<compile_context>
chip_gen: v5e
topology: v5e:2x2
jax: 0.10.0
libtpu: 0.0.40
codegen_flags: <defaults>
</compile_context>

<pallas_src>
import functools
import math

import numpy as np

import jax
import jax.numpy as jnp
from jax import lax
from jax.experimental import pallas as pl
from jax.experimental.pallas import tpu as pltpu


def _round_up(x, m):
    return ((x + m - 1) // m) * m


# ----------------------------------------------------------------------------
# Pallas flash-attention kernel (online softmax over KV tiles, heads folded)
# ----------------------------------------------------------------------------
def _flash_kernel(q_lens_ref, k_lens_ref,          # scalar prefetch (SMEM)
                  q_ref, k_ref, v_ref,             # VMEM input tiles
                  o_ref,                           # VMEM output tile
                  m_sc, l_sc, acc_sc,              # VMEM scratch
                  *, upper, window_left, block_q, block_k, n_heads, kv_resident):
    b = pl.program_id(0)
    qi = pl.program_id(1)
    kv = pl.program_id(2)

    @pl.when(kv == 0)
    def _():
        m_sc[...] = jnp.full_like(m_sc, -jnp.inf)
        l_sc[...] = jnp.zeros_like(l_sc)
        acc_sc[...] = jnp.zeros_like(acc_sc)

    q_len = q_lens_ref[b]
    k_len = k_lens_ref[b]
    q_start = qi * block_q
    k_start = kv * block_k
    shift = k_len - q_len            # bottom-right aligned causal/window shift
    rows = n_heads * block_q

    # Does this KV tile contribute anything at all?
    run = k_start < k_len
    # Is this KV tile fully interior (no masking needed for any key)?
    interior = k_start + block_k <= k_len
    if upper:                        # causal and/or window right bound == 0
        run = jnp.logical_and(run, k_start <= q_start + (block_q - 1) + shift)
        interior = jnp.logical_and(interior,
                                   k_start + (block_k - 1) <= q_start + shift)
    if window_left is not None:      # sliding-window lower bound
        run = jnp.logical_and(
            run, k_start + block_k > q_start + shift - window_left)
        interior = jnp.logical_and(
            interior, k_start >= q_start + (block_q - 1) + shift - window_left)

    def load_kv():
        if kv_resident:
            ks = pl.multiple_of(k_start, block_k)
            return k_ref[pl.ds(ks, block_k), :], v_ref[pl.ds(ks, block_k), :]
        return k_ref[...], v_ref[...]

    def qk(k_tile):
        # Heads folded into rows: one tall bf16 x bf16 -> f32 matmul on the MXU,
        # contracting on D (no materialized K transpose). Q is pre-scaled.
        q = q_ref[...].reshape(rows, q_ref.shape[-1])
        return lax.dot_general(q, k_tile, (((1,), (1,)), ((), ())),
                               preferred_element_type=jnp.float32)

    def online_update(s, v_tile, p_mask=None):
        m_prev = m_sc[...]
        m_new = jnp.maximum(m_prev, s.max(-1, keepdims=True))
        alpha = jnp.exp(m_prev - m_new)
        # TODO(synk): bf16 exp is worth trying on v6e/v7x (EUP bf16); kept f32
        # so the same kernel is safe on v5e.
        p = jnp.exp(s - m_new)
        if p_mask is not None:
            # Zero masked keys so rows with no valid key in this tile add 0.
            p = jnp.where(p_mask, p, 0.0)
        l_sc[...] = alpha * l_sc[...] + p.sum(-1, keepdims=True)
        acc_sc[...] = alpha * acc_sc[...] + jnp.dot(
            p.astype(v_tile.dtype), v_tile, preferred_element_type=jnp.float32)
        m_sc[...] = m_new

    # Fast path: fully-interior tile, no mask math at all.
    @pl.when(interior)
    def _():
        k, v = load_kv()
        online_update(qk(k), v)

    # Boundary tiles: padding / causal diagonal / window edges.
    @pl.when(jnp.logical_and(run, jnp.logical_not(interior)))
    def _():
        k, v = load_kv()
        s = qk(k)
        # Row r corresponds to head r // block_q, query offset r % block_q —
        # built via a (H, block_q, 1) iota (no integer modulo).
        q_pos = q_start + lax.broadcasted_iota(
            jnp.int32, (n_heads, block_q, 1), 1).reshape(rows, 1)
        k_pos = k_start + lax.broadcasted_iota(jnp.int32, (1, block_k), 1)
        mask = k_pos < k_len                                 # KV padding
        if upper:
            mask = jnp.logical_and(mask, k_pos <= q_pos + shift)
        if window_left is not None:
            mask = jnp.logical_and(mask, k_pos >= q_pos + shift - window_left)
        s = jnp.where(mask, s, -1e30)
        online_update(s, v, p_mask=mask)

    @pl.when(kv == pl.num_programs(2) - 1)
    def _():
        l = l_sc[...]
        inv = pl.reciprocal(jnp.where(l == 0.0, 1.0, l), approx=True)
        out = (acc_sc[...] * inv).astype(o_ref.dtype)        # (rows, Dv)
        o_ref[...] = out.reshape(o_ref.shape)                # (H, block_q, Dv)


def _make_kv_index_map(block_q, block_k, upper, window_left):
    """kv-block index map that clamps to the useful tile range.

    Skipped grid steps (padding, above the causal diagonal, below the sliding
    window) map to an already-fetched block index, so no DMA is issued for
    them. Whenever the kernel actually computes (run == True), the clamped
    index equals the raw kv index, so the correct tile is in VMEM.
    """
    def index_map(b, qi, kv, q_lens, k_lens):
        k_len = k_lens[b]
        last = (jnp.maximum(k_len, 1) - 1) // block_k          # padding bound
        first = 0
        if upper:
            shift = k_len - q_lens[b]
            hi = jnp.clip(qi * block_q + block_q + shift, 1, jnp.maximum(k_len, 1))
            last = jnp.minimum(last, (hi - 1) // block_k)      # causal/window top
        if window_left is not None:
            lo = jnp.maximum(qi * block_q + (k_len - q_lens[b]) - window_left, 0)
            first = jnp.minimum(lo // block_k, last)           # window bottom
        return b, jnp.clip(kv, first, last), 0
    return index_map


def _padded_flash_attention(q_pad, k_pad, v_pad, q_lens, k_lens, *,
                            upper, window_left, block_q, block_k, kv_resident):
    B, H, Sq, Dqk = q_pad.shape
    Sk = k_pad.shape[1]
    Dv = v_pad.shape[2]
    num_q_tiles = Sq // block_q
    num_kv_tiles = Sk // block_k
    rows = H * block_q

    kernel = functools.partial(
        _flash_kernel, upper=upper, window_left=window_left,
        block_q=block_q, block_k=block_k, n_heads=H, kv_resident=kv_resident)

    if kv_resident:
        # K/V fully VMEM-resident per batch: block index constant across qi/kv
        # => one DMA per batch element, sliced with pl.ds inside the kernel.
        k_spec = pl.BlockSpec((None, Sk, Dqk), lambda b, qi, kv, ql, kl: (b, 0, 0))
        v_spec = pl.BlockSpec((None, Sk, Dv), lambda b, qi, kv, ql, kl: (b, 0, 0))
    else:
        # Streamed K/V tiles with a clamped index map (no DMA for skipped tiles).
        kv_map = _make_kv_index_map(block_q, block_k, upper, window_left)
        k_spec = pl.BlockSpec((None, block_k, Dqk), kv_map)
        v_spec = pl.BlockSpec((None, block_k, Dv), kv_map)

    grid_spec = pltpu.PrefetchScalarGridSpec(
        num_scalar_prefetch=2,
        grid=(B, num_q_tiles, num_kv_tiles),
        in_specs=[
            # Q tile: all heads for one query block, resident across kv.
            pl.BlockSpec((None, H, block_q, Dqk),
                         lambda b, qi, kv, ql, kl: (b, 0, qi, 0)),
            k_spec,
            v_spec,
        ],
        out_specs=pl.BlockSpec((None, H, block_q, Dv),
                               lambda b, qi, kv, ql, kl: (b, 0, qi, 0)),
        scratch_shapes=[
            pltpu.VMEM((rows, 1), jnp.float32),    # running max
            pltpu.VMEM((rows, 1), jnp.float32),    # running denom
            pltpu.VMEM((rows, Dv), jnp.float32),   # output accumulator
        ],
    )

    # Worst-case tile footprint (double-buffered Q/K/V/out + f32 scratch) stays
    # well under 32 MiB even with resident K/V, which is safe on v5e/v6e
    # (128 MiB physical) and v7x (64 MiB physical).
    return pl.pallas_call(
        kernel,
        out_shape=jax.ShapeDtypeStruct((B, H, Sq, Dv), q_pad.dtype),
        grid_spec=grid_spec,
        compiler_params=pltpu.CompilerParams(
            dimension_semantics=("parallel", "parallel", "arbitrary"),
            vmem_limit_bytes=32 * 1024 * 1024),
    )(q_lens, k_lens, q_pad, k_pad, v_pad)


# ----------------------------------------------------------------------------
# Wrapper: varlen packing glue (plain JAX) around the Pallas kernel
# ----------------------------------------------------------------------------
def _unpack(x_packed, starts, max_len):
    """[total, ...] packed -> [B, max_len, ...] padded (garbage past seq len)."""
    total = x_packed.shape[0]
    pos = jnp.arange(max_len, dtype=jnp.int32)
    idx = jnp.clip(starts[:, None] + pos[None, :], 0, total - 1)
    return x_packed[idx]


def core_attention_forward(query_states, key_states, value_states,
                           q_sequence_mask, kv_sequence_mask,
                           sliding_window_size=None, *,
                           block_q=None, block_k=None,
                           kv_resident_bytes=4 * 1024 * 1024):
    total_q, n_heads, d_qk = query_states.shape
    total_kv, n_kv_heads, d_v = value_states.shape
    assert n_kv_heads == 1, "CoreAttention is multi-query: KV must have 1 head"
    assert key_states.shape == (total_kv, 1, d_qk)
    B, max_q = q_sequence_mask.shape
    _, max_k = kv_sequence_mask.shape

    q_lens = q_sequence_mask.astype(jnp.int32).sum(-1)
    k_lens = kv_sequence_mask.astype(jnp.int32).sum(-1)
    cu_q = jnp.concatenate(
        [jnp.zeros((1,), jnp.int32), jnp.cumsum(q_lens)]).astype(jnp.int32)
    cu_k = jnp.concatenate(
        [jnp.zeros((1,), jnp.int32), jnp.cumsum(k_lens)]).astype(jnp.int32)

    # Tile sizing (overridable for sweeps): target ~512 folded query rows per
    # MXU pass and KV tiles up to 512 so per-grid-step overhead (~0.35 us) is
    # small relative to per-step compute and K/V DMAs are large.
    if block_q is None:
        per_head = max(16, min(256, (512 // max(1, n_heads)) // 16 * 16))
        block_q = min(_round_up(max_q, 16), per_head)
    Sq = _round_up(max_q, block_q)
    if block_k is None:
        block_k = min(512, _round_up(max_k, 128))
    Sk = _round_up(max_k, block_k)

    scale = 1.0 / math.sqrt(d_qk)                            # softmax_scale=None
    causal = max_q != 1                                      # same rule as module
    # flash-attn applies window_size=(w-1, 0) regardless of the causal flag, so
    # the right bound (== causal upper bound) is active whenever a window is set.
    window_left = (sliding_window_size - 1) if sliding_window_size is not None else None
    upper = causal or (window_left is not None)
    # TODO(synk): attention dropout (attn_pdrop) only applies in training; eval path uses p=0.

    # K/V residency decision (raw per-batch slab; double-buffered by Pallas).
    kv_resident = (Sk * (d_qk + d_v) * query_states.dtype.itemsize) <= kv_resident_bytes

    # Unpack to padded layout. Q is pre-scaled here so the kernel never rescales
    # the resident Q tile per KV step.
    q_pad = _unpack(query_states, cu_q[:-1], Sq)              # [B, Sq, H, Dqk]
    q_pad = jnp.transpose(q_pad, (0, 2, 1, 3)) * scale        # [B, H, Sq, Dqk]
    k_pad = _unpack(key_states, cu_k[:-1], Sk)[:, :, 0, :]    # [B, Sk, Dqk]
    v_pad = _unpack(value_states, cu_k[:-1], Sk)[:, :, 0, :]  # [B, Sk, Dv]
    # TODO(synk): feed packed varlen Q/K/V directly (cu_seqlens scalar prefetch +
    # pl.Element/BoundedSlice rows) to remove these HBM gathers entirely.

    out_pad = _padded_flash_attention(
        q_pad, k_pad, v_pad, q_lens, k_lens,
        upper=upper, window_left=window_left,
        block_q=block_q, block_k=block_k,
        kv_resident=kv_resident)                              # [B, H, Sq, Dv]

    # Re-pack padded output back into varlen layout [total_q, H, Dv].
    t = jnp.arange(total_q, dtype=jnp.int32)
    b_ids = (jnp.searchsorted(cu_q, t, side="right") - 1).astype(jnp.int32)
    pos = t - cu_q[b_ids]
    return out_pad[b_ids, :, pos]


# ----------------------------------------------------------------------------
# Pure-numpy reference (flash-attn varlen semantics) for correctness checks
# ----------------------------------------------------------------------------
def reference_attention(q, k, v, q_mask, kv_mask, sliding_window_size=None):
    q = np.asarray(q, np.float32)
    k = np.asarray(k, np.float32)
    v = np.asarray(v, np.float32)
    q_lens = np.asarray(q_mask).sum(-1)
    k_lens = np.asarray(kv_mask).sum(-1)
    cu_q = np.concatenate([[0], np.cumsum(q_lens)])
    cu_k = np.concatenate([[0], np.cumsum(k_lens)])
    scale = 1.0 / math.sqrt(q.shape[-1])
    causal = q_mask.shape[1] != 1
    wl = sliding_window_size - 1 if sliding_window_size is not None else None
    upper = causal or (wl is not None)
    outs = []
    for b in range(len(q_lens)):
        qb = q[cu_q[b]:cu_q[b + 1]]          # [lq, H, D]
        kb = k[cu_k[b]:cu_k[b + 1], 0]       # [lk, D]
        vb = v[cu_k[b]:cu_k[b + 1], 0]       # [lk, D]
        s = np.einsum("qhd,kd->hqk", qb, kb) * scale
        lq, lk = qb.shape[0], kb.shape[0]
        i = np.arange(lq)[:, None]
        j = np.arange(lk)[None, :]
        m = np.ones((lq, lk), bool)
        if upper:
            m &= j <= i + (lk - lq)
        if wl is not None:
            m &= j >= i + (lk - lq) - wl
        s = np.where(m[None], s, -np.inf)
        p = np.exp(s - s.max(-1, keepdims=True))
        p = p / p.sum(-1, keepdims=True)
        outs.append(np.einsum("hqk,kd->qhd", p, vb))
    return np.concatenate(outs, 0)


if __name__ == "__main__":
    # Shapes consistent with the module: hidden=256, heads=4 -> d_qk=d_v=64.
    batch, max_seq, n_heads, d_head = 2, 160, 4, 64
    lens = np.array([160, 130], dtype=np.int32)            # ragged varlen batch
    q_mask = jnp.asarray(np.arange(max_seq)[None, :] < lens[:, None])
    kv_mask = q_mask
    total = int(lens.sum())

    kq, kk, kv_, kd = jax.random.split(jax.random.PRNGKey(0), 4)
    q = jax.random.normal(kq, (total, n_heads, d_head), jnp.bfloat16)
    k = jax.random.normal(kk, (total, 1, d_head), jnp.bfloat16)
    v = jax.random.normal(kv_, (total, 1, d_head), jnp.bfloat16)

    # 1) Causal prefill, default tiling (KV fully VMEM-resident path).
    out = jax.block_until_ready(core_attention_forward(q, k, v, q_mask, kv_mask))
    assert out.shape == (total, n_heads, d_head)
    assert out.dtype == q.dtype
    ref = reference_attention(q, k, v, q_mask, kv_mask)
    np.testing.assert_allclose(np.asarray(out, np.float32), ref, atol=5e-2, rtol=5e-2)

    # 2) Causal prefill, forced streaming path (multi-tile, clamped kv index map).
    out_s = jax.block_until_ready(core_attention_forward(
        q, k, v, q_mask, kv_mask, block_k=128, kv_resident_bytes=0))
    np.testing.assert_allclose(np.asarray(out_s, np.float32), ref, atol=5e-2, rtol=5e-2)

    # 3) Causal prefill with sliding window (resident and streaming paths).
    ref_w = reference_attention(q, k, v, q_mask, kv_mask, sliding_window_size=64)
    out_w = jax.block_until_ready(core_attention_forward(
        q, k, v, q_mask, kv_mask, sliding_window_size=64, block_k=128))
    np.testing.assert_allclose(np.asarray(out_w, np.float32), ref_w, atol=5e-2, rtol=5e-2)
    out_ws = jax.block_until_ready(core_attention_forward(
        q, k, v, q_mask, kv_mask, sliding_window_size=64, block_k=128,
        kv_resident_bytes=0))
    np.testing.assert_allclose(np.asarray(out_ws, np.float32), ref_w, atol=5e-2, rtol=5e-2)

    # 4) Decode (max_seqlen_q == 1) with sliding window (window now applied).
    qd_mask = jnp.ones((batch, 1), dtype=bool)
    qd = jax.random.normal(kd, (batch, n_heads, d_head), jnp.bfloat16)
    out_d = jax.block_until_ready(core_attention_forward(
        qd, k, v, qd_mask, kv_mask, sliding_window_size=64, block_k=128))
    ref_d = reference_attention(qd, k, v, qd_mask, kv_mask, sliding_window_size=64)
    np.testing.assert_allclose(np.asarray(out_d, np.float32), ref_d, atol=5e-2, rtol=5e-2)

    print("KERNEL_OK")
</pallas_src>

<mosaic_0001>
module attributes {stable_mosaic.version = 11 : i64} {
  func.func @_flash_kernel(%arg0: i32, %arg1: i32, %arg2: i32, %arg3: memref<2xi32, #tpu.memory_space<smem>>, %arg4: memref<2xi32, #tpu.memory_space<smem>>, %arg5: memref<1x4x128x64xbf16, #tpu.memory_space<vmem>>, %arg6: memref<1x256x64xbf16, #tpu.memory_space<vmem>>, %arg7: memref<1x256x64xbf16, #tpu.memory_space<vmem>>, %arg8: memref<1x4x128x64xbf16, #tpu.memory_space<vmem>>, %arg9: memref<512x1xf32, #tpu.memory_space<vmem>>, %arg10: memref<512x1xf32, #tpu.memory_space<vmem>>, %arg11: memref<512x64xf32, #tpu.memory_space<vmem>>) attributes {dimension_semantics = [#tpu.dimension_semantics<parallel>, #tpu.dimension_semantics<parallel>, #tpu.dimension_semantics<arbitrary>], iteration_bounds = array<i64: 2, 2, 1>, scalar_prefetch = 2 : i64, scratch_operands = 3 : i64, tpu.core_type = #tpu.core_type<tc>, window_params = [{transform_indices = @transform_0, window_bounds = array<i64: 1, 4, 128, 64>}, {transform_indices = @transform_1, window_bounds = array<i64: 1, 256, 64>}, {transform_indices = @transform_2, window_bounds = array<i64: 1, 256, 64>}, {transform_indices = @transform_3, window_bounds = array<i64: 1, 4, 128, 64>}]} {
    %c0_i32 = arith.constant 0 : i32
    %0 = arith.cmpi eq, %arg2, %c0_i32 : i32
    %1 = arith.extui %0 : i1 to i32
    %c0_i32_0 = arith.constant 0 : i32
    %2 = arith.cmpi ne, %1, %c0_i32_0 : i32
    scf.if %2 {
      %cst = arith.constant 0xFF800000 : f32
      %30 = vector.broadcast %cst : f32 to vector<512x1xf32>
      %c0 = arith.constant 0 : index
      %c0_6 = arith.constant 0 : index
      %31 = vector.load %arg9[%c0, %c0_6] : memref<512x1xf32, #tpu.memory_space<vmem>>, vector<512x1xf32>
      tpu.vector_store %arg9[%c0, %c0_6], %30 {strides = array<i32>} : memref<512x1xf32, #tpu.memory_space<vmem>>, vector<512x1xf32>,
      %cst_7 = arith.constant 0.000000e+00 : f32
      %32 = vector.broadcast %cst_7 : f32 to vector<512x1xf32>
      %c0_8 = arith.constant 0 : index
      %c0_9 = arith.constant 0 : index
      %33 = vector.load %arg10[%c0_8, %c0_9] : memref<512x1xf32, #tpu.memory_space<vmem>>, vector<512x1xf32>
      tpu.vector_store %arg10[%c0_8, %c0_9], %32 {strides = array<i32>} : memref<512x1xf32, #tpu.memory_space<vmem>>, vector<512x1xf32>,
      %cst_10 = arith.constant 0.000000e+00 : f32
      %34 = vector.broadcast %cst_10 : f32 to vector<512x64xf32>
      %c0_11 = arith.constant 0 : index
      %c0_12 = arith.constant 0 : index
      %35 = vector.load %arg11[%c0_11, %c0_12] : memref<512x64xf32, #tpu.memory_space<vmem>>, vector<512x64xf32>
      tpu.vector_store %arg11[%c0_11, %c0_12], %34 {strides = array<i32>} : memref<512x64xf32, #tpu.memory_space<vmem>>, vector<512x64xf32>,
    } else {
    }
    %3 = arith.index_cast %arg0 : i32 to index
    %4 = memref.load %arg3[%3] : memref<2xi32, #tpu.memory_space<smem>>
    %5 = arith.index_cast %arg0 : i32 to index
    %6 = memref.load %arg4[%5] : memref<2xi32, #tpu.memory_space<smem>>
    %c128_i32 = arith.constant 128 : i32
    %7 = arith.muli %arg1, %c128_i32 : i32
    %c256_i32 = arith.constant 256 : i32
    %8 = arith.muli %arg2, %c256_i32 : i32
    %9 = arith.subi %6, %4 : i32
    %10 = arith.cmpi slt, %8, %6 : i32
    %c256_i32_1 = arith.constant 256 : i32
    %11 = arith.addi %8, %c256_i32_1 : i32
    %12 = arith.cmpi sle, %11, %6 : i32
    %c127_i32 = arith.constant 127 : i32
    %13 = arith.addi %7, %c127_i32 : i32
    %14 = arith.addi %13, %9 : i32
    %15 = arith.cmpi sle, %8, %14 : i32
    %16 = arith.andi %10, %15 : i1
    %c255_i32 = arith.constant 255 : i32
    %17 = arith.addi %8, %c255_i32 : i32
    %18 = arith.addi %7, %9 : i32
    %19 = arith.cmpi sle, %17, %18 : i32
    %20 = arith.andi %12, %19 : i1
    %21 = arith.extui %20 : i1 to i32
    %c0_i32_2 = arith.constant 0 : i32
    %22 = arith.cmpi ne, %21, %c0_i32_2 : i32
    scf.if %22 {
      %30 = tpu.assume_multiple %8, 256 : i32
      %c0 = arith.constant 0 : index
      %31 = arith.index_cast %30 : i32 to index
      %c0_6 = arith.constant 0 : index
      %32 = vector.load %arg6[%c0, %31, %c0_6] : memref<1x256x64xbf16, #tpu.memory_space<vmem>>, vector<1x256x64xbf16>
      %33 = vector.shape_cast %32 : vector<1x256x64xbf16> to vector<256x64xbf16>
      %c0_7 = arith.constant 0 : index
      %34 = arith.index_cast %30 : i32 to index
      %c0_8 = arith.constant 0 : index
      %35 = vector.load %arg7[%c0_7, %34, %c0_8] : memref<1x256x64xbf16, #tpu.memory_space<vmem>>, vector<1x256x64xbf16>
      %36 = vector.shape_cast %35 : vector<1x256x64xbf16> to vector<256x64xbf16>
      %c0_9 = arith.constant 0 : index
      %c0_10 = arith.constant 0 : index
      %c0_11 = arith.constant 0 : index
      %c0_12 = arith.constant 0 : index
      %37 = vector.load %arg5[%c0_9, %c0_10, %c0_11, %c0_12] : memref<1x4x128x64xbf16, #tpu.memory_space<vmem>>, vector<1x4x128x64xbf16>
      %38 = vector.shape_cast %37 : vector<1x4x128x64xbf16> to vector<4x128x64xbf16>
      %39 = vector.shape_cast %38 : vector<4x128x64xbf16> to vector<512x64xbf16>
      %cst = arith.constant dense<0.000000e+00> : vector<512x256xf32>
      %40 = tpu.matmul %39, %33, %cst {dimension_numbers = #tpu.dot_dimension_numbers<[1], [1], [0], [0], [0, 0, 1, 0], [], []>} : vector<512x64xbf16>, vector<256x64xbf16>, vector<512x256xf32> -> vector<512x256xf32>
      %c0_13 = arith.constant 0 : index
      %c0_14 = arith.constant 0 : index
      %41 = vector.load %arg9[%c0_13, %c0_14] : memref<512x1xf32, #tpu.memory_space<vmem>>, vector<512x1xf32>
      %cst_15 = arith.constant dense<0xFF800000> : vector<512xf32>
      %42 = vector.multi_reduction <maximumf>, %40, %cst_15 [1] : vector<512x256xf32> to vector<512xf32>
      %43 = vector.shape_cast %42 : vector<512xf32> to vector<512x1xf32>
      %44 = arith.maximumf %41, %43 : vector<512x1xf32>
      %45 = arith.subf %41, %44 : vector<512x1xf32>
      %46 = math.exp %45 : vector<512x1xf32>
      %47 = vector.broadcast %44 : vector<512x1xf32> to vector<512x256xf32>
      %48 = arith.subf %40, %47 : vector<512x256xf32>
      %49 = math.exp %48 : vector<512x256xf32>
      %c0_16 = arith.constant 0 : index
      %c0_17 = arith.constant 0 : index
      %50 = vector.load %arg10[%c0_16, %c0_17] : memref<512x1xf32, #tpu.memory_space<vmem>>, vector<512x1xf32>
      %51 = arith.mulf %46, %50 : vector<512x1xf32>
      %cst_18 = arith.constant dense<0.000000e+00> : vector<512xf32>
      %52 = vector.multi_reduction <add>, %49, %cst_18 [1] : vector<512x256xf32> to vector<512xf32>
      %53 = vector.shape_cast %52 : vector<512xf32> to vector<512x1xf32>
      %54 = arith.addf %51, %53 : vector<512x1xf32>
      %c0_19 = arith.constant 0 : index
      %c0_20 = arith.constant 0 : index
      %55 = vector.load %arg10[%c0_19, %c0_20] : memref<512x1xf32, #tpu.memory_space<vmem>>, vector<512x1xf32>
      tpu.vector_store %arg10[%c0_19, %c0_20], %54 {strides = array<i32>} : memref<512x1xf32, #tpu.memory_space<vmem>>, vector<512x1xf32>,
      %c0_21 = arith.constant 0 : index
      %c0_22 = arith.constant 0 : index
      %56 = vector.load %arg11[%c0_21, %c0_22] : memref<512x64xf32, #tpu.memory_space<vmem>>, vector<512x64xf32>
      %57 = vector.broadcast %46 : vector<512x1xf32> to vector<512x64xf32>
      %58 = arith.mulf %57, %56 : vector<512x64xf32>
      %59 = arith.truncf %49 : vector<512x256xf32> to vector<512x256xbf16>
      %cst_23 = arith.constant dense<0.000000e+00> : vector<512x64xf32>
      %60 = tpu.matmul %59, %36, %cst_23 {dimension_numbers = #tpu.dot_dimension_numbers<[1], [0], [0], [1], [0, 0, 1, 1], [], []>} : vector<512x256xbf16>, vector<256x64xbf16>, vector<512x64xf32> -> vector<512x64xf32>
      %61 = arith.addf %58, %60 : vector<512x64xf32>
      %c0_24 = arith.constant 0 : index
      %c0_25 = arith.constant 0 : index
      %62 = vector.load %arg11[%c0_24, %c0_25] : memref<512x64xf32, #tpu.memory_space<vmem>>, vector<512x64xf32>
      tpu.vector_store %arg11[%c0_24, %c0_25], %61 {strides = array<i32>} : memref<512x64xf32, #tpu.memory_space<vmem>>, vector<512x64xf32>,
      %c0_26 = arith.constant 0 : index
      %c0_27 = arith.constant 0 : index
      %63 = vector.load %arg9[%c0_26, %c0_27] : memref<512x1xf32, #tpu.memory_space<vmem>>, vector<512x1xf32>
      tpu.vector_store %arg9[%c0_26, %c0_27], %44 {strides = array<i32>} : memref<512x1xf32, #tpu.memory_space<vmem>>, vector<512x1xf32>,
    } else {
    }
    %true = arith.constant true
    %23 = arith.xori %20, %true : i1
    %24 = arith.andi %16, %23 : i1
    %25 = arith.extui %24 : i1 to i32
    %c0_i32_3 = arith.constant 0 : i32
    %26 = arith.cmpi ne, %25, %c0_i32_3 : i32
    scf.if %26 {
      %30 = tpu.assume_multiple %8, 256 : i32
      %c0 = arith.constant 0 : index
      %31 = arith.index_cast %30 : i32 to index
      %c0_6 = arith.constant 0 : index
      %32 = vector.load %arg6[%c0, %31, %c0_6] : memref<1x256x64xbf16, #tpu.memory_space<vmem>>, vector<1x256x64xbf16>
      %33 = vector.shape_cast %32 : vector<1x256x64xbf16> to vector<256x64xbf16>
      %c0_7 = arith.constant 0 : index
      %34 = arith.index_cast %30 : i32 to index
      %c0_8 = arith.constant 0 : index
      %35 = vector.load %arg7[%c0_7, %34, %c0_8] : memref<1x256x64xbf16, #tpu.memory_space<vmem>>, vector<1x256x64xbf16>
      %36 = vector.shape_cast %35 : vector<1x256x64xbf16> to vector<256x64xbf16>
      %c0_9 = arith.constant 0 : index
      %c0_10 = arith.constant 0 : index
      %c0_11 = arith.constant 0 : index
      %c0_12 = arith.constant 0 : index
      %37 = vector.load %arg5[%c0_9, %c0_10, %c0_11, %c0_12] : memref<1x4x128x64xbf16, #tpu.memory_space<vmem>>, vector<1x4x128x64xbf16>
      %38 = vector.shape_cast %37 : vector<1x4x128x64xbf16> to vector<4x128x64xbf16>
      %39 = vector.shape_cast %38 : vector<4x128x64xbf16> to vector<512x64xbf16>
      %cst = arith.constant dense<0.000000e+00> : vector<512x256xf32>
      %40 = tpu.matmul %39, %33, %cst {dimension_numbers = #tpu.dot_dimension_numbers<[1], [1], [0], [0], [0, 0, 1, 0], [], []>} : vector<512x64xbf16>, vector<256x64xbf16>, vector<512x256xf32> -> vector<512x256xf32>
      %41 = tpu.iota {dimensions = array<i32: 1>} : vector<4x128x1xi32>
      %42 = vector.shape_cast %41 : vector<4x128x1xi32> to vector<512x1xi32>
      %43 = vector.broadcast %7 : i32 to vector<512x1xi32>
      %44 = arith.addi %43, %42 : vector<512x1xi32>
      %45 = tpu.iota {dimensions = array<i32: 1>} : vector<1x256xi32>
      %46 = vector.broadcast %8 : i32 to vector<1x256xi32>
      %47 = arith.addi %46, %45 : vector<1x256xi32>
      %48 = vector.broadcast %6 : i32 to vector<1x256xi32>
      %49 = arith.cmpi slt, %47, %48 : vector<1x256xi32>
      %50 = vector.broadcast %9 : i32 to vector<512x1xi32>
      %51 = arith.addi %44, %50 : vector<512x1xi32>
      %52 = vector.broadcast %47 : vector<1x256xi32> to vector<512x256xi32>
      %53 = vector.broadcast %51 : vector<512x1xi32> to vector<512x256xi32>
      %54 = arith.cmpi sle, %52, %53 : vector<512x256xi32>
      %55 = vector.broadcast %49 : vector<1x256xi1> to vector<512x256xi1>
      %56 = arith.andi %55, %54 : vector<512x256xi1>
      %cst_13 = arith.constant -1.000000e+30 : f32
      %57 = vector.broadcast %cst_13 : f32 to vector<512x256xf32>
      %58 = arith.select %56, %40, %57 : vector<512x256xi1>, vector<512x256xf32>
      %c0_14 = arith.constant 0 : index
      %c0_15 = arith.constant 0 : index
      %59 = vector.load %arg9[%c0_14, %c0_15] : memref<512x1xf32, #tpu.memory_space<vmem>>, vector<512x1xf32>
      %cst_16 = arith.constant dense<0xFF800000> : vector<512xf32>
      %60 = vector.multi_reduction <maximumf>, %58, %cst_16 [1] : vector<512x256xf32> to vector<512xf32>
      %61 = vector.shape_cast %60 : vector<512xf32> to vector<512x1xf32>
      %62 = arith.maximumf %59, %61 : vector<512x1xf32>
      %63 = arith.subf %59, %62 : vector<512x1xf32>
      %64 = math.exp %63 : vector<512x1xf32>
      %65 = vector.broadcast %62 : vector<512x1xf32> to vector<512x256xf32>
      %66 = arith.subf %58, %65 : vector<512x256xf32>
      %67 = math.exp %66 : vector<512x256xf32>
      %cst_17 = arith.constant 0.000000e+00 : f32
      %68 = vector.broadcast %cst_17 : f32 to vector<512x256xf32>
      %69 = arith.select %56, %67, %68 : vector<512x256xi1>, vector<512x256xf32>
      %c0_18 = arith.constant 0 : index
      %c0_19 = arith.constant 0 : index
      %70 = vector.load %arg10[%c0_18, %c0_19] : memref<512x1xf32, #tpu.memory_space<vmem>>, vector<512x1xf32>
      %71 = arith.mulf %64, %70 : vector<512x1xf32>
      %cst_20 = arith.constant dense<0.000000e+00> : vector<512xf32>
      %72 = vector.multi_reduction <add>, %69, %cst_20 [1] : vector<512x256xf32> to vector<512xf32>
      %73 = vector.shape_cast %72 : vector<512xf32> to vector<512x1xf32>
      %74 = arith.addf %71, %73 : vector<512x1xf32>
      %c0_21 = arith.constant 0 : index
      %c0_22 = arith.constant 0 : index
      %75 = vector.load %arg10[%c0_21, %c0_22] : memref<512x1xf32, #tpu.memory_space<vmem>>, vector<512x1xf32>
      tpu.vector_store %arg10[%c0_21, %c0_22], %74 {strides = array<i32>} : memref<512x1xf32, #tpu.memory_space<vmem>>, vector<512x1xf32>,
      %c0_23 = arith.constant 0 : index
      %c0_24 = arith.constant 0 : index
      %76 = vector.load %arg11[%c0_23, %c0_24] : memref<512x64xf32, #tpu.memory_space<vmem>>, vector<512x64xf32>
      %77 = vector.broadcast %64 : vector<512x1xf32> to vector<512x64xf32>
      %78 = arith.mulf %77, %76 : vector<512x64xf32>
      %79 = arith.truncf %69 : vector<512x256xf32> to vector<512x256xbf16>
      %cst_25 = arith.constant dense<0.000000e+00> : vector<512x64xf32>
      %80 = tpu.matmul %79, %36, %cst_25 {dimension_numbers = #tpu.dot_dimension_numbers<[1], [0], [0], [1], [0, 0, 1, 1], [], []>} : vector<512x256xbf16>, vector<256x64xbf16>, vector<512x64xf32> -> vector<512x64xf32>
      %81 = arith.addf %78, %80 : vector<512x64xf32>
      %c0_26 = arith.constant 0 : index
      %c0_27 = arith.constant 0 : index
      %82 = vector.load %arg11[%c0_26, %c0_27] : memref<512x64xf32, #tpu.memory_space<vmem>>, vector<512x64xf32>
      tpu.vector_store %arg11[%c0_26, %c0_27], %81 {strides = array<i32>} : memref<512x64xf32, #tpu.memory_space<vmem>>, vector<512x64xf32>,
      %c0_28 = arith.constant 0 : index
      %c0_29 = arith.constant 0 : index
      %83 = vector.load %arg9[%c0_28, %c0_29] : memref<512x1xf32, #tpu.memory_space<vmem>>, vector<512x1xf32>
      tpu.vector_store %arg9[%c0_28, %c0_29], %62 {strides = array<i32>} : memref<512x1xf32, #tpu.memory_space<vmem>>, vector<512x1xf32>,
    } else {
    }
    %c0_i32_4 = arith.constant 0 : i32
    %27 = arith.cmpi eq, %arg2, %c0_i32_4 : i32
    %28 = arith.extui %27 : i1 to i32
    %c0_i32_5 = arith.constant 0 : i32
    %29 = arith.cmpi ne, %28, %c0_i32_5 : i32
    scf.if %29 {
      %c0 = arith.constant 0 : index
      %c0_6 = arith.constant 0 : index
      %30 = vector.load %arg10[%c0, %c0_6] : memref<512x1xf32, #tpu.memory_space<vmem>>, vector<512x1xf32>
      %cst = arith.constant 0.000000e+00 : f32
      %31 = vector.broadcast %cst : f32 to vector<512x1xf32>
      %32 = arith.cmpf oeq, %30, %31 : vector<512x1xf32>
      %cst_7 = arith.constant 1.000000e+00 : f32
      %33 = vector.broadcast %cst_7 : f32 to vector<512x1xf32>
      %34 = arith.select %32, %33, %30 : vector<512x1xi1>, vector<512x1xf32>
      %35 = tpu.reciprocal %34 {approx = true} : vector<512x1xf32> -> vector<512x1xf32>
      %c0_8 = arith.constant 0 : index
      %c0_9 = arith.constant 0 : index
      %36 = vector.load %arg11[%c0_8, %c0_9] : memref<512x64xf32, #tpu.memory_space<vmem>>, vector<512x64xf32>
      %37 = vector.broadcast %35 : vector<512x1xf32> to vector<512x64xf32>
      %38 = arith.mulf %36, %37 : vector<512x64xf32>
      %39 = arith.truncf %38 : vector<512x64xf32> to vector<512x64xbf16>
      %40 = vector.shape_cast %39 : vector<512x64xbf16> to vector<4x128x64xbf16>
      %c0_10 = arith.constant 0 : index
      %c0_11 = arith.constant 0 : index
      %c0_12 = arith.constant 0 : index
      %c0_13 = arith.constant 0 : index
      %41 = vector.load %arg8[%c0_10, %c0_11, %c0_12, %c0_13] : memref<1x4x128x64xbf16, #tpu.memory_space<vmem>>, vector<1x4x128x64xbf16>
      %42 = vector.shape_cast %41 : vector<1x4x128x64xbf16> to vector<4x128x64xbf16>
      %43 = vector.shape_cast %40 : vector<4x128x64xbf16> to vector<1x4x128x64xbf16>
      tpu.vector_store %arg8[%c0_10, %c0_11, %c0_12, %c0_13], %43 {strides = array<i32>} : memref<1x4x128x64xbf16, #tpu.memory_space<vmem>>, vector<1x4x128x64xbf16>,
    } else {
    }
    return
  }
  func.func @transform_0(%arg0: i32, %arg1: i32, %arg2: i32, %arg3: memref<2xi32, #tpu.memory_space<smem>>, %arg4: memref<2xi32, #tpu.memory_space<smem>>) -> (i32, i32, i32, i32) {
    %c0_i32 = arith.constant 0 : i32
    %c0_i32_0 = arith.constant 0 : i32
    %c0_i32_1 = arith.constant 0 : i32
    return %arg0, %c0_i32, %arg1, %c0_i32_0 : i32, i32, i32, i32
  }
  func.func @transform_1(%arg0: i32, %arg1: i32, %arg2: i32, %arg3: memref<2xi32, #tpu.memory_space<smem>>, %arg4: memref<2xi32, #tpu.memory_space<smem>>) -> (i32, i32, i32) {
    %c0_i32 = arith.constant 0 : i32
    %c0_i32_0 = arith.constant 0 : i32
    %c0_i32_1 = arith.constant 0 : i32
    return %arg0, %c0_i32, %c0_i32_0 : i32, i32, i32
  }
  func.func @transform_2(%arg0: i32, %arg1: i32, %arg2: i32, %arg3: memref<2xi32, #tpu.memory_space<smem>>, %arg4: memref<2xi32, #tpu.memory_space<smem>>) -> (i32, i32, i32) {
    %c0_i32 = arith.constant 0 : i32
    %c0_i32_0 = arith.constant 0 : i32
    %c0_i32_1 = arith.constant 0 : i32
    return %arg0, %c0_i32, %c0_i32_0 : i32, i32, i32
  }
  func.func @transform_3(%arg0: i32, %arg1: i32, %arg2: i32, %arg3: memref<2xi32, #tpu.memory_space<smem>>, %arg4: memref<2xi32, #tpu.memory_space<smem>>) -> (i32, i32, i32, i32) {
    %c0_i32 = arith.constant 0 : i32
    %c0_i32_0 = arith.constant 0 : i32
    %c0_i32_1 = arith.constant 0 : i32
    return %arg0, %c0_i32, %arg1, %c0_i32_0 : i32, i32, i32, i32
  }
}

</mosaic_0001>

<llo_original>
// kernel: tpu_custom_call.1
$region0: #{tpu_custom_call.1}
  #allocation0 [shape = 'u32[]', space=smem, size = 0x4, offset = 0x4, fixed_abs, tag = 'smem constant byte address 0x4 - core index']
  #allocation1 [shape = 'u32[72,128]{1,0:T(1,128)}', space=vmem, size = 0x9000, scoped, tag = 'internal scratch']
  #allocation2 [shape = 'f32[512,1]{1,0:T(8,128)}', space=vmem, size = 0x40000, scoped, tag = 'scratch operand']
  #allocation3 [shape = 'f32[512,1]{1,0:T(8,128)}', space=vmem, size = 0x40000, scoped, tag = 'scratch operand']
  #allocation4 [shape = 'f32[512,64]{1,0:T(8,128)}', space=vmem, size = 0x40000, scoped, tag = 'scratch operand']
  #allocation5 [shape = 's32[1]{0}', space=sflag, size = 0x4, scoped, tag = 'scoped memory for tpu_custom_call.1']
  #allocation6 [shape = 'u8[512]{0}', space=smem, size = 0x200, scoped, tag = 'prefetched SMEM operand 0']
  #allocation7 [shape = 'u8[512]{0}', space=smem, size = 0x200, scoped, tag = 'prefetched SMEM operand 1']
  %s0 = inlined_call_operand.vmem [shape: s32[2], index: 0, kind: input, shape index: {}]
  %s1 = inlined_call_operand.vmem [shape: s32[2], index: 1, kind: input, shape index: {}]
  %s2 = inlined_call_operand.vmem [shape: bf16[2,4,256,64], index: 2, kind: input, shape index: {}]
  %s3 = inlined_call_operand.vmem [shape: bf16[2,256,64], index: 3, kind: input, shape index: {}]
  %s4 = inlined_call_operand.vmem [shape: bf16[2,256,64], index: 4, kind: input, shape index: {}]
  %s5 = inlined_call_operand.vmem [shape: bf16[2,4,256,64], index: 5, kind: output, shape index: {}]
  %s6 = sld [smem:[#allocation0]]
  $region139: #{tpu_custom_call.1} parent=0
    _
  %s8 = ssub.s32 1, %s6
  %s9 = scalar_select 0, %s8, %s6
  %s11 = sshll.u32 %s0, 4
  %s12 = int_to_ptr.vmem [resolvable:$true] %s11
  %14 = dma.vmem_to_smem %s12, 16, [#allocation6], [#allocation5]
  %s16 = sshll.u32 %s1, 4
  %s17 = int_to_ptr.vmem [resolvable:$true] %s16
  %19 = dma.vmem_to_smem %s17, 16, [#allocation7], [#allocation5]
  %21 = dma.done [#allocation5], 32
  %22 = sfence
  $region1: #{tpu_custom_call.1} parent=0
    #allocation8 [shape = 'u8[262144]{0}', space=vmem, size = 0x40000, scoped, tag = 'input window, operand 2']
    #allocation9 [shape = 'u8[262144]{0}', space=vmem, size = 0x40000, scoped, tag = 'output window, operand 0']
    loop: start=0, step=1, limit=6
    $region2: #{tpu_custom_call.1} parent=1 // loop_pre_header
      _
    $region3: #{tpu_custom_call.1} parent=1 // loop_header
      %s24 = sphi 0, %s28
      %p25 = scmp.ge.s32.totalorder %s24, 6
      %s31 = sphi 0, %s50
      %s32 = sphi 0, %s46
      %s33 = sphi 0, %s42
      %s34 = sphi 0, %s31
      %s35 = sphi 0, %s32
      %s36 = sphi 0, %s33
      %s37 = sphi 0, %s34
      %s38 = sphi 0, %s35
      %s39 = sphi 0, %s36
      %s55 = sphi 0, %s57
      %s58 = sphi 0, %s55
      %s59 = sphi 0, %s58
      %s75 = sphi 0, %s59
      %s81 = sphi 0, %s83
      %s84 = sphi 0, %s81
      %s85 = sphi 0, %s84
      %s101 = sphi 0, %s85
      %s107 = sphi 0, %s109
      %s110 = sphi 0, %s107
      %s111 = sphi 0, %s110
      %s127 = sphi 0, %s111
      %s135 = sphi 0, %s137
      %s138 = sphi 0, %s135
      %s139 = sphi 0, %s138
      %s155 = sphi 0, %s139
    $region4: #{tpu_custom_call.1} parent=1 // loop_header_branch
      %27 = sbr.rel (%p25) target = $region8
    $region5: #{tpu_custom_call.1} parent=1 // loop_body
      %s29 = ssub.s32 %s24, 1
      %s30 = ssub.s32 %s24, 2
      %s40 = sadd.s32 1, %s33
      %p41 = scmp.ge.s32.totalorder %s40, 1
      %s42 = scalar_select %p41, 0, %s40
      %s43 = sadd.s32 1, %s32
      %s44 = scalar_select %p41, %s43, %s32
      %p45 = scmp.ge.s32.totalorder %s44, 2
      %s46 = scalar_select %p45, 0, %s44
      %s47 = sadd.s32 1, %s31
      %s48 = scalar_select %p45, %s47, %s31
      %p49 = scmp.ge.s32.totalorder %s48, 2
      %s50 = scalar_select %p49, 0, %s48
      %s51 = ssub.s32 %s31, %s50
      %s52 = ssub.s32 %s32, %s46
      %s53 = sor.u32 %s51, %s52
      %p54 = scmp.eq.s32.totalorder %s53, 0
      %s56 = sadd.s32 %s55, 1
      %s57 = scalar_select %p54, %s55, %s56
      %p60 = pneg %p54
      %p61 = scmp.eq.s32.totalorder %s24, 3
      %p62 = por %p60, %p61
      %p63 = scmp.ne.s32.totalorder %s55, %s58
      %p64 = scmp.eq.s32.totalorder %s24, 0
      %p65 = por %p63, %p64
      %p66 = scmp.ne.s32.totalorder %s55, %s58
      %p67 = scmp.eq.s32.totalorder %s29, 3
      %p68 = por %p66, %p67
      %p69 = scmp.ne.s32.totalorder %s58, %s59
      %p70 = scmp.eq.s32.totalorder %s29, 0
      %p71 = por %p69, %p70
      %p72 = scmp.ne.s32.totalorder %s58, %s59
      %p73 = scmp.eq.s32.totalorder %s30, 3
      %p74 = por %p72, %p73
      %p76 = scmp.ne.s32.totalorder %s59, %s75
      %p77 = scmp.eq.s32.totalorder %s30, 0
      %p78 = por %p76, %p77
      %s79 = ssub.s32 %s31, %s50
      %p80 = scmp.eq.s32.totalorder %s79, 0
      %s82 = sadd.s32 %s81, 1
      %s83 = scalar_select %p80, %s81, %s82
      %p86 = pneg %p80
      %p87 = scmp.eq.s32.totalorder %s24, 3
      %p88 = por %p86, %p87
      %p89 = scmp.ne.s32.totalorder %s81, %s84
      %p90 = scmp.eq.s32.totalorder %s24, 0
      %p91 = por %p89, %p90
      %p92 = scmp.ne.s32.totalorder %s81, %s84
      %p93 = scmp.eq.s32.totalorder %s29, 3
      %p94 = por %p92, %p93
      %p95 = scmp.ne.s32.totalorder %s84, %s85
      %p96 = scmp.eq.s32.totalorder %s29, 0
      %p97 = por %p95, %p96
      %p98 = scmp.ne.s32.totalorder %s84, %s85
      %p99 = scmp.eq.s32.totalorder %s30, 3
      %p100 = por %p98, %p99
      %p102 = scmp.ne.s32.totalorder %s85, %s101
      %p103 = scmp.eq.s32.totalorder %s30, 0
      %p104 = por %p102, %p103
      %s105 = ssub.s32 %s31, %s50
      %p106 = scmp.eq.s32.totalorder %s105, 0
      %s108 = sadd.s32 %s107, 1
      %s109 = scalar_select %p106, %s107, %s108
      %p112 = pneg %p106
      %p113 = scmp.eq.s32.totalorder %s24, 3
      %p114 = por %p112, %p113
      %p115 = scmp.ne.s32.totalorder %s107, %s110
      %p116 = scmp.eq.s32.totalorder %s24, 0
      %p117 = por %p115, %p116
      %p118 = scmp.ne.s32.totalorder %s107, %s110
      %p119 = scmp.eq.s32.totalorder %s29, 3
      %p120 = por %p118, %p119
      %p121 = scmp.ne.s32.totalorder %s110, %s111
      %p122 = scmp.eq.s32.totalorder %s29, 0
      %p123 = por %p121, %p122
      %p124 = scmp.ne.s32.totalorder %s110, %s111
      %p125 = scmp.eq.s32.totalorder %s30, 3
      %p126 = por %p124, %p125
      %p128 = scmp.ne.s32.totalorder %s111, %s127
      %p129 = scmp.eq.s32.totalorder %s30, 0
      %p130 = por %p128, %p129
      %s131 = ssub.s32 %s31, %s50
      %s132 = ssub.s32 %s32, %s46
      %s133 = sor.u32 %s131, %s132
      %p134 = scmp.eq.s32.totalorder %s133, 0
      %s136 = sadd.s32 %s135, 1
      %s137 = scalar_select %p134, %s135, %s136
      %p140 = pneg %p134
      %p141 = scmp.eq.s32.totalorder %s24, 3
      %p142 = por %p140, %p141
      %p143 = scmp.ne.s32.totalorder %s135, %s138
      %p144 = scmp.eq.s32.totalorder %s24, 0
      %p145 = por %p143, %p144
      %p146 = scmp.ne.s32.totalorder %s135, %s138
      %p147 = scmp.eq.s32.totalorder %s29, 3
      %p148 = por %p146, %p147
      %p149 = scmp.ne.s32.totalorder %s138, %s139
      %p150 = scmp.eq.s32.totalorder %s29, 0
      %p151 = por %p149, %p150
      %p152 = scmp.ne.s32.totalorder %s138, %s139
      %p153 = scmp.eq.s32.totalorder %s30, 3
      %p154 = por %p152, %p153
      %p156 = scmp.ne.s32.totalorder %s139, %s155
      %p157 = scmp.eq.s32.totalorder %s30, 0
      %p158 = por %p156, %p157
      %p159 = scmp.le.s32.totalorder 1, %s24
      %p160 = scmp.lt.s32.totalorder %s24, 5
      %p161 = pnand %p159, %p160
      %p162 = pneg %p161
      // Predicated region
      $region9: #{tpu_custom_call.1} parent=5 // pred_check
        _
      $region10: #{tpu_custom_call.1} parent=5 // pred_check_branch
        %164 = sbr.rel (%p161) target = $region12
      $region11: #{tpu_custom_call.1} parent=5 // pred_region
        %s165 = ssub.s32 %s24, 1
      $region12: #{tpu_custom_call.1} parent=5 // pred_fallthru
        _
      %p166 = scmp.lt.s32.totalorder %s24, 4
      // Predicated region
      $region13: #{tpu_custom_call.1} parent=5 // pred_check
        %p167 = pneg %p166
      $region14: #{tpu_custom_call.1} parent=5 // pred_check_branch
        %169 = sbr.rel (%p167) target = $region16
      $region15: #{tpu_custom_call.1} parent=5 // pred_region
        // Predicated region
        $region17: #{tpu_custom_call.1} parent=15 // pred_check
          %p170 = pneg %p65
        $region18: #{tpu_custom_call.1} parent=15 // pred_check_branch
          %172 = sbr.rel (%p170) target = $region20
        $region19: #{tpu_custom_call.1} parent=15 // pred_region
          %s173 = sand.u32 %s55, 1
          %s174 = sand.u32 %s55, 1
          %s175 = smul.addr %s174, 256
          %s176 = scalar_lea.vmem [#allocation8], %s175
          %s177 = smul.u32 16, %s32
          %s178 = smul.addr %s31, 128
          %s179 = sadd.s32 %s177, %s178
          %s180 = smul.addr %s179, 4
          %s181 = scalar_lea.vmem %s2, %s180
          // Predicated region
          $region21: #{tpu_custom_call.1} parent=19 // pred_check
            _
          $region22: #{tpu_custom_call.1} parent=19 // pred_check_branch
            %183 = sbr.rel (0) target = $region24
          $region23: #{tpu_custom_call.1} parent=19 // pred_region
            // Predicated region
            $region25: #{tpu_custom_call.1} parent=23 // pred_check
              _
            $region26: #{tpu_custom_call.1} parent=23 // pred_check_branch
              %185 = sbr.rel target = $region28
            $region27: #{tpu_custom_call.1} parent=23 // pred_region
              // Predicated region
              $region40: #{tpu_custom_call.1} parent=27 // pred_check
                _
              $region41: #{tpu_custom_call.1} parent=27 // pred_check_branch
                %327 = sbr.rel (0) target = $region43
              $region42: #{tpu_custom_call.1} parent=27 // pred_region
                loop: start=0, step=1, limit=1
                $region44: #{tpu_custom_call.1} parent=42 // loop_pre_header
                  _
                $region45: #{tpu_custom_call.1} parent=42 // loop_header
                  %s329 = sphi 0, %s333
                  %p330 = scmp.ge.s32.totalorder %s329, 1
                  %s334 = sphi %s181, %s181
                  %s335 = sphi %s176, %s176
                $region46: #{tpu_custom_call.1} parent=42 // loop_header_branch
                  %332 = sbr.rel (%p330) target = $region50
                $region47: #{tpu_custom_call.1} parent=42 // loop_body
                  _
                $region48: #{tpu_custom_call.1} parent=42 // loop_footer
                  %s333 = sadd.s32 1, %s329
                $region49: #{tpu_custom_call.1} parent=42 // loop_footer_branch
                  %328 = sbr.rel target = $region45
                $region50: #{tpu_custom_call.1} parent=42 // loop_exit
                  _
                %s337 = ssub.s32 16, 1
                loop: start=0, step=1, limit=1
                $region51: #{tpu_custom_call.1} parent=42 // loop_pre_header
                  _
                $region52: #{tpu_custom_call.1} parent=42 // loop_header
                  %s339 = sphi 0, %s343
                  %p340 = scmp.ge.s32.totalorder %s339, 1
                  %s344 = sphi %s181, %s181
                  %s345 = sphi %s176, %s176
                $region53: #{tpu_custom_call.1} parent=42 // loop_header_branch
                  %342 = sbr.rel (%p340) target = $region57
                $region54: #{tpu_custom_call.1} parent=42 // loop_body
                  %v346 = vld [vmem:[%s344] sm:%s337]
                  %347 = vst [vmem:[%s345] sm:%s337] %v346
                  %v348 = vld [vmem:[%s344 + $0x4] sm:%s337]
                  %349 = vst [vmem:[%s345 + $0x4] sm:%s337] %v348
                  %v350 = vld [vmem:[%s344 + $0x8] sm:%s337]
                  %351 = vst [vmem:[%s345 + $0x8] sm:%s337] %v350
                  %v352 = vld [vmem:[%s344 + $0xc] sm:%s337]
                  %353 = vst [vmem:[%s345 + $0xc] sm:%s337] %v352
                  %v354 = vld [vmem:[%s344 + $0x10] sm:%s337]
                  %355 = vst [vmem:[%s345 + $0x10] sm:%s337] %v354
                  %v356 = vld [vmem:[%s344 + $0x14] sm:%s337]
                  %357 = vst [vmem:[%s345 + $0x14] sm:%s337] %v356
                  %v358 = vld [vmem:[%s344 + $0x18] sm:%s337]
                  %359 = vst [vmem:[%s345 + $0x18] sm:%s337] %v358
                  %v360 = vld [vmem:[%s344 + $0x1c] sm:%s337]
                  %361 = vst [vmem:[%s345 + $0x1c] sm:%s337] %v360
                  %v362 = vld [vmem:[%s344 + $0x20] sm:%s337]
                  %363 = vst [vmem:[%s345 + $0x20] sm:%s337] %v362
                  %v364 = vld [vmem:[%s344 + $0x24] sm:%s337]
                  %365 = vst [vmem:[%s345 + $0x24] sm:%s337] %v364
                  %v366 = vld [vmem:[%s344 + $0x28] sm:%s337]
                  %367 = vst [vmem:[%s345 + $0x28] sm:%s337] %v366
                  %v368 = vld [vmem:[%s344 + $0x2c] sm:%s337]
                  %369 = vst [vmem:[%s345 + $0x2c] sm:%s337] %v368
                  %v370 = vld [vmem:[%s344 + $0x30] sm:%s337]
                  %371 = vst [vmem:[%s345 + $0x30] sm:%s337] %v370
                  %v372 = vld [vmem:[%s344 + $0x34] sm:%s337]
                  %373 = vst [vmem:[%s345 + $0x34] sm:%s337] %v372
                  %v374 = vld [vmem:[%s344 + $0x38] sm:%s337]
                  %375 = vst [vmem:[%s345 + $0x38] sm:%s337] %v374
                  %v376 = vld [vmem:[%s344 + $0x3c] sm:%s337]
                  %377 = vst [vmem:[%s345 + $0x3c] sm:%s337] %v376
                  %v378 = vld [vmem:[%s344 + $0x80] sm:%s337]
                  %379 = vst [vmem:[%s345 + $0x40] sm:%s337] %v378
                  %v380 = vld [vmem:[%s344 + $0x84] sm:%s337]
                  %381 = vst [vmem:[%s345 + $0x44] sm:%s337] %v380
                  %v382 = vld [vmem:[%s344 + $0x88] sm:%s337]
                  %383 = vst [vmem:[%s345 + $0x48] sm:%s337] %v382
                  %v384 = vld [vmem:[%s344 + $0x8c] sm:%s337]
                  %385 = vst [vmem:[%s345 + $0x4c] sm:%s337] %v384
                  %v386 = vld [vmem:[%s344 + $0x90] sm:%s337]
                  %387 = vst [vmem:[%s345 + $0x50] sm:%s337] %v386
                  %v388 = vld [vmem:[%s344 + $0x94] sm:%s337]
                  %389 = vst [vmem:[%s345 + $0x54] sm:%s337] %v388
                  %v390 = vld [vmem:[%s344 + $0x98] sm:%s337]
                  %391 = vst [vmem:[%s345 + $0x58] sm:%s337] %v390
                  %v392 = vld [vmem:[%s344 + $0x9c] sm:%s337]
                  %393 = vst [vmem:[%s345 + $0x5c] sm:%s337] %v392
                  %v394 = vld [vmem:[%s344 + $0xa0] sm:%s337]
                  %395 = vst [vmem:[%s345 + $0x60] sm:%s337] %v394
                  %v396 = vld [vmem:[%s344 + $0xa4] sm:%s337]
                  %397 = vst [vmem:[%s345 + $0x64] sm:%s337] %v396
                  %v398 = vld [vmem:[%s344 + $0xa8] sm:%s337]
                  %399 = vst [vmem:[%s345 + $0x68] sm:%s337] %v398
                  %v400 = vld [vmem:[%s344 + $0xac] sm:%s337]
                  %401 = vst [vmem:[%s345 + $0x6c] sm:%s337] %v400
                  %v402 = vld [vmem:[%s344 + $0xb0] sm:%s337]
                  %403 = vst [vmem:[%s345 + $0x70] sm:%s337] %v402
                  %v404 = vld [vmem:[%s344 + $0xb4] sm:%s337]
                  %405 = vst [vmem:[%s345 + $0x74] sm:%s337] %v404
                  %v406 = vld [vmem:[%s344 + $0xb8] sm:%s337]
                  %407 = vst [vmem:[%s345 + $0x78] sm:%s337] %v406
                  %v408 = vld [vmem:[%s344 + $0xbc] sm:%s337]
                  %409 = vst [vmem:[%s345 + $0x7c] sm:%s337] %v408
                  %v410 = vld [vmem:[%s344 + $0x100] sm:%s337]
                  %411 = vst [vmem:[%s345 + $0x80] sm:%s337] %v410
                  %v412 = vld [vmem:[%s344 + $0x104] sm:%s337]
                  %413 = vst [vmem:[%s345 + $0x84] sm:%s337] %v412
                  %v414 = vld [vmem:[%s344 + $0x108] sm:%s337]
                  %415 = vst [vmem:[%s345 + $0x88] sm:%s337] %v414
                  %v416 = vld [vmem:[%s344 + $0x10c] sm:%s337]
                  %417 = vst [vmem:[%s345 + $0x8c] sm:%s337] %v416
                  %v418 = vld [vmem:[%s344 + $0x110] sm:%s337]
                  %419 = vst [vmem:[%s345 + $0x90] sm:%s337] %v418
                  %v420 = vld [vmem:[%s344 + $0x114] sm:%s337]
                  %421 = vst [vmem:[%s345 + $0x94] sm:%s337] %v420
                  %v422 = vld [vmem:[%s344 + $0x118] sm:%s337]
                  %423 = vst [vmem:[%s345 + $0x98] sm:%s337] %v422
                  %v424 = vld [vmem:[%s344 + $0x11c] sm:%s337]
                  %425 = vst [vmem:[%s345 + $0x9c] sm:%s337] %v424
                  %v426 = vld [vmem:[%s344 + $0x120] sm:%s337]
                  %427 = vst [vmem:[%s345 + $0xa0] sm:%s337] %v426
                  %v428 = vld [vmem:[%s344 + $0x124] sm:%s337]
                  %429 = vst [vmem:[%s345 + $0xa4] sm:%s337] %v428
                  %v430 = vld [vmem:[%s344 + $0x128] sm:%s337]
                  %431 = vst [vmem:[%s345 + $0xa8] sm:%s337] %v430
                  %v432 = vld [vmem:[%s344 + $0x12c] sm:%s337]
                  %433 = vst [vmem:[%s345 + $0xac] sm:%s337] %v432
                  %v434 = vld [vmem:[%s344 + $0x130] sm:%s337]
                  %435 = vst [vmem:[%s345 + $0xb0] sm:%s337] %v434
                  %v436 = vld [vmem:[%s344 + $0x134] sm:%s337]
                  %437 = vst [vmem:[%s345 + $0xb4] sm:%s337] %v436
                  %v438 = vld [vmem:[%s344 + $0x138] sm:%s337]
                  %439 = vst [vmem:[%s345 + $0xb8] sm:%s337] %v438
                  %v440 = vld [vmem:[%s344 + $0x13c] sm:%s337]
                  %441 = vst [vmem:[%s345 + $0xbc] sm:%s337] %v440
                  %v442 = vld [vmem:[%s344 + $0x180] sm:%s337]
                  %443 = vst [vmem:[%s345 + $0xc0] sm:%s337] %v442
                  %v444 = vld [vmem:[%s344 + $0x184] sm:%s337]
                  %445 = vst [vmem:[%s345 + $0xc4] sm:%s337] %v444
                  %v446 = vld [vmem:[%s344 + $0x188] sm:%s337]
                  %447 = vst [vmem:[%s345 + $0xc8] sm:%s337] %v446
                  %v448 = vld [vmem:[%s344 + $0x18c] sm:%s337]
                  %449 = vst [vmem:[%s345 + $0xcc] sm:%s337] %v448
                  %v450 = vld [vmem:[%s344 + $0x190] sm:%s337]
                  %451 = vst [vmem:[%s345 + $0xd0] sm:%s337] %v450
                  %v452 = vld [vmem:[%s344 + $0x194] sm:%s337]
                  %453 = vst [vmem:[%s345 + $0xd4] sm:%s337] %v452
                  %v454 = vld [vmem:[%s344 + $0x198] sm:%s337]
                  %455 = vst [vmem:[%s345 + $0xd8] sm:%s337] %v454
                  %v456 = vld [vmem:[%s344 + $0x19c] sm:%s337]
                  %457 = vst [vmem:[%s345 + $0xdc] sm:%s337] %v456
                  %v458 = vld [vmem:[%s344 + $0x1a0] sm:%s337]
                  %459 = vst [vmem:[%s345 + $0xe0] sm:%s337] %v458
                  %v460 = vld [vmem:[%s344 + $0x1a4] sm:%s337]
                  %461 = vst [vmem:[%s345 + $0xe4] sm:%s337] %v460
                  %v462 = vld [vmem:[%s344 + $0x1a8] sm:%s337]
                  %463 = vst [vmem:[%s345 + $0xe8] sm:%s337] %v462
                  %v464 = vld [vmem:[%s344 + $0x1ac] sm:%s337]
                  %465 = vst [vmem:[%s345 + $0xec] sm:%s337] %v464
                  %v466 = vld [vmem:[%s344 + $0x1b0] sm:%s337]
                  %467 = vst [vmem:[%s345 + $0xf0] sm:%s337] %v466
                  %v468 = vld [vmem:[%s344 + $0x1b4] sm:%s337]
                  %469 = vst [vmem:[%s345 + $0xf4] sm:%s337] %v468
                  %v470 = vld [vmem:[%s344 + $0x1b8] sm:%s337]
                  %471 = vst [vmem:[%s345 + $0xf8] sm:%s337] %v470
                  %v472 = vld [vmem:[%s344 + $0x1bc] sm:%s337]
                  %473 = vst [vmem:[%s345 + $0xfc] sm:%s337] %v472
                $region55: #{tpu_custom_call.1} parent=42 // loop_footer
                  %s343 = sadd.s32 1, %s339
                $region56: #{tpu_custom_call.1} parent=42 // loop_footer_branch
                  %338 = sbr.rel target = $region52
                $region57: #{tpu_custom_call.1} parent=42 // loop_exit
                  _
              $region43: #{tpu_custom_call.1} parent=27 // pred_fallthru
                _
            $region28: #{tpu_custom_call.1} parent=23 // pred_fallthru
              _
            // Predicated region
            $region29: #{tpu_custom_call.1} parent=23 // pred_check
              _
            $region30: #{tpu_custom_call.1} parent=23 // pred_check_branch
              %187 = sbr.rel (0) target = $region32
            $region31: #{tpu_custom_call.1} parent=23 // pred_region
              %s189 = ssub.s32 16, 1
              loop: start=0, step=1, limit=1
              $region33: #{tpu_custom_call.1} parent=31 // loop_pre_header
                _
              $region34: #{tpu_custom_call.1} parent=31 // loop_header
                %s191 = sphi 0, %s195
                %p192 = scmp.ge.s32.totalorder %s191, 1
                %s196 = sphi %s181, %s181
                %s197 = sphi %s176, %s176
              $region35: #{tpu_custom_call.1} parent=31 // loop_header_branch
                %194 = sbr.rel (%p192) target = $region39
              $region36: #{tpu_custom_call.1} parent=31 // loop_body
                %v198 = vld [vmem:[%s196] sm:%s189]
                %199 = vst [vmem:[%s197] sm:%s189] %v198
                %v200 = vld [vmem:[%s196 + $0x4] sm:%s189]
                %201 = vst [vmem:[%s197 + $0x4] sm:%s189] %v200
                %v202 = vld [vmem:[%s196 + $0x8] sm:%s189]
                %203 = vst [vmem:[%s197 + $0x8] sm:%s189] %v202
                %v204 = vld [vmem:[%s196 + $0xc] sm:%s189]
                %205 = vst [vmem:[%s197 + $0xc] sm:%s189] %v204
                %v206 = vld [vmem:[%s196 + $0x10] sm:%s189]
                %207 = vst [vmem:[%s197 + $0x10] sm:%s189] %v206
                %v208 = vld [vmem:[%s196 + $0x14] sm:%s189]
                %209 = vst [vmem:[%s197 + $0x14] sm:%s189] %v208
                %v210 = vld [vmem:[%s196 + $0x18] sm:%s189]
                %211 = vst [vmem:[%s197 + $0x18] sm:%s189] %v210
                %v212 = vld [vmem:[%s196 + $0x1c] sm:%s189]
                %213 = vst [vmem:[%s197 + $0x1c] sm:%s189] %v212
                %v214 = vld [vmem:[%s196 + $0x20] sm:%s189]
                %215 = vst [vmem:[%s197 + $0x20] sm:%s189] %v214
                %v216 = vld [vmem:[%s196 + $0x24] sm:%s189]
                %217 = vst [vmem:[%s197 + $0x24] sm:%s189] %v216
                %v218 = vld [vmem:[%s196 + $0x28] sm:%s189]
                %219 = vst [vmem:[%s197 + $0x28] sm:%s189] %v218
                %v220 = vld [vmem:[%s196 + $0x2c] sm:%s189]
                %221 = vst [vmem:[%s197 + $0x2c] sm:%s189] %v220
                %v222 = vld [vmem:[%s196 + $0x30] sm:%s189]
                %223 = vst [vmem:[%s197 + $0x30] sm:%s189] %v222
                %v224 = vld [vmem:[%s196 + $0x34] sm:%s189]
                %225 = vst [vmem:[%s197 + $0x34] sm:%s189] %v224
                %v226 = vld [vmem:[%s196 + $0x38] sm:%s189]
                %227 = vst [vmem:[%s197 + $0x38] sm:%s189] %v226
                %v228 = vld [vmem:[%s196 + $0x3c] sm:%s189]
                %229 = vst [vmem:[%s197 + $0x3c] sm:%s189] %v228
                %v230 = vld [vmem:[%s196 + $0x80] sm:%s189]
                %231 = vst [vmem:[%s197 + $0x40] sm:%s189] %v230
                %v232 = vld [vmem:[%s196 + $0x84] sm:%s189]
                %233 = vst [vmem:[%s197 + $0x44] sm:%s189] %v232
                %v234 = vld [vmem:[%s196 + $0x88] sm:%s189]
                %235 = vst [vmem:[%s197 + $0x48] sm:%s189] %v234
                %v236 = vld [vmem:[%s196 + $0x8c] sm:%s189]
                %237 = vst [vmem:[%s197 + $0x4c] sm:%s189] %v236
                %v238 = vld [vmem:[%s196 + $0x90] sm:%s189]
                %239 = vst [vmem:[%s197 + $0x50] sm:%s189] %v238
                %v240 = vld [vmem:[%s196 + $0x94] sm:%s189]
                %241 = vst [vmem:[%s197 + $0x54] sm:%s189] %v240
                %v242 = vld [vmem:[%s196 + $0x98] sm:%s189]
                %243 = vst [vmem:[%s197 + $0x58] sm:%s189] %v242
                %v244 = vld [vmem:[%s196 + $0x9c] sm:%s189]
                %245 = vst [vmem:[%s197 + $0x5c] sm:%s189] %v244
                %v246 = vld [vmem:[%s196 + $0xa0] sm:%s189]
                %247 = vst [vmem:[%s197 + $0x60] sm:%s189] %v246
                %v248 = vld [vmem:[%s196 + $0xa4] sm:%s189]
                %249 = vst [vmem:[%s197 + $0x64] sm:%s189] %v248
                %v250 = vld [vmem:[%s196 + $0xa8] sm:%s189]
                %251 = vst [vmem:[%s197 + $0x68] sm:%s189] %v250
                %v252 = vld [vmem:[%s196 + $0xac] sm:%s189]
                %253 = vst [vmem:[%s197 + $0x6c] sm:%s189] %v252
                %v254 = vld [vmem:[%s196 + $0xb0] sm:%s189]
                %255 = vst [vmem:[%s197 + $0x70] sm:%s189] %v254
                %v256 = vld [vmem:[%s196 + $0xb4] sm:%s189]
                %257 = vst [vmem:[%s197 + $0x74] sm:%s189] %v256
                %v258 = vld [vmem:[%s196 + $0xb8] sm:%s189]
                %259 = vst [vmem:[%s197 + $0x78] sm:%s189] %v258
                %v260 = vld [vmem:[%s196 + $0xbc] sm:%s189]
                %261 = vst [vmem:[%s197 + $0x7c] sm:%s189] %v260
                %v262 = vld [vmem:[%s196 + $0x100] sm:%s189]
                %263 = vst [vmem:[%s197 + $0x80] sm:%s189] %v262
                %v264 = vld [vmem:[%s196 + $0x104] sm:%s189]
                %265 = vst [vmem:[%s197 + $0x84] sm:%s189] %v264
                %v266 = vld [vmem:[%s196 + $0x108] sm:%s189]
                %267 = vst [vmem:[%s197 + $0x88] sm:%s189] %v266
                %v268 = vld [vmem:[%s196 + $0x10c] sm:%s189]
                %269 = vst [vmem:[%s197 + $0x8c] sm:%s189] %v268
                %v270 = vld [vmem:[%s196 + $0x110] sm:%s189]
                %271 = vst [vmem:[%s197 + $0x90] sm:%s189] %v270
                %v272 = vld [vmem:[%s196 + $0x114] sm:%s189]
                %273 = vst [vmem:[%s197 + $0x94] sm:%s189] %v272
                %v274 = vld [vmem:[%s196 + $0x118] sm:%s189]
                %275 = vst [vmem:[%s197 + $0x98] sm:%s189] %v274
                %v276 = vld [vmem:[%s196 + $0x11c] sm:%s189]
                %277 = vst [vmem:[%s197 + $0x9c] sm:%s189] %v276
                %v278 = vld [vmem:[%s196 + $0x120] sm:%s189]
                %279 = vst [vmem:[%s197 + $0xa0] sm:%s189] %v278
                %v280 = vld [vmem:[%s196 + $0x124] sm:%s189]
                %281 = vst [vmem:[%s197 + $0xa4] sm:%s189] %v280
                %v282 = vld [vmem:[%s196 + $0x128] sm:%s189]
                %283 = vst [vmem:[%s197 + $0xa8] sm:%s189] %v282
                %v284 = vld [vmem:[%s196 + $0x12c] sm:%s189]
                %285 = vst [vmem:[%s197 + $0xac] sm:%s189] %v284
                %v286 = vld [vmem:[%s196 + $0x130] sm:%s189]
                %287 = vst [vmem:[%s197 + $0xb0] sm:%s189] %v286
                %v288 = vld [vmem:[%s196 + $0x134] sm:%s189]
                %289 = vst [vmem:[%s197 + $0xb4] sm:%s189] %v288
                %v290 = vld [vmem:[%s196 + $0x138] sm:%s189]
                %291 = vst [vmem:[%s197 + $0xb8] sm:%s189] %v290
                %v292 = vld [vmem:[%s196 + $0x13c] sm:%s189]
                %293 = vst [vmem:[%s197 + $0xbc] sm:%s189] %v292
                %v294 = vld [vmem:[%s196 + $0x180] sm:%s189]
                %295 = vst [vmem:[%s197 + $0xc0] sm:%s189] %v294
                %v296 = vld [vmem:[%s196 + $0x184] sm:%s189]
                %297 = vst [vmem:[%s197 + $0xc4] sm:%s189] %v296
                %v298 = vld [vmem:[%s196 + $0x188] sm:%s189]
                %299 = vst [vmem:[%s197 + $0xc8] sm:%s189] %v298
                %v300 = vld [vmem:[%s196 + $0x18c] sm:%s189]
                %301 = vst [vmem:[%s197 + $0xcc] sm:%s189] %v300
                %v302 = vld [vmem:[%s196 + $0x190] sm:%s189]
                %303 = vst [vmem:[%s197 + $0xd0] sm:%s189] %v302
                %v304 = vld [vmem:[%s196 + $0x194] sm:%s189]
                %305 = vst [vmem:[%s197 + $0xd4] sm:%s189] %v304
                %v306 = vld [vmem:[%s196 + $0x198] sm:%s189]
                %307 = vst [vmem:[%s197 + $0xd8] sm:%s189] %v306
                %v308 = vld [vmem:[%s196 + $0x19c] sm:%s189]
                %309 = vst [vmem:[%s197 + $0xdc] sm:%s189] %v308
                %v310 = vld [vmem:[%s196 + $0x1a0] sm:%s189]
                %311 = vst [vmem:[%s197 + $0xe0] sm:%s189] %v310
                %v312 = vld [vmem:[%s196 + $0x1a4] sm:%s189]
                %313 = vst [vmem:[%s197 + $0xe4] sm:%s189] %v312
                %v314 = vld [vmem:[%s196 + $0x1a8] sm:%s189]
                %315 = vst [vmem:[%s197 + $0xe8] sm:%s189] %v314
                %v316 = vld [vmem:[%s196 + $0x1ac] sm:%s189]
                %317 = vst [vmem:[%s197 + $0xec] sm:%s189] %v316
                %v318 = vld [vmem:[%s196 + $0x1b0] sm:%s189]
                %319 = vst [vmem:[%s197 + $0xf0] sm:%s189] %v318
                %v320 = vld [vmem:[%s196 + $0x1b4] sm:%s189]
                %321 = vst [vmem:[%s197 + $0xf4] sm:%s189] %v320
                %v322 = vld [vmem:[%s196 + $0x1b8] sm:%s189]
                %323 = vst [vmem:[%s197 + $0xf8] sm:%s189] %v322
                %v324 = vld [vmem:[%s196 + $0x1bc] sm:%s189]
                %325 = vst [vmem:[%s197 + $0xfc] sm:%s189] %v324
              $region37: #{tpu_custom_call.1} parent=31 // loop_footer
                %s195 = sadd.s32 1, %s191
              $region38: #{tpu_custom_call.1} parent=31 // loop_footer_branch
                %190 = sbr.rel target = $region34
              $region39: #{tpu_custom_call.1} parent=31 // loop_exit
                _
            $region32: #{tpu_custom_call.1} parent=23 // pred_fallthru
              _
          $region24: #{tpu_custom_call.1} parent=19 // pred_fallthru
            _
          %474 = vnop
        $region20: #{tpu_custom_call.1} parent=15 // pred_fallthru
          _
        // Predicated region
        $region58: #{tpu_custom_call.1} parent=15 // pred_check
          %p475 = pneg %p91
        $region59: #{tpu_custom_call.1} parent=15 // pred_check_branch
          %477 = sbr.rel (%p475) target = $region61
        $region60: #{tpu_custom_call.1} parent=15 // pred_region
          %p478 = scmp.lt.s32.totalorder %s31, 1
          %s479 = scalar_select %p478, %s31, 1
          %s480 = smul.addr %s479, 32
          %s481 = smul.addr %s480, 4
          %s482 = scalar_lea.vmem %s3, %s481
        $region61: #{tpu_custom_call.1} parent=15 // pred_fallthru
          _
        // Predicated region
        $region62: #{tpu_custom_call.1} parent=15 // pred_check
          %p483 = pneg %p117
        $region63: #{tpu_custom_call.1} parent=15 // pred_check_branch
          %485 = sbr.rel (%p483) target = $region65
        $region64: #{tpu_custom_call.1} parent=15 // pred_region
          %p486 = scmp.lt.s32.totalorder %s31, 1
          %s487 = scalar_select %p486, %s31, 1
          %s488 = smul.addr %s487, 32
          %s489 = smul.addr %s488, 4
          %s490 = scalar_lea.vmem %s4, %s489
        $region65: #{tpu_custom_call.1} parent=15 // pred_fallthru
          _
      $region16: #{tpu_custom_call.1} parent=5 // pred_fallthru
        _
      %p491 = scmp.le.s32.totalorder 1, %s24
      %p492 = scmp.lt.s32.totalorder %s24, 5
      %p493 = pnand %p491, %p492
      %p494 = pneg %p493
      // Predicated region
      $region66: #{tpu_custom_call.1} parent=5 // pred_check
        _
      $region67: #{tpu_custom_call.1} parent=5 // pred_check_branch
        %496 = sbr.rel (%p493) target = $region69
      $region68: #{tpu_custom_call.1} parent=5 // pred_region
        %s497 = ssub.s32 %s24, 1
        %s498 = sand.u32 %s58, 1
        %s499 = sand.u32 %s58, 1
        %s500 = smul.addr %s499, 256
        %s501 = scalar_lea.vmem [#allocation8], %s500
        // Predicated region
        $region70: #{tpu_custom_call.1} parent=68 // pred_check
          %p502 = pneg %p71
        $region71: #{tpu_custom_call.1} parent=68 // pred_check_branch
          %504 = sbr.rel (%p502) target = $region73
        $region72: #{tpu_custom_call.1} parent=68 // pred_region
          _
        $region73: #{tpu_custom_call.1} parent=68 // pred_fallthru
          _
        %s505 = sand.u32 %s58, 1
        %s506 = sand.u32 %s58, 1
        %s507 = smul.addr %s506, 256
        %s508 = scalar_lea.vmem [#allocation8], %s507
        %p509 = pneg %p71
        %p510 = pneg %p68
        %p511 = scmp.lt.s32.totalorder %s34, 1
        %s512 = scalar_select %p511, %s34, 1
        %s513 = smul.addr %s512, 32
        %s514 = smul.addr %s513, 4
        %s515 = scalar_lea.vmem %s3, %s514
        %p516 = pneg %p97
        %p517 = pneg %p94
        %p518 = scmp.lt.s32.totalorder %s34, 1
        %s519 = scalar_select %p518, %s34, 1
        %s520 = smul.addr %s519, 32
        %s521 = smul.addr %s520, 4
        %s522 = scalar_lea.vmem %s4, %s521
        %p523 = pneg %p123
        %p524 = pneg %p120
        %p525 = pneg %p151
        %p526 = pneg %p148
        %s527 = sand.u32 %s138, 1
        %s528 = sand.u32 %s138, 1
        %s529 = smul.addr %s528, 256
        %s530 = scalar_lea.vmem [#allocation9], %s529
        %s531 = smul.u32 16, %s35
        %p532 = scmp.lt.s32.totalorder %s34, 1
        %s533 = scalar_select %p532, %s34, 1
        %s534 = smul.addr %s533, 32
        %s535 = smul.addr %s534, 4
        %s536 = scalar_lea.vmem %s3, %s535
        %p537 = scmp.lt.s32.totalorder %s34, 1
        %s538 = scalar_select %p537, %s34, 1
        %s539 = smul.addr %s538, 32
        %s540 = smul.addr %s539, 4
        %s541 = scalar_lea.vmem %s4, %s540
        %s542 = smul.u32 16, %s35
        %p543 = scmp.eq.s32.totalorder %s36, 0
        // Predicated region
        $region74: #{tpu_custom_call.1} parent=68 // pred_check
          %p544 = pneg %p543
        $region75: #{tpu_custom_call.1} parent=68 // pred_check_branch
          %546 = sbr.rel (%p544) target = $region77
        $region76: #{tpu_custom_call.1} parent=68 // pred_region
          %vm547 = vcmask 7168
          %548 = vst.msk [vmem:[#allocation2] sm:$0xff] %vm547, -inf
          %549 = vst.msk [vmem:[#allocation2 + $0x8] sm:$0xff] %vm547, -inf
          %550 = vst.msk [vmem:[#allocation2 + $0x10] sm:$0xff] %vm547, -inf
          %551 = vst.msk [vmem:[#allocation2 + $0x18] sm:$0xff] %vm547, -inf
          %552 = vst.msk [vmem:[#allocation2 + $0x20] sm:$0xff] %vm547, -inf
          %553 = vst.msk [vmem:[#allocation2 + $0x28] sm:$0xff] %vm547, -inf
          %554 = vst.msk [vmem:[#allocation2 + $0x30] sm:$0xff] %vm547, -inf
          %555 = vst.msk [vmem:[#allocation2 + $0x38] sm:$0xff] %vm547, -inf
          %556 = vst.msk [vmem:[#allocation2 + $0x40] sm:$0xff] %vm547, -inf
          %557 = vst.msk [vmem:[#allocation2 + $0x48] sm:$0xff] %vm547, -inf
          %558 = vst.msk [vmem:[#allocation2 + $0x50] sm:$0xff] %vm547, -inf
          %559 = vst.msk [vmem:[#allocation2 + $0x58] sm:$0xff] %vm547, -inf
          %560 = vst.msk [vmem:[#allocation2 + $0x60] sm:$0xff] %vm547, -inf
          %561 = vst.msk [vmem:[#allocation2 + $0x68] sm:$0xff] %vm547, -inf
          %562 = vst.msk [vmem:[#allocation2 + $0x70] sm:$0xff] %vm547, -inf
          %563 = vst.msk [vmem:[#allocation2 + $0x78] sm:$0xff] %vm547, -inf
          %564 = vst.msk [vmem:[#allocation2 + $0x80] sm:$0xff] %vm547, -inf
          %565 = vst.msk [vmem:[#allocation2 + $0x88] sm:$0xff] %vm547, -inf
          %566 = vst.msk [vmem:[#allocation2 + $0x90] sm:$0xff] %vm547, -inf
          %567 = vst.msk [vmem:[#allocation2 + $0x98] sm:$0xff] %vm547, -inf
          %568 = vst.msk [vmem:[#allocation2 + $0xa0] sm:$0xff] %vm547, -inf
          %569 = vst.msk [vmem:[#allocation2 + $0xa8] sm:$0xff] %vm547, -inf
          %570 = vst.msk [vmem:[#allocation2 + $0xb0] sm:$0xff] %vm547, -inf
          %571 = vst.msk [vmem:[#allocation2 + $0xb8] sm:$0xff] %vm547, -inf
          %572 = vst.msk [vmem:[#allocation2 + $0xc0] sm:$0xff] %vm547, -inf
          %573 = vst.msk [vmem:[#allocation2 + $0xc8] sm:$0xff] %vm547, -inf
          %574 = vst.msk [vmem:[#allocation2 + $0xd0] sm:$0xff] %vm547, -inf
          %575 = vst.msk [vmem:[#allocation2 + $0xd8] sm:$0xff] %vm547, -inf
          %576 = vst.msk [vmem:[#allocation2 + $0xe0] sm:$0xff] %vm547, -inf
          %577 = vst.msk [vmem:[#allocation2 + $0xe8] sm:$0xff] %vm547, -inf
          %578 = vst.msk [vmem:[#allocation2 + $0xf0] sm:$0xff] %vm547, -inf
          %579 = vst.msk [vmem:[#allocation2 + $0xf8] sm:$0xff] %vm547, -inf
          %580 = vst.msk [vmem:[#allocation2 + $0x100] sm:$0xff] %vm547, -inf
          %581 = vst.msk [vmem:[#allocation2 + $0x108] sm:$0xff] %vm547, -inf
          %582 = vst.msk [vmem:[#allocation2 + $0x110] sm:$0xff] %vm547, -inf
          %583 = vst.msk [vmem:[#allocation2 + $0x118] sm:$0xff] %vm547, -inf
          %584 = vst.msk [vmem:[#allocation2 + $0x120] sm:$0xff] %vm547, -inf
          %585 = vst.msk [vmem:[#allocation2 + $0x128] sm:$0xff] %vm547, -inf
          %586 = vst.msk [vmem:[#allocation2 + $0x130] sm:$0xff] %vm547, -inf
          %587 = vst.msk [vmem:[#allocation2 + $0x138] sm:$0xff] %vm547, -inf
          %588 = vst.msk [vmem:[#allocation2 + $0x140] sm:$0xff] %vm547, -inf
          %589 = vst.msk [vmem:[#allocation2 + $0x148] sm:$0xff] %vm547, -inf
          %590 = vst.msk [vmem:[#allocation2 + $0x150] sm:$0xff] %vm547, -inf
          %591 = vst.msk [vmem:[#allocation2 + $0x158] sm:$0xff] %vm547, -inf
          %592 = vst.msk [vmem:[#allocation2 + $0x160] sm:$0xff] %vm547, -inf
          %593 = vst.msk [vmem:[#allocation2 + $0x168] sm:$0xff] %vm547, -inf
          %594 = vst.msk [vmem:[#allocation2 + $0x170] sm:$0xff] %vm547, -inf
          %595 = vst.msk [vmem:[#allocation2 + $0x178] sm:$0xff] %vm547, -inf
          %596 = vst.msk [vmem:[#allocation2 + $0x180] sm:$0xff] %vm547, -inf
          %597 = vst.msk [vmem:[#allocation2 + $0x188] sm:$0xff] %vm547, -inf
          %598 = vst.msk [vmem:[#allocation2 + $0x190] sm:$0xff] %vm547, -inf
          %599 = vst.msk [vmem:[#allocation2 + $0x198] sm:$0xff] %vm547, -inf
          %600 = vst.msk [vmem:[#allocation2 + $0x1a0] sm:$0xff] %vm547, -inf
          %601 = vst.msk [vmem:[#allocation2 + $0x1a8] sm:$0xff] %vm547, -inf
          %602 = vst.msk [vmem:[#allocation2 + $0x1b0] sm:$0xff] %vm547, -inf
          %603 = vst.msk [vmem:[#allocation2 + $0x1b8] sm:$0xff] %vm547, -inf
          %604 = vst.msk [vmem:[#allocation2 + $0x1c0] sm:$0xff] %vm547, -inf
          %605 = vst.msk [vmem:[#allocation2 + $0x1c8] sm:$0xff] %vm547, -inf
          %606 = vst.msk [vmem:[#allocation2 + $0x1d0] sm:$0xff] %vm547, -inf
          %607 = vst.msk [vmem:[#allocation2 + $0x1d8] sm:$0xff] %vm547, -inf
          %608 = vst.msk [vmem:[#allocation2 + $0x1e0] sm:$0xff] %vm547, -inf
          %609 = vst.msk [vmem:[#allocation2 + $0x1e8] sm:$0xff] %vm547, -inf
          %610 = vst.msk [vmem:[#allocation2 + $0x1f0] sm:$0xff] %vm547, -inf
          %611 = vst.msk [vmem:[#allocation2 + $0x1f8] sm:$0xff] %vm547, -inf
          %612 = vst.msk [vmem:[#allocation3] sm:$0xff] %vm547, 0.0
          %613 = vst.msk [vmem:[#allocation3 + $0x8] sm:$0xff] %vm547, 0.0
          %614 = vst.msk [vmem:[#allocation3 + $0x10] sm:$0xff] %vm547, 0.0
          %615 = vst.msk [vmem:[#allocation3 + $0x18] sm:$0xff] %vm547, 0.0
          %616 = vst.msk [vmem:[#allocation3 + $0x20] sm:$0xff] %vm547, 0.0
          %617 = vst.msk [vmem:[#allocation3 + $0x28] sm:$0xff] %vm547, 0.0
          %618 = vst.msk [vmem:[#allocation3 + $0x30] sm:$0xff] %vm547, 0.0
          %619 = vst.msk [vmem:[#allocation3 + $0x38] sm:$0xff] %vm547, 0.0
          %620 = vst.msk [vmem:[#allocation3 + $0x40] sm:$0xff] %vm547, 0.0
          %621 = vst.msk [vmem:[#allocation3 + $0x48] sm:$0xff] %vm547, 0.0
          %622 = vst.msk [vmem:[#allocation3 + $0x50] sm:$0xff] %vm547, 0.0
          %623 = vst.msk [vmem:[#allocation3 + $0x58] sm:$0xff] %vm547, 0.0
          %624 = vst.msk [vmem:[#allocation3 + $0x60] sm:$0xff] %vm547, 0.0
          %625 = vst.msk [vmem:[#allocation3 + $0x68] sm:$0xff] %vm547, 0.0
          %626 = vst.msk [vmem:[#allocation3 + $0x70] sm:$0xff] %vm547, 0.0
          %627 = vst.msk [vmem:[#allocation3 + $0x78] sm:$0xff] %vm547, 0.0
          %628 = vst.msk [vmem:[#allocation3 + $0x80] sm:$0xff] %vm547, 0.0
          %629 = vst.msk [vmem:[#allocation3 + $0x88] sm:$0xff] %vm547, 0.0
          %630 = vst.msk [vmem:[#allocation3 + $0x90] sm:$0xff] %vm547, 0.0
          %631 = vst.msk [vmem:[#allocation3 + $0x98] sm:$0xff] %vm547, 0.0
          %632 = vst.msk [vmem:[#allocation3 + $0xa0] sm:$0xff] %vm547, 0.0
          %633 = vst.msk [vmem:[#allocation3 + $0xa8] sm:$0xff] %vm547, 0.0
          %634 = vst.msk [vmem:[#allocation3 + $0xb0] sm:$0xff] %vm547, 0.0
          %635 = vst.msk [vmem:[#allocation3 + $0xb8] sm:$0xff] %vm547, 0.0
          %636 = vst.msk [vmem:[#allocation3 + $0xc0] sm:$0xff] %vm547, 0.0
          %637 = vst.msk [vmem:[#allocation3 + $0xc8] sm:$0xff] %vm547, 0.0
          %638 = vst.msk [vmem:[#allocation3 + $0xd0] sm:$0xff] %vm547, 0.0
          %639 = vst.msk [vmem:[#allocation3 + $0xd8] sm:$0xff] %vm547, 0.0
          %640 = vst.msk [vmem:[#allocation3 + $0xe0] sm:$0xff] %vm547, 0.0
          %641 = vst.msk [vmem:[#allocation3 + $0xe8] sm:$0xff] %vm547, 0.0
          %642 = vst.msk [vmem:[#allocation3 + $0xf0] sm:$0xff] %vm547, 0.0
          %643 = vst.msk [vmem:[#allocation3 + $0xf8] sm:$0xff] %vm547, 0.0
          %644 = vst.msk [vmem:[#allocation3 + $0x100] sm:$0xff] %vm547, 0.0
          %645 = vst.msk [vmem:[#allocation3 + $0x108] sm:$0xff] %vm547, 0.0
          %646 = vst.msk [vmem:[#allocation3 + $0x110] sm:$0xff] %vm547, 0.0
          %647 = vst.msk [vmem:[#allocation3 + $0x118] sm:$0xff] %vm547, 0.0
          %648 = vst.msk [vmem:[#allocation3 + $0x120] sm:$0xff] %vm547, 0.0
          %649 = vst.msk [vmem:[#allocation3 + $0x128] sm:$0xff] %vm547, 0.0
          %650 = vst.msk [vmem:[#allocation3 + $0x130] sm:$0xff] %vm547, 0.0
          %651 = vst.msk [vmem:[#allocation3 + $0x138] sm:$0xff] %vm547, 0.0
          %652 = vst.msk [vmem:[#allocation3 + $0x140] sm:$0xff] %vm547, 0.0
          %653 = vst.msk [vmem:[#allocation3 + $0x148] sm:$0xff] %vm547, 0.0
          %654 = vst.msk [vmem:[#allocation3 + $0x150] sm:$0xff] %vm547, 0.0
          %655 = vst.msk [vmem:[#allocation3 + $0x158] sm:$0xff] %vm547, 0.0
          %656 = vst.msk [vmem:[#allocation3 + $0x160] sm:$0xff] %vm547, 0.0
          %657 = vst.msk [vmem:[#allocation3 + $0x168] sm:$0xff] %vm547, 0.0
          %658 = vst.msk [vmem:[#allocation3 + $0x170] sm:$0xff] %vm547, 0.0
          %659 = vst.msk [vmem:[#allocation3 + $0x178] sm:$0xff] %vm547, 0.0
          %660 = vst.msk [vmem:[#allocation3 + $0x180] sm:$0xff] %vm547, 0.0
          %661 = vst.msk [vmem:[#allocation3 + $0x188] sm:$0xff] %vm547, 0.0
          %662 = vst.msk [vmem:[#allocation3 + $0x190] sm:$0xff] %vm547, 0.0
          %663 = vst.msk [vmem:[#allocation3 + $0x198] sm:$0xff] %vm547, 0.0
          %664 = vst.msk [vmem:[#allocation3 + $0x1a0] sm:$0xff] %vm547, 0.0
          %665 = vst.msk [vmem:[#allocation3 + $0x1a8] sm:$0xff] %vm547, 0.0
          %666 = vst.msk [vmem:[#allocation3 + $0x1b0] sm:$0xff] %vm547, 0.0
          %667 = vst.msk [vmem:[#allocation3 + $0x1b8] sm:$0xff] %vm547, 0.0
          %668 = vst.msk [vmem:[#allocation3 + $0x1c0] sm:$0xff] %vm547, 0.0
          %669 = vst.msk [vmem:[#allocation3 + $0x1c8] sm:$0xff] %vm547, 0.0
          %670 = vst.msk [vmem:[#allocation3 + $0x1d0] sm:$0xff] %vm547, 0.0
          %671 = vst.msk [vmem:[#allocation3 + $0x1d8] sm:$0xff] %vm547, 0.0
          %672 = vst.msk [vmem:[#allocation3 + $0x1e0] sm:$0xff] %vm547, 0.0
          %673 = vst.msk [vmem:[#allocation3 + $0x1e8] sm:$0xff] %vm547, 0.0
          %674 = vst.msk [vmem:[#allocation3 + $0x1f0] sm:$0xff] %vm547, 0.0
          %675 = vst.msk [vmem:[#allocation3 + $0x1f8] sm:$0xff] %vm547, 0.0
          %vm676 = vcmask 523264
          %677 = vst.msk [vmem:[#allocation4] sm:$0xff] %vm676, 0.0
          %678 = vst.msk [vmem:[#allocation4 + $0x8] sm:$0xff] %vm676, 0.0
          %679 = vst.msk [vmem:[#allocation4 + $0x10] sm:$0xff] %vm676, 0.0
          %680 = vst.msk [vmem:[#allocation4 + $0x18] sm:$0xff] %vm676, 0.0
          %681 = vst.msk [vmem:[#allocation4 + $0x20] sm:$0xff] %vm676, 0.0
          %682 = vst.msk [vmem:[#allocation4 + $0x28] sm:$0xff] %vm676, 0.0
          %683 = vst.msk [vmem:[#allocation4 + $0x30] sm:$0xff] %vm676, 0.0
          %684 = vst.msk [vmem:[#allocation4 + $0x38] sm:$0xff] %vm676, 0.0
          %685 = vst.msk [vmem:[#allocation4 + $0x40] sm:$0xff] %vm676, 0.0
          %686 = vst.msk [vmem:[#allocation4 + $0x48] sm:$0xff] %vm676, 0.0
          %687 = vst.msk [vmem:[#allocation4 + $0x50] sm:$0xff] %vm676, 0.0
          %688 = vst.msk [vmem:[#allocation4 + $0x58] sm:$0xff] %vm676, 0.0
          %689 = vst.msk [vmem:[#allocation4 + $0x60] sm:$0xff] %vm676, 0.0
          %690 = vst.msk [vmem:[#allocation4 + $0x68] sm:$0xff] %vm676, 0.0
          %691 = vst.msk [vmem:[#allocation4 + $0x70] sm:$0xff] %vm676, 0.0
          %692 = vst.msk [vmem:[#allocation4 + $0x78] sm:$0xff] %vm676, 0.0
          %693 = vst.msk [vmem:[#allocation4 + $0x80] sm:$0xff] %vm676, 0.0
          %694 = vst.msk [vmem:[#allocation4 + $0x88] sm:$0xff] %vm676, 0.0
          %695 = vst.msk [vmem:[#allocation4 + $0x90] sm:$0xff] %vm676, 0.0
          %696 = vst.msk [vmem:[#allocation4 + $0x98] sm:$0xff] %vm676, 0.0
          %697 = vst.msk [vmem:[#allocation4 + $0xa0] sm:$0xff] %vm676, 0.0
          %698 = vst.msk [vmem:[#allocation4 + $0xa8] sm:$0xff] %vm676, 0.0
          %699 = vst.msk [vmem:[#allocation4 + $0xb0] sm:$0xff] %vm676, 0.0
          %700 = vst.msk [vmem:[#allocation4 + $0xb8] sm:$0xff] %vm676, 0.0
          %701 = vst.msk [vmem:[#allocation4 + $0xc0] sm:$0xff] %vm676, 0.0
          %702 = vst.msk [vmem:[#allocation4 + $0xc8] sm:$0xff] %vm676, 0.0
          %703 = vst.msk [vmem:[#allocation4 + $0xd0] sm:$0xff] %vm676, 0.0
          %704 = vst.msk [vmem:[#allocation4 + $0xd8] sm:$0xff] %vm676, 0.0
          %705 = vst.msk [vmem:[#allocation4 + $0xe0] sm:$0xff] %vm676, 0.0
          %706 = vst.msk [vmem:[#allocation4 + $0xe8] sm:$0xff] %vm676, 0.0
          %707 = vst.msk [vmem:[#allocation4 + $0xf0] sm:$0xff] %vm676, 0.0
          %708 = vst.msk [vmem:[#allocation4 + $0xf8] sm:$0xff] %vm676, 0.0
          %709 = vst.msk [vmem:[#allocation4 + $0x100] sm:$0xff] %vm676, 0.0
          %710 = vst.msk [vmem:[#allocation4 + $0x108] sm:$0xff] %vm676, 0.0
          %711 = vst.msk [vmem:[#allocation4 + $0x110] sm:$0xff] %vm676, 0.0
          %712 = vst.msk [vmem:[#allocation4 + $0x118] sm:$0xff] %vm676, 0.0
          %713 = vst.msk [vmem:[#allocation4 + $0x120] sm:$0xff] %vm676, 0.0
          %714 = vst.msk [vmem:[#allocation4 + $0x128] sm:$0xff] %vm676, 0.0
          %715 = vst.msk [vmem:[#allocation4 + $0x130] sm:$0xff] %vm676, 0.0
          %716 = vst.msk [vmem:[#allocation4 + $0x138] sm:$0xff] %vm676, 0.0
          %717 = vst.msk [vmem:[#allocation4 + $0x140] sm:$0xff] %vm676, 0.0
          %718 = vst.msk [vmem:[#allocation4 + $0x148] sm:$0xff] %vm676, 0.0
          %719 = vst.msk [vmem:[#allocation4 + $0x150] sm:$0xff] %vm676, 0.0
          %720 = vst.msk [vmem:[#allocation4 + $0x158] sm:$0xff] %vm676, 0.0
          %721 = vst.msk [vmem:[#allocation4 + $0x160] sm:$0xff] %vm676, 0.0
          %722 = vst.msk [vmem:[#allocation4 + $0x168] sm:$0xff] %vm676, 0.0
          %723 = vst.msk [vmem:[#allocation4 + $0x170] sm:$0xff] %vm676, 0.0
          %724 = vst.msk [vmem:[#allocation4 + $0x178] sm:$0xff] %vm676, 0.0
          %725 = vst.msk [vmem:[#allocation4 + $0x180] sm:$0xff] %vm676, 0.0
          %726 = vst.msk [vmem:[#allocation4 + $0x188] sm:$0xff] %vm676, 0.0
          %727 = vst.msk [vmem:[#allocation4 + $0x190] sm:$0xff] %vm676, 0.0
          %728 = vst.msk [vmem:[#allocation4 + $0x198] sm:$0xff] %vm676, 0.0
          %729 = vst.msk [vmem:[#allocation4 + $0x1a0] sm:$0xff] %vm676, 0.0
          %730 = vst.msk [vmem:[#allocation4 + $0x1a8] sm:$0xff] %vm676, 0.0
          %731 = vst.msk [vmem:[#allocation4 + $0x1b0] sm:$0xff] %vm676, 0.0
          %732 = vst.msk [vmem:[#allocation4 + $0x1b8] sm:$0xff] %vm676, 0.0
          %733 = vst.msk [vmem:[#allocation4 + $0x1c0] sm:$0xff] %vm676, 0.0
          %734 = vst.msk [vmem:[#allocation4 + $0x1c8] sm:$0xff] %vm676, 0.0
          %735 = vst.msk [vmem:[#allocation4 + $0x1d0] sm:$0xff] %vm676, 0.0
          %736 = vst.msk [vmem:[#allocation4 + $0x1d8] sm:$0xff] %vm676, 0.0
          %737 = vst.msk [vmem:[#allocation4 + $0x1e0] sm:$0xff] %vm676, 0.0
          %738 = vst.msk [vmem:[#allocation4 + $0x1e8] sm:$0xff] %vm676, 0.0
          %739 = vst.msk [vmem:[#allocation4 + $0x1f0] sm:$0xff] %vm676, 0.0
          %740 = vst.msk [vmem:[#allocation4 + $0x1f8] sm:$0xff] %vm676, 0.0
        $region77: #{tpu_custom_call.1} parent=68 // pred_fallthru
          _
        %s741 = sld [smem:[#allocation6 + %s34]]
        %s742 = sld [smem:[#allocation7 + %s34]]
        %s743 = smul.u32 %s35, 128
        %s744 = smul.u32 %s36, 256
        %s745 = ssub.s32 %s742, %s741
        %p746 = scmp.lt.s32.totalorder %s744, %s742
        %s747 = sadd.s32 %s744, 256
        %p748 = scmp.le.s32.totalorder %s747, %s742
        %s749 = sadd.s32 %s743, 127
        %s750 = sadd.s32 %s749, %s745
        %p751 = scmp.le.s32.totalorder %s744, %s750
        %p752 = pnand %p746, %p751
        %p753 = pneg %p752
        %s754 = sadd.s32 %s744, 255
        %s755 = sadd.s32 %s743, %s745
        %p756 = scmp.le.s32.totalorder %s754, %s755
        %p757 = pnand %p748, %p756
        %p758 = pneg %p757
        // Predicated region
        $region78: #{tpu_custom_call.1} parent=68 // pred_check
          _
        $region79: #{tpu_custom_call.1} parent=68 // pred_check_branch
          %760 = sbr.rel (%p757) target = $region81
        $region80: #{tpu_custom_call.1} parent=68 // pred_region
          %s761 = sshra.s32 %s744, 3
          %s762 = sand.u32 %s744, 7
          %s763 = smul.addr %s761, 4
          %s764 = scalar_lea.vmem %s536, %s763
          %v765 = vld [vmem:[%s764] sm:$0xf]
          %v766 = vld [vmem:[%s764 + $0x4] sm:$0xf]
          %v767 = vld [vmem:[%s764 + $0x8] sm:$0xf]
          %v768 = vld [vmem:[%s764 + $0xc] sm:$0xf]
          %v769 = vld [vmem:[%s764 + $0x10] sm:$0xf]
          %v770 = vld [vmem:[%s764 + $0x14] sm:$0xf]
          %v771 = vld [vmem:[%s764 + $0x18] sm:$0xf]
          %v772 = vld [vmem:[%s764 + $0x1c] sm:$0xf]
          %v773 = vld [vmem:[%s764 + $0x20] sm:$0xf]
          %v774 = vld [vmem:[%s764 + $0x24] sm:$0xf]
          %v775 = vld [vmem:[%s764 + $0x28] sm:$0xf]
          %v776 = vld [vmem:[%s764 + $0x2c] sm:$0xf]
          %v777 = vld [vmem:[%s764 + $0x30] sm:$0xf]
          %v778 = vld [vmem:[%s764 + $0x34] sm:$0xf]
          %v779 = vld [vmem:[%s764 + $0x38] sm:$0xf]
          %v780 = vld [vmem:[%s764 + $0x3c] sm:$0xf]
          %v781 = vld [vmem:[%s764 + $0x40] sm:$0xf]
          %v782 = vld [vmem:[%s764 + $0x44] sm:$0xf]
          %v783 = vld [vmem:[%s764 + $0x48] sm:$0xf]
          %v784 = vld [vmem:[%s764 + $0x4c] sm:$0xf]
          %v785 = vld [vmem:[%s764 + $0x50] sm:$0xf]
          %v786 = vld [vmem:[%s764 + $0x54] sm:$0xf]
          %v787 = vld [vmem:[%s764 + $0x58] sm:$0xf]
          %v788 = vld [vmem:[%s764 + $0x5c] sm:$0xf]
          %v789 = vld [vmem:[%s764 + $0x60] sm:$0xf]
          %v790 = vld [vmem:[%s764 + $0x64] sm:$0xf]
          %v791 = vld [vmem:[%s764 + $0x68] sm:$0xf]
          %v792 = vld [vmem:[%s764 + $0x6c] sm:$0xf]
          %v793 = vld [vmem:[%s764 + $0x70] sm:$0xf]
          %v794 = vld [vmem:[%s764 + $0x74] sm:$0xf]
          %v795 = vld [vmem:[%s764 + $0x78] sm:$0xf]
          %v796 = vld [vmem:[%s764 + $0x7c] sm:$0xf]
          %s797 = smul.addr %s761, 4
          %s798 = scalar_lea.vmem %s541, %s797
          %v799 = vld [vmem:[%s798] sm:$0xf]
          %v800 = vld [vmem:[%s798 + $0x4] sm:$0xf]
          %v801 = vld [vmem:[%s798 + $0x8] sm:$0xf]
          %v802 = vld [vmem:[%s798 + $0xc] sm:$0xf]
          %v803 = vld [vmem:[%s798 + $0x10] sm:$0xf]
          %v804 = vld [vmem:[%s798 + $0x14] sm:$0xf]
          %v805 = vld [vmem:[%s798 + $0x18] sm:$0xf]
          %v806 = vld [vmem:[%s798 + $0x1c] sm:$0xf]
          %v807 = vld [vmem:[%s798 + $0x20] sm:$0xf]
          %v808 = vld [vmem:[%s798 + $0x24] sm:$0xf]
          %v809 = vld [vmem:[%s798 + $0x28] sm:$0xf]
          %v810 = vld [vmem:[%s798 + $0x2c] sm:$0xf]
          %v811 = vld [vmem:[%s798 + $0x30] sm:$0xf]
          %v812 = vld [vmem:[%s798 + $0x34] sm:$0xf]
          %v813 = vld [vmem:[%s798 + $0x38] sm:$0xf]
          %v814 = vld [vmem:[%s798 + $0x3c] sm:$0xf]
          %v815 = vld [vmem:[%s798 + $0x40] sm:$0xf]
          %v816 = vld [vmem:[%s798 + $0x44] sm:$0xf]
          %v817 = vld [vmem:[%s798 + $0x48] sm:$0xf]
          %v818 = vld [vmem:[%s798 + $0x4c] sm:$0xf]
          %v819 = vld [vmem:[%s798 + $0x50] sm:$0xf]
          %v820 = vld [vmem:[%s798 + $0x54] sm:$0xf]
          %v821 = vld [vmem:[%s798 + $0x58] sm:$0xf]
          %v822 = vld [vmem:[%s798 + $0x5c] sm:$0xf]
          %v823 = vld [vmem:[%s798 + $0x60] sm:$0xf]
          %v824 = vld [vmem:[%s798 + $0x64] sm:$0xf]
          %v825 = vld [vmem:[%s798 + $0x68] sm:$0xf]
          %v826 = vld [vmem:[%s798 + $0x6c] sm:$0xf]
          %v827 = vld [vmem:[%s798 + $0x70] sm:$0xf]
          %v828 = vld [vmem:[%s798 + $0x74] sm:$0xf]
          %v829 = vld [vmem:[%s798 + $0x78] sm:$0xf]
          %v830 = vld [vmem:[%s798 + $0x7c] sm:$0xf]
          %v831 = vld [vmem:[%s501] sm:$0xf]
          %v832 = vld [vmem:[%s501 + $0x4] sm:$0xf]
          %v833 = vld [vmem:[%s501 + $0x8] sm:$0xf]
          %v834 = vld [vmem:[%s501 + $0xc] sm:$0xf]
          %v835 = vld [vmem:[%s501 + $0x10] sm:$0xf]
          %v836 = vld [vmem:[%s501 + $0x14] sm:$0xf]
          %v837 = vld [vmem:[%s501 + $0x18] sm:$0xf]
          %v838 = vld [vmem:[%s501 + $0x1c] sm:$0xf]
          %v839 = vld [vmem:[%s501 + $0x20] sm:$0xf]
          %v840 = vld [vmem:[%s501 + $0x24] sm:$0xf]
          %v841 = vld [vmem:[%s501 + $0x28] sm:$0xf]
          %v842 = vld [vmem:[%s501 + $0x2c] sm:$0xf]
          %v843 = vld [vmem:[%s501 + $0x30] sm:$0xf]
          %v844 = vld [vmem:[%s501 + $0x34] sm:$0xf]
          %v845 = vld [vmem:[%s501 + $0x38] sm:$0xf]
          %v846 = vld [vmem:[%s501 + $0x3c] sm:$0xf]
          %v847 = vld [vmem:[%s501 + $0x40] sm:$0xf]
          %v848 = vld [vmem:[%s501 + $0x44] sm:$0xf]
          %v849 = vld [vmem:[%s501 + $0x48] sm:$0xf]
          %v850 = vld [vmem:[%s501 + $0x4c] sm:$0xf]
          %v851 = vld [vmem:[%s501 + $0x50] sm:$0xf]
          %v852 = vld [vmem:[%s501 + $0x54] sm:$0xf]
          %v853 = vld [vmem:[%s501 + $0x58] sm:$0xf]
          %v854 = vld [vmem:[%s501 + $0x5c] sm:$0xf]
          %v855 = vld [vmem:[%s501 + $0x60] sm:$0xf]
          %v856 = vld [vmem:[%s501 + $0x64] sm:$0xf]
          %v857 = vld [vmem:[%s501 + $0x68] sm:$0xf]
          %v858 = vld [vmem:[%s501 + $0x6c] sm:$0xf]
          %v859 = vld [vmem:[%s501 + $0x70] sm:$0xf]
          %v860 = vld [vmem:[%s501 + $0x74] sm:$0xf]
          %v861 = vld [vmem:[%s501 + $0x78] sm:$0xf]
          %v862 = vld [vmem:[%s501 + $0x7c] sm:$0xf]
          %v863 = vld [vmem:[%s501 + $0x80] sm:$0xf]
          %v864 = vld [vmem:[%s501 + $0x84] sm:$0xf]
          %v865 = vld [vmem:[%s501 + $0x88] sm:$0xf]
          %v866 = vld [vmem:[%s501 + $0x8c] sm:$0xf]
          %v867 = vld [vmem:[%s501 + $0x90] sm:$0xf]
          %v868 = vld [vmem:[%s501 + $0x94] sm:$0xf]
          %v869 = vld [vmem:[%s501 + $0x98] sm:$0xf]
          %v870 = vld [vmem:[%s501 + $0x9c] sm:$0xf]
          %v871 = vld [vmem:[%s501 + $0xa0] sm:$0xf]
          %v872 = vld [vmem:[%s501 + $0xa4] sm:$0xf]
          %v873 = vld [vmem:[%s501 + $0xa8] sm:$0xf]
          %v874 = vld [vmem:[%s501 + $0xac] sm:$0xf]
          %v875 = vld [vmem:[%s501 + $0xb0] sm:$0xf]
          %v876 = vld [vmem:[%s501 + $0xb4] sm:$0xf]
          %v877 = vld [vmem:[%s501 + $0xb8] sm:$0xf]
          %v878 = vld [vmem:[%s501 + $0xbc] sm:$0xf]
          %v879 = vld [vmem:[%s501 + $0xc0] sm:$0xf]
          %v880 = vld [vmem:[%s501 + $0xc4] sm:$0xf]
          %v881 = vld [vmem:[%s501 + $0xc8] sm:$0xf]
          %v882 = vld [vmem:[%s501 + $0xcc] sm:$0xf]
          %v883 = vld [vmem:[%s501 + $0xd0] sm:$0xf]
          %v884 = vld [vmem:[%s501 + $0xd4] sm:$0xf]
          %v885 = vld [vmem:[%s501 + $0xd8] sm:$0xf]
          %v886 = vld [vmem:[%s501 + $0xdc] sm:$0xf]
          %v887 = vld [vmem:[%s501 + $0xe0] sm:$0xf]
          %v888 = vld [vmem:[%s501 + $0xe4] sm:$0xf]
          %v889 = vld [vmem:[%s501 + $0xe8] sm:$0xf]
          %v890 = vld [vmem:[%s501 + $0xec] sm:$0xf]
          %v891 = vld [vmem:[%s501 + $0xf0] sm:$0xf]
          %v892 = vld [vmem:[%s501 + $0xf4] sm:$0xf]
          %v893 = vld [vmem:[%s501 + $0xf8] sm:$0xf]
          %v894 = vld [vmem:[%s501 + $0xfc] sm:$0xf]
          %v959 = vunpack.c.l.b16 %v831
          %v960 = vunpack.c.l.b16 %v832
          %v961 = vunpack.c.l.b16 %v833
          %v962 = vunpack.c.l.b16 %v834
          %v963 = vunpack.c.l.b16 %v835
          %v964 = vunpack.c.l.b16 %v836
          %v965 = vunpack.c.l.b16 %v837
          %v966 = vunpack.c.l.b16 %v838
          %v967 = vunpack.c.l.b16 %v839
          %v968 = vunpack.c.l.b16 %v840
          %v969 = vunpack.c.l.b16 %v841
          %v970 = vunpack.c.l.b16 %v842
          %v971 = vunpack.c.l.b16 %v843
          %v972 = vunpack.c.l.b16 %v844
          %v973 = vunpack.c.l.b16 %v845
          %v974 = vunpack.c.l.b16 %v846
          %v975 = vunpack.c.l.b16 %v847
          %v976 = vunpack.c.l.b16 %v848
          %v977 = vunpack.c.l.b16 %v849
          %v978 = vunpack.c.l.b16 %v850
          %v979 = vunpack.c.l.b16 %v851
          %v980 = vunpack.c.l.b16 %v852
          %v981 = vunpack.c.l.b16 %v853
          %v982 = vunpack.c.l.b16 %v854
          %v983 = vunpack.c.l.b16 %v855
          %v984 = vunpack.c.l.b16 %v856
          %v985 = vunpack.c.l.b16 %v857
          %v986 = vunpack.c.l.b16 %v858
          %v987 = vunpack.c.l.b16 %v859
          %v988 = vunpack.c.l.b16 %v860
          %v989 = vunpack.c.l.b16 %v861
          %v990 = vunpack.c.l.b16 %v862
          %v991 = vunpack.c.l.b16 %v863
          %v992 = vunpack.c.l.b16 %v864
          %v993 = vunpack.c.l.b16 %v865
          %v994 = vunpack.c.l.b16 %v866
          %v995 = vunpack.c.l.b16 %v867
          %v996 = vunpack.c.l.b16 %v868
          %v997 = vunpack.c.l.b16 %v869
          %v998 = vunpack.c.l.b16 %v870
          %v999 = vunpack.c.l.b16 %v871
          %v1000 = vunpack.c.l.b16 %v872
          %v1001 = vunpack.c.l.b16 %v873
          %v1002 = vunpack.c.l.b16 %v874
          %v1003 = vunpack.c.l.b16 %v875
          %v1004 = vunpack.c.l.b16 %v876
          %v1005 = vunpack.c.l.b16 %v877
          %v1006 = vunpack.c.l.b16 %v878
          %v1007 = vunpack.c.l.b16 %v879
          %v1008 = vunpack.c.l.b16 %v880
          %v1009 = vunpack.c.l.b16 %v881
          %v1010 = vunpack.c.l.b16 %v882
          %v1011 = vunpack.c.l.b16 %v883
          %v1012 = vunpack.c.l.b16 %v884
          %v1013 = vunpack.c.l.b16 %v885
          %v1014 = vunpack.c.l.b16 %v886
          %v1015 = vunpack.c.l.b16 %v887
          %v1016 = vunpack.c.l.b16 %v888
          %v1017 = vunpack.c.l.b16 %v889
          %v1018 = vunpack.c.l.b16 %v890
          %v1019 = vunpack.c.l.b16 %v891
          %v1020 = vunpack.c.l.b16 %v892
          %v1021 = vunpack.c.l.b16 %v893
          %v1022 = vunpack.c.l.b16 %v894
          %v1023 = vpack.c.b16 %v960, %v959
          %v1024 = vpack.c.b16 %v962, %v961
          %v1025 = vpack.c.b16 %v964, %v963
          %v1026 = vpack.c.b16 %v966, %v965
          %v1027 = vpack.c.b16 %v968, %v967
          %v1028 = vpack.c.b16 %v970, %v969
          %v1029 = vpack.c.b16 %v972, %v971
          %v1030 = vpack.c.b16 %v974, %v973
          %v1031 = vpack.c.b16 %v976, %v975
          %v1032 = vpack.c.b16 %v978, %v977
          %v1033 = vpack.c.b16 %v980, %v979
          %v1034 = vpack.c.b16 %v982, %v981
          %v1035 = vpack.c.b16 %v984, %v983
          %v1036 = vpack.c.b16 %v986, %v985
          %v1037 = vpack.c.b16 %v988, %v987
          %v1038 = vpack.c.b16 %v990, %v989
          %v1039 = vpack.c.b16 %v992, %v991
          %v1040 = vpack.c.b16 %v994, %v993
          %v1041 = vpack.c.b16 %v996, %v995
          %v1042 = vpack.c.b16 %v998, %v997
          %v1043 = vpack.c.b16 %v1000, %v999
          %v1044 = vpack.c.b16 %v1002, %v1001
          %v1045 = vpack.c.b16 %v1004, %v1003
          %v1046 = vpack.c.b16 %v1006, %v1005
          %v1047 = vpack.c.b16 %v1008, %v1007
          %v1048 = vpack.c.b16 %v1010, %v1009
          %v1049 = vpack.c.b16 %v1012, %v1011
          %v1050 = vpack.c.b16 %v1014, %v1013
          %v1051 = vpack.c.b16 %v1016, %v1015
          %v1052 = vpack.c.b16 %v1018, %v1017
          %v1053 = vpack.c.b16 %v1020, %v1019
          %v1054 = vpack.c.b16 %v1022, %v1021
          %v1087 = vunpack.c.l.b16 %v765
          %v1088 = vunpack.c.l.b16 %v766
          %v1089 = vunpack.c.l.b16 %v767
          %v1090 = vunpack.c.l.b16 %v768
          %v1091 = vunpack.c.l.b16 %v769
          %v1092 = vunpack.c.l.b16 %v770
          %v1093 = vunpack.c.l.b16 %v771
          %v1094 = vunpack.c.l.b16 %v772
          %v1095 = vunpack.c.l.b16 %v773
          %v1096 = vunpack.c.l.b16 %v774
          %v1097 = vunpack.c.l.b16 %v775
          %v1098 = vunpack.c.l.b16 %v776
          %v1099 = vunpack.c.l.b16 %v777
          %v1100 = vunpack.c.l.b16 %v778
          %v1101 = vunpack.c.l.b16 %v779
          %v1102 = vunpack.c.l.b16 %v780
          %v1103 = vunpack.c.l.b16 %v781
          %v1104 = vunpack.c.l.b16 %v782
          %v1105 = vunpack.c.l.b16 %v783
          %v1106 = vunpack.c.l.b16 %v784
          %v1107 = vunpack.c.l.b16 %v785
          %v1108 = vunpack.c.l.b16 %v786
          %v1109 = vunpack.c.l.b16 %v787
          %v1110 = vunpack.c.l.b16 %v788
          %v1111 = vunpack.c.l.b16 %v789
          %v1112 = vunpack.c.l.b16 %v790
          %v1113 = vunpack.c.l.b16 %v791
          %v1114 = vunpack.c.l.b16 %v792
          %v1115 = vunpack.c.l.b16 %v793
          %v1116 = vunpack.c.l.b16 %v794
          %v1117 = vunpack.c.l.b16 %v795
          %v1118 = vunpack.c.l.b16 %v796
          %v1119 = vpack.c.b16 %v1088, %v1087
          %v1120 = vpack.c.b16 %v1090, %v1089
          %v1121 = vpack.c.b16 %v1092, %v1091
          %v1122 = vpack.c.b16 %v1094, %v1093
          %v1123 = vpack.c.b16 %v1096, %v1095
          %v1124 = vpack.c.b16 %v1098, %v1097
          %v1125 = vpack.c.b16 %v1100, %v1099
          %v1126 = vpack.c.b16 %v1102, %v1101
          %v1127 = vpack.c.b16 %v1104, %v1103
          %v1128 = vpack.c.b16 %v1106, %v1105
          %v1129 = vpack.c.b16 %v1108, %v1107
          %v1130 = vpack.c.b16 %v1110, %v1109
          %v1131 = vpack.c.b16 %v1112, %v1111
          %v1132 = vpack.c.b16 %v1114, %v1113
          %v1133 = vpack.c.b16 %v1116, %v1115
          %v1134 = vpack.c.b16 %v1118, %v1117
          %vm1135 = vcmask 523264
          %v1137 = vsel %vm1135, %v1023, 0
          %v1140 = vsel %vm1135, %v1024, 0
          %v1143 = vsel %vm1135, %v1025, 0
          %v1146 = vsel %vm1135, %v1026, 0
          %v1149 = vsel %vm1135, %v1027, 0
          %v1152 = vsel %vm1135, %v1028, 0
          %v1155 = vsel %vm1135, %v1029, 0
          %v1158 = vsel %vm1135, %v1030, 0
          %v1161 = vsel %vm1135, %v1031, 0
          %v1164 = vsel %vm1135, %v1032, 0
          %v1167 = vsel %vm1135, %v1033, 0
          %v1170 = vsel %vm1135, %v1034, 0
          %v1173 = vsel %vm1135, %v1035, 0
          %v1176 = vsel %vm1135, %v1036, 0
          %v1179 = vsel %vm1135, %v1037, 0
          %v1182 = vsel %vm1135, %v1038, 0
          %v1185 = vsel %vm1135, %v1039, 0
          %v1188 = vsel %vm1135, %v1040, 0
          %v1191 = vsel %vm1135, %v1041, 0
          %v1194 = vsel %vm1135, %v1042, 0
          %v1197 = vsel %vm1135, %v1043, 0
          %v1200 = vsel %vm1135, %v1044, 0
          %v1203 = vsel %vm1135, %v1045, 0
          %v1206 = vsel %vm1135, %v1046, 0
          %v1209 = vsel %vm1135, %v1047, 0
          %v1212 = vsel %vm1135, %v1048, 0
          %v1215 = vsel %vm1135, %v1049, 0
          %v1218 = vsel %vm1135, %v1050, 0
          %v1221 = vsel %vm1135, %v1051, 0
          %v1224 = vsel %vm1135, %v1052, 0
          %v1227 = vsel %vm1135, %v1053, 0
          %v1230 = vsel %vm1135, %v1054, 0
          %v1233 = vsel %vm1135, %v1119, 0
          %v1236 = vsel %vm1135, %v1120, 0
          %v1239 = vsel %vm1135, %v1121, 0
          %v1242 = vsel %vm1135, %v1122, 0
          %v1245 = vsel %vm1135, %v1123, 0
          %v1248 = vsel %vm1135, %v1124, 0
          %v1251 = vsel %vm1135, %v1125, 0
          %v1254 = vsel %vm1135, %v1126, 0
          %v1257 = vsel %vm1135, %v1127, 0
          %v1260 = vsel %vm1135, %v1128, 0
          %v1263 = vsel %vm1135, %v1129, 0
          %v1266 = vsel %vm1135, %v1130, 0
          %v1269 = vsel %vm1135, %v1131, 0
          %v1272 = vsel %vm1135, %v1132, 0
          %v1275 = vsel %vm1135, %v1133, 0
          %v1278 = vsel %vm1135, %v1134, 0
          %1280 = vmatpush.bf16.xpose.msra.mxu0 %v1254
          %1281 = vmatpush.bf16.xpose.msra.mxu0 %v1251
          %1282 = vmatpush.bf16.xpose.msra.mxu0 %v1248
          %1283 = vmatpush.bf16.xpose.msra.mxu0 %v1245
          %1284 = vmatpush.bf16.xpose.msra.mxu0 %v1242
          %1285 = vmatpush.bf16.xpose.msra.mxu0 %v1239
          %1286 = vmatpush.bf16.xpose.msra.mxu0 %v1236
          %1287 = vmatpush.bf16.xpose.msra.mxu0 %v1233
          %1288 = vmatmul.bf16.gmra.mxu0 %v1137
          %v1289 = vpop.f32.mrf.mxu0
          %v1290 = vadd.f32 0.0, %v1289
          %v1291 = vpop.f32.mrf.mxu0
          %v1292 = vadd.f32 0.0, %v1291
          %1293 = vmatmul.bf16.gmra.mxu0 %v1140
          %v1294 = vpop.f32.mrf.mxu0
          %v1295 = vadd.f32 0.0, %v1294
          %v1296 = vpop.f32.mrf.mxu0
          %v1297 = vadd.f32 0.0, %v1296
          %1298 = vmatmul.bf16.gmra.mxu0 %v1143
          %v1299 = vpop.f32.mrf.mxu0
          %v1300 = vadd.f32 0.0, %v1299
          %v1301 = vpop.f32.mrf.mxu0
          %v1302 = vadd.f32 0.0, %v1301
          %1303 = vmatmul.bf16.gmra.mxu0 %v1146
          %v1304 = vpop.f32.mrf.mxu0
          %v1305 = vadd.f32 0.0, %v1304
          %v1306 = vpop.f32.mrf.mxu0
          %v1307 = vadd.f32 0.0, %v1306
          %1308 = vmatmul.bf16.gmra.mxu0 %v1149
          %v1309 = vpop.f32.mrf.mxu0
          %v1310 = vadd.f32 0.0, %v1309
          %v1311 = vpop.f32.mrf.mxu0
          %v1312 = vadd.f32 0.0, %v1311
          %1313 = vmatmul.bf16.gmra.mxu0 %v1152
          %v1314 = vpop.f32.mrf.mxu0
          %v1315 = vadd.f32 0.0, %v1314
          %v1316 = vpop.f32.mrf.mxu0
          %v1317 = vadd.f32 0.0, %v1316
          %1318 = vmatmul.bf16.gmra.mxu0 %v1155
          %v1319 = vpop.f32.mrf.mxu0
          %v1320 = vadd.f32 0.0, %v1319
          %v1321 = vpop.f32.mrf.mxu0
          %v1322 = vadd.f32 0.0, %v1321
          %1323 = vmatmul.bf16.gmra.mxu0 %v1158
          %v1324 = vpop.f32.mrf.mxu0
          %v1325 = vadd.f32 0.0, %v1324
          %v1326 = vpop.f32.mrf.mxu0
          %v1327 = vadd.f32 0.0, %v1326
          %1328 = vmatmul.bf16.gmra.mxu0 %v1161
          %v1329 = vpop.f32.mrf.mxu0
          %v1330 = vadd.f32 0.0, %v1329
          %v1331 = vpop.f32.mrf.mxu0
          %v1332 = vadd.f32 0.0, %v1331
          %1333 = vmatmul.bf16.gmra.mxu0 %v1164
          %v1334 = vpop.f32.mrf.mxu0
          %v1335 = vadd.f32 0.0, %v1334
          %v1336 = vpop.f32.mrf.mxu0
          %v1337 = vadd.f32 0.0, %v1336
          %1338 = vmatmul.bf16.gmra.mxu0 %v1167
          %v1339 = vpop.f32.mrf.mxu0
          %v1340 = vadd.f32 0.0, %v1339
          %v1341 = vpop.f32.mrf.mxu0
          %v1342 = vadd.f32 0.0, %v1341
          %1343 = vmatmul.bf16.gmra.mxu0 %v1170
          %v1344 = vpop.f32.mrf.mxu0
          %v1345 = vadd.f32 0.0, %v1344
          %v1346 = vpop.f32.mrf.mxu0
          %v1347 = vadd.f32 0.0, %v1346
          %1348 = vmatmul.bf16.gmra.mxu0 %v1173
          %v1349 = vpop.f32.mrf.mxu0
          %v1350 = vadd.f32 0.0, %v1349
          %v1351 = vpop.f32.mrf.mxu0
          %v1352 = vadd.f32 0.0, %v1351
          %1353 = vmatmul.bf16.gmra.mxu0 %v1176
          %v1354 = vpop.f32.mrf.mxu0
          %v1355 = vadd.f32 0.0, %v1354
          %v1356 = vpop.f32.mrf.mxu0
          %v1357 = vadd.f32 0.0, %v1356
          %1358 = vmatmul.bf16.gmra.mxu0 %v1179
          %v1359 = vpop.f32.mrf.mxu0
          %v1360 = vadd.f32 0.0, %v1359
          %v1361 = vpop.f32.mrf.mxu0
          %v1362 = vadd.f32 0.0, %v1361
          %1363 = vmatmul.bf16.gmra.mxu0 %v1182
          %v1364 = vpop.f32.mrf.mxu0
          %v1365 = vadd.f32 0.0, %v1364
          %v1366 = vpop.f32.mrf.mxu0
          %v1367 = vadd.f32 0.0, %v1366
          %1368 = vmatmul.bf16.gmra.mxu0 %v1185
          %v1369 = vpop.f32.mrf.mxu0
          %v1370 = vadd.f32 0.0, %v1369
          %v1371 = vpop.f32.mrf.mxu0
          %v1372 = vadd.f32 0.0, %v1371
          %1373 = vmatmul.bf16.gmra.mxu0 %v1188
          %v1374 = vpop.f32.mrf.mxu0
          %v1375 = vadd.f32 0.0, %v1374
          %v1376 = vpop.f32.mrf.mxu0
          %v1377 = vadd.f32 0.0, %v1376
          %1378 = vmatmul.bf16.gmra.mxu0 %v1191
          %v1379 = vpop.f32.mrf.mxu0
          %v1380 = vadd.f32 0.0, %v1379
          %v1381 = vpop.f32.mrf.mxu0
          %v1382 = vadd.f32 0.0, %v1381
          %1383 = vmatmul.bf16.gmra.mxu0 %v1194
          %v1384 = vpop.f32.mrf.mxu0
          %v1385 = vadd.f32 0.0, %v1384
          %v1386 = vpop.f32.mrf.mxu0
          %v1387 = vadd.f32 0.0, %v1386
          %1388 = vmatmul.bf16.gmra.mxu0 %v1197
          %v1389 = vpop.f32.mrf.mxu0
          %v1390 = vadd.f32 0.0, %v1389
          %v1391 = vpop.f32.mrf.mxu0
          %v1392 = vadd.f32 0.0, %v1391
          %1393 = vmatmul.bf16.gmra.mxu0 %v1200
          %v1394 = vpop.f32.mrf.mxu0
          %v1395 = vadd.f32 0.0, %v1394
          %v1396 = vpop.f32.mrf.mxu0
          %v1397 = vadd.f32 0.0, %v1396
          %1398 = vmatmul.bf16.gmra.mxu0 %v1203
          %v1399 = vpop.f32.mrf.mxu0
          %v1400 = vadd.f32 0.0, %v1399
          %v1401 = vpop.f32.mrf.mxu0
          %v1402 = vadd.f32 0.0, %v1401
          %1403 = vmatmul.bf16.gmra.mxu0 %v1206
          %v1404 = vpop.f32.mrf.mxu0
          %v1405 = vadd.f32 0.0, %v1404
          %v1406 = vpop.f32.mrf.mxu0
          %v1407 = vadd.f32 0.0, %v1406
          %1408 = vmatmul.bf16.gmra.mxu0 %v1209
          %v1409 = vpop.f32.mrf.mxu0
          %v1410 = vadd.f32 0.0, %v1409
          %v1411 = vpop.f32.mrf.mxu0
          %v1412 = vadd.f32 0.0, %v1411
          %1413 = vmatmul.bf16.gmra.mxu0 %v1212
          %v1414 = vpop.f32.mrf.mxu0
          %v1415 = vadd.f32 0.0, %v1414
          %v1416 = vpop.f32.mrf.mxu0
          %v1417 = vadd.f32 0.0, %v1416
          %1418 = vmatmul.bf16.gmra.mxu0 %v1215
          %v1419 = vpop.f32.mrf.mxu0
          %v1420 = vadd.f32 0.0, %v1419
          %v1421 = vpop.f32.mrf.mxu0
          %v1422 = vadd.f32 0.0, %v1421
          %1423 = vmatmul.bf16.gmra.mxu0 %v1218
          %v1424 = vpop.f32.mrf.mxu0
          %v1425 = vadd.f32 0.0, %v1424
          %v1426 = vpop.f32.mrf.mxu0
          %v1427 = vadd.f32 0.0, %v1426
          %1428 = vmatmul.bf16.gmra.mxu0 %v1221
          %v1429 = vpop.f32.mrf.mxu0
          %v1430 = vadd.f32 0.0, %v1429
          %v1431 = vpop.f32.mrf.mxu0
          %v1432 = vadd.f32 0.0, %v1431
          %1433 = vmatmul.bf16.gmra.mxu0 %v1224
          %v1434 = vpop.f32.mrf.mxu0
          %v1435 = vadd.f32 0.0, %v1434
          %v1436 = vpop.f32.mrf.mxu0
          %v1437 = vadd.f32 0.0, %v1436
          %1438 = vmatmul.bf16.gmra.mxu0 %v1227
          %v1439 = vpop.f32.mrf.mxu0
          %v1440 = vadd.f32 0.0, %v1439
          %v1441 = vpop.f32.mrf.mxu0
          %v1442 = vadd.f32 0.0, %v1441
          %1443 = vmatmul.bf16.gmra.mxu0 %v1230
          %v1444 = vpop.f32.mrf.mxu0
          %v1445 = vadd.f32 0.0, %v1444
          %v1446 = vpop.f32.mrf.mxu0
          %v1447 = vadd.f32 0.0, %v1446
          %1448 = vdwg.mxu0
          %1449 = vmatpush.bf16.xpose.msra.mxu0 %v1278
          %1450 = vmatpush.bf16.xpose.msra.mxu0 %v1275
          %1451 = vmatpush.bf16.xpose.msra.mxu0 %v1272
          %1452 = vmatpush.bf16.xpose.msra.mxu0 %v1269
          %1453 = vmatpush.bf16.xpose.msra.mxu0 %v1266
          %1454 = vmatpush.bf16.xpose.msra.mxu0 %v1263
          %1455 = vmatpush.bf16.xpose.msra.mxu0 %v1260
          %1456 = vmatpush.bf16.xpose.msra.mxu0 %v1257
          %1457 = vmatmul.bf16.gmra.mxu0 %v1137
          %v1458 = vpop.f32.mrf.mxu0
          %v1459 = vadd.f32 0.0, %v1458
          %v1460 = vpop.f32.mrf.mxu0
          %v1461 = vadd.f32 0.0, %v1460
          %1462 = vmatmul.bf16.gmra.mxu0 %v1140
          %v1463 = vpop.f32.mrf.mxu0
          %v1464 = vadd.f32 0.0, %v1463
          %v1465 = vpop.f32.mrf.mxu0
          %v1466 = vadd.f32 0.0, %v1465
          %1467 = vmatmul.bf16.gmra.mxu0 %v1143
          %v1468 = vpop.f32.mrf.mxu0
          %v1469 = vadd.f32 0.0, %v1468
          %v1470 = vpop.f32.mrf.mxu0
          %v1471 = vadd.f32 0.0, %v1470
          %1472 = vmatmul.bf16.gmra.mxu0 %v1146
          %v1473 = vpop.f32.mrf.mxu0
          %v1474 = vadd.f32 0.0, %v1473
          %v1475 = vpop.f32.mrf.mxu0
          %v1476 = vadd.f32 0.0, %v1475
          %1477 = vmatmul.bf16.gmra.mxu0 %v1149
          %v1478 = vpop.f32.mrf.mxu0
          %v1479 = vadd.f32 0.0, %v1478
          %v1480 = vpop.f32.mrf.mxu0
          %v1481 = vadd.f32 0.0, %v1480
          %1482 = vmatmul.bf16.gmra.mxu0 %v1152
          %v1483 = vpop.f32.mrf.mxu0
          %v1484 = vadd.f32 0.0, %v1483
          %v1485 = vpop.f32.mrf.mxu0
          %v1486 = vadd.f32 0.0, %v1485
          %1487 = vmatmul.bf16.gmra.mxu0 %v1155
          %v1488 = vpop.f32.mrf.mxu0
          %v1489 = vadd.f32 0.0, %v1488
          %v1490 = vpop.f32.mrf.mxu0
          %v1491 = vadd.f32 0.0, %v1490
          %1492 = vmatmul.bf16.gmra.mxu0 %v1158
          %v1493 = vpop.f32.mrf.mxu0
          %v1494 = vadd.f32 0.0, %v1493
          %v1495 = vpop.f32.mrf.mxu0
          %v1496 = vadd.f32 0.0, %v1495
          %1497 = vmatmul.bf16.gmra.mxu0 %v1161
          %v1498 = vpop.f32.mrf.mxu0
          %v1499 = vadd.f32 0.0, %v1498
          %v1500 = vpop.f32.mrf.mxu0
          %v1501 = vadd.f32 0.0, %v1500
          %1502 = vmatmul.bf16.gmra.mxu0 %v1164
          %v1503 = vpop.f32.mrf.mxu0
          %v1504 = vadd.f32 0.0, %v1503
          %v1505 = vpop.f32.mrf.mxu0
          %v1506 = vadd.f32 0.0, %v1505
          %1507 = vmatmul.bf16.gmra.mxu0 %v1167
          %v1508 = vpop.f32.mrf.mxu0
          %v1509 = vadd.f32 0.0, %v1508
          %v1510 = vpop.f32.mrf.mxu0
          %v1511 = vadd.f32 0.0, %v1510
          %1512 = vmatmul.bf16.gmra.mxu0 %v1170
          %v1513 = vpop.f32.mrf.mxu0
          %v1514 = vadd.f32 0.0, %v1513
          %v1515 = vpop.f32.mrf.mxu0
          %v1516 = vadd.f32 0.0, %v1515
          %1517 = vmatmul.bf16.gmra.mxu0 %v1173
          %v1518 = vpop.f32.mrf.mxu0
          %v1519 = vadd.f32 0.0, %v1518
          %v1520 = vpop.f32.mrf.mxu0
          %v1521 = vadd.f32 0.0, %v1520
          %1522 = vmatmul.bf16.gmra.mxu0 %v1176
          %v1523 = vpop.f32.mrf.mxu0
          %v1524 = vadd.f32 0.0, %v1523
          %v1525 = vpop.f32.mrf.mxu0
          %v1526 = vadd.f32 0.0, %v1525
          %1527 = vmatmul.bf16.gmra.mxu0 %v1179
          %v1528 = vpop.f32.mrf.mxu0
          %v1529 = vadd.f32 0.0, %v1528
          %v1530 = vpop.f32.mrf.mxu0
          %v1531 = vadd.f32 0.0, %v1530
          %1532 = vmatmul.bf16.gmra.mxu0 %v1182
          %v1533 = vpop.f32.mrf.mxu0
          %v1534 = vadd.f32 0.0, %v1533
          %v1535 = vpop.f32.mrf.mxu0
          %v1536 = vadd.f32 0.0, %v1535
          %1537 = vmatmul.bf16.gmra.mxu0 %v1185
          %v1538 = vpop.f32.mrf.mxu0
          %v1539 = vadd.f32 0.0, %v1538
          %v1540 = vpop.f32.mrf.mxu0
          %v1541 = vadd.f32 0.0, %v1540
          %1542 = vmatmul.bf16.gmra.mxu0 %v1188
          %v1543 = vpop.f32.mrf.mxu0
          %v1544 = vadd.f32 0.0, %v1543
          %v1545 = vpop.f32.mrf.mxu0
          %v1546 = vadd.f32 0.0, %v1545
          %1547 = vmatmul.bf16.gmra.mxu0 %v1191
          %v1548 = vpop.f32.mrf.mxu0
          %v1549 = vadd.f32 0.0, %v1548
          %v1550 = vpop.f32.mrf.mxu0
          %v1551 = vadd.f32 0.0, %v1550
          %1552 = vmatmul.bf16.gmra.mxu0 %v1194
          %v1553 = vpop.f32.mrf.mxu0
          %v1554 = vadd.f32 0.0, %v1553
          %v1555 = vpop.f32.mrf.mxu0
          %v1556 = vadd.f32 0.0, %v1555
          %1557 = vmatmul.bf16.gmra.mxu0 %v1197
          %v1558 = vpop.f32.mrf.mxu0
          %v1559 = vadd.f32 0.0, %v1558
          %v1560 = vpop.f32.mrf.mxu0
          %v1561 = vadd.f32 0.0, %v1560
          %1562 = vmatmul.bf16.gmra.mxu0 %v1200
          %v1563 = vpop.f32.mrf.mxu0
          %v1564 = vadd.f32 0.0, %v1563
          %v1565 = vpop.f32.mrf.mxu0
          %v1566 = vadd.f32 0.0, %v1565
          %1567 = vmatmul.bf16.gmra.mxu0 %v1203
          %v1568 = vpop.f32.mrf.mxu0
          %v1569 = vadd.f32 0.0, %v1568
          %v1570 = vpop.f32.mrf.mxu0
          %v1571 = vadd.f32 0.0, %v1570
          %1572 = vmatmul.bf16.gmra.mxu0 %v1206
          %v1573 = vpop.f32.mrf.mxu0
          %v1574 = vadd.f32 0.0, %v1573
          %v1575 = vpop.f32.mrf.mxu0
          %v1576 = vadd.f32 0.0, %v1575
          %1577 = vmatmul.bf16.gmra.mxu0 %v1209
          %v1578 = vpop.f32.mrf.mxu0
          %v1579 = vadd.f32 0.0, %v1578
          %v1580 = vpop.f32.mrf.mxu0
          %v1581 = vadd.f32 0.0, %v1580
          %1582 = vmatmul.bf16.gmra.mxu0 %v1212
          %v1583 = vpop.f32.mrf.mxu0
          %v1584 = vadd.f32 0.0, %v1583
          %v1585 = vpop.f32.mrf.mxu0
          %v1586 = vadd.f32 0.0, %v1585
          %1587 = vmatmul.bf16.gmra.mxu0 %v1215
          %v1588 = vpop.f32.mrf.mxu0
          %v1589 = vadd.f32 0.0, %v1588
          %v1590 = vpop.f32.mrf.mxu0
          %v1591 = vadd.f32 0.0, %v1590
          %1592 = vmatmul.bf16.gmra.mxu0 %v1218
          %v1593 = vpop.f32.mrf.mxu0
          %v1594 = vadd.f32 0.0, %v1593
          %v1595 = vpop.f32.mrf.mxu0
          %v1596 = vadd.f32 0.0, %v1595
          %1597 = vmatmul.bf16.gmra.mxu0 %v1221
          %v1598 = vpop.f32.mrf.mxu0
          %v1599 = vadd.f32 0.0, %v1598
          %v1600 = vpop.f32.mrf.mxu0
          %v1601 = vadd.f32 0.0, %v1600
          %1602 = vmatmul.bf16.gmra.mxu0 %v1224
          %v1603 = vpop.f32.mrf.mxu0
          %v1604 = vadd.f32 0.0, %v1603
          %v1605 = vpop.f32.mrf.mxu0
          %v1606 = vadd.f32 0.0, %v1605
          %1607 = vmatmul.bf16.gmra.mxu0 %v1227
          %v1608 = vpop.f32.mrf.mxu0
          %v1609 = vadd.f32 0.0, %v1608
          %v1610 = vpop.f32.mrf.mxu0
          %v1611 = vadd.f32 0.0, %v1610
          %1612 = vmatmul.bf16.gmra.mxu0 %v1230
          %v1613 = vpop.f32.mrf.mxu0
          %v1614 = vadd.f32 0.0, %v1613
          %v1615 = vpop.f32.mrf.mxu0
          %v1616 = vadd.f32 0.0, %v1615
          %1617 = vdwg.mxu0
          %v1618 = vld [vmem:[#allocation2] sm:$0xff]
          %v1619 = vld [vmem:[#allocation2 + $0x8] sm:$0xff]
          %v1620 = vld [vmem:[#allocation2 + $0x10] sm:$0xff]
          %v1621 = vld [vmem:[#allocation2 + $0x18] sm:$0xff]
          %v1622 = vld [vmem:[#allocation2 + $0x20] sm:$0xff]
          %v1623 = vld [vmem:[#allocation2 + $0x28] sm:$0xff]
          %v1624 = vld [vmem:[#allocation2 + $0x30] sm:$0xff]
          %v1625 = vld [vmem:[#allocation2 + $0x38] sm:$0xff]
          %v1626 = vld [vmem:[#allocation2 + $0x40] sm:$0xff]
          %v1627 = vld [vmem:[#allocation2 + $0x48] sm:$0xff]
          %v1628 = vld [vmem:[#allocation2 + $0x50] sm:$0xff]
          %v1629 = vld [vmem:[#allocation2 + $0x58] sm:$0xff]
          %v1630 = vld [vmem:[#allocation2 + $0x60] sm:$0xff]
          %v1631 = vld [vmem:[#allocation2 + $0x68] sm:$0xff]
          %v1632 = vld [vmem:[#allocation2 + $0x70] sm:$0xff]
          %v1633 = vld [vmem:[#allocation2 + $0x78] sm:$0xff]
          %v1634 = vld [vmem:[#allocation2 + $0x80] sm:$0xff]
          %v1635 = vld [vmem:[#allocation2 + $0x88] sm:$0xff]
          %v1636 = vld [vmem:[#allocation2 + $0x90] sm:$0xff]
          %v1637 = vld [vmem:[#allocation2 + $0x98] sm:$0xff]
          %v1638 = vld [vmem:[#allocation2 + $0xa0] sm:$0xff]
          %v1639 = vld [vmem:[#allocation2 + $0xa8] sm:$0xff]
          %v1640 = vld [vmem:[#allocation2 + $0xb0] sm:$0xff]
          %v1641 = vld [vmem:[#allocation2 + $0xb8] sm:$0xff]
          %v1642 = vld [vmem:[#allocation2 + $0xc0] sm:$0xff]
          %v1643 = vld [vmem:[#allocation2 + $0xc8] sm:$0xff]
          %v1644 = vld [vmem:[#allocation2 + $0xd0] sm:$0xff]
          %v1645 = vld [vmem:[#allocation2 + $0xd8] sm:$0xff]
          %v1646 = vld [vmem:[#allocation2 + $0xe0] sm:$0xff]
          %v1647 = vld [vmem:[#allocation2 + $0xe8] sm:$0xff]
          %v1648 = vld [vmem:[#allocation2 + $0xf0] sm:$0xff]
          %v1649 = vld [vmem:[#allocation2 + $0xf8] sm:$0xff]
          %v1650 = vld [vmem:[#allocation2 + $0x100] sm:$0xff]
          %v1651 = vld [vmem:[#allocation2 + $0x108] sm:$0xff]
          %v1652 = vld [vmem:[#allocation2 + $0x110] sm:$0xff]
          %v1653 = vld [vmem:[#allocation2 + $0x118] sm:$0xff]
          %v1654 = vld [vmem:[#allocation2 + $0x120] sm:$0xff]
          %v1655 = vld [vmem:[#allocation2 + $0x128] sm:$0xff]
          %v1656 = vld [vmem:[#allocation2 + $0x130] sm:$0xff]
          %v1657 = vld [vmem:[#allocation2 + $0x138] sm:$0xff]
          %v1658 = vld [vmem:[#allocation2 + $0x140] sm:$0xff]
          %v1659 = vld [vmem:[#allocation2 + $0x148] sm:$0xff]
          %v1660 = vld [vmem:[#allocation2 + $0x150] sm:$0xff]
          %v1661 = vld [vmem:[#allocation2 + $0x158] sm:$0xff]
          %v1662 = vld [vmem:[#allocation2 + $0x160] sm:$0xff]
          %v1663 = vld [vmem:[#allocation2 + $0x168] sm:$0xff]
          %v1664 = vld [vmem:[#allocation2 + $0x170] sm:$0xff]
          %v1665 = vld [vmem:[#allocation2 + $0x178] sm:$0xff]
          %v1666 = vld [vmem:[#allocation2 + $0x180] sm:$0xff]
          %v1667 = vld [vmem:[#allocation2 + $0x188] sm:$0xff]
          %v1668 = vld [vmem:[#allocation2 + $0x190] sm:$0xff]
          %v1669 = vld [vmem:[#allocation2 + $0x198] sm:$0xff]
          %v1670 = vld [vmem:[#allocation2 + $0x1a0] sm:$0xff]
          %v1671 = vld [vmem:[#allocation2 + $0x1a8] sm:$0xff]
          %v1672 = vld [vmem:[#allocation2 + $0x1b0] sm:$0xff]
          %v1673 = vld [vmem:[#allocation2 + $0x1b8] sm:$0xff]
          %v1674 = vld [vmem:[#allocation2 + $0x1c0] sm:$0xff]
          %v1675 = vld [vmem:[#allocation2 + $0x1c8] sm:$0xff]
          %v1676 = vld [vmem:[#allocation2 + $0x1d0] sm:$0xff]
          %v1677 = vld [vmem:[#allocation2 + $0x1d8] sm:$0xff]
          %v1678 = vld [vmem:[#allocation2 + $0x1e0] sm:$0xff]
          %v1679 = vld [vmem:[#allocation2 + $0x1e8] sm:$0xff]
          %v1680 = vld [vmem:[#allocation2 + $0x1f0] sm:$0xff]
          %v1681 = vld [vmem:[#allocation2 + $0x1f8] sm:$0xff]
          %v1682 = vmax.f32 %v1290, %v1459
          %1683 = vmax.xlane.f32.xlu0 %v1682
          %v1684 = vpop.xlane.xlu0 %1683
          %v1685 = vmax.f32 %v1292, %v1461
          %1686 = vmax.xlane.f32.xlu0 %v1685
          %v1687 = vpop.xlane.xlu0 %1686
          %v1688 = vmax.f32 %v1295, %v1464
          %1689 = vmax.xlane.f32.xlu0 %v1688
          %v1690 = vpop.xlane.xlu0 %1689
          %v1691 = vmax.f32 %v1297, %v1466
          %1692 = vmax.xlane.f32.xlu0 %v1691
          %v1693 = vpop.xlane.xlu0 %1692
          %v1694 = vmax.f32 %v1300, %v1469
          %1695 = vmax.xlane.f32.xlu0 %v1694
          %v1696 = vpop.xlane.xlu0 %1695
          %v1697 = vmax.f32 %v1302, %v1471
          %1698 = vmax.xlane.f32.xlu0 %v1697
          %v1699 = vpop.xlane.xlu0 %1698
          %v1700 = vmax.f32 %v1305, %v1474
          %1701 = vmax.xlane.f32.xlu0 %v1700
          %v1702 = vpop.xlane.xlu0 %1701
          %v1703 = vmax.f32 %v1307, %v1476
          %1704 = vmax.xlane.f32.xlu0 %v1703
          %v1705 = vpop.xlane.xlu0 %1704
          %v1706 = vmax.f32 %v1310, %v1479
          %1707 = vmax.xlane.f32.xlu0 %v1706
          %v1708 = vpop.xlane.xlu0 %1707
          %v1709 = vmax.f32 %v1312, %v1481
          %1710 = vmax.xlane.f32.xlu0 %v1709
          %v1711 = vpop.xlane.xlu0 %1710
          %v1712 = vmax.f32 %v1315, %v1484
          %1713 = vmax.xlane.f32.xlu0 %v1712
          %v1714 = vpop.xlane.xlu0 %1713
          %v1715 = vmax.f32 %v1317, %v1486
          %1716 = vmax.xlane.f32.xlu0 %v1715
          %v1717 = vpop.xlane.xlu0 %1716
          %v1718 = vmax.f32 %v1320, %v1489
          %1719 = vmax.xlane.f32.xlu0 %v1718
          %v1720 = vpop.xlane.xlu0 %1719
          %v1721 = vmax.f32 %v1322, %v1491
          %1722 = vmax.xlane.f32.xlu0 %v1721
          %v1723 = vpop.xlane.xlu0 %1722
          %v1724 = vmax.f32 %v1325, %v1494
          %1725 = vmax.xlane.f32.xlu0 %v1724
          %v1726 = vpop.xlane.xlu0 %1725
          %v1727 = vmax.f32 %v1327, %v1496
          %1728 = vmax.xlane.f32.xlu0 %v1727
          %v1729 = vpop.xlane.xlu0 %1728
          %v1730 = vmax.f32 %v1330, %v1499
          %1731 = vmax.xlane.f32.xlu0 %v1730
          %v1732 = vpop.xlane.xlu0 %1731
          %v1733 = vmax.f32 %v1332, %v1501
          %1734 = vmax.xlane.f32.xlu0 %v1733
          %v1735 = vpop.xlane.xlu0 %1734
          %v1736 = vmax.f32 %v1335, %v1504
          %1737 = vmax.xlane.f32.xlu0 %v1736
          %v1738 = vpop.xlane.xlu0 %1737
          %v1739 = vmax.f32 %v1337, %v1506
          %1740 = vmax.xlane.f32.xlu0 %v1739
          %v1741 = vpop.xlane.xlu0 %1740
          %v1742 = vmax.f32 %v1340, %v1509
          %1743 = vmax.xlane.f32.xlu0 %v1742
          %v1744 = vpop.xlane.xlu0 %1743
          %v1745 = vmax.f32 %v1342, %v1511
          %1746 = vmax.xlane.f32.xlu0 %v1745
          %v1747 = vpop.xlane.xlu0 %1746
          %v1748 = vmax.f32 %v1345, %v1514
          %1749 = vmax.xlane.f32.xlu0 %v1748
          %v1750 = vpop.xlane.xlu0 %1749
          %v1751 = vmax.f32 %v1347, %v1516
          %1752 = vmax.xlane.f32.xlu0 %v1751
          %v1753 = vpop.xlane.xlu0 %1752
          %v1754 = vmax.f32 %v1350, %v1519
          %1755 = vmax.xlane.f32.xlu0 %v1754
          %v1756 = vpop.xlane.xlu0 %1755
          %v1757 = vmax.f32 %v1352, %v1521
          %1758 = vmax.xlane.f32.xlu0 %v1757
          %v1759 = vpop.xlane.xlu0 %1758
          %v1760 = vmax.f32 %v1355, %v1524
          %1761 = vmax.xlane.f32.xlu0 %v1760
          %v1762 = vpop.xlane.xlu0 %1761
          %v1763 = vmax.f32 %v1357, %v1526
          %1764 = vmax.xlane.f32.xlu0 %v1763
          %v1765 = vpop.xlane.xlu0 %1764
          %v1766 = vmax.f32 %v1360, %v1529
          %1767 = vmax.xlane.f32.xlu0 %v1766
          %v1768 = vpop.xlane.xlu0 %1767
          %v1769 = vmax.f32 %v1362, %v1531
          %1770 = vmax.xlane.f32.xlu0 %v1769
          %v1771 = vpop.xlane.xlu0 %1770
          %v1772 = vmax.f32 %v1365, %v1534
          %1773 = vmax.xlane.f32.xlu0 %v1772
          %v1774 = vpop.xlane.xlu0 %1773
          %v1775 = vmax.f32 %v1367, %v1536
          %1776 = vmax.xlane.f32.xlu0 %v1775
          %v1777 = vpop.xlane.xlu0 %1776
          %v1778 = vmax.f32 %v1370, %v1539
          %1779 = vmax.xlane.f32.xlu0 %v1778
          %v1780 = vpop.xlane.xlu0 %1779
          %v1781 = vmax.f32 %v1372, %v1541
          %1782 = vmax.xlane.f32.xlu0 %v1781
          %v1783 = vpop.xlane.xlu0 %1782
          %v1784 = vmax.f32 %v1375, %v1544
          %1785 = vmax.xlane.f32.xlu0 %v1784
          %v1786 = vpop.xlane.xlu0 %1785
          %v1787 = vmax.f32 %v1377, %v1546
          %1788 = vmax.xlane.f32.xlu0 %v1787
          %v1789 = vpop.xlane.xlu0 %1788
          %v1790 = vmax.f32 %v1380, %v1549
          %1791 = vmax.xlane.f32.xlu0 %v1790
          %v1792 = vpop.xlane.xlu0 %1791
          %v1793 = vmax.f32 %v1382, %v1551
          %1794 = vmax.xlane.f32.xlu0 %v1793
          %v1795 = vpop.xlane.xlu0 %1794
          %v1796 = vmax.f32 %v1385, %v1554
          %1797 = vmax.xlane.f32.xlu0 %v1796
          %v1798 = vpop.xlane.xlu0 %1797
          %v1799 = vmax.f32 %v1387, %v1556
          %1800 = vmax.xlane.f32.xlu0 %v1799
          %v1801 = vpop.xlane.xlu0 %1800
          %v1802 = vmax.f32 %v1390, %v1559
          %1803 = vmax.xlane.f32.xlu0 %v1802
          %v1804 = vpop.xlane.xlu0 %1803
          %v1805 = vmax.f32 %v1392, %v1561
          %1806 = vmax.xlane.f32.xlu0 %v1805
          %v1807 = vpop.xlane.xlu0 %1806
          %v1808 = vmax.f32 %v1395, %v1564
          %1809 = vmax.xlane.f32.xlu0 %v1808
          %v1810 = vpop.xlane.xlu0 %1809
          %v1811 = vmax.f32 %v1397, %v1566
          %1812 = vmax.xlane.f32.xlu0 %v1811
          %v1813 = vpop.xlane.xlu0 %1812
          %v1814 = vmax.f32 %v1400, %v1569
          %1815 = vmax.xlane.f32.xlu0 %v1814
          %v1816 = vpop.xlane.xlu0 %1815
          %v1817 = vmax.f32 %v1402, %v1571
          %1818 = vmax.xlane.f32.xlu0 %v1817
          %v1819 = vpop.xlane.xlu0 %1818
          %v1820 = vmax.f32 %v1405, %v1574
          %1821 = vmax.xlane.f32.xlu0 %v1820
          %v1822 = vpop.xlane.xlu0 %1821
          %v1823 = vmax.f32 %v1407, %v1576
          %1824 = vmax.xlane.f32.xlu0 %v1823
          %v1825 = vpop.xlane.xlu0 %1824
          %v1826 = vmax.f32 %v1410, %v1579
          %1827 = vmax.xlane.f32.xlu0 %v1826
          %v1828 = vpop.xlane.xlu0 %1827
          %v1829 = vmax.f32 %v1412, %v1581
          %1830 = vmax.xlane.f32.xlu0 %v1829
          %v1831 = vpop.xlane.xlu0 %1830
          %v1832 = vmax.f32 %v1415, %v1584
          %1833 = vmax.xlane.f32.xlu0 %v1832
          %v1834 = vpop.xlane.xlu0 %1833
          %v1835 = vmax.f32 %v1417, %v1586
          %1836 = vmax.xlane.f32.xlu0 %v1835
          %v1837 = vpop.xlane.xlu0 %1836
          %v1838 = vmax.f32 %v1420, %v1589
          %1839 = vmax.xlane.f32.xlu0 %v1838
          %v1840 = vpop.xlane.xlu0 %1839
          %v1841 = vmax.f32 %v1422, %v1591
          %1842 = vmax.xlane.f32.xlu0 %v1841
          %v1843 = vpop.xlane.xlu0 %1842
          %v1844 = vmax.f32 %v1425, %v1594
          %1845 = vmax.xlane.f32.xlu0 %v1844
          %v1846 = vpop.xlane.xlu0 %1845
          %v1847 = vmax.f32 %v1427, %v1596
          %1848 = vmax.xlane.f32.xlu0 %v1847
          %v1849 = vpop.xlane.xlu0 %1848
          %v1850 = vmax.f32 %v1430, %v1599
          %1851 = vmax.xlane.f32.xlu0 %v1850
          %v1852 = vpop.xlane.xlu0 %1851
          %v1853 = vmax.f32 %v1432, %v1601
          %1854 = vmax.xlane.f32.xlu0 %v1853
          %v1855 = vpop.xlane.xlu0 %1854
          %v1856 = vmax.f32 %v1435, %v1604
          %1857 = vmax.xlane.f32.xlu0 %v1856
          %v1858 = vpop.xlane.xlu0 %1857
          %v1859 = vmax.f32 %v1437, %v1606
          %1860 = vmax.xlane.f32.xlu0 %v1859
          %v1861 = vpop.xlane.xlu0 %1860
          %v1862 = vmax.f32 %v1440, %v1609
          %1863 = vmax.xlane.f32.xlu0 %v1862
          %v1864 = vpop.xlane.xlu0 %1863
          %v1865 = vmax.f32 %v1442, %v1611
          %1866 = vmax.xlane.f32.xlu0 %v1865
          %v1867 = vpop.xlane.xlu0 %1866
          %v1868 = vmax.f32 %v1445, %v1614
          %1869 = vmax.xlane.f32.xlu0 %v1868
          %v1870 = vpop.xlane.xlu0 %1869
          %v1871 = vmax.f32 %v1447, %v1616
          %1872 = vmax.xlane.f32.xlu0 %v1871
          %v1873 = vpop.xlane.xlu0 %1872
          %v1874 = vmax.f32 %v1618, %v1684
          %v1875 = vmax.f32 %v1619, %v1687
          %v1876 = vmax.f32 %v1620, %v1690
          %v1877 = vmax.f32 %v1621, %v1693
          %v1878 = vmax.f32 %v1622, %v1696
          %v1879 = vmax.f32 %v1623, %v1699
          %v1880 = vmax.f32 %v1624, %v1702
          %v1881 = vmax.f32 %v1625, %v1705
          %v1882 = vmax.f32 %v1626, %v1708
          %v1883 = vmax.f32 %v1627, %v1711
          %v1884 = vmax.f32 %v1628, %v1714
          %v1885 = vmax.f32 %v1629, %v1717
          %v1886 = vmax.f32 %v1630, %v1720
          %v1887 = vmax.f32 %v1631, %v1723
          %v1888 = vmax.f32 %v1632, %v1726
          %v1889 = vmax.f32 %v1633, %v1729
          %v1890 = vmax.f32 %v1634, %v1732
          %v1891 = vmax.f32 %v1635, %v1735
          %v1892 = vmax.f32 %v1636, %v1738
          %v1893 = vmax.f32 %v1637, %v1741
          %v1894 = vmax.f32 %v1638, %v1744
          %v1895 = vmax.f32 %v1639, %v1747
          %v1896 = vmax.f32 %v1640, %v1750
          %v1897 = vmax.f32 %v1641, %v1753
          %v1898 = vmax.f32 %v1642, %v1756
          %v1899 = vmax.f32 %v1643, %v1759
          %v1900 = vmax.f32 %v1644, %v1762
          %v1901 = vmax.f32 %v1645, %v1765
          %v1902 = vmax.f32 %v1646, %v1768
          %v1903 = vmax.f32 %v1647, %v1771
          %v1904 = vmax.f32 %v1648, %v1774
          %v1905 = vmax.f32 %v1649, %v1777
          %v1906 = vmax.f32 %v1650, %v1780
          %v1907 = vmax.f32 %v1651, %v1783
          %v1908 = vmax.f32 %v1652, %v1786
          %v1909 = vmax.f32 %v1653, %v1789
          %v1910 = vmax.f32 %v1654, %v1792
          %v1911 = vmax.f32 %v1655, %v1795
          %v1912 = vmax.f32 %v1656, %v1798
          %v1913 = vmax.f32 %v1657, %v1801
          %v1914 = vmax.f32 %v1658, %v1804
          %v1915 = vmax.f32 %v1659, %v1807
          %v1916 = vmax.f32 %v1660, %v1810
          %v1917 = vmax.f32 %v1661, %v1813
          %v1918 = vmax.f32 %v1662, %v1816
          %v1919 = vmax.f32 %v1663, %v1819
          %v1920 = vmax.f32 %v1664, %v1822
          %v1921 = vmax.f32 %v1665, %v1825
          %v1922 = vmax.f32 %v1666, %v1828
          %v1923 = vmax.f32 %v1667, %v1831
          %v1924 = vmax.f32 %v1668, %v1834
          %v1925 = vmax.f32 %v1669, %v1837
          %v1926 = vmax.f32 %v1670, %v1840
          %v1927 = vmax.f32 %v1671, %v1843
          %v1928 = vmax.f32 %v1672, %v1846
          %v1929 = vmax.f32 %v1673, %v1849
          %v1930 = vmax.f32 %v1674, %v1852
          %v1931 = vmax.f32 %v1675, %v1855
          %v1932 = vmax.f32 %v1676, %v1858
          %v1933 = vmax.f32 %v1677, %v1861
          %v1934 = vmax.f32 %v1678, %v1864
          %v1935 = vmax.f32 %v1679, %v1867
          %v1936 = vmax.f32 %v1680, %v1870
          %v1937 = vmax.f32 %v1681, %v1873
          %v1938 = vsub.f32 %v1618, %v1874
          %v1939 = vsub.f32 %v1619, %v1875
          %v1940 = vsub.f32 %v1620, %v1876
          %v1941 = vsub.f32 %v1621, %v1877
          %v1942 = vsub.f32 %v1622, %v1878
          %v1943 = vsub.f32 %v1623, %v1879
          %v1944 = vsub.f32 %v1624, %v1880
          %v1945 = vsub.f32 %v1625, %v1881
          %v1946 = vsub.f32 %v1626, %v1882
          %v1947 = vsub.f32 %v1627, %v1883
          %v1948 = vsub.f32 %v1628, %v1884
          %v1949 = vsub.f32 %v1629, %v1885
          %v1950 = vsub.f32 %v1630, %v1886
          %v1951 = vsub.f32 %v1631, %v1887
          %v1952 = vsub.f32 %v1632, %v1888
          %v1953 = vsub.f32 %v1633, %v1889
          %v1954 = vsub.f32 %v1634, %v1890
          %v1955 = vsub.f32 %v1635, %v1891
          %v1956 = vsub.f32 %v1636, %v1892
          %v1957 = vsub.f32 %v1637, %v1893
          %v1958 = vsub.f32 %v1638, %v1894
          %v1959 = vsub.f32 %v1639, %v1895
          %v1960 = vsub.f32 %v1640, %v1896
          %v1961 = vsub.f32 %v1641, %v1897
          %v1962 = vsub.f32 %v1642, %v1898
          %v1963 = vsub.f32 %v1643, %v1899
          %v1964 = vsub.f32 %v1644, %v1900
          %v1965 = vsub.f32 %v1645, %v1901
          %v1966 = vsub.f32 %v1646, %v1902
          %v1967 = vsub.f32 %v1647, %v1903
          %v1968 = vsub.f32 %v1648, %v1904
          %v1969 = vsub.f32 %v1649, %v1905
          %v1970 = vsub.f32 %v1650, %v1906
          %v1971 = vsub.f32 %v1651, %v1907
          %v1972 = vsub.f32 %v1652, %v1908
          %v1973 = vsub.f32 %v1653, %v1909
          %v1974 = vsub.f32 %v1654, %v1910
          %v1975 = vsub.f32 %v1655, %v1911
          %v1976 = vsub.f32 %v1656, %v1912
          %v1977 = vsub.f32 %v1657, %v1913
          %v1978 = vsub.f32 %v1658, %v1914
          %v1979 = vsub.f32 %v1659, %v1915
          %v1980 = vsub.f32 %v1660, %v1916
          %v1981 = vsub.f32 %v1661, %v1917
          %v1982 = vsub.f32 %v1662, %v1918
          %v1983 = vsub.f32 %v1663, %v1919
          %v1984 = vsub.f32 %v1664, %v1920
          %v1985 = vsub.f32 %v1665, %v1921
          %v1986 = vsub.f32 %v1666, %v1922
          %v1987 = vsub.f32 %v1667, %v1923
          %v1988 = vsub.f32 %v1668, %v1924
          %v1989 = vsub.f32 %v1669, %v1925
          %v1990 = vsub.f32 %v1670, %v1926
          %v1991 = vsub.f32 %v1671, %v1927
          %v1992 = vsub.f32 %v1672, %v1928
          %v1993 = vsub.f32 %v1673, %v1929
          %v1994 = vsub.f32 %v1674, %v1930
          %v1995 = vsub.f32 %v1675, %v1931
          %v1996 = vsub.f32 %v1676, %v1932
          %v1997 = vsub.f32 %v1677, %v1933
          %v1998 = vsub.f32 %v1678, %v1934
          %v1999 = vsub.f32 %v1679, %v1935
          %v2000 = vsub.f32 %v1680, %v1936
          %v2001 = vsub.f32 %v1681, %v1937
          %v2002 = vmul.f32 %v1938, 1.442695
          %v2003 = vpow.pop %v2002
          %v2004 = vmul.f32 %v1939, 1.442695
          %v2005 = vpow.pop %v2004
          %v2006 = vmul.f32 %v1940, 1.442695
          %v2007 = vpow.pop %v2006
          %v2008 = vmul.f32 %v1941, 1.442695
          %v2009 = vpow.pop %v2008
          %v2010 = vmul.f32 %v1942, 1.442695
          %v2011 = vpow.pop %v2010
          %v2012 = vmul.f32 %v1943, 1.442695
          %v2013 = vpow.pop %v2012
          %v2014 = vmul.f32 %v1944, 1.442695
          %v2015 = vpow.pop %v2014
          %v2016 = vmul.f32 %v1945, 1.442695
          %v2017 = vpow.pop %v2016
          %v2018 = vmul.f32 %v1946, 1.442695
          %v2019 = vpow.pop %v2018
          %v2020 = vmul.f32 %v1947, 1.442695
          %v2021 = vpow.pop %v2020
          %v2022 = vmul.f32 %v1948, 1.442695
          %v2023 = vpow.pop %v2022
          %v2024 = vmul.f32 %v1949, 1.442695
          %v2025 = vpow.pop %v2024
          %v2026 = vmul.f32 %v1950, 1.442695
          %v2027 = vpow.pop %v2026
          %v2028 = vmul.f32 %v1951, 1.442695
          %v2029 = vpow.pop %v2028
          %v2030 = vmul.f32 %v1952, 1.442695
          %v2031 = vpow.pop %v2030
          %v2032 = vmul.f32 %v1953, 1.442695
          %v2033 = vpow.pop %v2032
          %v2034 = vmul.f32 %v1954, 1.442695
          %v2035 = vpow.pop %v2034
          %v2036 = vmul.f32 %v1955, 1.442695
          %v2037 = vpow.pop %v2036
          %v2038 = vmul.f32 %v1956, 1.442695
          %v2039 = vpow.pop %v2038
          %v2040 = vmul.f32 %v1957, 1.442695
          %v2041 = vpow.pop %v2040
          %v2042 = vmul.f32 %v1958, 1.442695
          %v2043 = vpow.pop %v2042
          %v2044 = vmul.f32 %v1959, 1.442695
          %v2045 = vpow.pop %v2044
          %v2046 = vmul.f32 %v1960, 1.442695
          %v2047 = vpow.pop %v2046
          %v2048 = vmul.f32 %v1961, 1.442695
          %v2049 = vpow.pop %v2048
          %v2050 = vmul.f32 %v1962, 1.442695
          %v2051 = vpow.pop %v2050
          %v2052 = vmul.f32 %v1963, 1.442695
          %v2053 = vpow.pop %v2052
          %v2054 = vmul.f32 %v1964, 1.442695
          %v2055 = vpow.pop %v2054
          %v2056 = vmul.f32 %v1965, 1.442695
          %v2057 = vpow.pop %v2056
          %v2058 = vmul.f32 %v1966, 1.442695
          %v2059 = vpow.pop %v2058
          %v2060 = vmul.f32 %v1967, 1.442695
          %v2061 = vpow.pop %v2060
          %v2062 = vmul.f32 %v1968, 1.442695
          %v2063 = vpow.pop %v2062
          %v2064 = vmul.f32 %v1969, 1.442695
          %v2065 = vpow.pop %v2064
          %v2066 = vmul.f32 %v1970, 1.442695
          %v2067 = vpow.pop %v2066
          %v2068 = vmul.f32 %v1971, 1.442695
          %v2069 = vpow.pop %v2068
          %v2070 = vmul.f32 %v1972, 1.442695
          %v2071 = vpow.pop %v2070
          %v2072 = vmul.f32 %v1973, 1.442695
          %v2073 = vpow.pop %v2072
          %v2074 = vmul.f32 %v1974, 1.442695
          %v2075 = vpow.pop %v2074
          %v2076 = vmul.f32 %v1975, 1.442695
          %v2077 = vpow.pop %v2076
          %v2078 = vmul.f32 %v1976, 1.442695
          %v2079 = vpow.pop %v2078
          %v2080 = vmul.f32 %v1977, 1.442695
          %v2081 = vpow.pop %v2080
          %v2082 = vmul.f32 %v1978, 1.442695
          %v2083 = vpow.pop %v2082
          %v2084 = vmul.f32 %v1979, 1.442695
          %v2085 = vpow.pop %v2084
          %v2086 = vmul.f32 %v1980, 1.442695
          %v2087 = vpow.pop %v2086
          %v2088 = vmul.f32 %v1981, 1.442695
          %v2089 = vpow.pop %v2088
          %v2090 = vmul.f32 %v1982, 1.442695
          %v2091 = vpow.pop %v2090
          %v2092 = vmul.f32 %v1983, 1.442695
          %v2093 = vpow.pop %v2092
          %v2094 = vmul.f32 %v1984, 1.442695
          %v2095 = vpow.pop %v2094
          %v2096 = vmul.f32 %v1985, 1.442695
          %v2097 = vpow.pop %v2096
          %v2098 = vmul.f32 %v1986, 1.442695
          %v2099 = vpow.pop %v2098
          %v2100 = vmul.f32 %v1987, 1.442695
          %v2101 = vpow.pop %v2100
          %v2102 = vmul.f32 %v1988, 1.442695
          %v2103 = vpow.pop %v2102
          %v2104 = vmul.f32 %v1989, 1.442695
          %v2105 = vpow.pop %v2104
          %v2106 = vmul.f32 %v1990, 1.442695
          %v2107 = vpow.pop %v2106
          %v2108 = vmul.f32 %v1991, 1.442695
          %v2109 = vpow.pop %v2108
          %v2110 = vmul.f32 %v1992, 1.442695
          %v2111 = vpow.pop %v2110
          %v2112 = vmul.f32 %v1993, 1.442695
          %v2113 = vpow.pop %v2112
          %v2114 = vmul.f32 %v1994, 1.442695
          %v2115 = vpow.pop %v2114
          %v2116 = vmul.f32 %v1995, 1.442695
          %v2117 = vpow.pop %v2116
          %v2118 = vmul.f32 %v1996, 1.442695
          %v2119 = vpow.pop %v2118
          %v2120 = vmul.f32 %v1997, 1.442695
          %v2121 = vpow.pop %v2120
          %v2122 = vmul.f32 %v1998, 1.442695
          %v2123 = vpow.pop %v2122
          %v2124 = vmul.f32 %v1999, 1.442695
          %v2125 = vpow.pop %v2124
          %v2126 = vmul.f32 %v2000, 1.442695
          %v2127 = vpow.pop %v2126
          %v2128 = vmul.f32 %v2001, 1.442695
          %v2129 = vpow.pop %v2128
          %2131 = vset.pattern.permute.xlu0 0
          %2132 = vperm.xlu0 %2131, %v1874
          %v2133 = vpop.permute.xlu0 %2132
          %2136 = vset.pattern.permute.xlu0 0
          %2137 = vperm.xlu0 %2136, %v1875
          %v2138 = vpop.permute.xlu0 %2137
          %2141 = vset.pattern.permute.xlu0 0
          %2142 = vperm.xlu0 %2141, %v1876
          %v2143 = vpop.permute.xlu0 %2142
          %2146 = vset.pattern.permute.xlu0 0
          %2147 = vperm.xlu0 %2146, %v1877
          %v2148 = vpop.permute.xlu0 %2147
          %2151 = vset.pattern.permute.xlu0 0
          %2152 = vperm.xlu0 %2151, %v1878
          %v2153 = vpop.permute.xlu0 %2152
          %2156 = vset.pattern.permute.xlu0 0
          %2157 = vperm.xlu0 %2156, %v1879
          %v2158 = vpop.permute.xlu0 %2157
          %2161 = vset.pattern.permute.xlu0 0
          %2162 = vperm.xlu0 %2161, %v1880
          %v2163 = vpop.permute.xlu0 %2162
          %2166 = vset.pattern.permute.xlu0 0
          %2167 = vperm.xlu0 %2166, %v1881
          %v2168 = vpop.permute.xlu0 %2167
          %2171 = vset.pattern.permute.xlu0 0
          %2172 = vperm.xlu0 %2171, %v1882
          %v2173 = vpop.permute.xlu0 %2172
          %2176 = vset.pattern.permute.xlu0 0
          %2177 = vperm.xlu0 %2176, %v1883
          %v2178 = vpop.permute.xlu0 %2177
          %2181 = vset.pattern.permute.xlu0 0
          %2182 = vperm.xlu0 %2181, %v1884
          %v2183 = vpop.permute.xlu0 %2182
          %2186 = vset.pattern.permute.xlu0 0
          %2187 = vperm.xlu0 %2186, %v1885
          %v2188 = vpop.permute.xlu0 %2187
          %2191 = vset.pattern.permute.xlu0 0
          %2192 = vperm.xlu0 %2191, %v1886
          %v2193 = vpop.permute.xlu0 %2192
          %2196 = vset.pattern.permute.xlu0 0
          %2197 = vperm.xlu0 %2196, %v1887
          %v2198 = vpop.permute.xlu0 %2197
          %2201 = vset.pattern.permute.xlu0 0
          %2202 = vperm.xlu0 %2201, %v1888
          %v2203 = vpop.permute.xlu0 %2202
          %2206 = vset.pattern.permute.xlu0 0
          %2207 = vperm.xlu0 %2206, %v1889
          %v2208 = vpop.permute.xlu0 %2207
          %2211 = vset.pattern.permute.xlu0 0
          %2212 = vperm.xlu0 %2211, %v1890
          %v2213 = vpop.permute.xlu0 %2212
          %2216 = vset.pattern.permute.xlu0 0
          %2217 = vperm.xlu0 %2216, %v1891
          %v2218 = vpop.permute.xlu0 %2217
          %2221 = vset.pattern.permute.xlu0 0
          %2222 = vperm.xlu0 %2221, %v1892
          %v2223 = vpop.permute.xlu0 %2222
          %2226 = vset.pattern.permute.xlu0 0
          %2227 = vperm.xlu0 %2226, %v1893
          %v2228 = vpop.permute.xlu0 %2227
          %2231 = vset.pattern.permute.xlu0 0
          %2232 = vperm.xlu0 %2231, %v1894
          %v2233 = vpop.permute.xlu0 %2232
          %2236 = vset.pattern.permute.xlu0 0
          %2237 = vperm.xlu0 %2236, %v1895
          %v2238 = vpop.permute.xlu0 %2237
          %2241 = vset.pattern.permute.xlu0 0
          %2242 = vperm.xlu0 %2241, %v1896
          %v2243 = vpop.permute.xlu0 %2242
          %2246 = vset.pattern.permute.xlu0 0
          %2247 = vperm.xlu0 %2246, %v1897
          %v2248 = vpop.permute.xlu0 %2247
          %2251 = vset.pattern.permute.xlu0 0
          %2252 = vperm.xlu0 %2251, %v1898
          %v2253 = vpop.permute.xlu0 %2252
          %2256 = vset.pattern.permute.xlu0 0
          %2257 = vperm.xlu0 %2256, %v1899
          %v2258 = vpop.permute.xlu0 %2257
          %2261 = vset.pattern.permute.xlu0 0
          %2262 = vperm.xlu0 %2261, %v1900
          %v2263 = vpop.permute.xlu0 %2262
          %2266 = vset.pattern.permute.xlu0 0
          %2267 = vperm.xlu0 %2266, %v1901
          %v2268 = vpop.permute.xlu0 %2267
          %2271 = vset.pattern.permute.xlu0 0
          %2272 = vperm.xlu0 %2271, %v1902
          %v2273 = vpop.permute.xlu0 %2272
          %2276 = vset.pattern.permute.xlu0 0
          %2277 = vperm.xlu0 %2276, %v1903
          %v2278 = vpop.permute.xlu0 %2277
          %2281 = vset.pattern.permute.xlu0 0
          %2282 = vperm.xlu0 %2281, %v1904
          %v2283 = vpop.permute.xlu0 %2282
          %2286 = vset.pattern.permute.xlu0 0
          %2287 = vperm.xlu0 %2286, %v1905
          %v2288 = vpop.permute.xlu0 %2287
          %2291 = vset.pattern.permute.xlu0 0
          %2292 = vperm.xlu0 %2291, %v1906
          %v2293 = vpop.permute.xlu0 %2292
          %2296 = vset.pattern.permute.xlu0 0
          %2297 = vperm.xlu0 %2296, %v1907
          %v2298 = vpop.permute.xlu0 %2297
          %2301 = vset.pattern.permute.xlu0 0
          %2302 = vperm.xlu0 %2301, %v1908
          %v2303 = vpop.permute.xlu0 %2302
          %2306 = vset.pattern.permute.xlu0 0
          %2307 = vperm.xlu0 %2306, %v1909
          %v2308 = vpop.permute.xlu0 %2307
          %2311 = vset.pattern.permute.xlu0 0
          %2312 = vperm.xlu0 %2311, %v1910
          %v2313 = vpop.permute.xlu0 %2312
          %2316 = vset.pattern.permute.xlu0 0
          %2317 = vperm.xlu0 %2316, %v1911
          %v2318 = vpop.permute.xlu0 %2317
          %2321 = vset.pattern.permute.xlu0 0
          %2322 = vperm.xlu0 %2321, %v1912
          %v2323 = vpop.permute.xlu0 %2322
          %2326 = vset.pattern.permute.xlu0 0
          %2327 = vperm.xlu0 %2326, %v1913
          %v2328 = vpop.permute.xlu0 %2327
          %2331 = vset.pattern.permute.xlu0 0
          %2332 = vperm.xlu0 %2331, %v1914
          %v2333 = vpop.permute.xlu0 %2332
          %2336 = vset.pattern.permute.xlu0 0
          %2337 = vperm.xlu0 %2336, %v1915
          %v2338 = vpop.permute.xlu0 %2337
          %2341 = vset.pattern.permute.xlu0 0
          %2342 = vperm.xlu0 %2341, %v1916
          %v2343 = vpop.permute.xlu0 %2342
          %2346 = vset.pattern.permute.xlu0 0
          %2347 = vperm.xlu0 %2346, %v1917
          %v2348 = vpop.permute.xlu0 %2347
          %2351 = vset.pattern.permute.xlu0 0
          %2352 = vperm.xlu0 %2351, %v1918
          %v2353 = vpop.permute.xlu0 %2352
          %2356 = vset.pattern.permute.xlu0 0
          %2357 = vperm.xlu0 %2356, %v1919
          %v2358 = vpop.permute.xlu0 %2357
          %2361 = vset.pattern.permute.xlu0 0
          %2362 = vperm.xlu0 %2361, %v1920
          %v2363 = vpop.permute.xlu0 %2362
          %2366 = vset.pattern.permute.xlu0 0
          %2367 = vperm.xlu0 %2366, %v1921
          %v2368 = vpop.permute.xlu0 %2367
          %2371 = vset.pattern.permute.xlu0 0
          %2372 = vperm.xlu0 %2371, %v1922
          %v2373 = vpop.permute.xlu0 %2372
          %2376 = vset.pattern.permute.xlu0 0
          %2377 = vperm.xlu0 %2376, %v1923
          %v2378 = vpop.permute.xlu0 %2377
          %2381 = vset.pattern.permute.xlu0 0
          %2382 = vperm.xlu0 %2381, %v1924
          %v2383 = vpop.permute.xlu0 %2382
          %2386 = vset.pattern.permute.xlu0 0
          %2387 = vperm.xlu0 %2386, %v1925
          %v2388 = vpop.permute.xlu0 %2387
          %2391 = vset.pattern.permute.xlu0 0
          %2392 = vperm.xlu0 %2391, %v1926
          %v2393 = vpop.permute.xlu0 %2392
          %2396 = vset.pattern.permute.xlu0 0
          %2397 = vperm.xlu0 %2396, %v1927
          %v2398 = vpop.permute.xlu0 %2397
          %2401 = vset.pattern.permute.xlu0 0
          %2402 = vperm.xlu0 %2401, %v1928
          %v2403 = vpop.permute.xlu0 %2402
          %2406 = vset.pattern.permute.xlu0 0
          %2407 = vperm.xlu0 %2406, %v1929
          %v2408 = vpop.permute.xlu0 %2407
          %2411 = vset.pattern.permute.xlu0 0
          %2412 = vperm.xlu0 %2411, %v1930
          %v2413 = vpop.permute.xlu0 %2412
          %2416 = vset.pattern.permute.xlu0 0
          %2417 = vperm.xlu0 %2416, %v1931
          %v2418 = vpop.permute.xlu0 %2417
          %2421 = vset.pattern.permute.xlu0 0
          %2422 = vperm.xlu0 %2421, %v1932
          %v2423 = vpop.permute.xlu0 %2422
          %2426 = vset.pattern.permute.xlu0 0
          %2427 = vperm.xlu0 %2426, %v1933
          %v2428 = vpop.permute.xlu0 %2427
          %2431 = vset.pattern.permute.xlu0 0
          %2432 = vperm.xlu0 %2431, %v1934
          %v2433 = vpop.permute.xlu0 %2432
          %2436 = vset.pattern.permute.xlu0 0
          %2437 = vperm.xlu0 %2436, %v1935
          %v2438 = vpop.permute.xlu0 %2437
          %2441 = vset.pattern.permute.xlu0 0
          %2442 = vperm.xlu0 %2441, %v1936
          %v2443 = vpop.permute.xlu0 %2442
          %2446 = vset.pattern.permute.xlu0 0
          %2447 = vperm.xlu0 %2446, %v1937
          %v2448 = vpop.permute.xlu0 %2447
          %v2450 = vsub.f32 %v1290, %v2133
          %v2451 = vsub.f32 %v1459, %v2133
          %v2452 = vsub.f32 %v1292, %v2138
          %v2453 = vsub.f32 %v1461, %v2138
          %v2454 = vsub.f32 %v1295, %v2143
          %v2455 = vsub.f32 %v1464, %v2143
          %v2456 = vsub.f32 %v1297, %v2148
          %v2457 = vsub.f32 %v1466, %v2148
          %v2458 = vsub.f32 %v1300, %v2153
          %v2459 = vsub.f32 %v1469, %v2153
          %v2460 = vsub.f32 %v1302, %v2158
          %v2461 = vsub.f32 %v1471, %v2158
          %v2462 = vsub.f32 %v1305, %v2163
          %v2463 = vsub.f32 %v1474, %v2163
          %v2464 = vsub.f32 %v1307, %v2168
          %v2465 = vsub.f32 %v1476, %v2168
          %v2466 = vsub.f32 %v1310, %v2173
          %v2467 = vsub.f32 %v1479, %v2173
          %v2468 = vsub.f32 %v1312, %v2178
          %v2469 = vsub.f32 %v1481, %v2178
          %v2470 = vsub.f32 %v1315, %v2183
          %v2471 = vsub.f32 %v1484, %v2183
          %v2472 = vsub.f32 %v1317, %v2188
          %v2473 = vsub.f32 %v1486, %v2188
          %v2474 = vsub.f32 %v1320, %v2193
          %v2475 = vsub.f32 %v1489, %v2193
          %v2476 = vsub.f32 %v1322, %v2198
          %v2477 = vsub.f32 %v1491, %v2198
          %v2478 = vsub.f32 %v1325, %v2203
          %v2479 = vsub.f32 %v1494, %v2203
          %v2480 = vsub.f32 %v1327, %v2208
          %v2481 = vsub.f32 %v1496, %v2208
          %v2482 = vsub.f32 %v1330, %v2213
          %v2483 = vsub.f32 %v1499, %v2213
          %v2484 = vsub.f32 %v1332, %v2218
          %v2485 = vsub.f32 %v1501, %v2218
          %v2486 = vsub.f32 %v1335, %v2223
          %v2487 = vsub.f32 %v1504, %v2223
          %v2488 = vsub.f32 %v1337, %v2228
          %v2489 = vsub.f32 %v1506, %v2228
          %v2490 = vsub.f32 %v1340, %v2233
          %v2491 = vsub.f32 %v1509, %v2233
          %v2492 = vsub.f32 %v1342, %v2238
          %v2493 = vsub.f32 %v1511, %v2238
          %v2494 = vsub.f32 %v1345, %v2243
          %v2495 = vsub.f32 %v1514, %v2243
          %v2496 = vsub.f32 %v1347, %v2248
          %v2497 = vsub.f32 %v1516, %v2248
          %v2498 = vsub.f32 %v1350, %v2253
          %v2499 = vsub.f32 %v1519, %v2253
          %v2500 = vsub.f32 %v1352, %v2258
          %v2501 = vsub.f32 %v1521, %v2258
          %v2502 = vsub.f32 %v1355, %v2263
          %v2503 = vsub.f32 %v1524, %v2263
          %v2504 = vsub.f32 %v1357, %v2268
          %v2505 = vsub.f32 %v1526, %v2268
          %v2506 = vsub.f32 %v1360, %v2273
          %v2507 = vsub.f32 %v1529, %v2273
          %v2508 = vsub.f32 %v1362, %v2278
          %v2509 = vsub.f32 %v1531, %v2278
          %v2510 = vsub.f32 %v1365, %v2283
          %v2511 = vsub.f32 %v1534, %v2283
          %v2512 = vsub.f32 %v1367, %v2288
          %v2513 = vsub.f32 %v1536, %v2288
          %v2514 = vsub.f32 %v1370, %v2293
          %v2515 = vsub.f32 %v1539, %v2293
          %v2516 = vsub.f32 %v1372, %v2298
          %v2517 = vsub.f32 %v1541, %v2298
          %v2518 = vsub.f32 %v1375, %v2303
          %v2519 = vsub.f32 %v1544, %v2303
          %v2520 = vsub.f32 %v1377, %v2308
          %v2521 = vsub.f32 %v1546, %v2308
          %v2522 = vsub.f32 %v1380, %v2313
          %v2523 = vsub.f32 %v1549, %v2313
          %v2524 = vsub.f32 %v1382, %v2318
          %v2525 = vsub.f32 %v1551, %v2318
          %v2526 = vsub.f32 %v1385, %v2323
          %v2527 = vsub.f32 %v1554, %v2323
          %v2528 = vsub.f32 %v1387, %v2328
          %v2529 = vsub.f32 %v1556, %v2328
          %v2530 = vsub.f32 %v1390, %v2333
          %v2531 = vsub.f32 %v1559, %v2333
          %v2532 = vsub.f32 %v1392, %v2338
          %v2533 = vsub.f32 %v1561, %v2338
          %v2534 = vsub.f32 %v1395, %v2343
          %v2535 = vsub.f32 %v1564, %v2343
          %v2536 = vsub.f32 %v1397, %v2348
          %v2537 = vsub.f32 %v1566, %v2348
          %v2538 = vsub.f32 %v1400, %v2353
          %v2539 = vsub.f32 %v1569, %v2353
          %v2540 = vsub.f32 %v1402, %v2358
          %v2541 = vsub.f32 %v1571, %v2358
          %v2542 = vsub.f32 %v1405, %v2363
          %v2543 = vsub.f32 %v1574, %v2363
          %v2544 = vsub.f32 %v1407, %v2368
          %v2545 = vsub.f32 %v1576, %v2368
          %v2546 = vsub.f32 %v1410, %v2373
          %v2547 = vsub.f32 %v1579, %v2373
          %v2548 = vsub.f32 %v1412, %v2378
          %v2549 = vsub.f32 %v1581, %v2378
          %v2550 = vsub.f32 %v1415, %v2383
          %v2551 = vsub.f32 %v1584, %v2383
          %v2552 = vsub.f32 %v1417, %v2388
          %v2553 = vsub.f32 %v1586, %v2388
          %v2554 = vsub.f32 %v1420, %v2393
          %v2555 = vsub.f32 %v1589, %v2393
          %v2556 = vsub.f32 %v1422, %v2398
          %v2557 = vsub.f32 %v1591, %v2398
          %v2558 = vsub.f32 %v1425, %v2403
          %v2559 = vsub.f32 %v1594, %v2403
          %v2560 = vsub.f32 %v1427, %v2408
          %v2561 = vsub.f32 %v1596, %v2408
          %v2562 = vsub.f32 %v1430, %v2413
          %v2563 = vsub.f32 %v1599, %v2413
          %v2564 = vsub.f32 %v1432, %v2418
          %v2565 = vsub.f32 %v1601, %v2418
          %v2566 = vsub.f32 %v1435, %v2423
          %v2567 = vsub.f32 %v1604, %v2423
          %v2568 = vsub.f32 %v1437, %v2428
          %v2569 = vsub.f32 %v1606, %v2428
          %v2570 = vsub.f32 %v1440, %v2433
          %v2571 = vsub.f32 %v1609, %v2433
          %v2572 = vsub.f32 %v1442, %v2438
          %v2573 = vsub.f32 %v1611, %v2438
          %v2574 = vsub.f32 %v1445, %v2443
          %v2575 = vsub.f32 %v1614, %v2443
          %v2576 = vsub.f32 %v1447, %v2448
          %v2577 = vsub.f32 %v1616, %v2448
          %v2578 = vmul.f32 %v2450, 1.442695
          %v2579 = vpow.pop %v2578
          %v2580 = vmul.f32 %v2451, 1.442695
          %v2581 = vpow.pop %v2580
          %v2582 = vmul.f32 %v2452, 1.442695
          %v2583 = vpow.pop %v2582
          %v2584 = vmul.f32 %v2453, 1.442695
          %v2585 = vpow.pop %v2584
          %v2586 = vmul.f32 %v2454, 1.442695
          %v2587 = vpow.pop %v2586
          %v2588 = vmul.f32 %v2455, 1.442695
          %v2589 = vpow.pop %v2588
          %v2590 = vmul.f32 %v2456, 1.442695
          %v2591 = vpow.pop %v2590
          %v2592 = vmul.f32 %v2457, 1.442695
          %v2593 = vpow.pop %v2592
          %v2594 = vmul.f32 %v2458, 1.442695
          %v2595 = vpow.pop %v2594
          %v2596 = vmul.f32 %v2459, 1.442695
          %v2597 = vpow.pop %v2596
          %v2598 = vmul.f32 %v2460, 1.442695
          %v2599 = vpow.pop %v2598
          %v2600 = vmul.f32 %v2461, 1.442695
          %v2601 = vpow.pop %v2600
          %v2602 = vmul.f32 %v2462, 1.442695
          %v2603 = vpow.pop %v2602
          %v2604 = vmul.f32 %v2463, 1.442695
          %v2605 = vpow.pop %v2604
          %v2606 = vmul.f32 %v2464, 1.442695
          %v2607 = vpow.pop %v2606
          %v2608 = vmul.f32 %v2465, 1.442695
          %v2609 = vpow.pop %v2608
          %v2610 = vmul.f32 %v2466, 1.442695
          %v2611 = vpow.pop %v2610
          %v2612 = vmul.f32 %v2467, 1.442695
          %v2613 = vpow.pop %v2612
          %v2614 = vmul.f32 %v2468, 1.442695
          %v2615 = vpow.pop %v2614
          %v2616 = vmul.f32 %v2469, 1.442695
          %v2617 = vpow.pop %v2616
          %v2618 = vmul.f32 %v2470, 1.442695
          %v2619 = vpow.pop %v2618
          %v2620 = vmul.f32 %v2471, 1.442695
          %v2621 = vpow.pop %v2620
          %v2622 = vmul.f32 %v2472, 1.442695
          %v2623 = vpow.pop %v2622
          %v2624 = vmul.f32 %v2473, 1.442695
          %v2625 = vpow.pop %v2624
          %v2626 = vmul.f32 %v2474, 1.442695
          %v2627 = vpow.pop %v2626
          %v2628 = vmul.f32 %v2475, 1.442695
          %v2629 = vpow.pop %v2628
          %v2630 = vmul.f32 %v2476, 1.442695
          %v2631 = vpow.pop %v2630
          %v2632 = vmul.f32 %v2477, 1.442695
          %v2633 = vpow.pop %v2632
          %v2634 = vmul.f32 %v2478, 1.442695
          %v2635 = vpow.pop %v2634
          %v2636 = vmul.f32 %v2479, 1.442695
          %v2637 = vpow.pop %v2636
          %v2638 = vmul.f32 %v2480, 1.442695
          %v2639 = vpow.pop %v2638
          %v2640 = vmul.f32 %v2481, 1.442695
          %v2641 = vpow.pop %v2640
          %v2642 = vmul.f32 %v2482, 1.442695
          %v2643 = vpow.pop %v2642
          %v2644 = vmul.f32 %v2483, 1.442695
          %v2645 = vpow.pop %v2644
          %v2646 = vmul.f32 %v2484, 1.442695
          %v2647 = vpow.pop %v2646
          %v2648 = vmul.f32 %v2485, 1.442695
          %v2649 = vpow.pop %v2648
          %v2650 = vmul.f32 %v2486, 1.442695
          %v2651 = vpow.pop %v2650
          %v2652 = vmul.f32 %v2487, 1.442695
          %v2653 = vpow.pop %v2652
          %v2654 = vmul.f32 %v2488, 1.442695
          %v2655 = vpow.pop %v2654
          %v2656 = vmul.f32 %v2489, 1.442695
          %v2657 = vpow.pop %v2656
          %v2658 = vmul.f32 %v2490, 1.442695
          %v2659 = vpow.pop %v2658
          %v2660 = vmul.f32 %v2491, 1.442695
          %v2661 = vpow.pop %v2660
          %v2662 = vmul.f32 %v2492, 1.442695
          %v2663 = vpow.pop %v2662
          %v2664 = vmul.f32 %v2493, 1.442695
          %v2665 = vpow.pop %v2664
          %v2666 = vmul.f32 %v2494, 1.442695
          %v2667 = vpow.pop %v2666
          %v2668 = vmul.f32 %v2495, 1.442695
          %v2669 = vpow.pop %v2668
          %v2670 = vmul.f32 %v2496, 1.442695
          %v2671 = vpow.pop %v2670
          %v2672 = vmul.f32 %v2497, 1.442695
          %v2673 = vpow.pop %v2672
          %v2674 = vmul.f32 %v2498, 1.442695
          %v2675 = vpow.pop %v2674
          %v2676 = vmul.f32 %v2499, 1.442695
          %v2677 = vpow.pop %v2676
          %v2678 = vmul.f32 %v2500, 1.442695
          %v2679 = vpow.pop %v2678
          %v2680 = vmul.f32 %v2501, 1.442695
          %v2681 = vpow.pop %v2680
          %v2682 = vmul.f32 %v2502, 1.442695
          %v2683 = vpow.pop %v2682
          %v2684 = vmul.f32 %v2503, 1.442695
          %v2685 = vpow.pop %v2684
          %v2686 = vmul.f32 %v2504, 1.442695
          %v2687 = vpow.pop %v2686
          %v2688 = vmul.f32 %v2505, 1.442695
          %v2689 = vpow.pop %v2688
          %v2690 = vmul.f32 %v2506, 1.442695
          %v2691 = vpow.pop %v2690
          %v2692 = vmul.f32 %v2507, 1.442695
          %v2693 = vpow.pop %v2692
          %v2694 = vmul.f32 %v2508, 1.442695
          %v2695 = vpow.pop %v2694
          %v2696 = vmul.f32 %v2509, 1.442695
          %v2697 = vpow.pop %v2696
          %v2698 = vmul.f32 %v2510, 1.442695
          %v2699 = vpow.pop %v2698
          %v2700 = vmul.f32 %v2511, 1.442695
          %v2701 = vpow.pop %v2700
          %v2702 = vmul.f32 %v2512, 1.442695
          %v2703 = vpow.pop %v2702
          %v2704 = vmul.f32 %v2513, 1.442695
          %v2705 = vpow.pop %v2704
          %v2706 = vmul.f32 %v2514, 1.442695
          %v2707 = vpow.pop %v2706
          %v2708 = vmul.f32 %v2515, 1.442695
          %v2709 = vpow.pop %v2708
          %v2710 = vmul.f32 %v2516, 1.442695
          %v2711 = vpow.pop %v2710
          %v2712 = vmul.f32 %v2517, 1.442695
          %v2713 = vpow.pop %v2712
          %v2714 = vmul.f32 %v2518, 1.442695
          %v2715 = vpow.pop %v2714
          %v2716 = vmul.f32 %v2519, 1.442695
          %v2717 = vpow.pop %v2716
          %v2718 = vmul.f32 %v2520, 1.442695
          %v2719 = vpow.pop %v2718
          %v2720 = vmul.f32 %v2521, 1.442695
          %v2721 = vpow.pop %v2720
          %v2722 = vmul.f32 %v2522, 1.442695
          %v2723 = vpow.pop %v2722
          %v2724 = vmul.f32 %v2523, 1.442695
          %v2725 = vpow.pop %v2724
          %v2726 = vmul.f32 %v2524, 1.442695
          %v2727 = vpow.pop %v2726
          %v2728 = vmul.f32 %v2525, 1.442695
          %v2729 = vpow.pop %v2728
          %v2730 = vmul.f32 %v2526, 1.442695
          %v2731 = vpow.pop %v2730
          %v2732 = vmul.f32 %v2527, 1.442695
          %v2733 = vpow.pop %v2732
          %v2734 = vmul.f32 %v2528, 1.442695
          %v2735 = vpow.pop %v2734
          %v2736 = vmul.f32 %v2529, 1.442695
          %v2737 = vpow.pop %v2736
          %v2738 = vmul.f32 %v2530, 1.442695
          %v2739 = vpow.pop %v2738
          %v2740 = vmul.f32 %v2531, 1.442695
          %v2741 = vpow.pop %v2740
          %v2742 = vmul.f32 %v2532, 1.442695
          %v2743 = vpow.pop %v2742
          %v2744 = vmul.f32 %v2533, 1.442695
          %v2745 = vpow.pop %v2744
          %v2746 = vmul.f32 %v2534, 1.442695
          %v2747 = vpow.pop %v2746
          %v2748 = vmul.f32 %v2535, 1.442695
          %v2749 = vpow.pop %v2748
          %v2750 = vmul.f32 %v2536, 1.442695
          %v2751 = vpow.pop %v2750
          %v2752 = vmul.f32 %v2537, 1.442695
          %v2753 = vpow.pop %v2752
          %v2754 = vmul.f32 %v2538, 1.442695
          %v2755 = vpow.pop %v2754
          %v2756 = vmul.f32 %v2539, 1.442695
          %v2757 = vpow.pop %v2756
          %v2758 = vmul.f32 %v2540, 1.442695
          %v2759 = vpow.pop %v2758
          %v2760 = vmul.f32 %v2541, 1.442695
          %v2761 = vpow.pop %v2760
          %v2762 = vmul.f32 %v2542, 1.442695
          %v2763 = vpow.pop %v2762
          %v2764 = vmul.f32 %v2543, 1.442695
          %v2765 = vpow.pop %v2764
          %v2766 = vmul.f32 %v2544, 1.442695
          %v2767 = vpow.pop %v2766
          %v2768 = vmul.f32 %v2545, 1.442695
          %v2769 = vpow.pop %v2768
          %v2770 = vmul.f32 %v2546, 1.442695
          %v2771 = vpow.pop %v2770
          %v2772 = vmul.f32 %v2547, 1.442695
          %v2773 = vpow.pop %v2772
          %v2774 = vmul.f32 %v2548, 1.442695
          %v2775 = vpow.pop %v2774
          %v2776 = vmul.f32 %v2549, 1.442695
          %v2777 = vpow.pop %v2776
          %v2778 = vmul.f32 %v2550, 1.442695
          %v2779 = vpow.pop %v2778
          %v2780 = vmul.f32 %v2551, 1.442695
          %v2781 = vpow.pop %v2780
          %v2782 = vmul.f32 %v2552, 1.442695
          %v2783 = vpow.pop %v2782
          %v2784 = vmul.f32 %v2553, 1.442695
          %v2785 = vpow.pop %v2784
          %v2786 = vmul.f32 %v2554, 1.442695
          %v2787 = vpow.pop %v2786
          %v2788 = vmul.f32 %v2555, 1.442695
          %v2789 = vpow.pop %v2788
          %v2790 = vmul.f32 %v2556, 1.442695
          %v2791 = vpow.pop %v2790
          %v2792 = vmul.f32 %v2557, 1.442695
          %v2793 = vpow.pop %v2792
          %v2794 = vmul.f32 %v2558, 1.442695
          %v2795 = vpow.pop %v2794
          %v2796 = vmul.f32 %v2559, 1.442695
          %v2797 = vpow.pop %v2796
          %v2798 = vmul.f32 %v2560, 1.442695
          %v2799 = vpow.pop %v2798
          %v2800 = vmul.f32 %v2561, 1.442695
          %v2801 = vpow.pop %v2800
          %v2802 = vmul.f32 %v2562, 1.442695
          %v2803 = vpow.pop %v2802
          %v2804 = vmul.f32 %v2563, 1.442695
          %v2805 = vpow.pop %v2804
          %v2806 = vmul.f32 %v2564, 1.442695
          %v2807 = vpow.pop %v2806
          %v2808 = vmul.f32 %v2565, 1.442695
          %v2809 = vpow.pop %v2808
          %v2810 = vmul.f32 %v2566, 1.442695
          %v2811 = vpow.pop %v2810
          %v2812 = vmul.f32 %v2567, 1.442695
          %v2813 = vpow.pop %v2812
          %v2814 = vmul.f32 %v2568, 1.442695
          %v2815 = vpow.pop %v2814
          %v2816 = vmul.f32 %v2569, 1.442695
          %v2817 = vpow.pop %v2816
          %v2818 = vmul.f32 %v2570, 1.442695
          %v2819 = vpow.pop %v2818
          %v2820 = vmul.f32 %v2571, 1.442695
          %v2821 = vpow.pop %v2820
          %v2822 = vmul.f32 %v2572, 1.442695
          %v2823 = vpow.pop %v2822
          %v2824 = vmul.f32 %v2573, 1.442695
          %v2825 = vpow.pop %v2824
          %v2826 = vmul.f32 %v2574, 1.442695
          %v2827 = vpow.pop %v2826
          %v2828 = vmul.f32 %v2575, 1.442695
          %v2829 = vpow.pop %v2828
          %v2830 = vmul.f32 %v2576, 1.442695
          %v2831 = vpow.pop %v2830
          %v2832 = vmul.f32 %v2577, 1.442695
          %v2833 = vpow.pop %v2832
          %v2834 = vld [vmem:[#allocation3] sm:$0xff]
          %v2835 = vld [vmem:[#allocation3 + $0x8] sm:$0xff]
          %v2836 = vld [vmem:[#allocation3 + $0x10] sm:$0xff]
          %v2837 = vld [vmem:[#allocation3 + $0x18] sm:$0xff]
          %v2838 = vld [vmem:[#allocation3 + $0x20] sm:$0xff]
          %v2839 = vld [vmem:[#allocation3 + $0x28] sm:$0xff]
          %v2840 = vld [vmem:[#allocation3 + $0x30] sm:$0xff]
          %v2841 = vld [vmem:[#allocation3 + $0x38] sm:$0xff]
          %v2842 = vld [vmem:[#allocation3 + $0x40] sm:$0xff]
          %v2843 = vld [vmem:[#allocation3 + $0x48] sm:$0xff]
          %v2844 = vld [vmem:[#allocation3 + $0x50] sm:$0xff]
          %v2845 = vld [vmem:[#allocation3 + $0x58] sm:$0xff]
          %v2846 = vld [vmem:[#allocation3 + $0x60] sm:$0xff]
          %v2847 = vld [vmem:[#allocation3 + $0x68] sm:$0xff]
          %v2848 = vld [vmem:[#allocation3 + $0x70] sm:$0xff]
          %v2849 = vld [vmem:[#allocation3 + $0x78] sm:$0xff]
          %v2850 = vld [vmem:[#allocation3 + $0x80] sm:$0xff]
          %v2851 = vld [vmem:[#allocation3 + $0x88] sm:$0xff]
          %v2852 = vld [vmem:[#allocation3 + $0x90] sm:$0xff]
          %v2853 = vld [vmem:[#allocation3 + $0x98] sm:$0xff]
          %v2854 = vld [vmem:[#allocation3 + $0xa0] sm:$0xff]
          %v2855 = vld [vmem:[#allocation3 + $0xa8] sm:$0xff]
          %v2856 = vld [vmem:[#allocation3 + $0xb0] sm:$0xff]
          %v2857 = vld [vmem:[#allocation3 + $0xb8] sm:$0xff]
          %v2858 = vld [vmem:[#allocation3 + $0xc0] sm:$0xff]
          %v2859 = vld [vmem:[#allocation3 + $0xc8] sm:$0xff]
          %v2860 = vld [vmem:[#allocation3 + $0xd0] sm:$0xff]
          %v2861 = vld [vmem:[#allocation3 + $0xd8] sm:$0xff]
          %v2862 = vld [vmem:[#allocation3 + $0xe0] sm:$0xff]
          %v2863 = vld [vmem:[#allocation3 + $0xe8] sm:$0xff]
          %v2864 = vld [vmem:[#allocation3 + $0xf0] sm:$0xff]
          %v2865 = vld [vmem:[#allocation3 + $0xf8] sm:$0xff]
          %v2866 = vld [vmem:[#allocation3 + $0x100] sm:$0xff]
          %v2867 = vld [vmem:[#allocation3 + $0x108] sm:$0xff]
          %v2868 = vld [vmem:[#allocation3 + $0x110] sm:$0xff]
          %v2869 = vld [vmem:[#allocation3 + $0x118] sm:$0xff]
          %v2870 = vld [vmem:[#allocation3 + $0x120] sm:$0xff]
          %v2871 = vld [vmem:[#allocation3 + $0x128] sm:$0xff]
          %v2872 = vld [vmem:[#allocation3 + $0x130] sm:$0xff]
          %v2873 = vld [vmem:[#allocation3 + $0x138] sm:$0xff]
          %v2874 = vld [vmem:[#allocation3 + $0x140] sm:$0xff]
          %v2875 = vld [vmem:[#allocation3 + $0x148] sm:$0xff]
          %v2876 = vld [vmem:[#allocation3 + $0x150] sm:$0xff]
          %v2877 = vld [vmem:[#allocation3 + $0x158] sm:$0xff]
          %v2878 = vld [vmem:[#allocation3 + $0x160] sm:$0xff]
          %v2879 = vld [vmem:[#allocation3 + $0x168] sm:$0xff]
          %v2880 = vld [vmem:[#allocation3 + $0x170] sm:$0xff]
          %v2881 = vld [vmem:[#allocation3 + $0x178] sm:$0xff]
          %v2882 = vld [vmem:[#allocation3 + $0x180] sm:$0xff]
          %v2883 = vld [vmem:[#allocation3 + $0x188] sm:$0xff]
          %v2884 = vld [vmem:[#allocation3 + $0x190] sm:$0xff]
          %v2885 = vld [vmem:[#allocation3 + $0x198] sm:$0xff]
          %v2886 = vld [vmem:[#allocation3 + $0x1a0] sm:$0xff]
          %v2887 = vld [vmem:[#allocation3 + $0x1a8] sm:$0xff]
          %v2888 = vld [vmem:[#allocation3 + $0x1b0] sm:$0xff]
          %v2889 = vld [vmem:[#allocation3 + $0x1b8] sm:$0xff]
          %v2890 = vld [vmem:[#allocation3 + $0x1c0] sm:$0xff]
          %v2891 = vld [vmem:[#allocation3 + $0x1c8] sm:$0xff]
          %v2892 = vld [vmem:[#allocation3 + $0x1d0] sm:$0xff]
          %v2893 = vld [vmem:[#allocation3 + $0x1d8] sm:$0xff]
          %v2894 = vld [vmem:[#allocation3 + $0x1e0] sm:$0xff]
          %v2895 = vld [vmem:[#allocation3 + $0x1e8] sm:$0xff]
          %v2896 = vld [vmem:[#allocation3 + $0x1f0] sm:$0xff]
          %v2897 = vld [vmem:[#allocation3 + $0x1f8] sm:$0xff]
          %v2898 = vmul.f32 %v2003, %v2834
          %v2899 = vmul.f32 %v2005, %v2835
          %v2900 = vmul.f32 %v2007, %v2836
          %v2901 = vmul.f32 %v2009, %v2837
          %v2902 = vmul.f32 %v2011, %v2838
          %v2903 = vmul.f32 %v2013, %v2839
          %v2904 = vmul.f32 %v2015, %v2840
          %v2905 = vmul.f32 %v2017, %v2841
          %v2906 = vmul.f32 %v2019, %v2842
          %v2907 = vmul.f32 %v2021, %v2843
          %v2908 = vmul.f32 %v2023, %v2844
          %v2909 = vmul.f32 %v2025, %v2845
          %v2910 = vmul.f32 %v2027, %v2846
          %v2911 = vmul.f32 %v2029, %v2847
          %v2912 = vmul.f32 %v2031, %v2848
          %v2913 = vmul.f32 %v2033, %v2849
          %v2914 = vmul.f32 %v2035, %v2850
          %v2915 = vmul.f32 %v2037, %v2851
          %v2916 = vmul.f32 %v2039, %v2852
          %v2917 = vmul.f32 %v2041, %v2853
          %v2918 = vmul.f32 %v2043, %v2854
          %v2919 = vmul.f32 %v2045, %v2855
          %v2920 = vmul.f32 %v2047, %v2856
          %v2921 = vmul.f32 %v2049, %v2857
          %v2922 = vmul.f32 %v2051, %v2858
          %v2923 = vmul.f32 %v2053, %v2859
          %v2924 = vmul.f32 %v2055, %v2860
          %v2925 = vmul.f32 %v2057, %v2861
          %v2926 = vmul.f32 %v2059, %v2862
          %v2927 = vmul.f32 %v2061, %v2863
          %v2928 = vmul.f32 %v2063, %v2864
          %v2929 = vmul.f32 %v2065, %v2865
          %v2930 = vmul.f32 %v2067, %v2866
          %v2931 = vmul.f32 %v2069, %v2867
          %v2932 = vmul.f32 %v2071, %v2868
          %v2933 = vmul.f32 %v2073, %v2869
          %v2934 = vmul.f32 %v2075, %v2870
          %v2935 = vmul.f32 %v2077, %v2871
          %v2936 = vmul.f32 %v2079, %v2872
          %v2937 = vmul.f32 %v2081, %v2873
          %v2938 = vmul.f32 %v2083, %v2874
          %v2939 = vmul.f32 %v2085, %v2875
          %v2940 = vmul.f32 %v2087, %v2876
          %v2941 = vmul.f32 %v2089, %v2877
          %v2942 = vmul.f32 %v2091, %v2878
          %v2943 = vmul.f32 %v2093, %v2879
          %v2944 = vmul.f32 %v2095, %v2880
          %v2945 = vmul.f32 %v2097, %v2881
          %v2946 = vmul.f32 %v2099, %v2882
          %v2947 = vmul.f32 %v2101, %v2883
          %v2948 = vmul.f32 %v2103, %v2884
          %v2949 = vmul.f32 %v2105, %v2885
          %v2950 = vmul.f32 %v2107, %v2886
          %v2951 = vmul.f32 %v2109, %v2887
          %v2952 = vmul.f32 %v2111, %v2888
          %v2953 = vmul.f32 %v2113, %v2889
          %v2954 = vmul.f32 %v2115, %v2890
          %v2955 = vmul.f32 %v2117, %v2891
          %v2956 = vmul.f32 %v2119, %v2892
          %v2957 = vmul.f32 %v2121, %v2893
          %v2958 = vmul.f32 %v2123, %v2894
          %v2959 = vmul.f32 %v2125, %v2895
          %v2960 = vmul.f32 %v2127, %v2896
          %v2961 = vmul.f32 %v2129, %v2897
          %v2962 = vadd.f32 %v2579, %v2581
          %2963 = vadd.xlane.f32.xlu0 %v2962
          %v2964 = vpop.xlane.xlu0 %2963
          %v2965 = vadd.f32 %v2583, %v2585
          %2966 = vadd.xlane.f32.xlu0 %v2965
          %v2967 = vpop.xlane.xlu0 %2966
          %v2968 = vadd.f32 %v2587, %v2589
          %2969 = vadd.xlane.f32.xlu0 %v2968
          %v2970 = vpop.xlane.xlu0 %2969
          %v2971 = vadd.f32 %v2591, %v2593
          %2972 = vadd.xlane.f32.xlu0 %v2971
          %v2973 = vpop.xlane.xlu0 %2972
          %v2974 = vadd.f32 %v2595, %v2597
          %2975 = vadd.xlane.f32.xlu0 %v2974
          %v2976 = vpop.xlane.xlu0 %2975
          %v2977 = vadd.f32 %v2599, %v2601
          %2978 = vadd.xlane.f32.xlu0 %v2977
          %v2979 = vpop.xlane.xlu0 %2978
          %v2980 = vadd.f32 %v2603, %v2605
          %2981 = vadd.xlane.f32.xlu0 %v2980
          %v2982 = vpop.xlane.xlu0 %2981
          %v2983 = vadd.f32 %v2607, %v2609
          %2984 = vadd.xlane.f32.xlu0 %v2983
          %v2985 = vpop.xlane.xlu0 %2984
          %v2986 = vadd.f32 %v2611, %v2613
          %2987 = vadd.xlane.f32.xlu0 %v2986
          %v2988 = vpop.xlane.xlu0 %2987
          %v2989 = vadd.f32 %v2615, %v2617
          %2990 = vadd.xlane.f32.xlu0 %v2989
          %v2991 = vpop.xlane.xlu0 %2990
          %v2992 = vadd.f32 %v2619, %v2621
          %2993 = vadd.xlane.f32.xlu0 %v2992
          %v2994 = vpop.xlane.xlu0 %2993
          %v2995 = vadd.f32 %v2623, %v2625
          %2996 = vadd.xlane.f32.xlu0 %v2995
          %v2997 = vpop.xlane.xlu0 %2996
          %v2998 = vadd.f32 %v2627, %v2629
          %2999 = vadd.xlane.f32.xlu0 %v2998
          %v3000 = vpop.xlane.xlu0 %2999
          %v3001 = vadd.f32 %v2631, %v2633
          %3002 = vadd.xlane.f32.xlu0 %v3001
          %v3003 = vpop.xlane.xlu0 %3002
          %v3004 = vadd.f32 %v2635, %v2637
          %3005 = vadd.xlane.f32.xlu0 %v3004
          %v3006 = vpop.xlane.xlu0 %3005
          %v3007 = vadd.f32 %v2639, %v2641
          %3008 = vadd.xlane.f32.xlu0 %v3007
          %v3009 = vpop.xlane.xlu0 %3008
          %v3010 = vadd.f32 %v2643, %v2645
          %3011 = vadd.xlane.f32.xlu0 %v3010
          %v3012 = vpop.xlane.xlu0 %3011
          %v3013 = vadd.f32 %v2647, %v2649
          %3014 = vadd.xlane.f32.xlu0 %v3013
          %v3015 = vpop.xlane.xlu0 %3014
          %v3016 = vadd.f32 %v2651, %v2653
          %3017 = vadd.xlane.f32.xlu0 %v3016
          %v3018 = vpop.xlane.xlu0 %3017
          %v3019 = vadd.f32 %v2655, %v2657
          %3020 = vadd.xlane.f32.xlu0 %v3019
          %v3021 = vpop.xlane.xlu0 %3020
          %v3022 = vadd.f32 %v2659, %v2661
          %3023 = vadd.xlane.f32.xlu0 %v3022
          %v3024 = vpop.xlane.xlu0 %3023
          %v3025 = vadd.f32 %v2663, %v2665
          %3026 = vadd.xlane.f32.xlu0 %v3025
          %v3027 = vpop.xlane.xlu0 %3026
          %v3028 = vadd.f32 %v2667, %v2669
          %3029 = vadd.xlane.f32.xlu0 %v3028
          %v3030 = vpop.xlane.xlu0 %3029
          %v3031 = vadd.f32 %v2671, %v2673
          %3032 = vadd.xlane.f32.xlu0 %v3031
          %v3033 = vpop.xlane.xlu0 %3032
          %v3034 = vadd.f32 %v2675, %v2677
          %3035 = vadd.xlane.f32.xlu0 %v3034
          %v3036 = vpop.xlane.xlu0 %3035
          %v3037 = vadd.f32 %v2679, %v2681
          %3038 = vadd.xlane.f32.xlu0 %v3037
          %v3039 = vpop.xlane.xlu0 %3038
          %v3040 = vadd.f32 %v2683, %v2685
          %3041 = vadd.xlane.f32.xlu0 %v3040
          %v3042 = vpop.xlane.xlu0 %3041
          %v3043 = vadd.f32 %v2687, %v2689
          %3044 = vadd.xlane.f32.xlu0 %v3043
          %v3045 = vpop.xlane.xlu0 %3044
          %v3046 = vadd.f32 %v2691, %v2693
          %3047 = vadd.xlane.f32.xlu0 %v3046
          %v3048 = vpop.xlane.xlu0 %3047
          %v3049 = vadd.f32 %v2695, %v2697
          %3050 = vadd.xlane.f32.xlu0 %v3049
          %v3051 = vpop.xlane.xlu0 %3050
          %v3052 = vadd.f32 %v2699, %v2701
          %3053 = vadd.xlane.f32.xlu0 %v3052
          %v3054 = vpop.xlane.xlu0 %3053
          %v3055 = vadd.f32 %v2703, %v2705
          %3056 = vadd.xlane.f32.xlu0 %v3055
          %v3057 = vpop.xlane.xlu0 %3056
          %v3058 = vadd.f32 %v2707, %v2709
          %3059 = vadd.xlane.f32.xlu0 %v3058
          %v3060 = vpop.xlane.xlu0 %3059
          %v3061 = vadd.f32 %v2711, %v2713
          %3062 = vadd.xlane.f32.xlu0 %v3061
          %v3063 = vpop.xlane.xlu0 %3062
          %v3064 = vadd.f32 %v2715, %v2717
          %3065 = vadd.xlane.f32.xlu0 %v3064
          %v3066 = vpop.xlane.xlu0 %3065
          %v3067 = vadd.f32 %v2719, %v2721
          %3068 = vadd.xlane.f32.xlu0 %v3067
          %v3069 = vpop.xlane.xlu0 %3068
          %v3070 = vadd.f32 %v2723, %v2725
          %3071 = vadd.xlane.f32.xlu0 %v3070
          %v3072 = vpop.xlane.xlu0 %3071
          %v3073 = vadd.f32 %v2727, %v2729
          %3074 = vadd.xlane.f32.xlu0 %v3073
          %v3075 = vpop.xlane.xlu0 %3074
          %v3076 = vadd.f32 %v2731, %v2733
          %3077 = vadd.xlane.f32.xlu0 %v3076
          %v3078 = vpop.xlane.xlu0 %3077
          %v3079 = vadd.f32 %v2735, %v2737
          %3080 = vadd.xlane.f32.xlu0 %v3079
          %v3081 = vpop.xlane.xlu0 %3080
          %v3082 = vadd.f32 %v2739, %v2741
          %3083 = vadd.xlane.f32.xlu0 %v3082
          %v3084 = vpop.xlane.xlu0 %3083
          %v3085 = vadd.f32 %v2743, %v2745
          %3086 = vadd.xlane.f32.xlu0 %v3085
          %v3087 = vpop.xlane.xlu0 %3086
          %v3088 = vadd.f32 %v2747, %v2749
          %3089 = vadd.xlane.f32.xlu0 %v3088
          %v3090 = vpop.xlane.xlu0 %3089
          %v3091 = vadd.f32 %v2751, %v2753
          %3092 = vadd.xlane.f32.xlu0 %v3091
          %v3093 = vpop.xlane.xlu0 %3092
          %v3094 = vadd.f32 %v2755, %v2757
          %3095 = vadd.xlane.f32.xlu0 %v3094
          %v3096 = vpop.xlane.xlu0 %3095
          %v3097 = vadd.f32 %v2759, %v2761
          %3098 = vadd.xlane.f32.xlu0 %v3097
          %v3099 = vpop.xlane.xlu0 %3098
          %v3100 = vadd.f32 %v2763, %v2765
          %3101 = vadd.xlane.f32.xlu0 %v3100
          %v3102 = vpop.xlane.xlu0 %3101
          %v3103 = vadd.f32 %v2767, %v2769
          %3104 = vadd.xlane.f32.xlu0 %v3103
          %v3105 = vpop.xlane.xlu0 %3104
          %v3106 = vadd.f32 %v2771, %v2773
          %3107 = vadd.xlane.f32.xlu0 %v3106
          %v3108 = vpop.xlane.xlu0 %3107
          %v3109 = vadd.f32 %v2775, %v2777
          %3110 = vadd.xlane.f32.xlu0 %v3109
          %v3111 = vpop.xlane.xlu0 %3110
          %v3112 = vadd.f32 %v2779, %v2781
          %3113 = vadd.xlane.f32.xlu0 %v3112
          %v3114 = vpop.xlane.xlu0 %3113
          %v3115 = vadd.f32 %v2783, %v2785
          %3116 = vadd.xlane.f32.xlu0 %v3115
          %v3117 = vpop.xlane.xlu0 %3116
          %v3118 = vadd.f32 %v2787, %v2789
          %3119 = vadd.xlane.f32.xlu0 %v3118
          %v3120 = vpop.xlane.xlu0 %3119
          %v3121 = vadd.f32 %v2791, %v2793
          %3122 = vadd.xlane.f32.xlu0 %v3121
          %v3123 = vpop.xlane.xlu0 %3122
          %v3124 = vadd.f32 %v2795, %v2797
          %3125 = vadd.xlane.f32.xlu0 %v3124
          %v3126 = vpop.xlane.xlu0 %3125
          %v3127 = vadd.f32 %v2799, %v2801
          %3128 = vadd.xlane.f32.xlu0 %v3127
          %v3129 = vpop.xlane.xlu0 %3128
          %v3130 = vadd.f32 %v2803, %v2805
          %3131 = vadd.xlane.f32.xlu0 %v3130
          %v3132 = vpop.xlane.xlu0 %3131
          %v3133 = vadd.f32 %v2807, %v2809
          %3134 = vadd.xlane.f32.xlu0 %v3133
          %v3135 = vpop.xlane.xlu0 %3134
          %v3136 = vadd.f32 %v2811, %v2813
          %3137 = vadd.xlane.f32.xlu0 %v3136
          %v3138 = vpop.xlane.xlu0 %3137
          %v3139 = vadd.f32 %v2815, %v2817
          %3140 = vadd.xlane.f32.xlu0 %v3139
          %v3141 = vpop.xlane.xlu0 %3140
          %v3142 = vadd.f32 %v2819, %v2821
          %3143 = vadd.xlane.f32.xlu0 %v3142
          %v3144 = vpop.xlane.xlu0 %3143
          %v3145 = vadd.f32 %v2823, %v2825
          %3146 = vadd.xlane.f32.xlu0 %v3145
          %v3147 = vpop.xlane.xlu0 %3146
          %v3148 = vadd.f32 %v2827, %v2829
          %3149 = vadd.xlane.f32.xlu0 %v3148
          %v3150 = vpop.xlane.xlu0 %3149
          %v3151 = vadd.f32 %v2831, %v2833
          %3152 = vadd.xlane.f32.xlu0 %v3151
          %v3153 = vpop.xlane.xlu0 %3152
          %v3154 = vadd.f32 %v2898, %v2964
          %v3155 = vadd.f32 %v2899, %v2967
          %v3156 = vadd.f32 %v2900, %v2970
          %v3157 = vadd.f32 %v2901, %v2973
          %v3158 = vadd.f32 %v2902, %v2976
          %v3159 = vadd.f32 %v2903, %v2979
          %v3160 = vadd.f32 %v2904, %v2982
          %v3161 = vadd.f32 %v2905, %v2985
          %v3162 = vadd.f32 %v2906, %v2988
          %v3163 = vadd.f32 %v2907, %v2991
          %v3164 = vadd.f32 %v2908, %v2994
          %v3165 = vadd.f32 %v2909, %v2997
          %v3166 = vadd.f32 %v2910, %v3000
          %v3167 = vadd.f32 %v2911, %v3003
          %v3168 = vadd.f32 %v2912, %v3006
          %v3169 = vadd.f32 %v2913, %v3009
          %v3170 = vadd.f32 %v2914, %v3012
          %v3171 = vadd.f32 %v2915, %v3015
          %v3172 = vadd.f32 %v2916, %v3018
          %v3173 = vadd.f32 %v2917, %v3021
          %v3174 = vadd.f32 %v2918, %v3024
          %v3175 = vadd.f32 %v2919, %v3027
          %v3176 = vadd.f32 %v2920, %v3030
          %v3177 = vadd.f32 %v2921, %v3033
          %v3178 = vadd.f32 %v2922, %v3036
          %v3179 = vadd.f32 %v2923, %v3039
          %v3180 = vadd.f32 %v2924, %v3042
          %v3181 = vadd.f32 %v2925, %v3045
          %v3182 = vadd.f32 %v2926, %v3048
          %v3183 = vadd.f32 %v2927, %v3051
          %v3184 = vadd.f32 %v2928, %v3054
          %v3185 = vadd.f32 %v2929, %v3057
          %v3186 = vadd.f32 %v2930, %v3060
          %v3187 = vadd.f32 %v2931, %v3063
          %v3188 = vadd.f32 %v2932, %v3066
          %v3189 = vadd.f32 %v2933, %v3069
          %v3190 = vadd.f32 %v2934, %v3072
          %v3191 = vadd.f32 %v2935, %v3075
          %v3192 = vadd.f32 %v2936, %v3078
          %v3193 = vadd.f32 %v2937, %v3081
          %v3194 = vadd.f32 %v2938, %v3084
          %v3195 = vadd.f32 %v2939, %v3087
          %v3196 = vadd.f32 %v2940, %v3090
          %v3197 = vadd.f32 %v2941, %v3093
          %v3198 = vadd.f32 %v2942, %v3096
          %v3199 = vadd.f32 %v2943, %v3099
          %v3200 = vadd.f32 %v2944, %v3102
          %v3201 = vadd.f32 %v2945, %v3105
          %v3202 = vadd.f32 %v2946, %v3108
          %v3203 = vadd.f32 %v2947, %v3111
          %v3204 = vadd.f32 %v2948, %v3114
          %v3205 = vadd.f32 %v2949, %v3117
          %v3206 = vadd.f32 %v2950, %v3120
          %v3207 = vadd.f32 %v2951, %v3123
          %v3208 = vadd.f32 %v2952, %v3126
          %v3209 = vadd.f32 %v2953, %v3129
          %v3210 = vadd.f32 %v2954, %v3132
          %v3211 = vadd.f32 %v2955, %v3135
          %v3212 = vadd.f32 %v2956, %v3138
          %v3213 = vadd.f32 %v2957, %v3141
          %v3214 = vadd.f32 %v2958, %v3144
          %v3215 = vadd.f32 %v2959, %v3147
          %v3216 = vadd.f32 %v2960, %v3150
          %v3217 = vadd.f32 %v2961, %v3153
          %vm3218 = vcmask 7168
          %3219 = vst.msk [vmem:[#allocation3] sm:$0xff] %vm3218, %v3154
          %3220 = vst.msk [vmem:[#allocation3 + $0x8] sm:$0xff] %vm3218, %v3155
          %3221 = vst.msk [vmem:[#allocation3 + $0x10] sm:$0xff] %vm3218, %v3156
          %3222 = vst.msk [vmem:[#allocation3 + $0x18] sm:$0xff] %vm3218, %v3157
          %3223 = vst.msk [vmem:[#allocation3 + $0x20] sm:$0xff] %vm3218, %v3158
          %3224 = vst.msk [vmem:[#allocation3 + $0x28] sm:$0xff] %vm3218, %v3159
          %3225 = vst.msk [vmem:[#allocation3 + $0x30] sm:$0xff] %vm3218, %v3160
          %3226 = vst.msk [vmem:[#allocation3 + $0x38] sm:$0xff] %vm3218, %v3161
          %3227 = vst.msk [vmem:[#allocation3 + $0x40] sm:$0xff] %vm3218, %v3162
          %3228 = vst.msk [vmem:[#allocation3 + $0x48] sm:$0xff] %vm3218, %v3163
          %3229 = vst.msk [vmem:[#allocation3 + $0x50] sm:$0xff] %vm3218, %v3164
          %3230 = vst.msk [vmem:[#allocation3 + $0x58] sm:$0xff] %vm3218, %v3165
          %3231 = vst.msk [vmem:[#allocation3 + $0x60] sm:$0xff] %vm3218, %v3166
          %3232 = vst.msk [vmem:[#allocation3 + $0x68] sm:$0xff] %vm3218, %v3167
          %3233 = vst.msk [vmem:[#allocation3 + $0x70] sm:$0xff] %vm3218, %v3168
          %3234 = vst.msk [vmem:[#allocation3 + $0x78] sm:$0xff] %vm3218, %v3169
          %3235 = vst.msk [vmem:[#allocation3 + $0x80] sm:$0xff] %vm3218, %v3170
          %3236 = vst.msk [vmem:[#allocation3 + $0x88] sm:$0xff] %vm3218, %v3171
          %3237 = vst.msk [vmem:[#allocation3 + $0x90] sm:$0xff] %vm3218, %v3172
          %3238 = vst.msk [vmem:[#allocation3 + $0x98] sm:$0xff] %vm3218, %v3173
          %3239 = vst.msk [vmem:[#allocation3 + $0xa0] sm:$0xff] %vm3218, %v3174
          %3240 = vst.msk [vmem:[#allocation3 + $0xa8] sm:$0xff] %vm3218, %v3175
          %3241 = vst.msk [vmem:[#allocation3 + $0xb0] sm:$0xff] %vm3218, %v3176
          %3242 = vst.msk [vmem:[#allocation3 + $0xb8] sm:$0xff] %vm3218, %v3177
          %3243 = vst.msk [vmem:[#allocation3 + $0xc0] sm:$0xff] %vm3218, %v3178
          %3244 = vst.msk [vmem:[#allocation3 + $0xc8] sm:$0xff] %vm3218, %v3179
          %3245 = vst.msk [vmem:[#allocation3 + $0xd0] sm:$0xff] %vm3218, %v3180
          %3246 = vst.msk [vmem:[#allocation3 + $0xd8] sm:$0xff] %vm3218, %v3181
          %3247 = vst.msk [vmem:[#allocation3 + $0xe0] sm:$0xff] %vm3218, %v3182
          %3248 = vst.msk [vmem:[#allocation3 + $0xe8] sm:$0xff] %vm3218, %v3183
          %3249 = vst.msk [vmem:[#allocation3 + $0xf0] sm:$0xff] %vm3218, %v3184
          %3250 = vst.msk [vmem:[#allocation3 + $0xf8] sm:$0xff] %vm3218, %v3185
          %3251 = vst.msk [vmem:[#allocation3 + $0x100] sm:$0xff] %vm3218, %v3186
          %3252 = vst.msk [vmem:[#allocation3 + $0x108] sm:$0xff] %vm3218, %v3187
          %3253 = vst.msk [vmem:[#allocation3 + $0x110] sm:$0xff] %vm3218, %v3188
          %3254 = vst.msk [vmem:[#allocation3 + $0x118] sm:$0xff] %vm3218, %v3189
          %3255 = vst.msk [vmem:[#allocation3 + $0x120] sm:$0xff] %vm3218, %v3190
          %3256 = vst.msk [vmem:[#allocation3 + $0x128] sm:$0xff] %vm3218, %v3191
          %3257 = vst.msk [vmem:[#allocation3 + $0x130] sm:$0xff] %vm3218, %v3192
          %3258 = vst.msk [vmem:[#allocation3 + $0x138] sm:$0xff] %vm3218, %v3193
          %3259 = vst.msk [vmem:[#allocation3 + $0x140] sm:$0xff] %vm3218, %v3194
          %3260 = vst.msk [vmem:[#allocation3 + $0x148] sm:$0xff] %vm3218, %v3195
          %3261 = vst.msk [vmem:[#allocation3 + $0x150] sm:$0xff] %vm3218, %v3196
          %3262 = vst.msk [vmem:[#allocation3 + $0x158] sm:$0xff] %vm3218, %v3197
          %3263 = vst.msk [vmem:[#allocation3 + $0x160] sm:$0xff] %vm3218, %v3198
          %3264 = vst.msk [vmem:[#allocation3 + $0x168] sm:$0xff] %vm3218, %v3199
          %3265 = vst.msk [vmem:[#allocation3 + $0x170] sm:$0xff] %vm3218, %v3200
          %3266 = vst.msk [vmem:[#allocation3 + $0x178] sm:$0xff] %vm3218, %v3201
          %3267 = vst.msk [vmem:[#allocation3 + $0x180] sm:$0xff] %vm3218, %v3202
          %3268 = vst.msk [vmem:[#allocation3 + $0x188] sm:$0xff] %vm3218, %v3203
          %3269 = vst.msk [vmem:[#allocation3 + $0x190] sm:$0xff] %vm3218, %v3204
          %3270 = vst.msk [vmem:[#allocation3 + $0x198] sm:$0xff] %vm3218, %v3205
          %3271 = vst.msk [vmem:[#allocation3 + $0x1a0] sm:$0xff] %vm3218, %v3206
          %3272 = vst.msk [vmem:[#allocation3 + $0x1a8] sm:$0xff] %vm3218, %v3207
          %3273 = vst.msk [vmem:[#allocation3 + $0x1b0] sm:$0xff] %vm3218, %v3208
          %3274 = vst.msk [vmem:[#allocation3 + $0x1b8] sm:$0xff] %vm3218, %v3209
          %3275 = vst.msk [vmem:[#allocation3 + $0x1c0] sm:$0xff] %vm3218, %v3210
          %3276 = vst.msk [vmem:[#allocation3 + $0x1c8] sm:$0xff] %vm3218, %v3211
          %3277 = vst.msk [vmem:[#allocation3 + $0x1d0] sm:$0xff] %vm3218, %v3212
          %3278 = vst.msk [vmem:[#allocation3 + $0x1d8] sm:$0xff] %vm3218, %v3213
          %3279 = vst.msk [vmem:[#allocation3 + $0x1e0] sm:$0xff] %vm3218, %v3214
          %3280 = vst.msk [vmem:[#allocation3 + $0x1e8] sm:$0xff] %vm3218, %v3215
          %3281 = vst.msk [vmem:[#allocation3 + $0x1f0] sm:$0xff] %vm3218, %v3216
          %3282 = vst.msk [vmem:[#allocation3 + $0x1f8] sm:$0xff] %vm3218, %v3217
          %v3283 = vld [vmem:[#allocation4] sm:$0xff]
          %v3284 = vld [vmem:[#allocation4 + $0x8] sm:$0xff]
          %v3285 = vld [vmem:[#allocation4 + $0x10] sm:$0xff]
          %v3286 = vld [vmem:[#allocation4 + $0x18] sm:$0xff]
          %v3287 = vld [vmem:[#allocation4 + $0x20] sm:$0xff]
          %v3288 = vld [vmem:[#allocation4 + $0x28] sm:$0xff]
          %v3289 = vld [vmem:[#allocation4 + $0x30] sm:$0xff]
          %v3290 = vld [vmem:[#allocation4 + $0x38] sm:$0xff]
          %v3291 = vld [vmem:[#allocation4 + $0x40] sm:$0xff]
          %v3292 = vld [vmem:[#allocation4 + $0x48] sm:$0xff]
          %v3293 = vld [vmem:[#allocation4 + $0x50] sm:$0xff]
          %v3294 = vld [vmem:[#allocation4 + $0x58] sm:$0xff]
          %v3295 = vld [vmem:[#allocation4 + $0x60] sm:$0xff]
          %v3296 = vld [vmem:[#allocation4 + $0x68] sm:$0xff]
          %v3297 = vld [vmem:[#allocation4 + $0x70] sm:$0xff]
          %v3298 = vld [vmem:[#allocation4 + $0x78] sm:$0xff]
          %v3299 = vld [vmem:[#allocation4 + $0x80] sm:$0xff]
          %v3300 = vld [vmem:[#allocation4 + $0x88] sm:$0xff]
          %v3301 = vld [vmem:[#allocation4 + $0x90] sm:$0xff]
          %v3302 = vld [vmem:[#allocation4 + $0x98] sm:$0xff]
          %v3303 = vld [vmem:[#allocation4 + $0xa0] sm:$0xff]
          %v3304 = vld [vmem:[#allocation4 + $0xa8] sm:$0xff]
          %v3305 = vld [vmem:[#allocation4 + $0xb0] sm:$0xff]
          %v3306 = vld [vmem:[#allocation4 + $0xb8] sm:$0xff]
          %v3307 = vld [vmem:[#allocation4 + $0xc0] sm:$0xff]
          %v3308 = vld [vmem:[#allocation4 + $0xc8] sm:$0xff]
          %v3309 = vld [vmem:[#allocation4 + $0xd0] sm:$0xff]
          %v3310 = vld [vmem:[#allocation4 + $0xd8] sm:$0xff]
          %v3311 = vld [vmem:[#allocation4 + $0xe0] sm:$0xff]
          %v3312 = vld [vmem:[#allocation4 + $0xe8] sm:$0xff]
          %v3313 = vld [vmem:[#allocation4 + $0xf0] sm:$0xff]
          %v3314 = vld [vmem:[#allocation4 + $0xf8] sm:$0xff]
          %v3315 = vld [vmem:[#allocation4 + $0x100] sm:$0xff]
          %v3316 = vld [vmem:[#allocation4 + $0x108] sm:$0xff]
          %v3317 = vld [vmem:[#allocation4 + $0x110] sm:$0xff]
          %v3318 = vld [vmem:[#allocation4 + $0x118] sm:$0xff]
          %v3319 = vld [vmem:[#allocation4 + $0x120] sm:$0xff]
          %v3320 = vld [vmem:[#allocation4 + $0x128] sm:$0xff]
          %v3321 = vld [vmem:[#allocation4 + $0x130] sm:$0xff]
          %v3322 = vld [vmem:[#allocation4 + $0x138] sm:$0xff]
          %v3323 = vld [vmem:[#allocation4 + $0x140] sm:$0xff]
          %v3324 = vld [vmem:[#allocation4 + $0x148] sm:$0xff]
          %v3325 = vld [vmem:[#allocation4 + $0x150] sm:$0xff]
          %v3326 = vld [vmem:[#allocation4 + $0x158] sm:$0xff]
          %v3327 = vld [vmem:[#allocation4 + $0x160] sm:$0xff]
          %v3328 = vld [vmem:[#allocation4 + $0x168] sm:$0xff]
          %v3329 = vld [vmem:[#allocation4 + $0x170] sm:$0xff]
          %v3330 = vld [vmem:[#allocation4 + $0x178] sm:$0xff]
          %v3331 = vld [vmem:[#allocation4 + $0x180] sm:$0xff]
          %v3332 = vld [vmem:[#allocation4 + $0x188] sm:$0xff]
          %v3333 = vld [vmem:[#allocation4 + $0x190] sm:$0xff]
          %v3334 = vld [vmem:[#allocation4 + $0x198] sm:$0xff]
          %v3335 = vld [vmem:[#allocation4 + $0x1a0] sm:$0xff]
          %v3336 = vld [vmem:[#allocation4 + $0x1a8] sm:$0xff]
          %v3337 = vld [vmem:[#allocation4 + $0x1b0] sm:$0xff]
          %v3338 = vld [vmem:[#allocation4 + $0x1b8] sm:$0xff]
          %v3339 = vld [vmem:[#allocation4 + $0x1c0] sm:$0xff]
          %v3340 = vld [vmem:[#allocation4 + $0x1c8] sm:$0xff]
          %v3341 = vld [vmem:[#allocation4 + $0x1d0] sm:$0xff]
          %v3342 = vld [vmem:[#allocation4 + $0x1d8] sm:$0xff]
          %v3343 = vld [vmem:[#allocation4 + $0x1e0] sm:$0xff]
          %v3344 = vld [vmem:[#allocation4 + $0x1e8] sm:$0xff]
          %v3345 = vld [vmem:[#allocation4 + $0x1f0] sm:$0xff]
          %v3346 = vld [vmem:[#allocation4 + $0x1f8] sm:$0xff]
          %3348 = vset.pattern.permute.xlu0 0
          %3349 = vperm.xlu0 %3348, %v2003
          %v3350 = vpop.permute.xlu0 %3349
          %3353 = vset.pattern.permute.xlu0 0
          %3354 = vperm.xlu0 %3353, %v2005
          %v3355 = vpop.permute.xlu0 %3354
          %3358 = vset.pattern.permute.xlu0 0
          %3359 = vperm.xlu0 %3358, %v2007
          %v3360 = vpop.permute.xlu0 %3359
          %3363 = vset.pattern.permute.xlu0 0
          %3364 = vperm.xlu0 %3363, %v2009
          %v3365 = vpop.permute.xlu0 %3364
          %3368 = vset.pattern.permute.xlu0 0
          %3369 = vperm.xlu0 %3368, %v2011
          %v3370 = vpop.permute.xlu0 %3369
          %3373 = vset.pattern.permute.xlu0 0
          %3374 = vperm.xlu0 %3373, %v2013
          %v3375 = vpop.permute.xlu0 %3374
          %3378 = vset.pattern.permute.xlu0 0
          %3379 = vperm.xlu0 %3378, %v2015
          %v3380 = vpop.permute.xlu0 %3379
          %3383 = vset.pattern.permute.xlu0 0
          %3384 = vperm.xlu0 %3383, %v2017
          %v3385 = vpop.permute.xlu0 %3384
          %3388 = vset.pattern.permute.xlu0 0
          %3389 = vperm.xlu0 %3388, %v2019
          %v3390 = vpop.permute.xlu0 %3389
          %3393 = vset.pattern.permute.xlu0 0
          %3394 = vperm.xlu0 %3393, %v2021
          %v3395 = vpop.permute.xlu0 %3394
          %3398 = vset.pattern.permute.xlu0 0
          %3399 = vperm.xlu0 %3398, %v2023
          %v3400 = vpop.permute.xlu0 %3399
          %3403 = vset.pattern.permute.xlu0 0
          %3404 = vperm.xlu0 %3403, %v2025
          %v3405 = vpop.permute.xlu0 %3404
          %3408 = vset.pattern.permute.xlu0 0
          %3409 = vperm.xlu0 %3408, %v2027
          %v3410 = vpop.permute.xlu0 %3409
          %3413 = vset.pattern.permute.xlu0 0
          %3414 = vperm.xlu0 %3413, %v2029
          %v3415 = vpop.permute.xlu0 %3414
          %3418 = vset.pattern.permute.xlu0 0
          %3419 = vperm.xlu0 %3418, %v2031
          %v3420 = vpop.permute.xlu0 %3419
          %3423 = vset.pattern.permute.xlu0 0
          %3424 = vperm.xlu0 %3423, %v2033
          %v3425 = vpop.permute.xlu0 %3424
          %3428 = vset.pattern.permute.xlu0 0
          %3429 = vperm.xlu0 %3428, %v2035
          %v3430 = vpop.permute.xlu0 %3429
          %3433 = vset.pattern.permute.xlu0 0
          %3434 = vperm.xlu0 %3433, %v2037
          %v3435 = vpop.permute.xlu0 %3434
          %3438 = vset.pattern.permute.xlu0 0
          %3439 = vperm.xlu0 %3438, %v2039
          %v3440 = vpop.permute.xlu0 %3439
          %3443 = vset.pattern.permute.xlu0 0
          %3444 = vperm.xlu0 %3443, %v2041
          %v3445 = vpop.permute.xlu0 %3444
          %3448 = vset.pattern.permute.xlu0 0
          %3449 = vperm.xlu0 %3448, %v2043
          %v3450 = vpop.permute.xlu0 %3449
          %3453 = vset.pattern.permute.xlu0 0
          %3454 = vperm.xlu0 %3453, %v2045
          %v3455 = vpop.permute.xlu0 %3454
          %3458 = vset.pattern.permute.xlu0 0
          %3459 = vperm.xlu0 %3458, %v2047
          %v3460 = vpop.permute.xlu0 %3459
          %3463 = vset.pattern.permute.xlu0 0
          %3464 = vperm.xlu0 %3463, %v2049
          %v3465 = vpop.permute.xlu0 %3464
          %3468 = vset.pattern.permute.xlu0 0
          %3469 = vperm.xlu0 %3468, %v2051
          %v3470 = vpop.permute.xlu0 %3469
          %3473 = vset.pattern.permute.xlu0 0
          %3474 = vperm.xlu0 %3473, %v2053
          %v3475 = vpop.permute.xlu0 %3474
          %3478 = vset.pattern.permute.xlu0 0
          %3479 = vperm.xlu0 %3478, %v2055
          %v3480 = vpop.permute.xlu0 %3479
          %3483 = vset.pattern.permute.xlu0 0
          %3484 = vperm.xlu0 %3483, %v2057
          %v3485 = vpop.permute.xlu0 %3484
          %3488 = vset.pattern.permute.xlu0 0
          %3489 = vperm.xlu0 %3488, %v2059
          %v3490 = vpop.permute.xlu0 %3489
          %3493 = vset.pattern.permute.xlu0 0
          %3494 = vperm.xlu0 %3493, %v2061
          %v3495 = vpop.permute.xlu0 %3494
          %3498 = vset.pattern.permute.xlu0 0
          %3499 = vperm.xlu0 %3498, %v2063
          %v3500 = vpop.permute.xlu0 %3499
          %3503 = vset.pattern.permute.xlu0 0
          %3504 = vperm.xlu0 %3503, %v2065
          %v3505 = vpop.permute.xlu0 %3504
          %3508 = vset.pattern.permute.xlu0 0
          %3509 = vperm.xlu0 %3508, %v2067
          %v3510 = vpop.permute.xlu0 %3509
          %3513 = vset.pattern.permute.xlu0 0
          %3514 = vperm.xlu0 %3513, %v2069
          %v3515 = vpop.permute.xlu0 %3514
          %3518 = vset.pattern.permute.xlu0 0
          %3519 = vperm.xlu0 %3518, %v2071
          %v3520 = vpop.permute.xlu0 %3519
          %3523 = vset.pattern.permute.xlu0 0
          %3524 = vperm.xlu0 %3523, %v2073
          %v3525 = vpop.permute.xlu0 %3524
          %3528 = vset.pattern.permute.xlu0 0
          %3529 = vperm.xlu0 %3528, %v2075
          %v3530 = vpop.permute.xlu0 %3529
          %3533 = vset.pattern.permute.xlu0 0
          %3534 = vperm.xlu0 %3533, %v2077
          %v3535 = vpop.permute.xlu0 %3534
          %3538 = vset.pattern.permute.xlu0 0
          %3539 = vperm.xlu0 %3538, %v2079
          %v3540 = vpop.permute.xlu0 %3539
          %3543 = vset.pattern.permute.xlu0 0
          %3544 = vperm.xlu0 %3543, %v2081
          %v3545 = vpop.permute.xlu0 %3544
          %3548 = vset.pattern.permute.xlu0 0
          %3549 = vperm.xlu0 %3548, %v2083
          %v3550 = vpop.permute.xlu0 %3549
          %3553 = vset.pattern.permute.xlu0 0
          %3554 = vperm.xlu0 %3553, %v2085
          %v3555 = vpop.permute.xlu0 %3554
          %3558 = vset.pattern.permute.xlu0 0
          %3559 = vperm.xlu0 %3558, %v2087
          %v3560 = vpop.permute.xlu0 %3559
          %3563 = vset.pattern.permute.xlu0 0
          %3564 = vperm.xlu0 %3563, %v2089
          %v3565 = vpop.permute.xlu0 %3564
          %3568 = vset.pattern.permute.xlu0 0
          %3569 = vperm.xlu0 %3568, %v2091
          %v3570 = vpop.permute.xlu0 %3569
          %3573 = vset.pattern.permute.xlu0 0
          %3574 = vperm.xlu0 %3573, %v2093
          %v3575 = vpop.permute.xlu0 %3574
          %3578 = vset.pattern.permute.xlu0 0
          %3579 = vperm.xlu0 %3578, %v2095
          %v3580 = vpop.permute.xlu0 %3579
          %3583 = vset.pattern.permute.xlu0 0
          %3584 = vperm.xlu0 %3583, %v2097
          %v3585 = vpop.permute.xlu0 %3584
          %3588 = vset.pattern.permute.xlu0 0
          %3589 = vperm.xlu0 %3588, %v2099
          %v3590 = vpop.permute.xlu0 %3589
          %3593 = vset.pattern.permute.xlu0 0
          %3594 = vperm.xlu0 %3593, %v2101
          %v3595 = vpop.permute.xlu0 %3594
          %3598 = vset.pattern.permute.xlu0 0
          %3599 = vperm.xlu0 %3598, %v2103
          %v3600 = vpop.permute.xlu0 %3599
          %3603 = vset.pattern.permute.xlu0 0
          %3604 = vperm.xlu0 %3603, %v2105
          %v3605 = vpop.permute.xlu0 %3604
          %3608 = vset.pattern.permute.xlu0 0
          %3609 = vperm.xlu0 %3608, %v2107
          %v3610 = vpop.permute.xlu0 %3609
          %3613 = vset.pattern.permute.xlu0 0
          %3614 = vperm.xlu0 %3613, %v2109
          %v3615 = vpop.permute.xlu0 %3614
          %3618 = vset.pattern.permute.xlu0 0
          %3619 = vperm.xlu0 %3618, %v2111
          %v3620 = vpop.permute.xlu0 %3619
          %3623 = vset.pattern.permute.xlu0 0
          %3624 = vperm.xlu0 %3623, %v2113
          %v3625 = vpop.permute.xlu0 %3624
          %3628 = vset.pattern.permute.xlu0 0
          %3629 = vperm.xlu0 %3628, %v2115
          %v3630 = vpop.permute.xlu0 %3629
          %3633 = vset.pattern.permute.xlu0 0
          %3634 = vperm.xlu0 %3633, %v2117
          %v3635 = vpop.permute.xlu0 %3634
          %3638 = vset.pattern.permute.xlu0 0
          %3639 = vperm.xlu0 %3638, %v2119
          %v3640 = vpop.permute.xlu0 %3639
          %3643 = vset.pattern.permute.xlu0 0
          %3644 = vperm.xlu0 %3643, %v2121
          %v3645 = vpop.permute.xlu0 %3644
          %3648 = vset.pattern.permute.xlu0 0
          %3649 = vperm.xlu0 %3648, %v2123
          %v3650 = vpop.permute.xlu0 %3649
          %3653 = vset.pattern.permute.xlu0 0
          %3654 = vperm.xlu0 %3653, %v2125
          %v3655 = vpop.permute.xlu0 %3654
          %3658 = vset.pattern.permute.xlu0 0
          %3659 = vperm.xlu0 %3658, %v2127
          %v3660 = vpop.permute.xlu0 %3659
          %3663 = vset.pattern.permute.xlu0 0
          %3664 = vperm.xlu0 %3663, %v2129
          %v3665 = vpop.permute.xlu0 %3664
          %v3667 = vmul.f32 %v3350, %v3283
          %v3668 = vmul.f32 %v3355, %v3284
          %v3669 = vmul.f32 %v3360, %v3285
          %v3670 = vmul.f32 %v3365, %v3286
          %v3671 = vmul.f32 %v3370, %v3287
          %v3672 = vmul.f32 %v3375, %v3288
          %v3673 = vmul.f32 %v3380, %v3289
          %v3674 = vmul.f32 %v3385, %v3290
          %v3675 = vmul.f32 %v3390, %v3291
          %v3676 = vmul.f32 %v3395, %v3292
          %v3677 = vmul.f32 %v3400, %v3293
          %v3678 = vmul.f32 %v3405, %v3294
          %v3679 = vmul.f32 %v3410, %v3295
          %v3680 = vmul.f32 %v3415, %v3296
          %v3681 = vmul.f32 %v3420, %v3297
          %v3682 = vmul.f32 %v3425, %v3298
          %v3683 = vmul.f32 %v3430, %v3299
          %v3684 = vmul.f32 %v3435, %v3300
          %v3685 = vmul.f32 %v3440, %v3301
          %v3686 = vmul.f32 %v3445, %v3302
          %v3687 = vmul.f32 %v3450, %v3303
          %v3688 = vmul.f32 %v3455, %v3304
          %v3689 = vmul.f32 %v3460, %v3305
          %v3690 = vmul.f32 %v3465, %v3306
          %v3691 = vmul.f32 %v3470, %v3307
          %v3692 = vmul.f32 %v3475, %v3308
          %v3693 = vmul.f32 %v3480, %v3309
          %v3694 = vmul.f32 %v3485, %v3310
          %v3695 = vmul.f32 %v3490, %v3311
          %v3696 = vmul.f32 %v3495, %v3312
          %v3697 = vmul.f32 %v3500, %v3313
          %v3698 = vmul.f32 %v3505, %v3314
          %v3699 = vmul.f32 %v3510, %v3315
          %v3700 = vmul.f32 %v3515, %v3316
          %v3701 = vmul.f32 %v3520, %v3317
          %v3702 = vmul.f32 %v3525, %v3318
          %v3703 = vmul.f32 %v3530, %v3319
          %v3704 = vmul.f32 %v3535, %v3320
          %v3705 = vmul.f32 %v3540, %v3321
          %v3706 = vmul.f32 %v3545, %v3322
          %v3707 = vmul.f32 %v3550, %v3323
          %v3708 = vmul.f32 %v3555, %v3324
          %v3709 = vmul.f32 %v3560, %v3325
          %v3710 = vmul.f32 %v3565, %v3326
          %v3711 = vmul.f32 %v3570, %v3327
          %v3712 = vmul.f32 %v3575, %v3328
          %v3713 = vmul.f32 %v3580, %v3329
          %v3714 = vmul.f32 %v3585, %v3330
          %v3715 = vmul.f32 %v3590, %v3331
          %v3716 = vmul.f32 %v3595, %v3332
          %v3717 = vmul.f32 %v3600, %v3333
          %v3718 = vmul.f32 %v3605, %v3334
          %v3719 = vmul.f32 %v3610, %v3335
          %v3720 = vmul.f32 %v3615, %v3336
          %v3721 = vmul.f32 %v3620, %v3337
          %v3722 = vmul.f32 %v3625, %v3338
          %v3723 = vmul.f32 %v3630, %v3339
          %v3724 = vmul.f32 %v3635, %v3340
          %v3725 = vmul.f32 %v3640, %v3341
          %v3726 = vmul.f32 %v3645, %v3342
          %v3727 = vmul.f32 %v3650, %v3343
          %v3728 = vmul.f32 %v3655, %v3344
          %v3729 = vmul.f32 %v3660, %v3345
          %v3730 = vmul.f32 %v3665, %v3346
          %v3731 = vpack.c.bf16 %v2583, %v2579
          %v3732 = vpack.c.bf16 %v2585, %v2581
          %v3733 = vpack.c.bf16 %v2591, %v2587
          %v3734 = vpack.c.bf16 %v2593, %v2589
          %v3735 = vpack.c.bf16 %v2599, %v2595
          %v3736 = vpack.c.bf16 %v2601, %v2597
          %v3737 = vpack.c.bf16 %v2607, %v2603
          %v3738 = vpack.c.bf16 %v2609, %v2605
          %v3739 = vpack.c.bf16 %v2615, %v2611
          %v3740 = vpack.c.bf16 %v2617, %v2613
          %v3741 = vpack.c.bf16 %v2623, %v2619
          %v3742 = vpack.c.bf16 %v2625, %v2621
          %v3743 = vpack.c.bf16 %v2631, %v2627
          %v3744 = vpack.c.bf16 %v2633, %v2629
          %v3745 = vpack.c.bf16 %v2639, %v2635
          %v3746 = vpack.c.bf16 %v2641, %v2637
          %v3747 = vpack.c.bf16 %v2647, %v2643
          %v3748 = vpack.c.bf16 %v2649, %v2645
          %v3749 = vpack.c.bf16 %v2655, %v2651
          %v3750 = vpack.c.bf16 %v2657, %v2653
          %v3751 = vpack.c.bf16 %v2663, %v2659
          %v3752 = vpack.c.bf16 %v2665, %v2661
          %v3753 = vpack.c.bf16 %v2671, %v2667
          %v3754 = vpack.c.bf16 %v2673, %v2669
          %v3755 = vpack.c.bf16 %v2679, %v2675
          %v3756 = vpack.c.bf16 %v2681, %v2677
          %v3757 = vpack.c.bf16 %v2687, %v2683
          %v3758 = vpack.c.bf16 %v2689, %v2685
          %v3759 = vpack.c.bf16 %v2695, %v2691
          %v3760 = vpack.c.bf16 %v2697, %v2693
          %v3761 = vpack.c.bf16 %v2703, %v2699
          %v3762 = vpack.c.bf16 %v2705, %v2701
          %v3763 = vpack.c.bf16 %v2711, %v2707
          %v3764 = vpack.c.bf16 %v2713, %v2709
          %v3765 = vpack.c.bf16 %v2719, %v2715
          %v3766 = vpack.c.bf16 %v2721, %v2717
          %v3767 = vpack.c.bf16 %v2727, %v2723
          %v3768 = vpack.c.bf16 %v2729, %v2725
          %v3769 = vpack.c.bf16 %v2735, %v2731
          %v3770 = vpack.c.bf16 %v2737, %v2733
          %v3771 = vpack.c.bf16 %v2743, %v2739
          %v3772 = vpack.c.bf16 %v2745, %v2741
          %v3773 = vpack.c.bf16 %v2751, %v2747
          %v3774 = vpack.c.bf16 %v2753, %v2749
          %v3775 = vpack.c.bf16 %v2759, %v2755
          %v3776 = vpack.c.bf16 %v2761, %v2757
          %v3777 = vpack.c.bf16 %v2767, %v2763
          %v3778 = vpack.c.bf16 %v2769, %v2765
          %v3779 = vpack.c.bf16 %v2775, %v2771
          %v3780 = vpack.c.bf16 %v2777, %v2773
          %v3781 = vpack.c.bf16 %v2783, %v2779
          %v3782 = vpack.c.bf16 %v2785, %v2781
          %v3783 = vpack.c.bf16 %v2791, %v2787
          %v3784 = vpack.c.bf16 %v2793, %v2789
          %v3785 = vpack.c.bf16 %v2799, %v2795
          %v3786 = vpack.c.bf16 %v2801, %v2797
          %v3787 = vpack.c.bf16 %v2807, %v2803
          %v3788 = vpack.c.bf16 %v2809, %v2805
          %v3789 = vpack.c.bf16 %v2815, %v2811
          %v3790 = vpack.c.bf16 %v2817, %v2813
          %v3791 = vpack.c.bf16 %v2823, %v2819
          %v3792 = vpack.c.bf16 %v2825, %v2821
          %v3793 = vpack.c.bf16 %v2831, %v2827
          %v3794 = vpack.c.bf16 %v2833, %v2829
          %v3827 = vunpack.c.l.b16 %v799
          %v3828 = vunpack.c.l.b16 %v800
          %v3829 = vunpack.c.l.b16 %v801
          %v3830 = vunpack.c.l.b16 %v802
          %v3831 = vunpack.c.l.b16 %v803
          %v3832 = vunpack.c.l.b16 %v804
          %v3833 = vunpack.c.l.b16 %v805
          %v3834 = vunpack.c.l.b16 %v806
          %v3835 = vunpack.c.l.b16 %v807
          %v3836 = vunpack.c.l.b16 %v808
          %v3837 = vunpack.c.l.b16 %v809
          %v3838 = vunpack.c.l.b16 %v810
          %v3839 = vunpack.c.l.b16 %v811
          %v3840 = vunpack.c.l.b16 %v812
          %v3841 = vunpack.c.l.b16 %v813
          %v3842 = vunpack.c.l.b16 %v814
          %v3843 = vunpack.c.l.b16 %v815
          %v3844 = vunpack.c.l.b16 %v816
          %v3845 = vunpack.c.l.b16 %v817
          %v3846 = vunpack.c.l.b16 %v818
          %v3847 = vunpack.c.l.b16 %v819
          %v3848 = vunpack.c.l.b16 %v820
          %v3849 = vunpack.c.l.b16 %v821
          %v3850 = vunpack.c.l.b16 %v822
          %v3851 = vunpack.c.l.b16 %v823
          %v3852 = vunpack.c.l.b16 %v824
          %v3853 = vunpack.c.l.b16 %v825
          %v3854 = vunpack.c.l.b16 %v826
          %v3855 = vunpack.c.l.b16 %v827
          %v3856 = vunpack.c.l.b16 %v828
          %v3857 = vunpack.c.l.b16 %v829
          %v3858 = vunpack.c.l.b16 %v830
          %v3859 = vpack.c.b16 %v3828, %v3827
          %v3860 = vpack.c.b16 %v3830, %v3829
          %v3861 = vpack.c.b16 %v3832, %v3831
          %v3862 = vpack.c.b16 %v3834, %v3833
          %v3863 = vpack.c.b16 %v3836, %v3835
          %v3864 = vpack.c.b16 %v3838, %v3837
          %v3865 = vpack.c.b16 %v3840, %v3839
          %v3866 = vpack.c.b16 %v3842, %v3841
          %v3867 = vpack.c.b16 %v3844, %v3843
          %v3868 = vpack.c.b16 %v3846, %v3845
          %v3869 = vpack.c.b16 %v3848, %v3847
          %v3870 = vpack.c.b16 %v3850, %v3849
          %v3871 = vpack.c.b16 %v3852, %v3851
          %v3872 = vpack.c.b16 %v3854, %v3853
          %v3873 = vpack.c.b16 %v3856, %v3855
          %v3874 = vpack.c.b16 %v3858, %v3857
          %3891 = vmatpush.bf16.msra.mxu0 %v3866
          %3892 = vmatpush.bf16.msra.mxu0 %v3865
          %3893 = vmatpush.bf16.msra.mxu0 %v3864
          %3894 = vmatpush.bf16.msra.mxu0 %v3863
          %3895 = vmatpush.bf16.msra.mxu0 %v3862
          %3896 = vmatpush.bf16.msra.mxu0 %v3861
          %3897 = vmatpush.bf16.msra.mxu0 %v3860
          %3898 = vmatpush.bf16.msra.mxu0 %v3859
          %3899 = vmatmul.bf16.gmra.mxu0 %v3731
          %v3900 = vpop.f32.mrf.mxu0
          %v3901 = vadd.f32 0.0, %v3900
          %v3902 = vpop.f32.mrf.mxu0
          %v3903 = vadd.f32 0.0, %v3902
          %3904 = vmatmul.bf16.gmra.mxu0 %v3733
          %v3905 = vpop.f32.mrf.mxu0
          %v3906 = vadd.f32 0.0, %v3905
          %v3907 = vpop.f32.mrf.mxu0
          %v3908 = vadd.f32 0.0, %v3907
          %3909 = vmatmul.bf16.gmra.mxu0 %v3735
          %v3910 = vpop.f32.mrf.mxu0
          %v3911 = vadd.f32 0.0, %v3910
          %v3912 = vpop.f32.mrf.mxu0
          %v3913 = vadd.f32 0.0, %v3912
          %3914 = vmatmul.bf16.gmra.mxu0 %v3737
          %v3915 = vpop.f32.mrf.mxu0
          %v3916 = vadd.f32 0.0, %v3915
          %v3917 = vpop.f32.mrf.mxu0
          %v3918 = vadd.f32 0.0, %v3917
          %3919 = vmatmul.bf16.gmra.mxu0 %v3739
          %v3920 = vpop.f32.mrf.mxu0
          %v3921 = vadd.f32 0.0, %v3920
          %v3922 = vpop.f32.mrf.mxu0
          %v3923 = vadd.f32 0.0, %v3922
          %3924 = vmatmul.bf16.gmra.mxu0 %v3741
          %v3925 = vpop.f32.mrf.mxu0
          %v3926 = vadd.f32 0.0, %v3925
          %v3927 = vpop.f32.mrf.mxu0
          %v3928 = vadd.f32 0.0, %v3927
          %3929 = vmatmul.bf16.gmra.mxu0 %v3743
          %v3930 = vpop.f32.mrf.mxu0
          %v3931 = vadd.f32 0.0, %v3930
          %v3932 = vpop.f32.mrf.mxu0
          %v3933 = vadd.f32 0.0, %v3932
          %3934 = vmatmul.bf16.gmra.mxu0 %v3745
          %v3935 = vpop.f32.mrf.mxu0
          %v3936 = vadd.f32 0.0, %v3935
          %v3937 = vpop.f32.mrf.mxu0
          %v3938 = vadd.f32 0.0, %v3937
          %3939 = vmatmul.bf16.gmra.mxu0 %v3747
          %v3940 = vpop.f32.mrf.mxu0
          %v3941 = vadd.f32 0.0, %v3940
          %v3942 = vpop.f32.mrf.mxu0
          %v3943 = vadd.f32 0.0, %v3942
          %3944 = vmatmul.bf16.gmra.mxu0 %v3749
          %v3945 = vpop.f32.mrf.mxu0
          %v3946 = vadd.f32 0.0, %v3945
          %v3947 = vpop.f32.mrf.mxu0
          %v3948 = vadd.f32 0.0, %v3947
          %3949 = vmatmul.bf16.gmra.mxu0 %v3751
          %v3950 = vpop.f32.mrf.mxu0
          %v3951 = vadd.f32 0.0, %v3950
          %v3952 = vpop.f32.mrf.mxu0
          %v3953 = vadd.f32 0.0, %v3952
          %3954 = vmatmul.bf16.gmra.mxu0 %v3753
          %v3955 = vpop.f32.mrf.mxu0
          %v3956 = vadd.f32 0.0, %v3955
          %v3957 = vpop.f32.mrf.mxu0
          %v3958 = vadd.f32 0.0, %v3957
          %3959 = vmatmul.bf16.gmra.mxu0 %v3755
          %v3960 = vpop.f32.mrf.mxu0
          %v3961 = vadd.f32 0.0, %v3960
          %v3962 = vpop.f32.mrf.mxu0
          %v3963 = vadd.f32 0.0, %v3962
          %3964 = vmatmul.bf16.gmra.mxu0 %v3757
          %v3965 = vpop.f32.mrf.mxu0
          %v3966 = vadd.f32 0.0, %v3965
          %v3967 = vpop.f32.mrf.mxu0
          %v3968 = vadd.f32 0.0, %v3967
          %3969 = vmatmul.bf16.gmra.mxu0 %v3759
          %v3970 = vpop.f32.mrf.mxu0
          %v3971 = vadd.f32 0.0, %v3970
          %v3972 = vpop.f32.mrf.mxu0
          %v3973 = vadd.f32 0.0, %v3972
          %3974 = vmatmul.bf16.gmra.mxu0 %v3761
          %v3975 = vpop.f32.mrf.mxu0
          %v3976 = vadd.f32 0.0, %v3975
          %v3977 = vpop.f32.mrf.mxu0
          %v3978 = vadd.f32 0.0, %v3977
          %3979 = vmatmul.bf16.gmra.mxu0 %v3763
          %v3980 = vpop.f32.mrf.mxu0
          %v3981 = vadd.f32 0.0, %v3980
          %v3982 = vpop.f32.mrf.mxu0
          %v3983 = vadd.f32 0.0, %v3982
          %3984 = vmatmul.bf16.gmra.mxu0 %v3765
          %v3985 = vpop.f32.mrf.mxu0
          %v3986 = vadd.f32 0.0, %v3985
          %v3987 = vpop.f32.mrf.mxu0
          %v3988 = vadd.f32 0.0, %v3987
          %3989 = vmatmul.bf16.gmra.mxu0 %v3767
          %v3990 = vpop.f32.mrf.mxu0
          %v3991 = vadd.f32 0.0, %v3990
          %v3992 = vpop.f32.mrf.mxu0
          %v3993 = vadd.f32 0.0, %v3992
          %3994 = vmatmul.bf16.gmra.mxu0 %v3769
          %v3995 = vpop.f32.mrf.mxu0
          %v3996 = vadd.f32 0.0, %v3995
          %v3997 = vpop.f32.mrf.mxu0
          %v3998 = vadd.f32 0.0, %v3997
          %3999 = vmatmul.bf16.gmra.mxu0 %v3771
          %v4000 = vpop.f32.mrf.mxu0
          %v4001 = vadd.f32 0.0, %v4000
          %v4002 = vpop.f32.mrf.mxu0
          %v4003 = vadd.f32 0.0, %v4002
          %4004 = vmatmul.bf16.gmra.mxu0 %v3773
          %v4005 = vpop.f32.mrf.mxu0
          %v4006 = vadd.f32 0.0, %v4005
          %v4007 = vpop.f32.mrf.mxu0
          %v4008 = vadd.f32 0.0, %v4007
          %4009 = vmatmul.bf16.gmra.mxu0 %v3775
          %v4010 = vpop.f32.mrf.mxu0
          %v4011 = vadd.f32 0.0, %v4010
          %v4012 = vpop.f32.mrf.mxu0
          %v4013 = vadd.f32 0.0, %v4012
          %4014 = vmatmul.bf16.gmra.mxu0 %v3777
          %v4015 = vpop.f32.mrf.mxu0
          %v4016 = vadd.f32 0.0, %v4015
          %v4017 = vpop.f32.mrf.mxu0
          %v4018 = vadd.f32 0.0, %v4017
          %4019 = vmatmul.bf16.gmra.mxu0 %v3779
          %v4020 = vpop.f32.mrf.mxu0
          %v4021 = vadd.f32 0.0, %v4020
          %v4022 = vpop.f32.mrf.mxu0
          %v4023 = vadd.f32 0.0, %v4022
          %4024 = vmatmul.bf16.gmra.mxu0 %v3781
          %v4025 = vpop.f32.mrf.mxu0
          %v4026 = vadd.f32 0.0, %v4025
          %v4027 = vpop.f32.mrf.mxu0
          %v4028 = vadd.f32 0.0, %v4027
          %4029 = vmatmul.bf16.gmra.mxu0 %v3783
          %v4030 = vpop.f32.mrf.mxu0
          %v4031 = vadd.f32 0.0, %v4030
          %v4032 = vpop.f32.mrf.mxu0
          %v4033 = vadd.f32 0.0, %v4032
          %4034 = vmatmul.bf16.gmra.mxu0 %v3785
          %v4035 = vpop.f32.mrf.mxu0
          %v4036 = vadd.f32 0.0, %v4035
          %v4037 = vpop.f32.mrf.mxu0
          %v4038 = vadd.f32 0.0, %v4037
          %4039 = vmatmul.bf16.gmra.mxu0 %v3787
          %v4040 = vpop.f32.mrf.mxu0
          %v4041 = vadd.f32 0.0, %v4040
          %v4042 = vpop.f32.mrf.mxu0
          %v4043 = vadd.f32 0.0, %v4042
          %4044 = vmatmul.bf16.gmra.mxu0 %v3789
          %v4045 = vpop.f32.mrf.mxu0
          %v4046 = vadd.f32 0.0, %v4045
          %v4047 = vpop.f32.mrf.mxu0
          %v4048 = vadd.f32 0.0, %v4047
          %4049 = vmatmul.bf16.gmra.mxu0 %v3791
          %v4050 = vpop.f32.mrf.mxu0
          %v4051 = vadd.f32 0.0, %v4050
          %v4052 = vpop.f32.mrf.mxu0
          %v4053 = vadd.f32 0.0, %v4052
          %4054 = vmatmul.bf16.gmra.mxu0 %v3793
          %v4055 = vpop.f32.mrf.mxu0
          %v4056 = vadd.f32 0.0, %v4055
          %v4057 = vpop.f32.mrf.mxu0
          %v4058 = vadd.f32 0.0, %v4057
          %4059 = vdwg.mxu0
          %4060 = vmatpush.bf16.msra.mxu0 %v3874
          %4061 = vmatpush.bf16.msra.mxu0 %v3873
          %4062 = vmatpush.bf16.msra.mxu0 %v3872
          %4063 = vmatpush.bf16.msra.mxu0 %v3871
          %4064 = vmatpush.bf16.msra.mxu0 %v3870
          %4065 = vmatpush.bf16.msra.mxu0 %v3869
          %4066 = vmatpush.bf16.msra.mxu0 %v3868
          %4067 = vmatpush.bf16.msra.mxu0 %v3867
          %4068 = vmatmul.bf16.gmra.mxu0 %v3732
          %v4069 = vpop.f32.mrf.mxu0
          %v4070 = vadd.f32 %v3901, %v4069
          %v4071 = vpop.f32.mrf.mxu0
          %v4072 = vadd.f32 %v3903, %v4071
          %4073 = vmatmul.bf16.gmra.mxu0 %v3734
          %v4074 = vpop.f32.mrf.mxu0
          %v4075 = vadd.f32 %v3906, %v4074
          %v4076 = vpop.f32.mrf.mxu0
          %v4077 = vadd.f32 %v3908, %v4076
          %4078 = vmatmul.bf16.gmra.mxu0 %v3736
          %v4079 = vpop.f32.mrf.mxu0
          %v4080 = vadd.f32 %v3911, %v4079
          %v4081 = vpop.f32.mrf.mxu0
          %v4082 = vadd.f32 %v3913, %v4081
          %4083 = vmatmul.bf16.gmra.mxu0 %v3738
          %v4084 = vpop.f32.mrf.mxu0
          %v4085 = vadd.f32 %v3916, %v4084
          %v4086 = vpop.f32.mrf.mxu0
          %v4087 = vadd.f32 %v3918, %v4086
          %4088 = vmatmul.bf16.gmra.mxu0 %v3740
          %v4089 = vpop.f32.mrf.mxu0
          %v4090 = vadd.f32 %v3921, %v4089
          %v4091 = vpop.f32.mrf.mxu0
          %v4092 = vadd.f32 %v3923, %v4091
          %4093 = vmatmul.bf16.gmra.mxu0 %v3742
          %v4094 = vpop.f32.mrf.mxu0
          %v4095 = vadd.f32 %v3926, %v4094
          %v4096 = vpop.f32.mrf.mxu0
          %v4097 = vadd.f32 %v3928, %v4096
          %4098 = vmatmul.bf16.gmra.mxu0 %v3744
          %v4099 = vpop.f32.mrf.mxu0
          %v4100 = vadd.f32 %v3931, %v4099
          %v4101 = vpop.f32.mrf.mxu0
          %v4102 = vadd.f32 %v3933, %v4101
          %4103 = vmatmul.bf16.gmra.mxu0 %v3746
          %v4104 = vpop.f32.mrf.mxu0
          %v4105 = vadd.f32 %v3936, %v4104
          %v4106 = vpop.f32.mrf.mxu0
          %v4107 = vadd.f32 %v3938, %v4106
          %4108 = vmatmul.bf16.gmra.mxu0 %v3748
          %v4109 = vpop.f32.mrf.mxu0
          %v4110 = vadd.f32 %v3941, %v4109
          %v4111 = vpop.f32.mrf.mxu0
          %v4112 = vadd.f32 %v3943, %v4111
          %4113 = vmatmul.bf16.gmra.mxu0 %v3750
          %v4114 = vpop.f32.mrf.mxu0
          %v4115 = vadd.f32 %v3946, %v4114
          %v4116 = vpop.f32.mrf.mxu0
          %v4117 = vadd.f32 %v3948, %v4116
          %4118 = vmatmul.bf16.gmra.mxu0 %v3752
          %v4119 = vpop.f32.mrf.mxu0
          %v4120 = vadd.f32 %v3951, %v4119
          %v4121 = vpop.f32.mrf.mxu0
          %v4122 = vadd.f32 %v3953, %v4121
          %4123 = vmatmul.bf16.gmra.mxu0 %v3754
          %v4124 = vpop.f32.mrf.mxu0
          %v4125 = vadd.f32 %v3956, %v4124
          %v4126 = vpop.f32.mrf.mxu0
          %v4127 = vadd.f32 %v3958, %v4126
          %4128 = vmatmul.bf16.gmra.mxu0 %v3756
          %v4129 = vpop.f32.mrf.mxu0
          %v4130 = vadd.f32 %v3961, %v4129
          %v4131 = vpop.f32.mrf.mxu0
          %v4132 = vadd.f32 %v3963, %v4131
          %4133 = vmatmul.bf16.gmra.mxu0 %v3758
          %v4134 = vpop.f32.mrf.mxu0
          %v4135 = vadd.f32 %v3966, %v4134
          %v4136 = vpop.f32.mrf.mxu0
          %v4137 = vadd.f32 %v3968, %v4136
          %4138 = vmatmul.bf16.gmra.mxu0 %v3760
          %v4139 = vpop.f32.mrf.mxu0
          %v4140 = vadd.f32 %v3971, %v4139
          %v4141 = vpop.f32.mrf.mxu0
          %v4142 = vadd.f32 %v3973, %v4141
          %4143 = vmatmul.bf16.gmra.mxu0 %v3762
          %v4144 = vpop.f32.mrf.mxu0
          %v4145 = vadd.f32 %v3976, %v4144
          %v4146 = vpop.f32.mrf.mxu0
          %v4147 = vadd.f32 %v3978, %v4146
          %4148 = vmatmul.bf16.gmra.mxu0 %v3764
          %v4149 = vpop.f32.mrf.mxu0
          %v4150 = vadd.f32 %v3981, %v4149
          %v4151 = vpop.f32.mrf.mxu0
          %v4152 = vadd.f32 %v3983, %v4151
          %4153 = vmatmul.bf16.gmra.mxu0 %v3766
          %v4154 = vpop.f32.mrf.mxu0
          %v4155 = vadd.f32 %v3986, %v4154
          %v4156 = vpop.f32.mrf.mxu0
          %v4157 = vadd.f32 %v3988, %v4156
          %4158 = vmatmul.bf16.gmra.mxu0 %v3768
          %v4159 = vpop.f32.mrf.mxu0
          %v4160 = vadd.f32 %v3991, %v4159
          %v4161 = vpop.f32.mrf.mxu0
          %v4162 = vadd.f32 %v3993, %v4161
          %4163 = vmatmul.bf16.gmra.mxu0 %v3770
          %v4164 = vpop.f32.mrf.mxu0
          %v4165 = vadd.f32 %v3996, %v4164
          %v4166 = vpop.f32.mrf.mxu0
          %v4167 = vadd.f32 %v3998, %v4166
          %4168 = vmatmul.bf16.gmra.mxu0 %v3772
          %v4169 = vpop.f32.mrf.mxu0
          %v4170 = vadd.f32 %v4001, %v4169
          %v4171 = vpop.f32.mrf.mxu0
          %v4172 = vadd.f32 %v4003, %v4171
          %4173 = vmatmul.bf16.gmra.mxu0 %v3774
          %v4174 = vpop.f32.mrf.mxu0
          %v4175 = vadd.f32 %v4006, %v4174
          %v4176 = vpop.f32.mrf.mxu0
          %v4177 = vadd.f32 %v4008, %v4176
          %4178 = vmatmul.bf16.gmra.mxu0 %v3776
          %v4179 = vpop.f32.mrf.mxu0
          %v4180 = vadd.f32 %v4011, %v4179
          %v4181 = vpop.f32.mrf.mxu0
          %v4182 = vadd.f32 %v4013, %v4181
          %4183 = vmatmul.bf16.gmra.mxu0 %v3778
          %v4184 = vpop.f32.mrf.mxu0
          %v4185 = vadd.f32 %v4016, %v4184
          %v4186 = vpop.f32.mrf.mxu0
          %v4187 = vadd.f32 %v4018, %v4186
          %4188 = vmatmul.bf16.gmra.mxu0 %v3780
          %v4189 = vpop.f32.mrf.mxu0
          %v4190 = vadd.f32 %v4021, %v4189
          %v4191 = vpop.f32.mrf.mxu0
          %v4192 = vadd.f32 %v4023, %v4191
          %4193 = vmatmul.bf16.gmra.mxu0 %v3782
          %v4194 = vpop.f32.mrf.mxu0
          %v4195 = vadd.f32 %v4026, %v4194
          %v4196 = vpop.f32.mrf.mxu0
          %v4197 = vadd.f32 %v4028, %v4196
          %4198 = vmatmul.bf16.gmra.mxu0 %v3784
          %v4199 = vpop.f32.mrf.mxu0
          %v4200 = vadd.f32 %v4031, %v4199
          %v4201 = vpop.f32.mrf.mxu0
          %v4202 = vadd.f32 %v4033, %v4201
          %4203 = vmatmul.bf16.gmra.mxu0 %v3786
          %v4204 = vpop.f32.mrf.mxu0
          %v4205 = vadd.f32 %v4036, %v4204
          %v4206 = vpop.f32.mrf.mxu0
          %v4207 = vadd.f32 %v4038, %v4206
          %4208 = vmatmul.bf16.gmra.mxu0 %v3788
          %v4209 = vpop.f32.mrf.mxu0
          %v4210 = vadd.f32 %v4041, %v4209
          %v4211 = vpop.f32.mrf.mxu0
          %v4212 = vadd.f32 %v4043, %v4211
          %4213 = vmatmul.bf16.gmra.mxu0 %v3790
          %v4214 = vpop.f32.mrf.mxu0
          %v4215 = vadd.f32 %v4046, %v4214
          %v4216 = vpop.f32.mrf.mxu0
          %v4217 = vadd.f32 %v4048, %v4216
          %4218 = vmatmul.bf16.gmra.mxu0 %v3792
          %v4219 = vpop.f32.mrf.mxu0
          %v4220 = vadd.f32 %v4051, %v4219
          %v4221 = vpop.f32.mrf.mxu0
          %v4222 = vadd.f32 %v4053, %v4221
          %4223 = vmatmul.bf16.gmra.mxu0 %v3794
          %v4224 = vpop.f32.mrf.mxu0
          %v4225 = vadd.f32 %v4056, %v4224
          %v4226 = vpop.f32.mrf.mxu0
          %v4227 = vadd.f32 %v4058, %v4226
          %4228 = vdwg.mxu0
          %v4229 = vadd.f32 %v3667, %v4070
          %v4230 = vadd.f32 %v3668, %v4072
          %v4231 = vadd.f32 %v3669, %v4075
          %v4232 = vadd.f32 %v3670, %v4077
          %v4233 = vadd.f32 %v3671, %v4080
          %v4234 = vadd.f32 %v3672, %v4082
          %v4235 = vadd.f32 %v3673, %v4085
          %v4236 = vadd.f32 %v3674, %v4087
          %v4237 = vadd.f32 %v3675, %v4090
          %v4238 = vadd.f32 %v3676, %v4092
          %v4239 = vadd.f32 %v3677, %v4095
          %v4240 = vadd.f32 %v3678, %v4097
          %v4241 = vadd.f32 %v3679, %v4100
          %v4242 = vadd.f32 %v3680, %v4102
          %v4243 = vadd.f32 %v3681, %v4105
          %v4244 = vadd.f32 %v3682, %v4107
          %v4245 = vadd.f32 %v3683, %v4110
          %v4246 = vadd.f32 %v3684, %v4112
          %v4247 = vadd.f32 %v3685, %v4115
          %v4248 = vadd.f32 %v3686, %v4117
          %v4249 = vadd.f32 %v3687, %v4120
          %v4250 = vadd.f32 %v3688, %v4122
          %v4251 = vadd.f32 %v3689, %v4125
          %v4252 = vadd.f32 %v3690, %v4127
          %v4253 = vadd.f32 %v3691, %v4130
          %v4254 = vadd.f32 %v3692, %v4132
          %v4255 = vadd.f32 %v3693, %v4135
          %v4256 = vadd.f32 %v3694, %v4137
          %v4257 = vadd.f32 %v3695, %v4140
          %v4258 = vadd.f32 %v3696, %v4142
          %v4259 = vadd.f32 %v3697, %v4145
          %v4260 = vadd.f32 %v3698, %v4147
          %v4261 = vadd.f32 %v3699, %v4150
          %v4262 = vadd.f32 %v3700, %v4152
          %v4263 = vadd.f32 %v3701, %v4155
          %v4264 = vadd.f32 %v3702, %v4157
          %v4265 = vadd.f32 %v3703, %v4160
          %v4266 = vadd.f32 %v3704, %v4162
          %v4267 = vadd.f32 %v3705, %v4165
          %v4268 = vadd.f32 %v3706, %v4167
          %v4269 = vadd.f32 %v3707, %v4170
          %v4270 = vadd.f32 %v3708, %v4172
          %v4271 = vadd.f32 %v3709, %v4175
          %v4272 = vadd.f32 %v3710, %v4177
          %v4273 = vadd.f32 %v3711, %v4180
          %v4274 = vadd.f32 %v3712, %v4182
          %v4275 = vadd.f32 %v3713, %v4185
          %v4276 = vadd.f32 %v3714, %v4187
          %v4277 = vadd.f32 %v3715, %v4190
          %v4278 = vadd.f32 %v3716, %v4192
          %v4279 = vadd.f32 %v3717, %v4195
          %v4280 = vadd.f32 %v3718, %v4197
          %v4281 = vadd.f32 %v3719, %v4200
          %v4282 = vadd.f32 %v3720, %v4202
          %v4283 = vadd.f32 %v3721, %v4205
          %v4284 = vadd.f32 %v3722, %v4207
          %v4285 = vadd.f32 %v3723, %v4210
          %v4286 = vadd.f32 %v3724, %v4212
          %v4287 = vadd.f32 %v3725, %v4215
          %v4288 = vadd.f32 %v3726, %v4217
          %v4289 = vadd.f32 %v3727, %v4220
          %v4290 = vadd.f32 %v3728, %v4222
          %v4291 = vadd.f32 %v3729, %v4225
          %v4292 = vadd.f32 %v3730, %v4227
          %4293 = vst.msk [vmem:[#allocation4] sm:$0xff] %vm1135, %v4229
          %4294 = vst.msk [vmem:[#allocation4 + $0x8] sm:$0xff] %vm1135, %v4230
          %4295 = vst.msk [vmem:[#allocation4 + $0x10] sm:$0xff] %vm1135, %v4231
          %4296 = vst.msk [vmem:[#allocation4 + $0x18] sm:$0xff] %vm1135, %v4232
          %4297 = vst.msk [vmem:[#allocation4 + $0x20] sm:$0xff] %vm1135, %v4233
          %4298 = vst.msk [vmem:[#allocation4 + $0x28] sm:$0xff] %vm1135, %v4234
          %4299 = vst.msk [vmem:[#allocation4 + $0x30] sm:$0xff] %vm1135, %v4235
          %4300 = vst.msk [vmem:[#allocation4 + $0x38] sm:$0xff] %vm1135, %v4236
          %4301 = vst.msk [vmem:[#allocation4 + $0x40] sm:$0xff] %vm1135, %v4237
          %4302 = vst.msk [vmem:[#allocation4 + $0x48] sm:$0xff] %vm1135, %v4238
          %4303 = vst.msk [vmem:[#allocation4 + $0x50] sm:$0xff] %vm1135, %v4239
          %4304 = vst.msk [vmem:[#allocation4 + $0x58] sm:$0xff] %vm1135, %v4240
          %4305 = vst.msk [vmem:[#allocation4 + $0x60] sm:$0xff] %vm1135, %v4241
          %4306 = vst.msk [vmem:[#allocation4 + $0x68] sm:$0xff] %vm1135, %v4242
          %4307 = vst.msk [vmem:[#allocation4 + $0x70] sm:$0xff] %vm1135, %v4243
          %4308 = vst.msk [vmem:[#allocation4 + $0x78] sm:$0xff] %vm1135, %v4244
          %4309 = vst.msk [vmem:[#allocation4 + $0x80] sm:$0xff] %vm1135, %v4245
          %4310 = vst.msk [vmem:[#allocation4 + $0x88] sm:$0xff] %vm1135, %v4246
          %4311 = vst.msk [vmem:[#allocation4 + $0x90] sm:$0xff] %vm1135, %v4247
          %4312 = vst.msk [vmem:[#allocation4 + $0x98] sm:$0xff] %vm1135, %v4248
          %4313 = vst.msk [vmem:[#allocation4 + $0xa0] sm:$0xff] %vm1135, %v4249
          %4314 = vst.msk [vmem:[#allocation4 + $0xa8] sm:$0xff] %vm1135, %v4250
          %4315 = vst.msk [vmem:[#allocation4 + $0xb0] sm:$0xff] %vm1135, %v4251
          %4316 = vst.msk [vmem:[#allocation4 + $0xb8] sm:$0xff] %vm1135, %v4252
          %4317 = vst.msk [vmem:[#allocation4 + $0xc0] sm:$0xff] %vm1135, %v4253
          %4318 = vst.msk [vmem:[#allocation4 + $0xc8] sm:$0xff] %vm1135, %v4254
          %4319 = vst.msk [vmem:[#allocation4 + $0xd0] sm:$0xff] %vm1135, %v4255
          %4320 = vst.msk [vmem:[#allocation4 + $0xd8] sm:$0xff] %vm1135, %v4256
          %4321 = vst.msk [vmem:[#allocation4 + $0xe0] sm:$0xff] %vm1135, %v4257
          %4322 = vst.msk [vmem:[#allocation4 + $0xe8] sm:$0xff] %vm1135, %v4258
          %4323 = vst.msk [vmem:[#allocation4 + $0xf0] sm:$0xff] %vm1135, %v4259
          %4324 = vst.msk [vmem:[#allocation4 + $0xf8] sm:$0xff] %vm1135, %v4260
          %4325 = vst.msk [vmem:[#allocation4 + $0x100] sm:$0xff] %vm1135, %v4261
          %4326 = vst.msk [vmem:[#allocation4 + $0x108] sm:$0xff] %vm1135, %v4262
          %4327 = vst.msk [vmem:[#allocation4 + $0x110] sm:$0xff] %vm1135, %v4263
          %4328 = vst.msk [vmem:[#allocation4 + $0x118] sm:$0xff] %vm1135, %v4264
          %4329 = vst.msk [vmem:[#allocation4 + $0x120] sm:$0xff] %vm1135, %v4265
          %4330 = vst.msk [vmem:[#allocation4 + $0x128] sm:$0xff] %vm1135, %v4266
          %4331 = vst.msk [vmem:[#allocation4 + $0x130] sm:$0xff] %vm1135, %v4267
          %4332 = vst.msk [vmem:[#allocation4 + $0x138] sm:$0xff] %vm1135, %v4268
          %4333 = vst.msk [vmem:[#allocation4 + $0x140] sm:$0xff] %vm1135, %v4269
          %4334 = vst.msk [vmem:[#allocation4 + $0x148] sm:$0xff] %vm1135, %v4270
          %4335 = vst.msk [vmem:[#allocation4 + $0x150] sm:$0xff] %vm1135, %v4271
          %4336 = vst.msk [vmem:[#allocation4 + $0x158] sm:$0xff] %vm1135, %v4272
          %4337 = vst.msk [vmem:[#allocation4 + $0x160] sm:$0xff] %vm1135, %v4273
          %4338 = vst.msk [vmem:[#allocation4 + $0x168] sm:$0xff] %vm1135, %v4274
          %4339 = vst.msk [vmem:[#allocation4 + $0x170] sm:$0xff] %vm1135, %v4275
          %4340 = vst.msk [vmem:[#allocation4 + $0x178] sm:$0xff] %vm1135, %v4276
          %4341 = vst.msk [vmem:[#allocation4 + $0x180] sm:$0xff] %vm1135, %v4277
          %4342 = vst.msk [vmem:[#allocation4 + $0x188] sm:$0xff] %vm1135, %v4278
          %4343 = vst.msk [vmem:[#allocation4 + $0x190] sm:$0xff] %vm1135, %v4279
          %4344 = vst.msk [vmem:[#allocation4 + $0x198] sm:$0xff] %vm1135, %v4280
          %4345 = vst.msk [vmem:[#allocation4 + $0x1a0] sm:$0xff] %vm1135, %v4281
          %4346 = vst.msk [vmem:[#allocation4 + $0x1a8] sm:$0xff] %vm1135, %v4282
          %4347 = vst.msk [vmem:[#allocation4 + $0x1b0] sm:$0xff] %vm1135, %v4283
          %4348 = vst.msk [vmem:[#allocation4 + $0x1b8] sm:$0xff] %vm1135, %v4284
          %4349 = vst.msk [vmem:[#allocation4 + $0x1c0] sm:$0xff] %vm1135, %v4285
          %4350 = vst.msk [vmem:[#allocation4 + $0x1c8] sm:$0xff] %vm1135, %v4286
          %4351 = vst.msk [vmem:[#allocation4 + $0x1d0] sm:$0xff] %vm1135, %v4287
          %4352 = vst.msk [vmem:[#allocation4 + $0x1d8] sm:$0xff] %vm1135, %v4288
          %4353 = vst.msk [vmem:[#allocation4 + $0x1e0] sm:$0xff] %vm1135, %v4289
          %4354 = vst.msk [vmem:[#allocation4 + $0x1e8] sm:$0xff] %vm1135, %v4290
          %4355 = vst.msk [vmem:[#allocation4 + $0x1f0] sm:$0xff] %vm1135, %v4291
          %4356 = vst.msk [vmem:[#allocation4 + $0x1f8] sm:$0xff] %vm1135, %v4292
          %4357 = vst.msk [vmem:[#allocation2] sm:$0xff] %vm3218, %v1874
          %4358 = vst.msk [vmem:[#allocation2 + $0x8] sm:$0xff] %vm3218, %v1875
          %4359 = vst.msk [vmem:[#allocation2 + $0x10] sm:$0xff] %vm3218, %v1876
          %4360 = vst.msk [vmem:[#allocation2 + $0x18] sm:$0xff] %vm3218, %v1877
          %4361 = vst.msk [vmem:[#allocation2 + $0x20] sm:$0xff] %vm3218, %v1878
          %4362 = vst.msk [vmem:[#allocation2 + $0x28] sm:$0xff] %vm3218, %v1879
          %4363 = vst.msk [vmem:[#allocation2 + $0x30] sm:$0xff] %vm3218, %v1880
          %4364 = vst.msk [vmem:[#allocation2 + $0x38] sm:$0xff] %vm3218, %v1881
          %4365 = vst.msk [vmem:[#allocation2 + $0x40] sm:$0xff] %vm3218, %v1882
          %4366 = vst.msk [vmem:[#allocation2 + $0x48] sm:$0xff] %vm3218, %v1883
          %4367 = vst.msk [vmem:[#allocation2 + $0x50] sm:$0xff] %vm3218, %v1884
          %4368 = vst.msk [vmem:[#allocation2 + $0x58] sm:$0xff] %vm3218, %v1885
          %4369 = vst.msk [vmem:[#allocation2 + $0x60] sm:$0xff] %vm3218, %v1886
          %4370 = vst.msk [vmem:[#allocation2 + $0x68] sm:$0xff] %vm3218, %v1887
          %4371 = vst.msk [vmem:[#allocation2 + $0x70] sm:$0xff] %vm3218, %v1888
          %4372 = vst.msk [vmem:[#allocation2 + $0x78] sm:$0xff] %vm3218, %v1889
          %4373 = vst.msk [vmem:[#allocation2 + $0x80] sm:$0xff] %vm3218, %v1890
          %4374 = vst.msk [vmem:[#allocation2 + $0x88] sm:$0xff] %vm3218, %v1891
          %4375 = vst.msk [vmem:[#allocation2 + $0x90] sm:$0xff] %vm3218, %v1892
          %4376 = vst.msk [vmem:[#allocation2 + $0x98] sm:$0xff] %vm3218, %v1893
          %4377 = vst.msk [vmem:[#allocation2 + $0xa0] sm:$0xff] %vm3218, %v1894
          %4378 = vst.msk [vmem:[#allocation2 + $0xa8] sm:$0xff] %vm3218, %v1895
          %4379 = vst.msk [vmem:[#allocation2 + $0xb0] sm:$0xff] %vm3218, %v1896
          %4380 = vst.msk [vmem:[#allocation2 + $0xb8] sm:$0xff] %vm3218, %v1897
          %4381 = vst.msk [vmem:[#allocation2 + $0xc0] sm:$0xff] %vm3218, %v1898
          %4382 = vst.msk [vmem:[#allocation2 + $0xc8] sm:$0xff] %vm3218, %v1899
          %4383 = vst.msk [vmem:[#allocation2 + $0xd0] sm:$0xff] %vm3218, %v1900
          %4384 = vst.msk [vmem:[#allocation2 + $0xd8] sm:$0xff] %vm3218, %v1901
          %4385 = vst.msk [vmem:[#allocation2 + $0xe0] sm:$0xff] %vm3218, %v1902
          %4386 = vst.msk [vmem:[#allocation2 + $0xe8] sm:$0xff] %vm3218, %v1903
          %4387 = vst.msk [vmem:[#allocation2 + $0xf0] sm:$0xff] %vm3218, %v1904
          %4388 = vst.msk [vmem:[#allocation2 + $0xf8] sm:$0xff] %vm3218, %v1905
          %4389 = vst.msk [vmem:[#allocation2 + $0x100] sm:$0xff] %vm3218, %v1906
          %4390 = vst.msk [vmem:[#allocation2 + $0x108] sm:$0xff] %vm3218, %v1907
          %4391 = vst.msk [vmem:[#allocation2 + $0x110] sm:$0xff] %vm3218, %v1908
          %4392 = vst.msk [vmem:[#allocation2 + $0x118] sm:$0xff] %vm3218, %v1909
          %4393 = vst.msk [vmem:[#allocation2 + $0x120] sm:$0xff] %vm3218, %v1910
          %4394 = vst.msk [vmem:[#allocation2 + $0x128] sm:$0xff] %vm3218, %v1911
          %4395 = vst.msk [vmem:[#allocation2 + $0x130] sm:$0xff] %vm3218, %v1912
          %4396 = vst.msk [vmem:[#allocation2 + $0x138] sm:$0xff] %vm3218, %v1913
          %4397 = vst.msk [vmem:[#allocation2 + $0x140] sm:$0xff] %vm3218, %v1914
          %4398 = vst.msk [vmem:[#allocation2 + $0x148] sm:$0xff] %vm3218, %v1915
          %4399 = vst.msk [vmem:[#allocation2 + $0x150] sm:$0xff] %vm3218, %v1916
          %4400 = vst.msk [vmem:[#allocation2 + $0x158] sm:$0xff] %vm3218, %v1917
          %4401 = vst.msk [vmem:[#allocation2 + $0x160] sm:$0xff] %vm3218, %v1918
          %4402 = vst.msk [vmem:[#allocation2 + $0x168] sm:$0xff] %vm3218, %v1919
          %4403 = vst.msk [vmem:[#allocation2 + $0x170] sm:$0xff] %vm3218, %v1920
          %4404 = vst.msk [vmem:[#allocation2 + $0x178] sm:$0xff] %vm3218, %v1921
          %4405 = vst.msk [vmem:[#allocation2 + $0x180] sm:$0xff] %vm3218, %v1922
          %4406 = vst.msk [vmem:[#allocation2 + $0x188] sm:$0xff] %vm3218, %v1923
          %4407 = vst.msk [vmem:[#allocation2 + $0x190] sm:$0xff] %vm3218, %v1924
          %4408 = vst.msk [vmem:[#allocation2 + $0x198] sm:$0xff] %vm3218, %v1925
          %4409 = vst.msk [vmem:[#allocation2 + $0x1a0] sm:$0xff] %vm3218, %v1926
          %4410 = vst.msk [vmem:[#allocation2 + $0x1a8] sm:$0xff] %vm3218, %v1927
          %4411 = vst.msk [vmem:[#allocation2 + $0x1b0] sm:$0xff] %vm3218, %v1928
          %4412 = vst.msk [vmem:[#allocation2 + $0x1b8] sm:$0xff] %vm3218, %v1929
          %4413 = vst.msk [vmem:[#allocation2 + $0x1c0] sm:$0xff] %vm3218, %v1930
          %4414 = vst.msk [vmem:[#allocation2 + $0x1c8] sm:$0xff] %vm3218, %v1931
          %4415 = vst.msk [vmem:[#allocation2 + $0x1d0] sm:$0xff] %vm3218, %v1932
          %4416 = vst.msk [vmem:[#allocation2 + $0x1d8] sm:$0xff] %vm3218, %v1933
          %4417 = vst.msk [vmem:[#allocation2 + $0x1e0] sm:$0xff] %vm3218, %v1934
          %4418 = vst.msk [vmem:[#allocation2 + $0x1e8] sm:$0xff] %vm3218, %v1935
          %4419 = vst.msk [vmem:[#allocation2 + $0x1f0] sm:$0xff] %vm3218, %v1936
          %4420 = vst.msk [vmem:[#allocation2 + $0x1f8] sm:$0xff] %vm3218, %v1937
        $region81: #{tpu_custom_call.1} parent=68 // pred_fallthru
          _
        %p4421 = pneg %p758
        %p4422 = pnand %p753, %p4421
        %p4423 = pneg %p4422
        // Predicated region
        $region82: #{tpu_custom_call.1} parent=68 // pred_check
          _
        $region83: #{tpu_custom_call.1} parent=68 // pred_check_branch
          %4425 = sbr.rel (%p4422) target = $region85
        $region84: #{tpu_custom_call.1} parent=68 // pred_region
          %s4426 = sshra.s32 %s744, 3
          %s4427 = sand.u32 %s744, 7
          %s4428 = smul.addr %s4426, 4
          %s4429 = scalar_lea.vmem %s536, %s4428
          %v4430 = vld [vmem:[%s4429] sm:$0xf]
          %v4431 = vld [vmem:[%s4429 + $0x4] sm:$0xf]
          %v4432 = vld [vmem:[%s4429 + $0x8] sm:$0xf]
          %v4433 = vld [vmem:[%s4429 + $0xc] sm:$0xf]
          %v4434 = vld [vmem:[%s4429 + $0x10] sm:$0xf]
          %v4435 = vld [vmem:[%s4429 + $0x14] sm:$0xf]
          %v4436 = vld [vmem:[%s4429 + $0x18] sm:$0xf]
          %v4437 = vld [vmem:[%s4429 + $0x1c] sm:$0xf]
          %v4438 = vld [vmem:[%s4429 + $0x20] sm:$0xf]
          %v4439 = vld [vmem:[%s4429 + $0x24] sm:$0xf]
          %v4440 = vld [vmem:[%s4429 + $0x28] sm:$0xf]
          %v4441 = vld [vmem:[%s4429 + $0x2c] sm:$0xf]
          %v4442 = vld [vmem:[%s4429 + $0x30] sm:$0xf]
          %v4443 = vld [vmem:[%s4429 + $0x34] sm:$0xf]
          %v4444 = vld [vmem:[%s4429 + $0x38] sm:$0xf]
          %v4445 = vld [vmem:[%s4429 + $0x3c] sm:$0xf]
          %v4446 = vld [vmem:[%s4429 + $0x40] sm:$0xf]
          %v4447 = vld [vmem:[%s4429 + $0x44] sm:$0xf]
          %v4448 = vld [vmem:[%s4429 + $0x48] sm:$0xf]
          %v4449 = vld [vmem:[%s4429 + $0x4c] sm:$0xf]
          %v4450 = vld [vmem:[%s4429 + $0x50] sm:$0xf]
          %v4451 = vld [vmem:[%s4429 + $0x54] sm:$0xf]
          %v4452 = vld [vmem:[%s4429 + $0x58] sm:$0xf]
          %v4453 = vld [vmem:[%s4429 + $0x5c] sm:$0xf]
          %v4454 = vld [vmem:[%s4429 + $0x60] sm:$0xf]
          %v4455 = vld [vmem:[%s4429 + $0x64] sm:$0xf]
          %v4456 = vld [vmem:[%s4429 + $0x68] sm:$0xf]
          %v4457 = vld [vmem:[%s4429 + $0x6c] sm:$0xf]
          %v4458 = vld [vmem:[%s4429 + $0x70] sm:$0xf]
          %v4459 = vld [vmem:[%s4429 + $0x74] sm:$0xf]
          %v4460 = vld [vmem:[%s4429 + $0x78] sm:$0xf]
          %v4461 = vld [vmem:[%s4429 + $0x7c] sm:$0xf]
          %s4462 = smul.addr %s4426, 4
          %s4463 = scalar_lea.vmem %s541, %s4462
          %v4464 = vld [vmem:[%s4463] sm:$0xf]
          %v4465 = vld [vmem:[%s4463 + $0x4] sm:$0xf]
          %v4466 = vld [vmem:[%s4463 + $0x8] sm:$0xf]
          %v4467 = vld [vmem:[%s4463 + $0xc] sm:$0xf]
          %v4468 = vld [vmem:[%s4463 + $0x10] sm:$0xf]
          %v4469 = vld [vmem:[%s4463 + $0x14] sm:$0xf]
          %v4470 = vld [vmem:[%s4463 + $0x18] sm:$0xf]
          %v4471 = vld [vmem:[%s4463 + $0x1c] sm:$0xf]
          %v4472 = vld [vmem:[%s4463 + $0x20] sm:$0xf]
          %v4473 = vld [vmem:[%s4463 + $0x24] sm:$0xf]
          %v4474 = vld [vmem:[%s4463 + $0x28] sm:$0xf]
          %v4475 = vld [vmem:[%s4463 + $0x2c] sm:$0xf]
          %v4476 = vld [vmem:[%s4463 + $0x30] sm:$0xf]
          %v4477 = vld [vmem:[%s4463 + $0x34] sm:$0xf]
          %v4478 = vld [vmem:[%s4463 + $0x38] sm:$0xf]
          %v4479 = vld [vmem:[%s4463 + $0x3c] sm:$0xf]
          %v4480 = vld [vmem:[%s4463 + $0x40] sm:$0xf]
          %v4481 = vld [vmem:[%s4463 + $0x44] sm:$0xf]
          %v4482 = vld [vmem:[%s4463 + $0x48] sm:$0xf]
          %v4483 = vld [vmem:[%s4463 + $0x4c] sm:$0xf]
          %v4484 = vld [vmem:[%s4463 + $0x50] sm:$0xf]
          %v4485 = vld [vmem:[%s4463 + $0x54] sm:$0xf]
          %v4486 = vld [vmem:[%s4463 + $0x58] sm:$0xf]
          %v4487 = vld [vmem:[%s4463 + $0x5c] sm:$0xf]
          %v4488 = vld [vmem:[%s4463 + $0x60] sm:$0xf]
          %v4489 = vld [vmem:[%s4463 + $0x64] sm:$0xf]
          %v4490 = vld [vmem:[%s4463 + $0x68] sm:$0xf]
          %v4491 = vld [vmem:[%s4463 + $0x6c] sm:$0xf]
          %v4492 = vld [vmem:[%s4463 + $0x70] sm:$0xf]
          %v4493 = vld [vmem:[%s4463 + $0x74] sm:$0xf]
          %v4494 = vld [vmem:[%s4463 + $0x78] sm:$0xf]
          %v4495 = vld [vmem:[%s4463 + $0x7c] sm:$0xf]
          %v4496 = vld [vmem:[%s501] sm:$0xf]
          %v4497 = vld [vmem:[%s501 + $0x4] sm:$0xf]
          %v4498 = vld [vmem:[%s501 + $0x8] sm:$0xf]
          %v4499 = vld [vmem:[%s501 + $0xc] sm:$0xf]
          %v4500 = vld [vmem:[%s501 + $0x10] sm:$0xf]
          %v4501 = vld [vmem:[%s501 + $0x14] sm:$0xf]
          %v4502 = vld [vmem:[%s501 + $0x18] sm:$0xf]
          %v4503 = vld [vmem:[%s501 + $0x1c] sm:$0xf]
          %v4504 = vld [vmem:[%s501 + $0x20] sm:$0xf]
          %v4505 = vld [vmem:[%s501 + $0x24] sm:$0xf]
          %v4506 = vld [vmem:[%s501 + $0x28] sm:$0xf]
          %v4507 = vld [vmem:[%s501 + $0x2c] sm:$0xf]
          %v4508 = vld [vmem:[%s501 + $0x30] sm:$0xf]
          %v4509 = vld [vmem:[%s501 + $0x34] sm:$0xf]
          %v4510 = vld [vmem:[%s501 + $0x38] sm:$0xf]
          %v4511 = vld [vmem:[%s501 + $0x3c] sm:$0xf]
          %v4512 = vld [vmem:[%s501 + $0x40] sm:$0xf]
          %v4513 = vld [vmem:[%s501 + $0x44] sm:$0xf]
          %v4514 = vld [vmem:[%s501 + $0x48] sm:$0xf]
          %v4515 = vld [vmem:[%s501 + $0x4c] sm:$0xf]
          %v4516 = vld [vmem:[%s501 + $0x50] sm:$0xf]
          %v4517 = vld [vmem:[%s501 + $0x54] sm:$0xf]
          %v4518 = vld [vmem:[%s501 + $0x58] sm:$0xf]
          %v4519 = vld [vmem:[%s501 + $0x5c] sm:$0xf]
          %v4520 = vld [vmem:[%s501 + $0x60] sm:$0xf]
          %v4521 = vld [vmem:[%s501 + $0x64] sm:$0xf]
          %v4522 = vld [vmem:[%s501 + $0x68] sm:$0xf]
          %v4523 = vld [vmem:[%s501 + $0x6c] sm:$0xf]
          %v4524 = vld [vmem:[%s501 + $0x70] sm:$0xf]
          %v4525 = vld [vmem:[%s501 + $0x74] sm:$0xf]
          %v4526 = vld [vmem:[%s501 + $0x78] sm:$0xf]
          %v4527 = vld [vmem:[%s501 + $0x7c] sm:$0xf]
          %v4528 = vld [vmem:[%s501 + $0x80] sm:$0xf]
          %v4529 = vld [vmem:[%s501 + $0x84] sm:$0xf]
          %v4530 = vld [vmem:[%s501 + $0x88] sm:$0xf]
          %v4531 = vld [vmem:[%s501 + $0x8c] sm:$0xf]
          %v4532 = vld [vmem:[%s501 + $0x90] sm:$0xf]
          %v4533 = vld [vmem:[%s501 + $0x94] sm:$0xf]
          %v4534 = vld [vmem:[%s501 + $0x98] sm:$0xf]
          %v4535 = vld [vmem:[%s501 + $0x9c] sm:$0xf]
          %v4536 = vld [vmem:[%s501 + $0xa0] sm:$0xf]
          %v4537 = vld [vmem:[%s501 + $0xa4] sm:$0xf]
          %v4538 = vld [vmem:[%s501 + $0xa8] sm:$0xf]
          %v4539 = vld [vmem:[%s501 + $0xac] sm:$0xf]
          %v4540 = vld [vmem:[%s501 + $0xb0] sm:$0xf]
          %v4541 = vld [vmem:[%s501 + $0xb4] sm:$0xf]
          %v4542 = vld [vmem:[%s501 + $0xb8] sm:$0xf]
          %v4543 = vld [vmem:[%s501 + $0xbc] sm:$0xf]
          %v4544 = vld [vmem:[%s501 + $0xc0] sm:$0xf]
          %v4545 = vld [vmem:[%s501 + $0xc4] sm:$0xf]
          %v4546 = vld [vmem:[%s501 + $0xc8] sm:$0xf]
          %v4547 = vld [vmem:[%s501 + $0xcc] sm:$0xf]
          %v4548 = vld [vmem:[%s501 + $0xd0] sm:$0xf]
          %v4549 = vld [vmem:[%s501 + $0xd4] sm:$0xf]
          %v4550 = vld [vmem:[%s501 + $0xd8] sm:$0xf]
          %v4551 = vld [vmem:[%s501 + $0xdc] sm:$0xf]
          %v4552 = vld [vmem:[%s501 + $0xe0] sm:$0xf]
          %v4553 = vld [vmem:[%s501 + $0xe4] sm:$0xf]
          %v4554 = vld [vmem:[%s501 + $0xe8] sm:$0xf]
          %v4555 = vld [vmem:[%s501 + $0xec] sm:$0xf]
          %v4556 = vld [vmem:[%s501 + $0xf0] sm:$0xf]
          %v4557 = vld [vmem:[%s501 + $0xf4] sm:$0xf]
          %v4558 = vld [vmem:[%s501 + $0xf8] sm:$0xf]
          %v4559 = vld [vmem:[%s501 + $0xfc] sm:$0xf]
          %v4624 = vunpack.c.l.b16 %v4496
          %v4625 = vunpack.c.l.b16 %v4497
          %v4626 = vunpack.c.l.b16 %v4498
          %v4627 = vunpack.c.l.b16 %v4499
          %v4628 = vunpack.c.l.b16 %v4500
          %v4629 = vunpack.c.l.b16 %v4501
          %v4630 = vunpack.c.l.b16 %v4502
          %v4631 = vunpack.c.l.b16 %v4503
          %v4632 = vunpack.c.l.b16 %v4504
          %v4633 = vunpack.c.l.b16 %v4505
          %v4634 = vunpack.c.l.b16 %v4506
          %v4635 = vunpack.c.l.b16 %v4507
          %v4636 = vunpack.c.l.b16 %v4508
          %v4637 = vunpack.c.l.b16 %v4509
          %v4638 = vunpack.c.l.b16 %v4510
          %v4639 = vunpack.c.l.b16 %v4511
          %v4640 = vunpack.c.l.b16 %v4512
          %v4641 = vunpack.c.l.b16 %v4513
          %v4642 = vunpack.c.l.b16 %v4514
          %v4643 = vunpack.c.l.b16 %v4515
          %v4644 = vunpack.c.l.b16 %v4516
          %v4645 = vunpack.c.l.b16 %v4517
          %v4646 = vunpack.c.l.b16 %v4518
          %v4647 = vunpack.c.l.b16 %v4519
          %v4648 = vunpack.c.l.b16 %v4520
          %v4649 = vunpack.c.l.b16 %v4521
          %v4650 = vunpack.c.l.b16 %v4522
          %v4651 = vunpack.c.l.b16 %v4523
          %v4652 = vunpack.c.l.b16 %v4524
          %v4653 = vunpack.c.l.b16 %v4525
          %v4654 = vunpack.c.l.b16 %v4526
          %v4655 = vunpack.c.l.b16 %v4527
          %v4656 = vunpack.c.l.b16 %v4528
          %v4657 = vunpack.c.l.b16 %v4529
          %v4658 = vunpack.c.l.b16 %v4530
          %v4659 = vunpack.c.l.b16 %v4531
          %v4660 = vunpack.c.l.b16 %v4532
          %v4661 = vunpack.c.l.b16 %v4533
          %v4662 = vunpack.c.l.b16 %v4534
          %v4663 = vunpack.c.l.b16 %v4535
          %v4664 = vunpack.c.l.b16 %v4536
          %v4665 = vunpack.c.l.b16 %v4537
          %v4666 = vunpack.c.l.b16 %v4538
          %v4667 = vunpack.c.l.b16 %v4539
          %v4668 = vunpack.c.l.b16 %v4540
          %v4669 = vunpack.c.l.b16 %v4541
          %v4670 = vunpack.c.l.b16 %v4542
          %v4671 = vunpack.c.l.b16 %v4543
          %v4672 = vunpack.c.l.b16 %v4544
          %v4673 = vunpack.c.l.b16 %v4545
          %v4674 = vunpack.c.l.b16 %v4546
          %v4675 = vunpack.c.l.b16 %v4547
          %v4676 = vunpack.c.l.b16 %v4548
          %v4677 = vunpack.c.l.b16 %v4549
          %v4678 = vunpack.c.l.b16 %v4550
          %v4679 = vunpack.c.l.b16 %v4551
          %v4680 = vunpack.c.l.b16 %v4552
          %v4681 = vunpack.c.l.b16 %v4553
          %v4682 = vunpack.c.l.b16 %v4554
          %v4683 = vunpack.c.l.b16 %v4555
          %v4684 = vunpack.c.l.b16 %v4556
          %v4685 = vunpack.c.l.b16 %v4557
          %v4686 = vunpack.c.l.b16 %v4558
          %v4687 = vunpack.c.l.b16 %v4559
          %v4688 = vpack.c.b16 %v4625, %v4624
          %v4689 = vpack.c.b16 %v4627, %v4626
          %v4690 = vpack.c.b16 %v4629, %v4628
          %v4691 = vpack.c.b16 %v4631, %v4630
          %v4692 = vpack.c.b16 %v4633, %v4632
          %v4693 = vpack.c.b16 %v4635, %v4634
          %v4694 = vpack.c.b16 %v4637, %v4636
          %v4695 = vpack.c.b16 %v4639, %v4638
          %v4696 = vpack.c.b16 %v4641, %v4640
          %v4697 = vpack.c.b16 %v4643, %v4642
          %v4698 = vpack.c.b16 %v4645, %v4644
          %v4699 = vpack.c.b16 %v4647, %v4646
          %v4700 = vpack.c.b16 %v4649, %v4648
          %v4701 = vpack.c.b16 %v4651, %v4650
          %v4702 = vpack.c.b16 %v4653, %v4652
          %v4703 = vpack.c.b16 %v4655, %v4654
          %v4704 = vpack.c.b16 %v4657, %v4656
          %v4705 = vpack.c.b16 %v4659, %v4658
          %v4706 = vpack.c.b16 %v4661, %v4660
          %v4707 = vpack.c.b16 %v4663, %v4662
          %v4708 = vpack.c.b16 %v4665, %v4664
          %v4709 = vpack.c.b16 %v4667, %v4666
          %v4710 = vpack.c.b16 %v4669, %v4668
          %v4711 = vpack.c.b16 %v4671, %v4670
          %v4712 = vpack.c.b16 %v4673, %v4672
          %v4713 = vpack.c.b16 %v4675, %v4674
          %v4714 = vpack.c.b16 %v4677, %v4676
          %v4715 = vpack.c.b16 %v4679, %v4678
          %v4716 = vpack.c.b16 %v4681, %v4680
          %v4717 = vpack.c.b16 %v4683, %v4682
          %v4718 = vpack.c.b16 %v4685, %v4684
          %v4719 = vpack.c.b16 %v4687, %v4686
          %v4752 = vunpack.c.l.b16 %v4430
          %v4753 = vunpack.c.l.b16 %v4431
          %v4754 = vunpack.c.l.b16 %v4432
          %v4755 = vunpack.c.l.b16 %v4433
          %v4756 = vunpack.c.l.b16 %v4434
          %v4757 = vunpack.c.l.b16 %v4435
          %v4758 = vunpack.c.l.b16 %v4436
          %v4759 = vunpack.c.l.b16 %v4437
          %v4760 = vunpack.c.l.b16 %v4438
          %v4761 = vunpack.c.l.b16 %v4439
          %v4762 = vunpack.c.l.b16 %v4440
          %v4763 = vunpack.c.l.b16 %v4441
          %v4764 = vunpack.c.l.b16 %v4442
          %v4765 = vunpack.c.l.b16 %v4443
          %v4766 = vunpack.c.l.b16 %v4444
          %v4767 = vunpack.c.l.b16 %v4445
          %v4768 = vunpack.c.l.b16 %v4446
          %v4769 = vunpack.c.l.b16 %v4447
          %v4770 = vunpack.c.l.b16 %v4448
          %v4771 = vunpack.c.l.b16 %v4449
          %v4772 = vunpack.c.l.b16 %v4450
          %v4773 = vunpack.c.l.b16 %v4451
          %v4774 = vunpack.c.l.b16 %v4452
          %v4775 = vunpack.c.l.b16 %v4453
          %v4776 = vunpack.c.l.b16 %v4454
          %v4777 = vunpack.c.l.b16 %v4455
          %v4778 = vunpack.c.l.b16 %v4456
          %v4779 = vunpack.c.l.b16 %v4457
          %v4780 = vunpack.c.l.b16 %v4458
          %v4781 = vunpack.c.l.b16 %v4459
          %v4782 = vunpack.c.l.b16 %v4460
          %v4783 = vunpack.c.l.b16 %v4461
          %v4784 = vpack.c.b16 %v4753, %v4752
          %v4785 = vpack.c.b16 %v4755, %v4754
          %v4786 = vpack.c.b16 %v4757, %v4756
          %v4787 = vpack.c.b16 %v4759, %v4758
          %v4788 = vpack.c.b16 %v4761, %v4760
          %v4789 = vpack.c.b16 %v4763, %v4762
          %v4790 = vpack.c.b16 %v4765, %v4764
          %v4791 = vpack.c.b16 %v4767, %v4766
          %v4792 = vpack.c.b16 %v4769, %v4768
          %v4793 = vpack.c.b16 %v4771, %v4770
          %v4794 = vpack.c.b16 %v4773, %v4772
          %v4795 = vpack.c.b16 %v4775, %v4774
          %v4796 = vpack.c.b16 %v4777, %v4776
          %v4797 = vpack.c.b16 %v4779, %v4778
          %v4798 = vpack.c.b16 %v4781, %v4780
          %v4799 = vpack.c.b16 %v4783, %v4782
          %vm4800 = vcmask 523264
          %v4802 = vsel %vm4800, %v4688, 0
          %v4805 = vsel %vm4800, %v4689, 0
          %v4808 = vsel %vm4800, %v4690, 0
          %v4811 = vsel %vm4800, %v4691, 0
          %v4814 = vsel %vm4800, %v4692, 0
          %v4817 = vsel %vm4800, %v4693, 0
          %v4820 = vsel %vm4800, %v4694, 0
          %v4823 = vsel %vm4800, %v4695, 0
          %v4826 = vsel %vm4800, %v4696, 0
          %v4829 = vsel %vm4800, %v4697, 0
          %v4832 = vsel %vm4800, %v4698, 0
          %v4835 = vsel %vm4800, %v4699, 0
          %v4838 = vsel %vm4800, %v4700, 0
          %v4841 = vsel %vm4800, %v4701, 0
          %v4844 = vsel %vm4800, %v4702, 0
          %v4847 = vsel %vm4800, %v4703, 0
          %v4850 = vsel %vm4800, %v4704, 0
          %v4853 = vsel %vm4800, %v4705, 0
          %v4856 = vsel %vm4800, %v4706, 0
          %v4859 = vsel %vm4800, %v4707, 0
          %v4862 = vsel %vm4800, %v4708, 0
          %v4865 = vsel %vm4800, %v4709, 0
          %v4868 = vsel %vm4800, %v4710, 0
          %v4871 = vsel %vm4800, %v4711, 0
          %v4874 = vsel %vm4800, %v4712, 0
          %v4877 = vsel %vm4800, %v4713, 0
          %v4880 = vsel %vm4800, %v4714, 0
          %v4883 = vsel %vm4800, %v4715, 0
          %v4886 = vsel %vm4800, %v4716, 0
          %v4889 = vsel %vm4800, %v4717, 0
          %v4892 = vsel %vm4800, %v4718, 0
          %v4895 = vsel %vm4800, %v4719, 0
          %v4898 = vsel %vm4800, %v4784, 0
          %v4901 = vsel %vm4800, %v4785, 0
          %v4904 = vsel %vm4800, %v4786, 0
          %v4907 = vsel %vm4800, %v4787, 0
          %v4910 = vsel %vm4800, %v4788, 0
          %v4913 = vsel %vm4800, %v4789, 0
          %v4916 = vsel %vm4800, %v4790, 0
          %v4919 = vsel %vm4800, %v4791, 0
          %v4922 = vsel %vm4800, %v4792, 0
          %v4925 = vsel %vm4800, %v4793, 0
          %v4928 = vsel %vm4800, %v4794, 0
          %v4931 = vsel %vm4800, %v4795, 0
          %v4934 = vsel %vm4800, %v4796, 0
          %v4937 = vsel %vm4800, %v4797, 0
          %v4940 = vsel %vm4800, %v4798, 0
          %v4943 = vsel %vm4800, %v4799, 0
          %4945 = vmatpush.bf16.xpose.msra.mxu0 %v4919
          %4946 = vmatpush.bf16.xpose.msra.mxu0 %v4916
          %4947 = vmatpush.bf16.xpose.msra.mxu0 %v4913
          %4948 = vmatpush.bf16.xpose.msra.mxu0 %v4910
          %4949 = vmatpush.bf16.xpose.msra.mxu0 %v4907
          %4950 = vmatpush.bf16.xpose.msra.mxu0 %v4904
          %4951 = vmatpush.bf16.xpose.msra.mxu0 %v4901
          %4952 = vmatpush.bf16.xpose.msra.mxu0 %v4898
          %4953 = vmatmul.bf16.gmra.mxu0 %v4802
          %v4954 = vpop.f32.mrf.mxu0
          %v4955 = vadd.f32 0.0, %v4954
          %v4956 = vpop.f32.mrf.mxu0
          %v4957 = vadd.f32 0.0, %v4956
          %4958 = vmatmul.bf16.gmra.mxu0 %v4805
          %v4959 = vpop.f32.mrf.mxu0
          %v4960 = vadd.f32 0.0, %v4959
          %v4961 = vpop.f32.mrf.mxu0
          %v4962 = vadd.f32 0.0, %v4961
          %4963 = vmatmul.bf16.gmra.mxu0 %v4808
          %v4964 = vpop.f32.mrf.mxu0
          %v4965 = vadd.f32 0.0, %v4964
          %v4966 = vpop.f32.mrf.mxu0
          %v4967 = vadd.f32 0.0, %v4966
          %4968 = vmatmul.bf16.gmra.mxu0 %v4811
          %v4969 = vpop.f32.mrf.mxu0
          %v4970 = vadd.f32 0.0, %v4969
          %v4971 = vpop.f32.mrf.mxu0
          %v4972 = vadd.f32 0.0, %v4971
          %4973 = vmatmul.bf16.gmra.mxu0 %v4814
          %v4974 = vpop.f32.mrf.mxu0
          %v4975 = vadd.f32 0.0, %v4974
          %v4976 = vpop.f32.mrf.mxu0
          %v4977 = vadd.f32 0.0, %v4976
          %4978 = vmatmul.bf16.gmra.mxu0 %v4817
          %v4979 = vpop.f32.mrf.mxu0
          %v4980 = vadd.f32 0.0, %v4979
          %v4981 = vpop.f32.mrf.mxu0
          %v4982 = vadd.f32 0.0, %v4981
          %4983 = vmatmul.bf16.gmra.mxu0 %v4820
          %v4984 = vpop.f32.mrf.mxu0
          %v4985 = vadd.f32 0.0, %v4984
          %v4986 = vpop.f32.mrf.mxu0
          %v4987 = vadd.f32 0.0, %v4986
          %4988 = vmatmul.bf16.gmra.mxu0 %v4823
          %v4989 = vpop.f32.mrf.mxu0
          %v4990 = vadd.f32 0.0, %v4989
          %v4991 = vpop.f32.mrf.mxu0
          %v4992 = vadd.f32 0.0, %v4991
          %4993 = vmatmul.bf16.gmra.mxu0 %v4826
          %v4994 = vpop.f32.mrf.mxu0
          %v4995 = vadd.f32 0.0, %v4994
          %v4996 = vpop.f32.mrf.mxu0
          %v4997 = vadd.f32 0.0, %v4996
          %4998 = vmatmul.bf16.gmra.mxu0 %v4829
          %v4999 = vpop.f32.mrf.mxu0
          %v5000 = vadd.f32 0.0, %v4999
          %v5001 = vpop.f32.mrf.mxu0
          %v5002 = vadd.f32 0.0, %v5001
          %5003 = vmatmul.bf16.gmra.mxu0 %v4832
          %v5004 = vpop.f32.mrf.mxu0
          %v5005 = vadd.f32 0.0, %v5004
          %v5006 = vpop.f32.mrf.mxu0
          %v5007 = vadd.f32 0.0, %v5006
          %5008 = vmatmul.bf16.gmra.mxu0 %v4835
          %v5009 = vpop.f32.mrf.mxu0
          %v5010 = vadd.f32 0.0, %v5009
          %v5011 = vpop.f32.mrf.mxu0
          %v5012 = vadd.f32 0.0, %v5011
          %5013 = vmatmul.bf16.gmra.mxu0 %v4838
          %v5014 = vpop.f32.mrf.mxu0
          %v5015 = vadd.f32 0.0, %v5014
          %v5016 = vpop.f32.mrf.mxu0
          %v5017 = vadd.f32 0.0, %v5016
          %5018 = vmatmul.bf16.gmra.mxu0 %v4841
          %v5019 = vpop.f32.mrf.mxu0
          %v5020 = vadd.f32 0.0, %v5019
          %v5021 = vpop.f32.mrf.mxu0
          %v5022 = vadd.f32 0.0, %v5021
          %5023 = vmatmul.bf16.gmra.mxu0 %v4844
          %v5024 = vpop.f32.mrf.mxu0
          %v5025 = vadd.f32 0.0, %v5024
          %v5026 = vpop.f32.mrf.mxu0
          %v5027 = vadd.f32 0.0, %v5026
          %5028 = vmatmul.bf16.gmra.mxu0 %v4847
          %v5029 = vpop.f32.mrf.mxu0
          %v5030 = vadd.f32 0.0, %v5029
          %v5031 = vpop.f32.mrf.mxu0
          %v5032 = vadd.f32 0.0, %v5031
          %5033 = vmatmul.bf16.gmra.mxu0 %v4850
          %v5034 = vpop.f32.mrf.mxu0
          %v5035 = vadd.f32 0.0, %v5034
          %v5036 = vpop.f32.mrf.mxu0
          %v5037 = vadd.f32 0.0, %v5036
          %5038 = vmatmul.bf16.gmra.mxu0 %v4853
          %v5039 = vpop.f32.mrf.mxu0
          %v5040 = vadd.f32 0.0, %v5039
          %v5041 = vpop.f32.mrf.mxu0
          %v5042 = vadd.f32 0.0, %v5041
          %5043 = vmatmul.bf16.gmra.mxu0 %v4856
          %v5044 = vpop.f32.mrf.mxu0
          %v5045 = vadd.f32 0.0, %v5044
          %v5046 = vpop.f32.mrf.mxu0
          %v5047 = vadd.f32 0.0, %v5046
          %5048 = vmatmul.bf16.gmra.mxu0 %v4859
          %v5049 = vpop.f32.mrf.mxu0
          %v5050 = vadd.f32 0.0, %v5049
          %v5051 = vpop.f32.mrf.mxu0
          %v5052 = vadd.f32 0.0, %v5051
          %5053 = vmatmul.bf16.gmra.mxu0 %v4862
          %v5054 = vpop.f32.mrf.mxu0
          %v5055 = vadd.f32 0.0, %v5054
          %v5056 = vpop.f32.mrf.mxu0
          %v5057 = vadd.f32 0.0, %v5056
          %5058 = vmatmul.bf16.gmra.mxu0 %v4865
          %v5059 = vpop.f32.mrf.mxu0
          %v5060 = vadd.f32 0.0, %v5059
          %v5061 = vpop.f32.mrf.mxu0
          %v5062 = vadd.f32 0.0, %v5061
          %5063 = vmatmul.bf16.gmra.mxu0 %v4868
          %v5064 = vpop.f32.mrf.mxu0
          %v5065 = vadd.f32 0.0, %v5064
          %v5066 = vpop.f32.mrf.mxu0
          %v5067 = vadd.f32 0.0, %v5066
          %5068 = vmatmul.bf16.gmra.mxu0 %v4871
          %v5069 = vpop.f32.mrf.mxu0
          %v5070 = vadd.f32 0.0, %v5069
          %v5071 = vpop.f32.mrf.mxu0
          %v5072 = vadd.f32 0.0, %v5071
          %5073 = vmatmul.bf16.gmra.mxu0 %v4874
          %v5074 = vpop.f32.mrf.mxu0
          %v5075 = vadd.f32 0.0, %v5074
          %v5076 = vpop.f32.mrf.mxu0
          %v5077 = vadd.f32 0.0, %v5076
          %5078 = vmatmul.bf16.gmra.mxu0 %v4877
          %v5079 = vpop.f32.mrf.mxu0
          %v5080 = vadd.f32 0.0, %v5079
          %v5081 = vpop.f32.mrf.mxu0
          %v5082 = vadd.f32 0.0, %v5081
          %5083 = vmatmul.bf16.gmra.mxu0 %v4880
          %v5084 = vpop.f32.mrf.mxu0
          %v5085 = vadd.f32 0.0, %v5084
          %v5086 = vpop.f32.mrf.mxu0
          %v5087 = vadd.f32 0.0, %v5086
          %5088 = vmatmul.bf16.gmra.mxu0 %v4883
          %v5089 = vpop.f32.mrf.mxu0
          %v5090 = vadd.f32 0.0, %v5089
          %v5091 = vpop.f32.mrf.mxu0
          %v5092 = vadd.f32 0.0, %v5091
          %5093 = vmatmul.bf16.gmra.mxu0 %v4886
          %v5094 = vpop.f32.mrf.mxu0
          %v5095 = vadd.f32 0.0, %v5094
          %v5096 = vpop.f32.mrf.mxu0
          %v5097 = vadd.f32 0.0, %v5096
          %5098 = vmatmul.bf16.gmra.mxu0 %v4889
          %v5099 = vpop.f32.mrf.mxu0
          %v5100 = vadd.f32 0.0, %v5099
          %v5101 = vpop.f32.mrf.mxu0
          %v5102 = vadd.f32 0.0, %v5101
          %5103 = vmatmul.bf16.gmra.mxu0 %v4892
          %v5104 = vpop.f32.mrf.mxu0
          %v5105 = vadd.f32 0.0, %v5104
          %v5106 = vpop.f32.mrf.mxu0
          %v5107 = vadd.f32 0.0, %v5106
          %5108 = vmatmul.bf16.gmra.mxu0 %v4895
          %v5109 = vpop.f32.mrf.mxu0
          %v5110 = vadd.f32 0.0, %v5109
          %v5111 = vpop.f32.mrf.mxu0
          %v5112 = vadd.f32 0.0, %v5111
          %5113 = vdwg.mxu0
          %5114 = vmatpush.bf16.xpose.msra.mxu0 %v4943
          %5115 = vmatpush.bf16.xpose.msra.mxu0 %v4940
          %5116 = vmatpush.bf16.xpose.msra.mxu0 %v4937
          %5117 = vmatpush.bf16.xpose.msra.mxu0 %v4934
          %5118 = vmatpush.bf16.xpose.msra.mxu0 %v4931
          %5119 = vmatpush.bf16.xpose.msra.mxu0 %v4928
          %5120 = vmatpush.bf16.xpose.msra.mxu0 %v4925
          %5121 = vmatpush.bf16.xpose.msra.mxu0 %v4922
          %5122 = vmatmul.bf16.gmra.mxu0 %v4802
          %v5123 = vpop.f32.mrf.mxu0
          %v5124 = vadd.f32 0.0, %v5123
          %v5125 = vpop.f32.mrf.mxu0
          %v5126 = vadd.f32 0.0, %v5125
          %5127 = vmatmul.bf16.gmra.mxu0 %v4805
          %v5128 = vpop.f32.mrf.mxu0
          %v5129 = vadd.f32 0.0, %v5128
          %v5130 = vpop.f32.mrf.mxu0
          %v5131 = vadd.f32 0.0, %v5130
          %5132 = vmatmul.bf16.gmra.mxu0 %v4808
          %v5133 = vpop.f32.mrf.mxu0
          %v5134 = vadd.f32 0.0, %v5133
          %v5135 = vpop.f32.mrf.mxu0
          %v5136 = vadd.f32 0.0, %v5135
          %5137 = vmatmul.bf16.gmra.mxu0 %v4811
          %v5138 = vpop.f32.mrf.mxu0
          %v5139 = vadd.f32 0.0, %v5138
          %v5140 = vpop.f32.mrf.mxu0
          %v5141 = vadd.f32 0.0, %v5140
          %5142 = vmatmul.bf16.gmra.mxu0 %v4814
          %v5143 = vpop.f32.mrf.mxu0
          %v5144 = vadd.f32 0.0, %v5143
          %v5145 = vpop.f32.mrf.mxu0
          %v5146 = vadd.f32 0.0, %v5145
          %5147 = vmatmul.bf16.gmra.mxu0 %v4817
          %v5148 = vpop.f32.mrf.mxu0
          %v5149 = vadd.f32 0.0, %v5148
          %v5150 = vpop.f32.mrf.mxu0
          %v5151 = vadd.f32 0.0, %v5150
          %5152 = vmatmul.bf16.gmra.mxu0 %v4820
          %v5153 = vpop.f32.mrf.mxu0
          %v5154 = vadd.f32 0.0, %v5153
          %v5155 = vpop.f32.mrf.mxu0
          %v5156 = vadd.f32 0.0, %v5155
          %5157 = vmatmul.bf16.gmra.mxu0 %v4823
          %v5158 = vpop.f32.mrf.mxu0
          %v5159 = vadd.f32 0.0, %v5158
          %v5160 = vpop.f32.mrf.mxu0
          %v5161 = vadd.f32 0.0, %v5160
          %5162 = vmatmul.bf16.gmra.mxu0 %v4826
          %v5163 = vpop.f32.mrf.mxu0
          %v5164 = vadd.f32 0.0, %v5163
          %v5165 = vpop.f32.mrf.mxu0
          %v5166 = vadd.f32 0.0, %v5165
          %5167 = vmatmul.bf16.gmra.mxu0 %v4829
          %v5168 = vpop.f32.mrf.mxu0
          %v5169 = vadd.f32 0.0, %v5168
          %v5170 = vpop.f32.mrf.mxu0
          %v5171 = vadd.f32 0.0, %v5170
          %5172 = vmatmul.bf16.gmra.mxu0 %v4832
          %v5173 = vpop.f32.mrf.mxu0
          %v5174 = vadd.f32 0.0, %v5173
          %v5175 = vpop.f32.mrf.mxu0
          %v5176 = vadd.f32 0.0, %v5175
          %5177 = vmatmul.bf16.gmra.mxu0 %v4835
          %v5178 = vpop.f32.mrf.mxu0
          %v5179 = vadd.f32 0.0, %v5178
          %v5180 = vpop.f32.mrf.mxu0
          %v5181 = vadd.f32 0.0, %v5180
          %5182 = vmatmul.bf16.gmra.mxu0 %v4838
          %v5183 = vpop.f32.mrf.mxu0
          %v5184 = vadd.f32 0.0, %v5183
          %v5185 = vpop.f32.mrf.mxu0
          %v5186 = vadd.f32 0.0, %v5185
          %5187 = vmatmul.bf16.gmra.mxu0 %v4841
          %v5188 = vpop.f32.mrf.mxu0
          %v5189 = vadd.f32 0.0, %v5188
          %v5190 = vpop.f32.mrf.mxu0
          %v5191 = vadd.f32 0.0, %v5190
          %5192 = vmatmul.bf16.gmra.mxu0 %v4844
          %v5193 = vpop.f32.mrf.mxu0
          %v5194 = vadd.f32 0.0, %v5193
          %v5195 = vpop.f32.mrf.mxu0
          %v5196 = vadd.f32 0.0, %v5195
          %5197 = vmatmul.bf16.gmra.mxu0 %v4847
          %v5198 = vpop.f32.mrf.mxu0
          %v5199 = vadd.f32 0.0, %v5198
          %v5200 = vpop.f32.mrf.mxu0
          %v5201 = vadd.f32 0.0, %v5200
          %5202 = vmatmul.bf16.gmra.mxu0 %v4850
          %v5203 = vpop.f32.mrf.mxu0
          %v5204 = vadd.f32 0.0, %v5203
          %v5205 = vpop.f32.mrf.mxu0
          %v5206 = vadd.f32 0.0, %v5205
          %5207 = vmatmul.bf16.gmra.mxu0 %v4853
          %v5208 = vpop.f32.mrf.mxu0
          %v5209 = vadd.f32 0.0, %v5208
          %v5210 = vpop.f32.mrf.mxu0
          %v5211 = vadd.f32 0.0, %v5210
          %5212 = vmatmul.bf16.gmra.mxu0 %v4856
          %v5213 = vpop.f32.mrf.mxu0
          %v5214 = vadd.f32 0.0, %v5213
          %v5215 = vpop.f32.mrf.mxu0
          %v5216 = vadd.f32 0.0, %v5215
          %5217 = vmatmul.bf16.gmra.mxu0 %v4859
          %v5218 = vpop.f32.mrf.mxu0
          %v5219 = vadd.f32 0.0, %v5218
          %v5220 = vpop.f32.mrf.mxu0
          %v5221 = vadd.f32 0.0, %v5220
          %5222 = vmatmul.bf16.gmra.mxu0 %v4862
          %v5223 = vpop.f32.mrf.mxu0
          %v5224 = vadd.f32 0.0, %v5223
          %v5225 = vpop.f32.mrf.mxu0
          %v5226 = vadd.f32 0.0, %v5225
          %5227 = vmatmul.bf16.gmra.mxu0 %v4865
          %v5228 = vpop.f32.mrf.mxu0
          %v5229 = vadd.f32 0.0, %v5228
          %v5230 = vpop.f32.mrf.mxu0
          %v5231 = vadd.f32 0.0, %v5230
          %5232 = vmatmul.bf16.gmra.mxu0 %v4868
          %v5233 = vpop.f32.mrf.mxu0
          %v5234 = vadd.f32 0.0, %v5233
          %v5235 = vpop.f32.mrf.mxu0
          %v5236 = vadd.f32 0.0, %v5235
          %5237 = vmatmul.bf16.gmra.mxu0 %v4871
          %v5238 = vpop.f32.mrf.mxu0
          %v5239 = vadd.f32 0.0, %v5238
          %v5240 = vpop.f32.mrf.mxu0
          %v5241 = vadd.f32 0.0, %v5240
          %5242 = vmatmul.bf16.gmra.mxu0 %v4874
          %v5243 = vpop.f32.mrf.mxu0
          %v5244 = vadd.f32 0.0, %v5243
          %v5245 = vpop.f32.mrf.mxu0
          %v5246 = vadd.f32 0.0, %v5245
          %5247 = vmatmul.bf16.gmra.mxu0 %v4877
          %v5248 = vpop.f32.mrf.mxu0
          %v5249 = vadd.f32 0.0, %v5248
          %v5250 = vpop.f32.mrf.mxu0
          %v5251 = vadd.f32 0.0, %v5250
          %5252 = vmatmul.bf16.gmra.mxu0 %v4880
          %v5253 = vpop.f32.mrf.mxu0
          %v5254 = vadd.f32 0.0, %v5253
          %v5255 = vpop.f32.mrf.mxu0
          %v5256 = vadd.f32 0.0, %v5255
          %5257 = vmatmul.bf16.gmra.mxu0 %v4883
          %v5258 = vpop.f32.mrf.mxu0
          %v5259 = vadd.f32 0.0, %v5258
          %v5260 = vpop.f32.mrf.mxu0
          %v5261 = vadd.f32 0.0, %v5260
          %5262 = vmatmul.bf16.gmra.mxu0 %v4886
          %v5263 = vpop.f32.mrf.mxu0
          %v5264 = vadd.f32 0.0, %v5263
          %v5265 = vpop.f32.mrf.mxu0
          %v5266 = vadd.f32 0.0, %v5265
          %5267 = vmatmul.bf16.gmra.mxu0 %v4889
          %v5268 = vpop.f32.mrf.mxu0
          %v5269 = vadd.f32 0.0, %v5268
          %v5270 = vpop.f32.mrf.mxu0
          %v5271 = vadd.f32 0.0, %v5270
          %5272 = vmatmul.bf16.gmra.mxu0 %v4892
          %v5273 = vpop.f32.mrf.mxu0
          %v5274 = vadd.f32 0.0, %v5273
          %v5275 = vpop.f32.mrf.mxu0
          %v5276 = vadd.f32 0.0, %v5275
          %5277 = vmatmul.bf16.gmra.mxu0 %v4895
          %v5278 = vpop.f32.mrf.mxu0
          %v5279 = vadd.f32 0.0, %v5278
          %v5280 = vpop.f32.mrf.mxu0
          %v5281 = vadd.f32 0.0, %v5280
          %5282 = vdwg.mxu0
          %v5283 = vlaneseq
          %v5284 = vshrl.u32 %v5283, 7
          %v5285 = vadd.s32 %v5284, 8
          %v5286 = vadd.s32 %v5284, 16
          %v5287 = vadd.s32 %v5284, 24
          %v5288 = vadd.s32 %v5284, 32
          %v5289 = vadd.s32 %v5284, 40
          %v5290 = vadd.s32 %v5284, 48
          %v5291 = vadd.s32 %v5284, 56
          %v5292 = vadd.s32 %v5284, 64
          %v5293 = vadd.s32 %v5284, 72
          %v5294 = vadd.s32 %v5284, 80
          %v5295 = vadd.s32 %v5284, 88
          %v5296 = vadd.s32 %v5284, 96
          %v5297 = vadd.s32 %v5284, 104
          %v5298 = vadd.s32 %v5284, 112
          %v5299 = vadd.s32 %v5284, 120
          %v5300 = vstv %s743
          %v5301 = vadd.s32 %v5300, %v5284
          %v5302 = vadd.s32 %v5300, %v5285
          %v5303 = vadd.s32 %v5300, %v5286
          %v5304 = vadd.s32 %v5300, %v5287
          %v5305 = vadd.s32 %v5300, %v5288
          %v5306 = vadd.s32 %v5300, %v5289
          %v5307 = vadd.s32 %v5300, %v5290
          %v5308 = vadd.s32 %v5300, %v5291
          %v5309 = vadd.s32 %v5300, %v5292
          %v5310 = vadd.s32 %v5300, %v5293
          %v5311 = vadd.s32 %v5300, %v5294
          %v5312 = vadd.s32 %v5300, %v5295
          %v5313 = vadd.s32 %v5300, %v5296
          %v5314 = vadd.s32 %v5300, %v5297
          %v5315 = vadd.s32 %v5300, %v5298
          %v5316 = vadd.s32 %v5300, %v5299
          %v5317 = vlaneseq
          %v5318 = vand.u32 %v5317, 127
          %v5319 = vadd.s32 %v5318, 128
          %v5320 = vstv %s744
          %v5321 = vadd.s32 %v5320, %v5318
          %v5322 = vadd.s32 %v5320, %v5319
          %v5323 = vstv %s742
          %vm5324 = vcmp.lt.s32.totalorder %v5321, %v5323
          %vm5325 = vcmp.lt.s32.totalorder %v5322, %v5323
          %v5326 = vstv %s745
          %v5327 = vadd.s32 %v5301, %v5326
          %v5328 = vadd.s32 %v5302, %v5326
          %v5329 = vadd.s32 %v5303, %v5326
          %v5330 = vadd.s32 %v5304, %v5326
          %v5331 = vadd.s32 %v5305, %v5326
          %v5332 = vadd.s32 %v5306, %v5326
          %v5333 = vadd.s32 %v5307, %v5326
          %v5334 = vadd.s32 %v5308, %v5326
          %v5335 = vadd.s32 %v5309, %v5326
          %v5336 = vadd.s32 %v5310, %v5326
          %v5337 = vadd.s32 %v5311, %v5326
          %v5338 = vadd.s32 %v5312, %v5326
          %v5339 = vadd.s32 %v5313, %v5326
          %v5340 = vadd.s32 %v5314, %v5326
          %v5341 = vadd.s32 %v5315, %v5326
          %v5342 = vadd.s32 %v5316, %v5326
          %vm5343 = vcmp.le.s32.totalorder %v5321, %v5327
          %vm5344 = vcmp.le.s32.totalorder %v5322, %v5327
          %vm5345 = vcmp.le.s32.totalorder %v5321, %v5328
          %vm5346 = vcmp.le.s32.totalorder %v5322, %v5328
          %vm5347 = vcmp.le.s32.totalorder %v5321, %v5329
          %vm5348 = vcmp.le.s32.totalorder %v5322, %v5329
          %vm5349 = vcmp.le.s32.totalorder %v5321, %v5330
          %vm5350 = vcmp.le.s32.totalorder %v5322, %v5330
          %vm5351 = vcmp.le.s32.totalorder %v5321, %v5331
          %vm5352 = vcmp.le.s32.totalorder %v5322, %v5331
          %vm5353 = vcmp.le.s32.totalorder %v5321, %v5332
          %vm5354 = vcmp.le.s32.totalorder %v5322, %v5332
          %vm5355 = vcmp.le.s32.totalorder %v5321, %v5333
          %vm5356 = vcmp.le.s32.totalorder %v5322, %v5333
          %vm5357 = vcmp.le.s32.totalorder %v5321, %v5334
          %vm5358 = vcmp.le.s32.totalorder %v5322, %v5334
          %vm5359 = vcmp.le.s32.totalorder %v5321, %v5335
          %vm5360 = vcmp.le.s32.totalorder %v5322, %v5335
          %vm5361 = vcmp.le.s32.totalorder %v5321, %v5336
          %vm5362 = vcmp.le.s32.totalorder %v5322, %v5336
          %vm5363 = vcmp.le.s32.totalorder %v5321, %v5337
          %vm5364 = vcmp.le.s32.totalorder %v5322, %v5337
          %vm5365 = vcmp.le.s32.totalorder %v5321, %v5338
          %vm5366 = vcmp.le.s32.totalorder %v5322, %v5338
          %vm5367 = vcmp.le.s32.totalorder %v5321, %v5339
          %vm5368 = vcmp.le.s32.totalorder %v5322, %v5339
          %vm5369 = vcmp.le.s32.totalorder %v5321, %v5340
          %vm5370 = vcmp.le.s32.totalorder %v5322, %v5340
          %vm5371 = vcmp.le.s32.totalorder %v5321, %v5341
          %vm5372 = vcmp.le.s32.totalorder %v5322, %v5341
          %vm5373 = vcmp.le.s32.totalorder %v5321, %v5342
          %vm5374 = vcmp.le.s32.totalorder %v5322, %v5342
          %v5375 = vsel %vm5324, 1, 0
          %v5376 = vsel %vm5325, 1, 0
          %vm5377 = vcmp.eq.s32.totalorder %v5375, 1
          %vm5378 = vcmp.eq.s32.totalorder %v5376, 1
          %vm5379 = vmand %vm5377, %vm5343
          %vm5380 = vmand %vm5378, %vm5344
          %vm5381 = vmand %vm5377, %vm5345
          %vm5382 = vmand %vm5378, %vm5346
          %vm5383 = vmand %vm5377, %vm5347
          %vm5384 = vmand %vm5378, %vm5348
          %vm5385 = vmand %vm5377, %vm5349
          %vm5386 = vmand %vm5378, %vm5350
          %vm5387 = vmand %vm5377, %vm5351
          %vm5388 = vmand %vm5378, %vm5352
          %vm5389 = vmand %vm5377, %vm5353
          %vm5390 = vmand %vm5378, %vm5354
          %vm5391 = vmand %vm5377, %vm5355
          %vm5392 = vmand %vm5378, %vm5356
          %vm5393 = vmand %vm5377, %vm5357
          %vm5394 = vmand %vm5378, %vm5358
          %vm5395 = vmand %vm5377, %vm5359
          %vm5396 = vmand %vm5378, %vm5360
          %vm5397 = vmand %vm5377, %vm5361
          %vm5398 = vmand %vm5378, %vm5362
          %vm5399 = vmand %vm5377, %vm5363
          %vm5400 = vmand %vm5378, %vm5364
          %vm5401 = vmand %vm5377, %vm5365
          %vm5402 = vmand %vm5378, %vm5366
          %vm5403 = vmand %vm5377, %vm5367
          %vm5404 = vmand %vm5378, %vm5368
          %vm5405 = vmand %vm5377, %vm5369
          %vm5406 = vmand %vm5378, %vm5370
          %vm5407 = vmand %vm5377, %vm5371
          %vm5408 = vmand %vm5378, %vm5372
          %vm5409 = vmand %vm5377, %vm5373
          %vm5410 = vmand %vm5378, %vm5374
          %v5411 = vsel %vm5379, %v4955, -1e+30
          %v5412 = vsel %vm5380, %v5124, -1e+30
          %v5413 = vsel %vm5381, %v4957, -1e+30
          %v5414 = vsel %vm5382, %v5126, -1e+30
          %v5415 = vsel %vm5383, %v4960, -1e+30
          %v5416 = vsel %vm5384, %v5129, -1e+30
          %v5417 = vsel %vm5385, %v4962, -1e+30
          %v5418 = vsel %vm5386, %v5131, -1e+30
          %v5419 = vsel %vm5387, %v4965, -1e+30
          %v5420 = vsel %vm5388, %v5134, -1e+30
          %v5421 = vsel %vm5389, %v4967, -1e+30
          %v5422 = vsel %vm5390, %v5136, -1e+30
          %v5423 = vsel %vm5391, %v4970, -1e+30
          %v5424 = vsel %vm5392, %v5139, -1e+30
          %v5425 = vsel %vm5393, %v4972, -1e+30
          %v5426 = vsel %vm5394, %v5141, -1e+30
          %v5427 = vsel %vm5395, %v4975, -1e+30
          %v5428 = vsel %vm5396, %v5144, -1e+30
          %v5429 = vsel %vm5397, %v4977, -1e+30
          %v5430 = vsel %vm5398, %v5146, -1e+30
          %v5431 = vsel %vm5399, %v4980, -1e+30
          %v5432 = vsel %vm5400, %v5149, -1e+30
          %v5433 = vsel %vm5401, %v4982, -1e+30
          %v5434 = vsel %vm5402, %v5151, -1e+30
          %v5435 = vsel %vm5403, %v4985, -1e+30
          %v5436 = vsel %vm5404, %v5154, -1e+30
          %v5437 = vsel %vm5405, %v4987, -1e+30
          %v5438 = vsel %vm5406, %v5156, -1e+30
          %v5439 = vsel %vm5407, %v4990, -1e+30
          %v5440 = vsel %vm5408, %v5159, -1e+30
          %v5441 = vsel %vm5409, %v4992, -1e+30
          %v5442 = vsel %vm5410, %v5161, -1e+30
          %v5443 = vsel %vm5379, %v4995, -1e+30
          %v5444 = vsel %vm5380, %v5164, -1e+30
          %v5445 = vsel %vm5381, %v4997, -1e+30
          %v5446 = vsel %vm5382, %v5166, -1e+30
          %v5447 = vsel %vm5383, %v5000, -1e+30
          %v5448 = vsel %vm5384, %v5169, -1e+30
          %v5449 = vsel %vm5385, %v5002, -1e+30
          %v5450 = vsel %vm5386, %v5171, -1e+30
          %v5451 = vsel %vm5387, %v5005, -1e+30
          %v5452 = vsel %vm5388, %v5174, -1e+30
          %v5453 = vsel %vm5389, %v5007, -1e+30
          %v5454 = vsel %vm5390, %v5176, -1e+30
          %v5455 = vsel %vm5391, %v5010, -1e+30
          %v5456 = vsel %vm5392, %v5179, -1e+30
          %v5457 = vsel %vm5393, %v5012, -1e+30
          %v5458 = vsel %vm5394, %v5181, -1e+30
          %v5459 = vsel %vm5395, %v5015, -1e+30
          %v5460 = vsel %vm5396, %v5184, -1e+30
          %v5461 = vsel %vm5397, %v5017, -1e+30
          %v5462 = vsel %vm5398, %v5186, -1e+30
          %v5463 = vsel %vm5399, %v5020, -1e+30
          %v5464 = vsel %vm5400, %v5189, -1e+30
          %v5465 = vsel %vm5401, %v5022, -1e+30
          %v5466 = vsel %vm5402, %v5191, -1e+30
          %v5467 = vsel %vm5403, %v5025, -1e+30
          %v5468 = vsel %vm5404, %v5194, -1e+30
          %v5469 = vsel %vm5405, %v5027, -1e+30
          %v5470 = vsel %vm5406, %v5196, -1e+30
          %v5471 = vsel %vm5407, %v5030, -1e+30
          %v5472 = vsel %vm5408, %v5199, -1e+30
          %v5473 = vsel %vm5409, %v5032, -1e+30
          %v5474 = vsel %vm5410, %v5201, -1e+30
          %v5475 = vsel %vm5379, %v5035, -1e+30
          %v5476 = vsel %vm5380, %v5204, -1e+30
          %v5477 = vsel %vm5381, %v5037, -1e+30
          %v5478 = vsel %vm5382, %v5206, -1e+30
          %v5479 = vsel %vm5383, %v5040, -1e+30
          %v5480 = vsel %vm5384, %v5209, -1e+30
          %v5481 = vsel %vm5385, %v5042, -1e+30
          %v5482 = vsel %vm5386, %v5211, -1e+30
          %v5483 = vsel %vm5387, %v5045, -1e+30
          %v5484 = vsel %vm5388, %v5214, -1e+30
          %v5485 = vsel %vm5389, %v5047, -1e+30
          %v5486 = vsel %vm5390, %v5216, -1e+30
          %v5487 = vsel %vm5391, %v5050, -1e+30
          %v5488 = vsel %vm5392, %v5219, -1e+30
          %v5489 = vsel %vm5393, %v5052, -1e+30
          %v5490 = vsel %vm5394, %v5221, -1e+30
          %v5491 = vsel %vm5395, %v5055, -1e+30
          %v5492 = vsel %vm5396, %v5224, -1e+30
          %v5493 = vsel %vm5397, %v5057, -1e+30
          %v5494 = vsel %vm5398, %v5226, -1e+30
          %v5495 = vsel %vm5399, %v5060, -1e+30
          %v5496 = vsel %vm5400, %v5229, -1e+30
          %v5497 = vsel %vm5401, %v5062, -1e+30
          %v5498 = vsel %vm5402, %v5231, -1e+30
          %v5499 = vsel %vm5403, %v5065, -1e+30
          %v5500 = vsel %vm5404, %v5234, -1e+30
          %v5501 = vsel %vm5405, %v5067, -1e+30
          %v5502 = vsel %vm5406, %v5236, -1e+30
          %v5503 = vsel %vm5407, %v5070, -1e+30
          %v5504 = vsel %vm5408, %v5239, -1e+30
          %v5505 = vsel %vm5409, %v5072, -1e+30
          %v5506 = vsel %vm5410, %v5241, -1e+30
          %v5507 = vsel %vm5379, %v5075, -1e+30
          %v5508 = vsel %vm5380, %v5244, -1e+30
          %v5509 = vsel %vm5381, %v5077, -1e+30
          %v5510 = vsel %vm5382, %v5246, -1e+30
          %v5511 = vsel %vm5383, %v5080, -1e+30
          %v5512 = vsel %vm5384, %v5249, -1e+30
          %v5513 = vsel %vm5385, %v5082, -1e+30
          %v5514 = vsel %vm5386, %v5251, -1e+30
          %v5515 = vsel %vm5387, %v5085, -1e+30
          %v5516 = vsel %vm5388, %v5254, -1e+30
          %v5517 = vsel %vm5389, %v5087, -1e+30
          %v5518 = vsel %vm5390, %v5256, -1e+30
          %v5519 = vsel %vm5391, %v5090, -1e+30
          %v5520 = vsel %vm5392, %v5259, -1e+30
          %v5521 = vsel %vm5393, %v5092, -1e+30
          %v5522 = vsel %vm5394, %v5261, -1e+30
          %v5523 = vsel %vm5395, %v5095, -1e+30
          %v5524 = vsel %vm5396, %v5264, -1e+30
          %v5525 = vsel %vm5397, %v5097, -1e+30
          %v5526 = vsel %vm5398, %v5266, -1e+30
          %v5527 = vsel %vm5399, %v5100, -1e+30
          %v5528 = vsel %vm5400, %v5269, -1e+30
          %v5529 = vsel %vm5401, %v5102, -1e+30
          %v5530 = vsel %vm5402, %v5271, -1e+30
          %v5531 = vsel %vm5403, %v5105, -1e+30
          %v5532 = vsel %vm5404, %v5274, -1e+30
          %v5533 = vsel %vm5405, %v5107, -1e+30
          %v5534 = vsel %vm5406, %v5276, -1e+30
          %v5535 = vsel %vm5407, %v5110, -1e+30
          %v5536 = vsel %vm5408, %v5279, -1e+30
          %v5537 = vsel %vm5409, %v5112, -1e+30
          %v5538 = vsel %vm5410, %v5281, -1e+30
          %v5539 = vld [vmem:[#allocation2] sm:$0xff]
          %v5540 = vld [vmem:[#allocation2 + $0x8] sm:$0xff]
          %v5541 = vld [vmem:[#allocation2 + $0x10] sm:$0xff]
          %v5542 = vld [vmem:[#allocation2 + $0x18] sm:$0xff]
          %v5543 = vld [vmem:[#allocation2 + $0x20] sm:$0xff]
          %v5544 = vld [vmem:[#allocation2 + $0x28] sm:$0xff]
          %v5545 = vld [vmem:[#allocation2 + $0x30] sm:$0xff]
          %v5546 = vld [vmem:[#allocation2 + $0x38] sm:$0xff]
          %v5547 = vld [vmem:[#allocation2 + $0x40] sm:$0xff]
          %v5548 = vld [vmem:[#allocation2 + $0x48] sm:$0xff]
          %v5549 = vld [vmem:[#allocation2 + $0x50] sm:$0xff]
          %v5550 = vld [vmem:[#allocation2 + $0x58] sm:$0xff]
          %v5551 = vld [vmem:[#allocation2 + $0x60] sm:$0xff]
          %v5552 = vld [vmem:[#allocation2 + $0x68] sm:$0xff]
          %v5553 = vld [vmem:[#allocation2 + $0x70] sm:$0xff]
          %v5554 = vld [vmem:[#allocation2 + $0x78] sm:$0xff]
          %v5555 = vld [vmem:[#allocation2 + $0x80] sm:$0xff]
          %v5556 = vld [vmem:[#allocation2 + $0x88] sm:$0xff]
          %v5557 = vld [vmem:[#allocation2 + $0x90] sm:$0xff]
          %v5558 = vld [vmem:[#allocation2 + $0x98] sm:$0xff]
          %v5559 = vld [vmem:[#allocation2 + $0xa0] sm:$0xff]
          %v5560 = vld [vmem:[#allocation2 + $0xa8] sm:$0xff]
          %v5561 = vld [vmem:[#allocation2 + $0xb0] sm:$0xff]
          %v5562 = vld [vmem:[#allocation2 + $0xb8] sm:$0xff]
          %v5563 = vld [vmem:[#allocation2 + $0xc0] sm:$0xff]
          %v5564 = vld [vmem:[#allocation2 + $0xc8] sm:$0xff]
          %v5565 = vld [vmem:[#allocation2 + $0xd0] sm:$0xff]
          %v5566 = vld [vmem:[#allocation2 + $0xd8] sm:$0xff]
          %v5567 = vld [vmem:[#allocation2 + $0xe0] sm:$0xff]
          %v5568 = vld [vmem:[#allocation2 + $0xe8] sm:$0xff]
          %v5569 = vld [vmem:[#allocation2 + $0xf0] sm:$0xff]
          %v5570 = vld [vmem:[#allocation2 + $0xf8] sm:$0xff]
          %v5571 = vld [vmem:[#allocation2 + $0x100] sm:$0xff]
          %v5572 = vld [vmem:[#allocation2 + $0x108] sm:$0xff]
          %v5573 = vld [vmem:[#allocation2 + $0x110] sm:$0xff]
          %v5574 = vld [vmem:[#allocation2 + $0x118] sm:$0xff]
          %v5575 = vld [vmem:[#allocation2 + $0x120] sm:$0xff]
          %v5576 = vld [vmem:[#allocation2 + $0x128] sm:$0xff]
          %v5577 = vld [vmem:[#allocation2 + $0x130] sm:$0xff]
          %v5578 = vld [vmem:[#allocation2 + $0x138] sm:$0xff]
          %v5579 = vld [vmem:[#allocation2 + $0x140] sm:$0xff]
          %v5580 = vld [vmem:[#allocation2 + $0x148] sm:$0xff]
          %v5581 = vld [vmem:[#allocation2 + $0x150] sm:$0xff]
          %v5582 = vld [vmem:[#allocation2 + $0x158] sm:$0xff]
          %v5583 = vld [vmem:[#allocation2 + $0x160] sm:$0xff]
          %v5584 = vld [vmem:[#allocation2 + $0x168] sm:$0xff]
          %v5585 = vld [vmem:[#allocation2 + $0x170] sm:$0xff]
          %v5586 = vld [vmem:[#allocation2 + $0x178] sm:$0xff]
          %v5587 = vld [vmem:[#allocation2 + $0x180] sm:$0xff]
          %v5588 = vld [vmem:[#allocation2 + $0x188] sm:$0xff]
          %v5589 = vld [vmem:[#allocation2 + $0x190] sm:$0xff]
          %v5590 = vld [vmem:[#allocation2 + $0x198] sm:$0xff]
          %v5591 = vld [vmem:[#allocation2 + $0x1a0] sm:$0xff]
          %v5592 = vld [vmem:[#allocation2 + $0x1a8] sm:$0xff]
          %v5593 = vld [vmem:[#allocation2 + $0x1b0] sm:$0xff]
          %v5594 = vld [vmem:[#allocation2 + $0x1b8] sm:$0xff]
          %v5595 = vld [vmem:[#allocation2 + $0x1c0] sm:$0xff]
          %v5596 = vld [vmem:[#allocation2 + $0x1c8] sm:$0xff]
          %v5597 = vld [vmem:[#allocation2 + $0x1d0] sm:$0xff]
          %v5598 = vld [vmem:[#allocation2 + $0x1d8] sm:$0xff]
          %v5599 = vld [vmem:[#allocation2 + $0x1e0] sm:$0xff]
          %v5600 = vld [vmem:[#allocation2 + $0x1e8] sm:$0xff]
          %v5601 = vld [vmem:[#allocation2 + $0x1f0] sm:$0xff]
          %v5602 = vld [vmem:[#allocation2 + $0x1f8] sm:$0xff]
          %v5603 = vmax.f32 %v5411, %v5412
          %5604 = vmax.xlane.f32.xlu0 %v5603
          %v5605 = vpop.xlane.xlu0 %5604
          %v5606 = vmax.f32 %v5413, %v5414
          %5607 = vmax.xlane.f32.xlu0 %v5606
          %v5608 = vpop.xlane.xlu0 %5607
          %v5609 = vmax.f32 %v5415, %v5416
          %5610 = vmax.xlane.f32.xlu0 %v5609
          %v5611 = vpop.xlane.xlu0 %5610
          %v5612 = vmax.f32 %v5417, %v5418
          %5613 = vmax.xlane.f32.xlu0 %v5612
          %v5614 = vpop.xlane.xlu0 %5613
          %v5615 = vmax.f32 %v5419, %v5420
          %5616 = vmax.xlane.f32.xlu0 %v5615
          %v5617 = vpop.xlane.xlu0 %5616
          %v5618 = vmax.f32 %v5421, %v5422
          %5619 = vmax.xlane.f32.xlu0 %v5618
          %v5620 = vpop.xlane.xlu0 %5619
          %v5621 = vmax.f32 %v5423, %v5424
          %5622 = vmax.xlane.f32.xlu0 %v5621
          %v5623 = vpop.xlane.xlu0 %5622
          %v5624 = vmax.f32 %v5425, %v5426
          %5625 = vmax.xlane.f32.xlu0 %v5624
          %v5626 = vpop.xlane.xlu0 %5625
          %v5627 = vmax.f32 %v5427, %v5428
          %5628 = vmax.xlane.f32.xlu0 %v5627
          %v5629 = vpop.xlane.xlu0 %5628
          %v5630 = vmax.f32 %v5429, %v5430
          %5631 = vmax.xlane.f32.xlu0 %v5630
          %v5632 = vpop.xlane.xlu0 %5631
          %v5633 = vmax.f32 %v5431, %v5432
          %5634 = vmax.xlane.f32.xlu0 %v5633
          %v5635 = vpop.xlane.xlu0 %5634
          %v5636 = vmax.f32 %v5433, %v5434
          %5637 = vmax.xlane.f32.xlu0 %v5636
          %v5638 = vpop.xlane.xlu0 %5637
          %v5639 = vmax.f32 %v5435, %v5436
          %5640 = vmax.xlane.f32.xlu0 %v5639
          %v5641 = vpop.xlane.xlu0 %5640
          %v5642 = vmax.f32 %v5437, %v5438
          %5643 = vmax.xlane.f32.xlu0 %v5642
          %v5644 = vpop.xlane.xlu0 %5643
          %v5645 = vmax.f32 %v5439, %v5440
          %5646 = vmax.xlane.f32.xlu0 %v5645
          %v5647 = vpop.xlane.xlu0 %5646
          %v5648 = vmax.f32 %v5441, %v5442
          %5649 = vmax.xlane.f32.xlu0 %v5648
          %v5650 = vpop.xlane.xlu0 %5649
          %v5651 = vmax.f32 %v5443, %v5444
          %5652 = vmax.xlane.f32.xlu0 %v5651
          %v5653 = vpop.xlane.xlu0 %5652
          %v5654 = vmax.f32 %v5445, %v5446
          %5655 = vmax.xlane.f32.xlu0 %v5654
          %v5656 = vpop.xlane.xlu0 %5655
          %v5657 = vmax.f32 %v5447, %v5448
          %5658 = vmax.xlane.f32.xlu0 %v5657
          %v5659 = vpop.xlane.xlu0 %5658
          %v5660 = vmax.f32 %v5449, %v5450
          %5661 = vmax.xlane.f32.xlu0 %v5660
          %v5662 = vpop.xlane.xlu0 %5661
          %v5663 = vmax.f32 %v5451, %v5452
          %5664 = vmax.xlane.f32.xlu0 %v5663
          %v5665 = vpop.xlane.xlu0 %5664
          %v5666 = vmax.f32 %v5453, %v5454
          %5667 = vmax.xlane.f32.xlu0 %v5666
          %v5668 = vpop.xlane.xlu0 %5667
          %v5669 = vmax.f32 %v5455, %v5456
          %5670 = vmax.xlane.f32.xlu0 %v5669
          %v5671 = vpop.xlane.xlu0 %5670
          %v5672 = vmax.f32 %v5457, %v5458
          %5673 = vmax.xlane.f32.xlu0 %v5672
          %v5674 = vpop.xlane.xlu0 %5673
          %v5675 = vmax.f32 %v5459, %v5460
          %5676 = vmax.xlane.f32.xlu0 %v5675
          %v5677 = vpop.xlane.xlu0 %5676
          %v5678 = vmax.f32 %v5461, %v5462
          %5679 = vmax.xlane.f32.xlu0 %v5678
          %v5680 = vpop.xlane.xlu0 %5679
          %v5681 = vmax.f32 %v5463, %v5464
          %5682 = vmax.xlane.f32.xlu0 %v5681
          %v5683 = vpop.xlane.xlu0 %5682
          %v5684 = vmax.f32 %v5465, %v5466
          %5685 = vmax.xlane.f32.xlu0 %v5684
          %v5686 = vpop.xlane.xlu0 %5685
          %v5687 = vmax.f32 %v5467, %v5468
          %5688 = vmax.xlane.f32.xlu0 %v5687
          %v5689 = vpop.xlane.xlu0 %5688
          %v5690 = vmax.f32 %v5469, %v5470
          %5691 = vmax.xlane.f32.xlu0 %v5690
          %v5692 = vpop.xlane.xlu0 %5691
          %v5693 = vmax.f32 %v5471, %v5472
          %5694 = vmax.xlane.f32.xlu0 %v5693
          %v5695 = vpop.xlane.xlu0 %5694
          %v5696 = vmax.f32 %v5473, %v5474
          %5697 = vmax.xlane.f32.xlu0 %v5696
          %v5698 = vpop.xlane.xlu0 %5697
          %v5699 = vmax.f32 %v5475, %v5476
          %5700 = vmax.xlane.f32.xlu0 %v5699
          %v5701 = vpop.xlane.xlu0 %5700
          %v5702 = vmax.f32 %v5477, %v5478
          %5703 = vmax.xlane.f32.xlu0 %v5702
          %v5704 = vpop.xlane.xlu0 %5703
          %v5705 = vmax.f32 %v5479, %v5480
          %5706 = vmax.xlane.f32.xlu0 %v5705
          %v5707 = vpop.xlane.xlu0 %5706
          %v5708 = vmax.f32 %v5481, %v5482
          %5709 = vmax.xlane.f32.xlu0 %v5708
          %v5710 = vpop.xlane.xlu0 %5709
          %v5711 = vmax.f32 %v5483, %v5484
          %5712 = vmax.xlane.f32.xlu0 %v5711
          %v5713 = vpop.xlane.xlu0 %5712
          %v5714 = vmax.f32 %v5485, %v5486
          %5715 = vmax.xlane.f32.xlu0 %v5714
          %v5716 = vpop.xlane.xlu0 %5715
          %v5717 = vmax.f32 %v5487, %v5488
          %5718 = vmax.xlane.f32.xlu0 %v5717
          %v5719 = vpop.xlane.xlu0 %5718
          %v5720 = vmax.f32 %v5489, %v5490
          %5721 = vmax.xlane.f32.xlu0 %v5720
          %v5722 = vpop.xlane.xlu0 %5721
          %v5723 = vmax.f32 %v5491, %v5492
          %5724 = vmax.xlane.f32.xlu0 %v5723
          %v5725 = vpop.xlane.xlu0 %5724
          %v5726 = vmax.f32 %v5493, %v5494
          %5727 = vmax.xlane.f32.xlu0 %v5726
          %v5728 = vpop.xlane.xlu0 %5727
          %v5729 = vmax.f32 %v5495, %v5496
          %5730 = vmax.xlane.f32.xlu0 %v5729
          %v5731 = vpop.xlane.xlu0 %5730
          %v5732 = vmax.f32 %v5497, %v5498
          %5733 = vmax.xlane.f32.xlu0 %v5732
          %v5734 = vpop.xlane.xlu0 %5733
          %v5735 = vmax.f32 %v5499, %v5500
          %5736 = vmax.xlane.f32.xlu0 %v5735
          %v5737 = vpop.xlane.xlu0 %5736
          %v5738 = vmax.f32 %v5501, %v5502
          %5739 = vmax.xlane.f32.xlu0 %v5738
          %v5740 = vpop.xlane.xlu0 %5739
          %v5741 = vmax.f32 %v5503, %v5504
          %5742 = vmax.xlane.f32.xlu0 %v5741
          %v5743 = vpop.xlane.xlu0 %5742
          %v5744 = vmax.f32 %v5505, %v5506
          %5745 = vmax.xlane.f32.xlu0 %v5744
          %v5746 = vpop.xlane.xlu0 %5745
          %v5747 = vmax.f32 %v5507, %v5508
          %5748 = vmax.xlane.f32.xlu0 %v5747
          %v5749 = vpop.xlane.xlu0 %5748
          %v5750 = vmax.f32 %v5509, %v5510
          %5751 = vmax.xlane.f32.xlu0 %v5750
          %v5752 = vpop.xlane.xlu0 %5751
          %v5753 = vmax.f32 %v5511, %v5512
          %5754 = vmax.xlane.f32.xlu0 %v5753
          %v5755 = vpop.xlane.xlu0 %5754
          %v5756 = vmax.f32 %v5513, %v5514
          %5757 = vmax.xlane.f32.xlu0 %v5756
          %v5758 = vpop.xlane.xlu0 %5757
          %v5759 = vmax.f32 %v5515, %v5516
          %5760 = vmax.xlane.f32.xlu0 %v5759
          %v5761 = vpop.xlane.xlu0 %5760
          %v5762 = vmax.f32 %v5517, %v5518
          %5763 = vmax.xlane.f32.xlu0 %v5762
          %v5764 = vpop.xlane.xlu0 %5763
          %v5765 = vmax.f32 %v5519, %v5520
          %5766 = vmax.xlane.f32.xlu0 %v5765
          %v5767 = vpop.xlane.xlu0 %5766
          %v5768 = vmax.f32 %v5521, %v5522
          %5769 = vmax.xlane.f32.xlu0 %v5768
          %v5770 = vpop.xlane.xlu0 %5769
          %v5771 = vmax.f32 %v5523, %v5524
          %5772 = vmax.xlane.f32.xlu0 %v5771
          %v5773 = vpop.xlane.xlu0 %5772
          %v5774 = vmax.f32 %v5525, %v5526
          %5775 = vmax.xlane.f32.xlu0 %v5774
          %v5776 = vpop.xlane.xlu0 %5775
          %v5777 = vmax.f32 %v5527, %v5528
          %5778 = vmax.xlane.f32.xlu0 %v5777
          %v5779 = vpop.xlane.xlu0 %5778
          %v5780 = vmax.f32 %v5529, %v5530
          %5781 = vmax.xlane.f32.xlu0 %v5780
          %v5782 = vpop.xlane.xlu0 %5781
          %v5783 = vmax.f32 %v5531, %v5532
          %5784 = vmax.xlane.f32.xlu0 %v5783
          %v5785 = vpop.xlane.xlu0 %5784
          %v5786 = vmax.f32 %v5533, %v5534
          %5787 = vmax.xlane.f32.xlu0 %v5786
          %v5788 = vpop.xlane.xlu0 %5787
          %v5789 = vmax.f32 %v5535, %v5536
          %5790 = vmax.xlane.f32.xlu0 %v5789
          %v5791 = vpop.xlane.xlu0 %5790
          %v5792 = vmax.f32 %v5537, %v5538
          %5793 = vmax.xlane.f32.xlu0 %v5792
          %v5794 = vpop.xlane.xlu0 %5793
          %v5795 = vmax.f32 %v5539, %v5605
          %v5796 = vmax.f32 %v5540, %v5608
          %v5797 = vmax.f32 %v5541, %v5611
          %v5798 = vmax.f32 %v5542, %v5614
          %v5799 = vmax.f32 %v5543, %v5617
          %v5800 = vmax.f32 %v5544, %v5620
          %v5801 = vmax.f32 %v5545, %v5623
          %v5802 = vmax.f32 %v5546, %v5626
          %v5803 = vmax.f32 %v5547, %v5629
          %v5804 = vmax.f32 %v5548, %v5632
          %v5805 = vmax.f32 %v5549, %v5635
          %v5806 = vmax.f32 %v5550, %v5638
          %v5807 = vmax.f32 %v5551, %v5641
          %v5808 = vmax.f32 %v5552, %v5644
          %v5809 = vmax.f32 %v5553, %v5647
          %v5810 = vmax.f32 %v5554, %v5650
          %v5811 = vmax.f32 %v5555, %v5653
          %v5812 = vmax.f32 %v5556, %v5656
          %v5813 = vmax.f32 %v5557, %v5659
          %v5814 = vmax.f32 %v5558, %v5662
          %v5815 = vmax.f32 %v5559, %v5665
          %v5816 = vmax.f32 %v5560, %v5668
          %v5817 = vmax.f32 %v5561, %v5671
          %v5818 = vmax.f32 %v5562, %v5674
          %v5819 = vmax.f32 %v5563, %v5677
          %v5820 = vmax.f32 %v5564, %v5680
          %v5821 = vmax.f32 %v5565, %v5683
          %v5822 = vmax.f32 %v5566, %v5686
          %v5823 = vmax.f32 %v5567, %v5689
          %v5824 = vmax.f32 %v5568, %v5692
          %v5825 = vmax.f32 %v5569, %v5695
          %v5826 = vmax.f32 %v5570, %v5698
          %v5827 = vmax.f32 %v5571, %v5701
          %v5828 = vmax.f32 %v5572, %v5704
          %v5829 = vmax.f32 %v5573, %v5707
          %v5830 = vmax.f32 %v5574, %v5710
          %v5831 = vmax.f32 %v5575, %v5713
          %v5832 = vmax.f32 %v5576, %v5716
          %v5833 = vmax.f32 %v5577, %v5719
          %v5834 = vmax.f32 %v5578, %v5722
          %v5835 = vmax.f32 %v5579, %v5725
          %v5836 = vmax.f32 %v5580, %v5728
          %v5837 = vmax.f32 %v5581, %v5731
          %v5838 = vmax.f32 %v5582, %v5734
          %v5839 = vmax.f32 %v5583, %v5737
          %v5840 = vmax.f32 %v5584, %v5740
          %v5841 = vmax.f32 %v5585, %v5743
          %v5842 = vmax.f32 %v5586, %v5746
          %v5843 = vmax.f32 %v5587, %v5749
          %v5844 = vmax.f32 %v5588, %v5752
          %v5845 = vmax.f32 %v5589, %v5755
          %v5846 = vmax.f32 %v5590, %v5758
          %v5847 = vmax.f32 %v5591, %v5761
          %v5848 = vmax.f32 %v5592, %v5764
          %v5849 = vmax.f32 %v5593, %v5767
          %v5850 = vmax.f32 %v5594, %v5770
          %v5851 = vmax.f32 %v5595, %v5773
          %v5852 = vmax.f32 %v5596, %v5776
          %v5853 = vmax.f32 %v5597, %v5779
          %v5854 = vmax.f32 %v5598, %v5782
          %v5855 = vmax.f32 %v5599, %v5785
          %v5856 = vmax.f32 %v5600, %v5788
          %v5857 = vmax.f32 %v5601, %v5791
          %v5858 = vmax.f32 %v5602, %v5794
          %v5859 = vsub.f32 %v5539, %v5795
          %v5860 = vsub.f32 %v5540, %v5796
          %v5861 = vsub.f32 %v5541, %v5797
          %v5862 = vsub.f32 %v5542, %v5798
          %v5863 = vsub.f32 %v5543, %v5799
          %v5864 = vsub.f32 %v5544, %v5800
          %v5865 = vsub.f32 %v5545, %v5801
          %v5866 = vsub.f32 %v5546, %v5802
          %v5867 = vsub.f32 %v5547, %v5803
          %v5868 = vsub.f32 %v5548, %v5804
          %v5869 = vsub.f32 %v5549, %v5805
          %v5870 = vsub.f32 %v5550, %v5806
          %v5871 = vsub.f32 %v5551, %v5807
          %v5872 = vsub.f32 %v5552, %v5808
          %v5873 = vsub.f32 %v5553, %v5809
          %v5874 = vsub.f32 %v5554, %v5810
          %v5875 = vsub.f32 %v5555, %v5811
          %v5876 = vsub.f32 %v5556, %v5812
          %v5877 = vsub.f32 %v5557, %v5813
          %v5878 = vsub.f32 %v5558, %v5814
          %v5879 = vsub.f32 %v5559, %v5815
          %v5880 = vsub.f32 %v5560, %v5816
          %v5881 = vsub.f32 %v5561, %v5817
          %v5882 = vsub.f32 %v5562, %v5818
          %v5883 = vsub.f32 %v5563, %v5819
          %v5884 = vsub.f32 %v5564, %v5820
          %v5885 = vsub.f32 %v5565, %v5821
          %v5886 = vsub.f32 %v5566, %v5822
          %v5887 = vsub.f32 %v5567, %v5823
          %v5888 = vsub.f32 %v5568, %v5824
          %v5889 = vsub.f32 %v5569, %v5825
          %v5890 = vsub.f32 %v5570, %v5826
          %v5891 = vsub.f32 %v5571, %v5827
          %v5892 = vsub.f32 %v5572, %v5828
          %v5893 = vsub.f32 %v5573, %v5829
          %v5894 = vsub.f32 %v5574, %v5830
          %v5895 = vsub.f32 %v5575, %v5831
          %v5896 = vsub.f32 %v5576, %v5832
          %v5897 = vsub.f32 %v5577, %v5833
          %v5898 = vsub.f32 %v5578, %v5834
          %v5899 = vsub.f32 %v5579, %v5835
          %v5900 = vsub.f32 %v5580, %v5836
          %v5901 = vsub.f32 %v5581, %v5837
          %v5902 = vsub.f32 %v5582, %v5838
          %v5903 = vsub.f32 %v5583, %v5839
          %v5904 = vsub.f32 %v5584, %v5840
          %v5905 = vsub.f32 %v5585, %v5841
          %v5906 = vsub.f32 %v5586, %v5842
          %v5907 = vsub.f32 %v5587, %v5843
          %v5908 = vsub.f32 %v5588, %v5844
          %v5909 = vsub.f32 %v5589, %v5845
          %v5910 = vsub.f32 %v5590, %v5846
          %v5911 = vsub.f32 %v5591, %v5847
          %v5912 = vsub.f32 %v5592, %v5848
          %v5913 = vsub.f32 %v5593, %v5849
          %v5914 = vsub.f32 %v5594, %v5850
          %v5915 = vsub.f32 %v5595, %v5851
          %v5916 = vsub.f32 %v5596, %v5852
          %v5917 = vsub.f32 %v5597, %v5853
          %v5918 = vsub.f32 %v5598, %v5854
          %v5919 = vsub.f32 %v5599, %v5855
          %v5920 = vsub.f32 %v5600, %v5856
          %v5921 = vsub.f32 %v5601, %v5857
          %v5922 = vsub.f32 %v5602, %v5858
          %v5923 = vmul.f32 %v5859, 1.442695
          %v5924 = vpow.pop %v5923
          %v5925 = vmul.f32 %v5860, 1.442695
          %v5926 = vpow.pop %v5925
          %v5927 = vmul.f32 %v5861, 1.442695
          %v5928 = vpow.pop %v5927
          %v5929 = vmul.f32 %v5862, 1.442695
          %v5930 = vpow.pop %v5929
          %v5931 = vmul.f32 %v5863, 1.442695
          %v5932 = vpow.pop %v5931
          %v5933 = vmul.f32 %v5864, 1.442695
          %v5934 = vpow.pop %v5933
          %v5935 = vmul.f32 %v5865, 1.442695
          %v5936 = vpow.pop %v5935
          %v5937 = vmul.f32 %v5866, 1.442695
          %v5938 = vpow.pop %v5937
          %v5939 = vmul.f32 %v5867, 1.442695
          %v5940 = vpow.pop %v5939
          %v5941 = vmul.f32 %v5868, 1.442695
          %v5942 = vpow.pop %v5941
          %v5943 = vmul.f32 %v5869, 1.442695
          %v5944 = vpow.pop %v5943
          %v5945 = vmul.f32 %v5870, 1.442695
          %v5946 = vpow.pop %v5945
          %v5947 = vmul.f32 %v5871, 1.442695
          %v5948 = vpow.pop %v5947
          %v5949 = vmul.f32 %v5872, 1.442695
          %v5950 = vpow.pop %v5949
          %v5951 = vmul.f32 %v5873, 1.442695
          %v5952 = vpow.pop %v5951
          %v5953 = vmul.f32 %v5874, 1.442695
          %v5954 = vpow.pop %v5953
          %v5955 = vmul.f32 %v5875, 1.442695
          %v5956 = vpow.pop %v5955
          %v5957 = vmul.f32 %v5876, 1.442695
          %v5958 = vpow.pop %v5957
          %v5959 = vmul.f32 %v5877, 1.442695
          %v5960 = vpow.pop %v5959
          %v5961 = vmul.f32 %v5878, 1.442695
          %v5962 = vpow.pop %v5961
          %v5963 = vmul.f32 %v5879, 1.442695
          %v5964 = vpow.pop %v5963
          %v5965 = vmul.f32 %v5880, 1.442695
          %v5966 = vpow.pop %v5965
          %v5967 = vmul.f32 %v5881, 1.442695
          %v5968 = vpow.pop %v5967
          %v5969 = vmul.f32 %v5882, 1.442695
          %v5970 = vpow.pop %v5969
          %v5971 = vmul.f32 %v5883, 1.442695
          %v5972 = vpow.pop %v5971
          %v5973 = vmul.f32 %v5884, 1.442695
          %v5974 = vpow.pop %v5973
          %v5975 = vmul.f32 %v5885, 1.442695
          %v5976 = vpow.pop %v5975
          %v5977 = vmul.f32 %v5886, 1.442695
          %v5978 = vpow.pop %v5977
          %v5979 = vmul.f32 %v5887, 1.442695
          %v5980 = vpow.pop %v5979
          %v5981 = vmul.f32 %v5888, 1.442695
          %v5982 = vpow.pop %v5981
          %v5983 = vmul.f32 %v5889, 1.442695
          %v5984 = vpow.pop %v5983
          %v5985 = vmul.f32 %v5890, 1.442695
          %v5986 = vpow.pop %v5985
          %v5987 = vmul.f32 %v5891, 1.442695
          %v5988 = vpow.pop %v5987
          %v5989 = vmul.f32 %v5892, 1.442695
          %v5990 = vpow.pop %v5989
          %v5991 = vmul.f32 %v5893, 1.442695
          %v5992 = vpow.pop %v5991
          %v5993 = vmul.f32 %v5894, 1.442695
          %v5994 = vpow.pop %v5993
          %v5995 = vmul.f32 %v5895, 1.442695
          %v5996 = vpow.pop %v5995
          %v5997 = vmul.f32 %v5896, 1.442695
          %v5998 = vpow.pop %v5997
          %v5999 = vmul.f32 %v5897, 1.442695
          %v6000 = vpow.pop %v5999
          %v6001 = vmul.f32 %v5898, 1.442695
          %v6002 = vpow.pop %v6001
          %v6003 = vmul.f32 %v5899, 1.442695
          %v6004 = vpow.pop %v6003
          %v6005 = vmul.f32 %v5900, 1.442695
          %v6006 = vpow.pop %v6005
          %v6007 = vmul.f32 %v5901, 1.442695
          %v6008 = vpow.pop %v6007
          %v6009 = vmul.f32 %v5902, 1.442695
          %v6010 = vpow.pop %v6009
          %v6011 = vmul.f32 %v5903, 1.442695
          %v6012 = vpow.pop %v6011
          %v6013 = vmul.f32 %v5904, 1.442695
          %v6014 = vpow.pop %v6013
          %v6015 = vmul.f32 %v5905, 1.442695
          %v6016 = vpow.pop %v6015
          %v6017 = vmul.f32 %v5906, 1.442695
          %v6018 = vpow.pop %v6017
          %v6019 = vmul.f32 %v5907, 1.442695
          %v6020 = vpow.pop %v6019
          %v6021 = vmul.f32 %v5908, 1.442695
          %v6022 = vpow.pop %v6021
          %v6023 = vmul.f32 %v5909, 1.442695
          %v6024 = vpow.pop %v6023
          %v6025 = vmul.f32 %v5910, 1.442695
          %v6026 = vpow.pop %v6025
          %v6027 = vmul.f32 %v5911, 1.442695
          %v6028 = vpow.pop %v6027
          %v6029 = vmul.f32 %v5912, 1.442695
          %v6030 = vpow.pop %v6029
          %v6031 = vmul.f32 %v5913, 1.442695
          %v6032 = vpow.pop %v6031
          %v6033 = vmul.f32 %v5914, 1.442695
          %v6034 = vpow.pop %v6033
          %v6035 = vmul.f32 %v5915, 1.442695
          %v6036 = vpow.pop %v6035
          %v6037 = vmul.f32 %v5916, 1.442695
          %v6038 = vpow.pop %v6037
          %v6039 = vmul.f32 %v5917, 1.442695
          %v6040 = vpow.pop %v6039
          %v6041 = vmul.f32 %v5918, 1.442695
          %v6042 = vpow.pop %v6041
          %v6043 = vmul.f32 %v5919, 1.442695
          %v6044 = vpow.pop %v6043
          %v6045 = vmul.f32 %v5920, 1.442695
          %v6046 = vpow.pop %v6045
          %v6047 = vmul.f32 %v5921, 1.442695
          %v6048 = vpow.pop %v6047
          %v6049 = vmul.f32 %v5922, 1.442695
          %v6050 = vpow.pop %v6049
          %6052 = vset.pattern.permute.xlu0 0
          %6053 = vperm.xlu0 %6052, %v5795
          %v6054 = vpop.permute.xlu0 %6053
          %6057 = vset.pattern.permute.xlu0 0
          %6058 = vperm.xlu0 %6057, %v5796
          %v6059 = vpop.permute.xlu0 %6058
          %6062 = vset.pattern.permute.xlu0 0
          %6063 = vperm.xlu0 %6062, %v5797
          %v6064 = vpop.permute.xlu0 %6063
          %6067 = vset.pattern.permute.xlu0 0
          %6068 = vperm.xlu0 %6067, %v5798
          %v6069 = vpop.permute.xlu0 %6068
          %6072 = vset.pattern.permute.xlu0 0
          %6073 = vperm.xlu0 %6072, %v5799
          %v6074 = vpop.permute.xlu0 %6073
          %6077 = vset.pattern.permute.xlu0 0
          %6078 = vperm.xlu0 %6077, %v5800
          %v6079 = vpop.permute.xlu0 %6078
          %6082 = vset.pattern.permute.xlu0 0
          %6083 = vperm.xlu0 %6082, %v5801
          %v6084 = vpop.permute.xlu0 %6083
          %6087 = vset.pattern.permute.xlu0 0
          %6088 = vperm.xlu0 %6087, %v5802
          %v6089 = vpop.permute.xlu0 %6088
          %6092 = vset.pattern.permute.xlu0 0
          %6093 = vperm.xlu0 %6092, %v5803
          %v6094 = vpop.permute.xlu0 %6093
          %6097 = vset.pattern.permute.xlu0 0
          %6098 = vperm.xlu0 %6097, %v5804
          %v6099 = vpop.permute.xlu0 %6098
          %6102 = vset.pattern.permute.xlu0 0
          %6103 = vperm.xlu0 %6102, %v5805
          %v6104 = vpop.permute.xlu0 %6103
          %6107 = vset.pattern.permute.xlu0 0
          %6108 = vperm.xlu0 %6107, %v5806
          %v6109 = vpop.permute.xlu0 %6108
          %6112 = vset.pattern.permute.xlu0 0
          %6113 = vperm.xlu0 %6112, %v5807
          %v6114 = vpop.permute.xlu0 %6113
          %6117 = vset.pattern.permute.xlu0 0
          %6118 = vperm.xlu0 %6117, %v5808
          %v6119 = vpop.permute.xlu0 %6118
          %6122 = vset.pattern.permute.xlu0 0
          %6123 = vperm.xlu0 %6122, %v5809
          %v6124 = vpop.permute.xlu0 %6123
          %6127 = vset.pattern.permute.xlu0 0
          %6128 = vperm.xlu0 %6127, %v5810
          %v6129 = vpop.permute.xlu0 %6128
          %6132 = vset.pattern.permute.xlu0 0
          %6133 = vperm.xlu0 %6132, %v5811
          %v6134 = vpop.permute.xlu0 %6133
          %6137 = vset.pattern.permute.xlu0 0
          %6138 = vperm.xlu0 %6137, %v5812
          %v6139 = vpop.permute.xlu0 %6138
          %6142 = vset.pattern.permute.xlu0 0
          %6143 = vperm.xlu0 %6142, %v5813
          %v6144 = vpop.permute.xlu0 %6143
          %6147 = vset.pattern.permute.xlu0 0
          %6148 = vperm.xlu0 %6147, %v5814
          %v6149 = vpop.permute.xlu0 %6148
          %6152 = vset.pattern.permute.xlu0 0
          %6153 = vperm.xlu0 %6152, %v5815
          %v6154 = vpop.permute.xlu0 %6153
          %6157 = vset.pattern.permute.xlu0 0
          %6158 = vperm.xlu0 %6157, %v5816
          %v6159 = vpop.permute.xlu0 %6158
          %6162 = vset.pattern.permute.xlu0 0
          %6163 = vperm.xlu0 %6162, %v5817
          %v6164 = vpop.permute.xlu0 %6163
          %6167 = vset.pattern.permute.xlu0 0
          %6168 = vperm.xlu0 %6167, %v5818
          %v6169 = vpop.permute.xlu0 %6168
          %6172 = vset.pattern.permute.xlu0 0
          %6173 = vperm.xlu0 %6172, %v5819
          %v6174 = vpop.permute.xlu0 %6173
          %6177 = vset.pattern.permute.xlu0 0
          %6178 = vperm.xlu0 %6177, %v5820
          %v6179 = vpop.permute.xlu0 %6178
          %6182 = vset.pattern.permute.xlu0 0
          %6183 = vperm.xlu0 %6182, %v5821
          %v6184 = vpop.permute.xlu0 %6183
          %6187 = vset.pattern.permute.xlu0 0
          %6188 = vperm.xlu0 %6187, %v5822
          %v6189 = vpop.permute.xlu0 %6188
          %6192 = vset.pattern.permute.xlu0 0
          %6193 = vperm.xlu0 %6192, %v5823
          %v6194 = vpop.permute.xlu0 %6193
          %6197 = vset.pattern.permute.xlu0 0
          %6198 = vperm.xlu0 %6197, %v5824
          %v6199 = vpop.permute.xlu0 %6198
          %6202 = vset.pattern.permute.xlu0 0
          %6203 = vperm.xlu0 %6202, %v5825
          %v6204 = vpop.permute.xlu0 %6203
          %6207 = vset.pattern.permute.xlu0 0
          %6208 = vperm.xlu0 %6207, %v5826
          %v6209 = vpop.permute.xlu0 %6208
          %6212 = vset.pattern.permute.xlu0 0
          %6213 = vperm.xlu0 %6212, %v5827
          %v6214 = vpop.permute.xlu0 %6213
          %6217 = vset.pattern.permute.xlu0 0
          %6218 = vperm.xlu0 %6217, %v5828
          %v6219 = vpop.permute.xlu0 %6218
          %6222 = vset.pattern.permute.xlu0 0
          %6223 = vperm.xlu0 %6222, %v5829
          %v6224 = vpop.permute.xlu0 %6223
          %6227 = vset.pattern.permute.xlu0 0
          %6228 = vperm.xlu0 %6227, %v5830
          %v6229 = vpop.permute.xlu0 %6228
          %6232 = vset.pattern.permute.xlu0 0
          %6233 = vperm.xlu0 %6232, %v5831
          %v6234 = vpop.permute.xlu0 %6233
          %6237 = vset.pattern.permute.xlu0 0
          %6238 = vperm.xlu0 %6237, %v5832
          %v6239 = vpop.permute.xlu0 %6238
          %6242 = vset.pattern.permute.xlu0 0
          %6243 = vperm.xlu0 %6242, %v5833
          %v6244 = vpop.permute.xlu0 %6243
          %6247 = vset.pattern.permute.xlu0 0
          %6248 = vperm.xlu0 %6247, %v5834
          %v6249 = vpop.permute.xlu0 %6248
          %6252 = vset.pattern.permute.xlu0 0
          %6253 = vperm.xlu0 %6252, %v5835
          %v6254 = vpop.permute.xlu0 %6253
          %6257 = vset.pattern.permute.xlu0 0
          %6258 = vperm.xlu0 %6257, %v5836
          %v6259 = vpop.permute.xlu0 %6258
          %6262 = vset.pattern.permute.xlu0 0
          %6263 = vperm.xlu0 %6262, %v5837
          %v6264 = vpop.permute.xlu0 %6263
          %6267 = vset.pattern.permute.xlu0 0
          %6268 = vperm.xlu0 %6267, %v5838
          %v6269 = vpop.permute.xlu0 %6268
          %6272 = vset.pattern.permute.xlu0 0
          %6273 = vperm.xlu0 %6272, %v5839
          %v6274 = vpop.permute.xlu0 %6273
          %6277 = vset.pattern.permute.xlu0 0
          %6278 = vperm.xlu0 %6277, %v5840
          %v6279 = vpop.permute.xlu0 %6278
          %6282 = vset.pattern.permute.xlu0 0
          %6283 = vperm.xlu0 %6282, %v5841
          %v6284 = vpop.permute.xlu0 %6283
          %6287 = vset.pattern.permute.xlu0 0
          %6288 = vperm.xlu0 %6287, %v5842
          %v6289 = vpop.permute.xlu0 %6288
          %6292 = vset.pattern.permute.xlu0 0
          %6293 = vperm.xlu0 %6292, %v5843
          %v6294 = vpop.permute.xlu0 %6293
          %6297 = vset.pattern.permute.xlu0 0
          %6298 = vperm.xlu0 %6297, %v5844
          %v6299 = vpop.permute.xlu0 %6298
          %6302 = vset.pattern.permute.xlu0 0
          %6303 = vperm.xlu0 %6302, %v5845
          %v6304 = vpop.permute.xlu0 %6303
          %6307 = vset.pattern.permute.xlu0 0
          %6308 = vperm.xlu0 %6307, %v5846
          %v6309 = vpop.permute.xlu0 %6308
          %6312 = vset.pattern.permute.xlu0 0
          %6313 = vperm.xlu0 %6312, %v5847
          %v6314 = vpop.permute.xlu0 %6313
          %6317 = vset.pattern.permute.xlu0 0
          %6318 = vperm.xlu0 %6317, %v5848
          %v6319 = vpop.permute.xlu0 %6318
          %6322 = vset.pattern.permute.xlu0 0
          %6323 = vperm.xlu0 %6322, %v5849
          %v6324 = vpop.permute.xlu0 %6323
          %6327 = vset.pattern.permute.xlu0 0
          %6328 = vperm.xlu0 %6327, %v5850
          %v6329 = vpop.permute.xlu0 %6328
          %6332 = vset.pattern.permute.xlu0 0
          %6333 = vperm.xlu0 %6332, %v5851
          %v6334 = vpop.permute.xlu0 %6333
          %6337 = vset.pattern.permute.xlu0 0
          %6338 = vperm.xlu0 %6337, %v5852
          %v6339 = vpop.permute.xlu0 %6338
          %6342 = vset.pattern.permute.xlu0 0
          %6343 = vperm.xlu0 %6342, %v5853
          %v6344 = vpop.permute.xlu0 %6343
          %6347 = vset.pattern.permute.xlu0 0
          %6348 = vperm.xlu0 %6347, %v5854
          %v6349 = vpop.permute.xlu0 %6348
          %6352 = vset.pattern.permute.xlu0 0
          %6353 = vperm.xlu0 %6352, %v5855
          %v6354 = vpop.permute.xlu0 %6353
          %6357 = vset.pattern.permute.xlu0 0
          %6358 = vperm.xlu0 %6357, %v5856
          %v6359 = vpop.permute.xlu0 %6358
          %6362 = vset.pattern.permute.xlu0 0
          %6363 = vperm.xlu0 %6362, %v5857
          %v6364 = vpop.permute.xlu0 %6363
          %6367 = vset.pattern.permute.xlu0 0
          %6368 = vperm.xlu0 %6367, %v5858
          %v6369 = vpop.permute.xlu0 %6368
          %v6371 = vsub.f32 %v5411, %v6054
          %v6372 = vsub.f32 %v5412, %v6054
          %v6373 = vsub.f32 %v5413, %v6059
          %v6374 = vsub.f32 %v5414, %v6059
          %v6375 = vsub.f32 %v5415, %v6064
          %v6376 = vsub.f32 %v5416, %v6064
          %v6377 = vsub.f32 %v5417, %v6069
          %v6378 = vsub.f32 %v5418, %v6069
          %v6379 = vsub.f32 %v5419, %v6074
          %v6380 = vsub.f32 %v5420, %v6074
          %v6381 = vsub.f32 %v5421, %v6079
          %v6382 = vsub.f32 %v5422, %v6079
          %v6383 = vsub.f32 %v5423, %v6084
          %v6384 = vsub.f32 %v5424, %v6084
          %v6385 = vsub.f32 %v5425, %v6089
          %v6386 = vsub.f32 %v5426, %v6089
          %v6387 = vsub.f32 %v5427, %v6094
          %v6388 = vsub.f32 %v5428, %v6094
          %v6389 = vsub.f32 %v5429, %v6099
          %v6390 = vsub.f32 %v5430, %v6099
          %v6391 = vsub.f32 %v5431, %v6104
          %v6392 = vsub.f32 %v5432, %v6104
          %v6393 = vsub.f32 %v5433, %v6109
          %v6394 = vsub.f32 %v5434, %v6109
          %v6395 = vsub.f32 %v5435, %v6114
          %v6396 = vsub.f32 %v5436, %v6114
          %v6397 = vsub.f32 %v5437, %v6119
          %v6398 = vsub.f32 %v5438, %v6119
          %v6399 = vsub.f32 %v5439, %v6124
          %v6400 = vsub.f32 %v5440, %v6124
          %v6401 = vsub.f32 %v5441, %v6129
          %v6402 = vsub.f32 %v5442, %v6129
          %v6403 = vsub.f32 %v5443, %v6134
          %v6404 = vsub.f32 %v5444, %v6134
          %v6405 = vsub.f32 %v5445, %v6139
          %v6406 = vsub.f32 %v5446, %v6139
          %v6407 = vsub.f32 %v5447, %v6144
          %v6408 = vsub.f32 %v5448, %v6144
          %v6409 = vsub.f32 %v5449, %v6149
          %v6410 = vsub.f32 %v5450, %v6149
          %v6411 = vsub.f32 %v5451, %v6154
          %v6412 = vsub.f32 %v5452, %v6154
          %v6413 = vsub.f32 %v5453, %v6159
          %v6414 = vsub.f32 %v5454, %v6159
          %v6415 = vsub.f32 %v5455, %v6164
          %v6416 = vsub.f32 %v5456, %v6164
          %v6417 = vsub.f32 %v5457, %v6169
          %v6418 = vsub.f32 %v5458, %v6169
          %v6419 = vsub.f32 %v5459, %v6174
          %v6420 = vsub.f32 %v5460, %v6174
          %v6421 = vsub.f32 %v5461, %v6179
          %v6422 = vsub.f32 %v5462, %v6179
          %v6423 = vsub.f32 %v5463, %v6184
          %v6424 = vsub.f32 %v5464, %v6184
          %v6425 = vsub.f32 %v5465, %v6189
          %v6426 = vsub.f32 %v5466, %v6189
          %v6427 = vsub.f32 %v5467, %v6194
          %v6428 = vsub.f32 %v5468, %v6194
          %v6429 = vsub.f32 %v5469, %v6199
          %v6430 = vsub.f32 %v5470, %v6199
          %v6431 = vsub.f32 %v5471, %v6204
          %v6432 = vsub.f32 %v5472, %v6204
          %v6433 = vsub.f32 %v5473, %v6209
          %v6434 = vsub.f32 %v5474, %v6209
          %v6435 = vsub.f32 %v5475, %v6214
          %v6436 = vsub.f32 %v5476, %v6214
          %v6437 = vsub.f32 %v5477, %v6219
          %v6438 = vsub.f32 %v5478, %v6219
          %v6439 = vsub.f32 %v5479, %v6224
          %v6440 = vsub.f32 %v5480, %v6224
          %v6441 = vsub.f32 %v5481, %v6229
          %v6442 = vsub.f32 %v5482, %v6229
          %v6443 = vsub.f32 %v5483, %v6234
          %v6444 = vsub.f32 %v5484, %v6234
          %v6445 = vsub.f32 %v5485, %v6239
          %v6446 = vsub.f32 %v5486, %v6239
          %v6447 = vsub.f32 %v5487, %v6244
          %v6448 = vsub.f32 %v5488, %v6244
          %v6449 = vsub.f32 %v5489, %v6249
          %v6450 = vsub.f32 %v5490, %v6249
          %v6451 = vsub.f32 %v5491, %v6254
          %v6452 = vsub.f32 %v5492, %v6254
          %v6453 = vsub.f32 %v5493, %v6259
          %v6454 = vsub.f32 %v5494, %v6259
          %v6455 = vsub.f32 %v5495, %v6264
          %v6456 = vsub.f32 %v5496, %v6264
          %v6457 = vsub.f32 %v5497, %v6269
          %v6458 = vsub.f32 %v5498, %v6269
          %v6459 = vsub.f32 %v5499, %v6274
          %v6460 = vsub.f32 %v5500, %v6274
          %v6461 = vsub.f32 %v5501, %v6279
          %v6462 = vsub.f32 %v5502, %v6279
          %v6463 = vsub.f32 %v5503, %v6284
          %v6464 = vsub.f32 %v5504, %v6284
          %v6465 = vsub.f32 %v5505, %v6289
          %v6466 = vsub.f32 %v5506, %v6289
          %v6467 = vsub.f32 %v5507, %v6294
          %v6468 = vsub.f32 %v5508, %v6294
          %v6469 = vsub.f32 %v5509, %v6299
          %v6470 = vsub.f32 %v5510, %v6299
          %v6471 = vsub.f32 %v5511, %v6304
          %v6472 = vsub.f32 %v5512, %v6304
          %v6473 = vsub.f32 %v5513, %v6309
          %v6474 = vsub.f32 %v5514, %v6309
          %v6475 = vsub.f32 %v5515, %v6314
          %v6476 = vsub.f32 %v5516, %v6314
          %v6477 = vsub.f32 %v5517, %v6319
          %v6478 = vsub.f32 %v5518, %v6319
          %v6479 = vsub.f32 %v5519, %v6324
          %v6480 = vsub.f32 %v5520, %v6324
          %v6481 = vsub.f32 %v5521, %v6329
          %v6482 = vsub.f32 %v5522, %v6329
          %v6483 = vsub.f32 %v5523, %v6334
          %v6484 = vsub.f32 %v5524, %v6334
          %v6485 = vsub.f32 %v5525, %v6339
          %v6486 = vsub.f32 %v5526, %v6339
          %v6487 = vsub.f32 %v5527, %v6344
          %v6488 = vsub.f32 %v5528, %v6344
          %v6489 = vsub.f32 %v5529, %v6349
          %v6490 = vsub.f32 %v5530, %v6349
          %v6491 = vsub.f32 %v5531, %v6354
          %v6492 = vsub.f32 %v5532, %v6354
          %v6493 = vsub.f32 %v5533, %v6359
          %v6494 = vsub.f32 %v5534, %v6359
          %v6495 = vsub.f32 %v5535, %v6364
          %v6496 = vsub.f32 %v5536, %v6364
          %v6497 = vsub.f32 %v5537, %v6369
          %v6498 = vsub.f32 %v5538, %v6369
          %v6499 = vmul.f32 %v6371, 1.442695
          %v6500 = vpow.pop %v6499
          %v6501 = vmul.f32 %v6372, 1.442695
          %v6502 = vpow.pop %v6501
          %v6503 = vmul.f32 %v6373, 1.442695
          %v6504 = vpow.pop %v6503
          %v6505 = vmul.f32 %v6374, 1.442695
          %v6506 = vpow.pop %v6505
          %v6507 = vmul.f32 %v6375, 1.442695
          %v6508 = vpow.pop %v6507
          %v6509 = vmul.f32 %v6376, 1.442695
          %v6510 = vpow.pop %v6509
          %v6511 = vmul.f32 %v6377, 1.442695
          %v6512 = vpow.pop %v6511
          %v6513 = vmul.f32 %v6378, 1.442695
          %v6514 = vpow.pop %v6513
          %v6515 = vmul.f32 %v6379, 1.442695
          %v6516 = vpow.pop %v6515
          %v6517 = vmul.f32 %v6380, 1.442695
          %v6518 = vpow.pop %v6517
          %v6519 = vmul.f32 %v6381, 1.442695
          %v6520 = vpow.pop %v6519
          %v6521 = vmul.f32 %v6382, 1.442695
          %v6522 = vpow.pop %v6521
          %v6523 = vmul.f32 %v6383, 1.442695
          %v6524 = vpow.pop %v6523
          %v6525 = vmul.f32 %v6384, 1.442695
          %v6526 = vpow.pop %v6525
          %v6527 = vmul.f32 %v6385, 1.442695
          %v6528 = vpow.pop %v6527
          %v6529 = vmul.f32 %v6386, 1.442695
          %v6530 = vpow.pop %v6529
          %v6531 = vmul.f32 %v6387, 1.442695
          %v6532 = vpow.pop %v6531
          %v6533 = vmul.f32 %v6388, 1.442695
          %v6534 = vpow.pop %v6533
          %v6535 = vmul.f32 %v6389, 1.442695
          %v6536 = vpow.pop %v6535
          %v6537 = vmul.f32 %v6390, 1.442695
          %v6538 = vpow.pop %v6537
          %v6539 = vmul.f32 %v6391, 1.442695
          %v6540 = vpow.pop %v6539
          %v6541 = vmul.f32 %v6392, 1.442695
          %v6542 = vpow.pop %v6541
          %v6543 = vmul.f32 %v6393, 1.442695
          %v6544 = vpow.pop %v6543
          %v6545 = vmul.f32 %v6394, 1.442695
          %v6546 = vpow.pop %v6545
          %v6547 = vmul.f32 %v6395, 1.442695
          %v6548 = vpow.pop %v6547
          %v6549 = vmul.f32 %v6396, 1.442695
          %v6550 = vpow.pop %v6549
          %v6551 = vmul.f32 %v6397, 1.442695
          %v6552 = vpow.pop %v6551
          %v6553 = vmul.f32 %v6398, 1.442695
          %v6554 = vpow.pop %v6553
          %v6555 = vmul.f32 %v6399, 1.442695
          %v6556 = vpow.pop %v6555
          %v6557 = vmul.f32 %v6400, 1.442695
          %v6558 = vpow.pop %v6557
          %v6559 = vmul.f32 %v6401, 1.442695
          %v6560 = vpow.pop %v6559
          %v6561 = vmul.f32 %v6402, 1.442695
          %v6562 = vpow.pop %v6561
          %v6563 = vmul.f32 %v6403, 1.442695
          %v6564 = vpow.pop %v6563
          %v6565 = vmul.f32 %v6404, 1.442695
          %v6566 = vpow.pop %v6565
          %v6567 = vmul.f32 %v6405, 1.442695
          %v6568 = vpow.pop %v6567
          %v6569 = vmul.f32 %v6406, 1.442695
          %v6570 = vpow.pop %v6569
          %v6571 = vmul.f32 %v6407, 1.442695
          %v6572 = vpow.pop %v6571
          %v6573 = vmul.f32 %v6408, 1.442695
          %v6574 = vpow.pop %v6573
          %v6575 = vmul.f32 %v6409, 1.442695
          %v6576 = vpow.pop %v6575
          %v6577 = vmul.f32 %v6410, 1.442695
          %v6578 = vpow.pop %v6577
          %v6579 = vmul.f32 %v6411, 1.442695
          %v6580 = vpow.pop %v6579
          %v6581 = vmul.f32 %v6412, 1.442695
          %v6582 = vpow.pop %v6581
          %v6583 = vmul.f32 %v6413, 1.442695
          %v6584 = vpow.pop %v6583
          %v6585 = vmul.f32 %v6414, 1.442695
          %v6586 = vpow.pop %v6585
          %v6587 = vmul.f32 %v6415, 1.442695
          %v6588 = vpow.pop %v6587
          %v6589 = vmul.f32 %v6416, 1.442695
          %v6590 = vpow.pop %v6589
          %v6591 = vmul.f32 %v6417, 1.442695
          %v6592 = vpow.pop %v6591
          %v6593 = vmul.f32 %v6418, 1.442695
          %v6594 = vpow.pop %v6593
          %v6595 = vmul.f32 %v6419, 1.442695
          %v6596 = vpow.pop %v6595
          %v6597 = vmul.f32 %v6420, 1.442695
          %v6598 = vpow.pop %v6597
          %v6599 = vmul.f32 %v6421, 1.442695
          %v6600 = vpow.pop %v6599
          %v6601 = vmul.f32 %v6422, 1.442695
          %v6602 = vpow.pop %v6601
          %v6603 = vmul.f32 %v6423, 1.442695
          %v6604 = vpow.pop %v6603
          %v6605 = vmul.f32 %v6424, 1.442695
          %v6606 = vpow.pop %v6605
          %v6607 = vmul.f32 %v6425, 1.442695
          %v6608 = vpow.pop %v6607
          %v6609 = vmul.f32 %v6426, 1.442695
          %v6610 = vpow.pop %v6609
          %v6611 = vmul.f32 %v6427, 1.442695
          %v6612 = vpow.pop %v6611
          %v6613 = vmul.f32 %v6428, 1.442695
          %v6614 = vpow.pop %v6613
          %v6615 = vmul.f32 %v6429, 1.442695
          %v6616 = vpow.pop %v6615
          %v6617 = vmul.f32 %v6430, 1.442695
          %v6618 = vpow.pop %v6617
          %v6619 = vmul.f32 %v6431, 1.442695
          %v6620 = vpow.pop %v6619
          %v6621 = vmul.f32 %v6432, 1.442695
          %v6622 = vpow.pop %v6621
          %v6623 = vmul.f32 %v6433, 1.442695
          %v6624 = vpow.pop %v6623
          %v6625 = vmul.f32 %v6434, 1.442695
          %v6626 = vpow.pop %v6625
          %v6627 = vmul.f32 %v6435, 1.442695
          %v6628 = vpow.pop %v6627
          %v6629 = vmul.f32 %v6436, 1.442695
          %v6630 = vpow.pop %v6629
          %v6631 = vmul.f32 %v6437, 1.442695
          %v6632 = vpow.pop %v6631
          %v6633 = vmul.f32 %v6438, 1.442695
          %v6634 = vpow.pop %v6633
          %v6635 = vmul.f32 %v6439, 1.442695
          %v6636 = vpow.pop %v6635
          %v6637 = vmul.f32 %v6440, 1.442695
          %v6638 = vpow.pop %v6637
          %v6639 = vmul.f32 %v6441, 1.442695
          %v6640 = vpow.pop %v6639
          %v6641 = vmul.f32 %v6442, 1.442695
          %v6642 = vpow.pop %v6641
          %v6643 = vmul.f32 %v6443, 1.442695
          %v6644 = vpow.pop %v6643
          %v6645 = vmul.f32 %v6444, 1.442695
          %v6646 = vpow.pop %v6645
          %v6647 = vmul.f32 %v6445, 1.442695
          %v6648 = vpow.pop %v6647
          %v6649 = vmul.f32 %v6446, 1.442695
          %v6650 = vpow.pop %v6649
          %v6651 = vmul.f32 %v6447, 1.442695
          %v6652 = vpow.pop %v6651
          %v6653 = vmul.f32 %v6448, 1.442695
          %v6654 = vpow.pop %v6653
          %v6655 = vmul.f32 %v6449, 1.442695
          %v6656 = vpow.pop %v6655
          %v6657 = vmul.f32 %v6450, 1.442695
          %v6658 = vpow.pop %v6657
          %v6659 = vmul.f32 %v6451, 1.442695
          %v6660 = vpow.pop %v6659
          %v6661 = vmul.f32 %v6452, 1.442695
          %v6662 = vpow.pop %v6661
          %v6663 = vmul.f32 %v6453, 1.442695
          %v6664 = vpow.pop %v6663
          %v6665 = vmul.f32 %v6454, 1.442695
          %v6666 = vpow.pop %v6665
          %v6667 = vmul.f32 %v6455, 1.442695
          %v6668 = vpow.pop %v6667
          %v6669 = vmul.f32 %v6456, 1.442695
          %v6670 = vpow.pop %v6669
          %v6671 = vmul.f32 %v6457, 1.442695
          %v6672 = vpow.pop %v6671
          %v6673 = vmul.f32 %v6458, 1.442695
          %v6674 = vpow.pop %v6673
          %v6675 = vmul.f32 %v6459, 1.442695
          %v6676 = vpow.pop %v6675
          %v6677 = vmul.f32 %v6460, 1.442695
          %v6678 = vpow.pop %v6677
          %v6679 = vmul.f32 %v6461, 1.442695
          %v6680 = vpow.pop %v6679
          %v6681 = vmul.f32 %v6462, 1.442695
          %v6682 = vpow.pop %v6681
          %v6683 = vmul.f32 %v6463, 1.442695
          %v6684 = vpow.pop %v6683
          %v6685 = vmul.f32 %v6464, 1.442695
          %v6686 = vpow.pop %v6685
          %v6687 = vmul.f32 %v6465, 1.442695
          %v6688 = vpow.pop %v6687
          %v6689 = vmul.f32 %v6466, 1.442695
          %v6690 = vpow.pop %v6689
          %v6691 = vmul.f32 %v6467, 1.442695
          %v6692 = vpow.pop %v6691
          %v6693 = vmul.f32 %v6468, 1.442695
          %v6694 = vpow.pop %v6693
          %v6695 = vmul.f32 %v6469, 1.442695
          %v6696 = vpow.pop %v6695
          %v6697 = vmul.f32 %v6470, 1.442695
          %v6698 = vpow.pop %v6697
          %v6699 = vmul.f32 %v6471, 1.442695
          %v6700 = vpow.pop %v6699
          %v6701 = vmul.f32 %v6472, 1.442695
          %v6702 = vpow.pop %v6701
          %v6703 = vmul.f32 %v6473, 1.442695
          %v6704 = vpow.pop %v6703
          %v6705 = vmul.f32 %v6474, 1.442695
          %v6706 = vpow.pop %v6705
          %v6707 = vmul.f32 %v6475, 1.442695
          %v6708 = vpow.pop %v6707
          %v6709 = vmul.f32 %v6476, 1.442695
          %v6710 = vpow.pop %v6709
          %v6711 = vmul.f32 %v6477, 1.442695
          %v6712 = vpow.pop %v6711
          %v6713 = vmul.f32 %v6478, 1.442695
          %v6714 = vpow.pop %v6713
          %v6715 = vmul.f32 %v6479, 1.442695
          %v6716 = vpow.pop %v6715
          %v6717 = vmul.f32 %v6480, 1.442695
          %v6718 = vpow.pop %v6717
          %v6719 = vmul.f32 %v6481, 1.442695
          %v6720 = vpow.pop %v6719
          %v6721 = vmul.f32 %v6482, 1.442695
          %v6722 = vpow.pop %v6721
          %v6723 = vmul.f32 %v6483, 1.442695
          %v6724 = vpow.pop %v6723
          %v6725 = vmul.f32 %v6484, 1.442695
          %v6726 = vpow.pop %v6725
          %v6727 = vmul.f32 %v6485, 1.442695
          %v6728 = vpow.pop %v6727
          %v6729 = vmul.f32 %v6486, 1.442695
          %v6730 = vpow.pop %v6729
          %v6731 = vmul.f32 %v6487, 1.442695
          %v6732 = vpow.pop %v6731
          %v6733 = vmul.f32 %v6488, 1.442695
          %v6734 = vpow.pop %v6733
          %v6735 = vmul.f32 %v6489, 1.442695
          %v6736 = vpow.pop %v6735
          %v6737 = vmul.f32 %v6490, 1.442695
          %v6738 = vpow.pop %v6737
          %v6739 = vmul.f32 %v6491, 1.442695
          %v6740 = vpow.pop %v6739
          %v6741 = vmul.f32 %v6492, 1.442695
          %v6742 = vpow.pop %v6741
          %v6743 = vmul.f32 %v6493, 1.442695
          %v6744 = vpow.pop %v6743
          %v6745 = vmul.f32 %v6494, 1.442695
          %v6746 = vpow.pop %v6745
          %v6747 = vmul.f32 %v6495, 1.442695
          %v6748 = vpow.pop %v6747
          %v6749 = vmul.f32 %v6496, 1.442695
          %v6750 = vpow.pop %v6749
          %v6751 = vmul.f32 %v6497, 1.442695
          %v6752 = vpow.pop %v6751
          %v6753 = vmul.f32 %v6498, 1.442695
          %v6754 = vpow.pop %v6753
          %v6755 = vsel %vm5379, %v6500, 0.0
          %v6756 = vsel %vm5380, %v6502, 0.0
          %v6757 = vsel %vm5381, %v6504, 0.0
          %v6758 = vsel %vm5382, %v6506, 0.0
          %v6759 = vsel %vm5383, %v6508, 0.0
          %v6760 = vsel %vm5384, %v6510, 0.0
          %v6761 = vsel %vm5385, %v6512, 0.0
          %v6762 = vsel %vm5386, %v6514, 0.0
          %v6763 = vsel %vm5387, %v6516, 0.0
          %v6764 = vsel %vm5388, %v6518, 0.0
          %v6765 = vsel %vm5389, %v6520, 0.0
          %v6766 = vsel %vm5390, %v6522, 0.0
          %v6767 = vsel %vm5391, %v6524, 0.0
          %v6768 = vsel %vm5392, %v6526, 0.0
          %v6769 = vsel %vm5393, %v6528, 0.0
          %v6770 = vsel %vm5394, %v6530, 0.0
          %v6771 = vsel %vm5395, %v6532, 0.0
          %v6772 = vsel %vm5396, %v6534, 0.0
          %v6773 = vsel %vm5397, %v6536, 0.0
          %v6774 = vsel %vm5398, %v6538, 0.0
          %v6775 = vsel %vm5399, %v6540, 0.0
          %v6776 = vsel %vm5400, %v6542, 0.0
          %v6777 = vsel %vm5401, %v6544, 0.0
          %v6778 = vsel %vm5402, %v6546, 0.0
          %v6779 = vsel %vm5403, %v6548, 0.0
          %v6780 = vsel %vm5404, %v6550, 0.0
          %v6781 = vsel %vm5405, %v6552, 0.0
          %v6782 = vsel %vm5406, %v6554, 0.0
          %v6783 = vsel %vm5407, %v6556, 0.0
          %v6784 = vsel %vm5408, %v6558, 0.0
          %v6785 = vsel %vm5409, %v6560, 0.0
          %v6786 = vsel %vm5410, %v6562, 0.0
          %v6787 = vsel %vm5379, %v6564, 0.0
          %v6788 = vsel %vm5380, %v6566, 0.0
          %v6789 = vsel %vm5381, %v6568, 0.0
          %v6790 = vsel %vm5382, %v6570, 0.0
          %v6791 = vsel %vm5383, %v6572, 0.0
          %v6792 = vsel %vm5384, %v6574, 0.0
          %v6793 = vsel %vm5385, %v6576, 0.0
          %v6794 = vsel %vm5386, %v6578, 0.0
          %v6795 = vsel %vm5387, %v6580, 0.0
          %v6796 = vsel %vm5388, %v6582, 0.0
          %v6797 = vsel %vm5389, %v6584, 0.0
          %v6798 = vsel %vm5390, %v6586, 0.0
          %v6799 = vsel %vm5391, %v6588, 0.0
          %v6800 = vsel %vm5392, %v6590, 0.0
          %v6801 = vsel %vm5393, %v6592, 0.0
          %v6802 = vsel %vm5394, %v6594, 0.0
          %v6803 = vsel %vm5395, %v6596, 0.0
          %v6804 = vsel %vm5396, %v6598, 0.0
          %v6805 = vsel %vm5397, %v6600, 0.0
          %v6806 = vsel %vm5398, %v6602, 0.0
          %v6807 = vsel %vm5399, %v6604, 0.0
          %v6808 = vsel %vm5400, %v6606, 0.0
          %v6809 = vsel %vm5401, %v6608, 0.0
          %v6810 = vsel %vm5402, %v6610, 0.0
          %v6811 = vsel %vm5403, %v6612, 0.0
          %v6812 = vsel %vm5404, %v6614, 0.0
          %v6813 = vsel %vm5405, %v6616, 0.0
          %v6814 = vsel %vm5406, %v6618, 0.0
          %v6815 = vsel %vm5407, %v6620, 0.0
          %v6816 = vsel %vm5408, %v6622, 0.0
          %v6817 = vsel %vm5409, %v6624, 0.0
          %v6818 = vsel %vm5410, %v6626, 0.0
          %v6819 = vsel %vm5379, %v6628, 0.0
          %v6820 = vsel %vm5380, %v6630, 0.0
          %v6821 = vsel %vm5381, %v6632, 0.0
          %v6822 = vsel %vm5382, %v6634, 0.0
          %v6823 = vsel %vm5383, %v6636, 0.0
          %v6824 = vsel %vm5384, %v6638, 0.0
          %v6825 = vsel %vm5385, %v6640, 0.0
          %v6826 = vsel %vm5386, %v6642, 0.0
          %v6827 = vsel %vm5387, %v6644, 0.0
          %v6828 = vsel %vm5388, %v6646, 0.0
          %v6829 = vsel %vm5389, %v6648, 0.0
          %v6830 = vsel %vm5390, %v6650, 0.0
          %v6831 = vsel %vm5391, %v6652, 0.0
          %v6832 = vsel %vm5392, %v6654, 0.0
          %v6833 = vsel %vm5393, %v6656, 0.0
          %v6834 = vsel %vm5394, %v6658, 0.0
          %v6835 = vsel %vm5395, %v6660, 0.0
          %v6836 = vsel %vm5396, %v6662, 0.0
          %v6837 = vsel %vm5397, %v6664, 0.0
          %v6838 = vsel %vm5398, %v6666, 0.0
          %v6839 = vsel %vm5399, %v6668, 0.0
          %v6840 = vsel %vm5400, %v6670, 0.0
          %v6841 = vsel %vm5401, %v6672, 0.0
          %v6842 = vsel %vm5402, %v6674, 0.0
          %v6843 = vsel %vm5403, %v6676, 0.0
          %v6844 = vsel %vm5404, %v6678, 0.0
          %v6845 = vsel %vm5405, %v6680, 0.0
          %v6846 = vsel %vm5406, %v6682, 0.0
          %v6847 = vsel %vm5407, %v6684, 0.0
          %v6848 = vsel %vm5408, %v6686, 0.0
          %v6849 = vsel %vm5409, %v6688, 0.0
          %v6850 = vsel %vm5410, %v6690, 0.0
          %v6851 = vsel %vm5379, %v6692, 0.0
          %v6852 = vsel %vm5380, %v6694, 0.0
          %v6853 = vsel %vm5381, %v6696, 0.0
          %v6854 = vsel %vm5382, %v6698, 0.0
          %v6855 = vsel %vm5383, %v6700, 0.0
          %v6856 = vsel %vm5384, %v6702, 0.0
          %v6857 = vsel %vm5385, %v6704, 0.0
          %v6858 = vsel %vm5386, %v6706, 0.0
          %v6859 = vsel %vm5387, %v6708, 0.0
          %v6860 = vsel %vm5388, %v6710, 0.0
          %v6861 = vsel %vm5389, %v6712, 0.0
          %v6862 = vsel %vm5390, %v6714, 0.0
          %v6863 = vsel %vm5391, %v6716, 0.0
          %v6864 = vsel %vm5392, %v6718, 0.0
          %v6865 = vsel %vm5393, %v6720, 0.0
          %v6866 = vsel %vm5394, %v6722, 0.0
          %v6867 = vsel %vm5395, %v6724, 0.0
          %v6868 = vsel %vm5396, %v6726, 0.0
          %v6869 = vsel %vm5397, %v6728, 0.0
          %v6870 = vsel %vm5398, %v6730, 0.0
          %v6871 = vsel %vm5399, %v6732, 0.0
          %v6872 = vsel %vm5400, %v6734, 0.0
          %v6873 = vsel %vm5401, %v6736, 0.0
          %v6874 = vsel %vm5402, %v6738, 0.0
          %v6875 = vsel %vm5403, %v6740, 0.0
          %v6876 = vsel %vm5404, %v6742, 0.0
          %v6877 = vsel %vm5405, %v6744, 0.0
          %v6878 = vsel %vm5406, %v6746, 0.0
          %v6879 = vsel %vm5407, %v6748, 0.0
          %v6880 = vsel %vm5408, %v6750, 0.0
          %v6881 = vsel %vm5409, %v6752, 0.0
          %v6882 = vsel %vm5410, %v6754, 0.0
          %v6883 = vld [vmem:[#allocation3] sm:$0xff]
          %v6884 = vld [vmem:[#allocation3 + $0x8] sm:$0xff]
          %v6885 = vld [vmem:[#allocation3 + $0x10] sm:$0xff]
          %v6886 = vld [vmem:[#allocation3 + $0x18] sm:$0xff]
          %v6887 = vld [vmem:[#allocation3 + $0x20] sm:$0xff]
          %v6888 = vld [vmem:[#allocation3 + $0x28] sm:$0xff]
          %v6889 = vld [vmem:[#allocation3 + $0x30] sm:$0xff]
          %v6890 = vld [vmem:[#allocation3 + $0x38] sm:$0xff]
          %v6891 = vld [vmem:[#allocation3 + $0x40] sm:$0xff]
          %v6892 = vld [vmem:[#allocation3 + $0x48] sm:$0xff]
          %v6893 = vld [vmem:[#allocation3 + $0x50] sm:$0xff]
          %v6894 = vld [vmem:[#allocation3 + $0x58] sm:$0xff]
          %v6895 = vld [vmem:[#allocation3 + $0x60] sm:$0xff]
          %v6896 = vld [vmem:[#allocation3 + $0x68] sm:$0xff]
          %v6897 = vld [vmem:[#allocation3 + $0x70] sm:$0xff]
          %v6898 = vld [vmem:[#allocation3 + $0x78] sm:$0xff]
          %v6899 = vld [vmem:[#allocation3 + $0x80] sm:$0xff]
          %v6900 = vld [vmem:[#allocation3 + $0x88] sm:$0xff]
          %v6901 = vld [vmem:[#allocation3 + $0x90] sm:$0xff]
          %v6902 = vld [vmem:[#allocation3 + $0x98] sm:$0xff]
          %v6903 = vld [vmem:[#allocation3 + $0xa0] sm:$0xff]
          %v6904 = vld [vmem:[#allocation3 + $0xa8] sm:$0xff]
          %v6905 = vld [vmem:[#allocation3 + $0xb0] sm:$0xff]
          %v6906 = vld [vmem:[#allocation3 + $0xb8] sm:$0xff]
          %v6907 = vld [vmem:[#allocation3 + $0xc0] sm:$0xff]
          %v6908 = vld [vmem:[#allocation3 + $0xc8] sm:$0xff]
          %v6909 = vld [vmem:[#allocation3 + $0xd0] sm:$0xff]
          %v6910 = vld [vmem:[#allocation3 + $0xd8] sm:$0xff]
          %v6911 = vld [vmem:[#allocation3 + $0xe0] sm:$0xff]
          %v6912 = vld [vmem:[#allocation3 + $0xe8] sm:$0xff]
          %v6913 = vld [vmem:[#allocation3 + $0xf0] sm:$0xff]
          %v6914 = vld [vmem:[#allocation3 + $0xf8] sm:$0xff]
          %v6915 = vld [vmem:[#allocation3 + $0x100] sm:$0xff]
          %v6916 = vld [vmem:[#allocation3 + $0x108] sm:$0xff]
          %v6917 = vld [vmem:[#allocation3 + $0x110] sm:$0xff]
          %v6918 = vld [vmem:[#allocation3 + $0x118] sm:$0xff]
          %v6919 = vld [vmem:[#allocation3 + $0x120] sm:$0xff]
          %v6920 = vld [vmem:[#allocation3 + $0x128] sm:$0xff]
          %v6921 = vld [vmem:[#allocation3 + $0x130] sm:$0xff]
          %v6922 = vld [vmem:[#allocation3 + $0x138] sm:$0xff]
          %v6923 = vld [vmem:[#allocation3 + $0x140] sm:$0xff]
          %v6924 = vld [vmem:[#allocation3 + $0x148] sm:$0xff]
          %v6925 = vld [vmem:[#allocation3 + $0x150] sm:$0xff]
          %v6926 = vld [vmem:[#allocation3 + $0x158] sm:$0xff]
          %v6927 = vld [vmem:[#allocation3 + $0x160] sm:$0xff]
          %v6928 = vld [vmem:[#allocation3 + $0x168] sm:$0xff]
          %v6929 = vld [vmem:[#allocation3 + $0x170] sm:$0xff]
          %v6930 = vld [vmem:[#allocation3 + $0x178] sm:$0xff]
          %v6931 = vld [vmem:[#allocation3 + $0x180] sm:$0xff]
          %v6932 = vld [vmem:[#allocation3 + $0x188] sm:$0xff]
          %v6933 = vld [vmem:[#allocation3 + $0x190] sm:$0xff]
          %v6934 = vld [vmem:[#allocation3 + $0x198] sm:$0xff]
          %v6935 = vld [vmem:[#allocation3 + $0x1a0] sm:$0xff]
          %v6936 = vld [vmem:[#allocation3 + $0x1a8] sm:$0xff]
          %v6937 = vld [vmem:[#allocation3 + $0x1b0] sm:$0xff]
          %v6938 = vld [vmem:[#allocation3 + $0x1b8] sm:$0xff]
          %v6939 = vld [vmem:[#allocation3 + $0x1c0] sm:$0xff]
          %v6940 = vld [vmem:[#allocation3 + $0x1c8] sm:$0xff]
          %v6941 = vld [vmem:[#allocation3 + $0x1d0] sm:$0xff]
          %v6942 = vld [vmem:[#allocation3 + $0x1d8] sm:$0xff]
          %v6943 = vld [vmem:[#allocation3 + $0x1e0] sm:$0xff]
          %v6944 = vld [vmem:[#allocation3 + $0x1e8] sm:$0xff]
          %v6945 = vld [vmem:[#allocation3 + $0x1f0] sm:$0xff]
          %v6946 = vld [vmem:[#allocation3 + $0x1f8] sm:$0xff]
          %v6947 = vmul.f32 %v5924, %v6883
          %v6948 = vmul.f32 %v5926, %v6884
          %v6949 = vmul.f32 %v5928, %v6885
          %v6950 = vmul.f32 %v5930, %v6886
          %v6951 = vmul.f32 %v5932, %v6887
          %v6952 = vmul.f32 %v5934, %v6888
          %v6953 = vmul.f32 %v5936, %v6889
          %v6954 = vmul.f32 %v5938, %v6890
          %v6955 = vmul.f32 %v5940, %v6891
          %v6956 = vmul.f32 %v5942, %v6892
          %v6957 = vmul.f32 %v5944, %v6893
          %v6958 = vmul.f32 %v5946, %v6894
          %v6959 = vmul.f32 %v5948, %v6895
          %v6960 = vmul.f32 %v5950, %v6896
          %v6961 = vmul.f32 %v5952, %v6897
          %v6962 = vmul.f32 %v5954, %v6898
          %v6963 = vmul.f32 %v5956, %v6899
          %v6964 = vmul.f32 %v5958, %v6900
          %v6965 = vmul.f32 %v5960, %v6901
          %v6966 = vmul.f32 %v5962, %v6902
          %v6967 = vmul.f32 %v5964, %v6903
          %v6968 = vmul.f32 %v5966, %v6904
          %v6969 = vmul.f32 %v5968, %v6905
          %v6970 = vmul.f32 %v5970, %v6906
          %v6971 = vmul.f32 %v5972, %v6907
          %v6972 = vmul.f32 %v5974, %v6908
          %v6973 = vmul.f32 %v5976, %v6909
          %v6974 = vmul.f32 %v5978, %v6910
          %v6975 = vmul.f32 %v5980, %v6911
          %v6976 = vmul.f32 %v5982, %v6912
          %v6977 = vmul.f32 %v5984, %v6913
          %v6978 = vmul.f32 %v5986, %v6914
          %v6979 = vmul.f32 %v5988, %v6915
          %v6980 = vmul.f32 %v5990, %v6916
          %v6981 = vmul.f32 %v5992, %v6917
          %v6982 = vmul.f32 %v5994, %v6918
          %v6983 = vmul.f32 %v5996, %v6919
          %v6984 = vmul.f32 %v5998, %v6920
          %v6985 = vmul.f32 %v6000, %v6921
          %v6986 = vmul.f32 %v6002, %v6922
          %v6987 = vmul.f32 %v6004, %v6923
          %v6988 = vmul.f32 %v6006, %v6924
          %v6989 = vmul.f32 %v6008, %v6925
          %v6990 = vmul.f32 %v6010, %v6926
          %v6991 = vmul.f32 %v6012, %v6927
          %v6992 = vmul.f32 %v6014, %v6928
          %v6993 = vmul.f32 %v6016, %v6929
          %v6994 = vmul.f32 %v6018, %v6930
          %v6995 = vmul.f32 %v6020, %v6931
          %v6996 = vmul.f32 %v6022, %v6932
          %v6997 = vmul.f32 %v6024, %v6933
          %v6998 = vmul.f32 %v6026, %v6934
          %v6999 = vmul.f32 %v6028, %v6935
          %v7000 = vmul.f32 %v6030, %v6936
          %v7001 = vmul.f32 %v6032, %v6937
          %v7002 = vmul.f32 %v6034, %v6938
          %v7003 = vmul.f32 %v6036, %v6939
          %v7004 = vmul.f32 %v6038, %v6940
          %v7005 = vmul.f32 %v6040, %v6941
          %v7006 = vmul.f32 %v6042, %v6942
          %v7007 = vmul.f32 %v6044, %v6943
          %v7008 = vmul.f32 %v6046, %v6944
          %v7009 = vmul.f32 %v6048, %v6945
          %v7010 = vmul.f32 %v6050, %v6946
          %v7011 = vadd.f32 %v6755, %v6756
          %7012 = vadd.xlane.f32.xlu0 %v7011
          %v7013 = vpop.xlane.xlu0 %7012
          %v7014 = vadd.f32 %v6757, %v6758
          %7015 = vadd.xlane.f32.xlu0 %v7014
          %v7016 = vpop.xlane.xlu0 %7015
          %v7017 = vadd.f32 %v6759, %v6760
          %7018 = vadd.xlane.f32.xlu0 %v7017
          %v7019 = vpop.xlane.xlu0 %7018
          %v7020 = vadd.f32 %v6761, %v6762
          %7021 = vadd.xlane.f32.xlu0 %v7020
          %v7022 = vpop.xlane.xlu0 %7021
          %v7023 = vadd.f32 %v6763, %v6764
          %7024 = vadd.xlane.f32.xlu0 %v7023
          %v7025 = vpop.xlane.xlu0 %7024
          %v7026 = vadd.f32 %v6765, %v6766
          %7027 = vadd.xlane.f32.xlu0 %v7026
          %v7028 = vpop.xlane.xlu0 %7027
          %v7029 = vadd.f32 %v6767, %v6768
          %7030 = vadd.xlane.f32.xlu0 %v7029
          %v7031 = vpop.xlane.xlu0 %7030
          %v7032 = vadd.f32 %v6769, %v6770
          %7033 = vadd.xlane.f32.xlu0 %v7032
          %v7034 = vpop.xlane.xlu0 %7033
          %v7035 = vadd.f32 %v6771, %v6772
          %7036 = vadd.xlane.f32.xlu0 %v7035
          %v7037 = vpop.xlane.xlu0 %7036
          %v7038 = vadd.f32 %v6773, %v6774
          %7039 = vadd.xlane.f32.xlu0 %v7038
          %v7040 = vpop.xlane.xlu0 %7039
          %v7041 = vadd.f32 %v6775, %v6776
          %7042 = vadd.xlane.f32.xlu0 %v7041
          %v7043 = vpop.xlane.xlu0 %7042
          %v7044 = vadd.f32 %v6777, %v6778
          %7045 = vadd.xlane.f32.xlu0 %v7044
          %v7046 = vpop.xlane.xlu0 %7045
          %v7047 = vadd.f32 %v6779, %v6780
          %7048 = vadd.xlane.f32.xlu0 %v7047
          %v7049 = vpop.xlane.xlu0 %7048
          %v7050 = vadd.f32 %v6781, %v6782
          %7051 = vadd.xlane.f32.xlu0 %v7050
          %v7052 = vpop.xlane.xlu0 %7051
          %v7053 = vadd.f32 %v6783, %v6784
          %7054 = vadd.xlane.f32.xlu0 %v7053
          %v7055 = vpop.xlane.xlu0 %7054
          %v7056 = vadd.f32 %v6785, %v6786
          %7057 = vadd.xlane.f32.xlu0 %v7056
          %v7058 = vpop.xlane.xlu0 %7057
          %v7059 = vadd.f32 %v6787, %v6788
          %7060 = vadd.xlane.f32.xlu0 %v7059
          %v7061 = vpop.xlane.xlu0 %7060
          %v7062 = vadd.f32 %v6789, %v6790
          %7063 = vadd.xlane.f32.xlu0 %v7062
          %v7064 = vpop.xlane.xlu0 %7063
          %v7065 = vadd.f32 %v6791, %v6792
          %7066 = vadd.xlane.f32.xlu0 %v7065
          %v7067 = vpop.xlane.xlu0 %7066
          %v7068 = vadd.f32 %v6793, %v6794
          %7069 = vadd.xlane.f32.xlu0 %v7068
          %v7070 = vpop.xlane.xlu0 %7069
          %v7071 = vadd.f32 %v6795, %v6796
          %7072 = vadd.xlane.f32.xlu0 %v7071
          %v7073 = vpop.xlane.xlu0 %7072
          %v7074 = vadd.f32 %v6797, %v6798
          %7075 = vadd.xlane.f32.xlu0 %v7074
          %v7076 = vpop.xlane.xlu0 %7075
          %v7077 = vadd.f32 %v6799, %v6800
          %7078 = vadd.xlane.f32.xlu0 %v7077
          %v7079 = vpop.xlane.xlu0 %7078
          %v7080 = vadd.f32 %v6801, %v6802
          %7081 = vadd.xlane.f32.xlu0 %v7080
          %v7082 = vpop.xlane.xlu0 %7081
          %v7083 = vadd.f32 %v6803, %v6804
          %7084 = vadd.xlane.f32.xlu0 %v7083
          %v7085 = vpop.xlane.xlu0 %7084
          %v7086 = vadd.f32 %v6805, %v6806
          %7087 = vadd.xlane.f32.xlu0 %v7086
          %v7088 = vpop.xlane.xlu0 %7087
          %v7089 = vadd.f32 %v6807, %v6808
          %7090 = vadd.xlane.f32.xlu0 %v7089
          %v7091 = vpop.xlane.xlu0 %7090
          %v7092 = vadd.f32 %v6809, %v6810
          %7093 = vadd.xlane.f32.xlu0 %v7092
          %v7094 = vpop.xlane.xlu0 %7093
          %v7095 = vadd.f32 %v6811, %v6812
          %7096 = vadd.xlane.f32.xlu0 %v7095
          %v7097 = vpop.xlane.xlu0 %7096
          %v7098 = vadd.f32 %v6813, %v6814
          %7099 = vadd.xlane.f32.xlu0 %v7098
          %v7100 = vpop.xlane.xlu0 %7099
          %v7101 = vadd.f32 %v6815, %v6816
          %7102 = vadd.xlane.f32.xlu0 %v7101
          %v7103 = vpop.xlane.xlu0 %7102
          %v7104 = vadd.f32 %v6817, %v6818
          %7105 = vadd.xlane.f32.xlu0 %v7104
          %v7106 = vpop.xlane.xlu0 %7105
          %v7107 = vadd.f32 %v6819, %v6820
          %7108 = vadd.xlane.f32.xlu0 %v7107
          %v7109 = vpop.xlane.xlu0 %7108
          %v7110 = vadd.f32 %v6821, %v6822
          %7111 = vadd.xlane.f32.xlu0 %v7110
          %v7112 = vpop.xlane.xlu0 %7111
          %v7113 = vadd.f32 %v6823, %v6824
          %7114 = vadd.xlane.f32.xlu0 %v7113
          %v7115 = vpop.xlane.xlu0 %7114
          %v7116 = vadd.f32 %v6825, %v6826
          %7117 = vadd.xlane.f32.xlu0 %v7116
          %v7118 = vpop.xlane.xlu0 %7117
          %v7119 = vadd.f32 %v6827, %v6828
          %7120 = vadd.xlane.f32.xlu0 %v7119
          %v7121 = vpop.xlane.xlu0 %7120
          %v7122 = vadd.f32 %v6829, %v6830
          %7123 = vadd.xlane.f32.xlu0 %v7122
          %v7124 = vpop.xlane.xlu0 %7123
          %v7125 = vadd.f32 %v6831, %v6832
          %7126 = vadd.xlane.f32.xlu0 %v7125
          %v7127 = vpop.xlane.xlu0 %7126
          %v7128 = vadd.f32 %v6833, %v6834
          %7129 = vadd.xlane.f32.xlu0 %v7128
          %v7130 = vpop.xlane.xlu0 %7129
          %v7131 = vadd.f32 %v6835, %v6836
          %7132 = vadd.xlane.f32.xlu0 %v7131
          %v7133 = vpop.xlane.xlu0 %7132
          %v7134 = vadd.f32 %v6837, %v6838
          %7135 = vadd.xlane.f32.xlu0 %v7134
          %v7136 = vpop.xlane.xlu0 %7135
          %v7137 = vadd.f32 %v6839, %v6840
          %7138 = vadd.xlane.f32.xlu0 %v7137
          %v7139 = vpop.xlane.xlu0 %7138
          %v7140 = vadd.f32 %v6841, %v6842
          %7141 = vadd.xlane.f32.xlu0 %v7140
          %v7142 = vpop.xlane.xlu0 %7141
          %v7143 = vadd.f32 %v6843, %v6844
          %7144 = vadd.xlane.f32.xlu0 %v7143
          %v7145 = vpop.xlane.xlu0 %7144
          %v7146 = vadd.f32 %v6845, %v6846
          %7147 = vadd.xlane.f32.xlu0 %v7146
          %v7148 = vpop.xlane.xlu0 %7147
          %v7149 = vadd.f32 %v6847, %v6848
          %7150 = vadd.xlane.f32.xlu0 %v7149
          %v7151 = vpop.xlane.xlu0 %7150
          %v7152 = vadd.f32 %v6849, %v6850
          %7153 = vadd.xlane.f32.xlu0 %v7152
          %v7154 = vpop.xlane.xlu0 %7153
          %v7155 = vadd.f32 %v6851, %v6852
          %7156 = vadd.xlane.f32.xlu0 %v7155
          %v7157 = vpop.xlane.xlu0 %7156
          %v7158 = vadd.f32 %v6853, %v6854
          %7159 = vadd.xlane.f32.xlu0 %v7158
          %v7160 = vpop.xlane.xlu0 %7159
          %v7161 = vadd.f32 %v6855, %v6856
          %7162 = vadd.xlane.f32.xlu0 %v7161
          %v7163 = vpop.xlane.xlu0 %7162
          %v7164 = vadd.f32 %v6857, %v6858
          %7165 = vadd.xlane.f32.xlu0 %v7164
          %v7166 = vpop.xlane.xlu0 %7165
          %v7167 = vadd.f32 %v6859, %v6860
          %7168 = vadd.xlane.f32.xlu0 %v7167
          %v7169 = vpop.xlane.xlu0 %7168
          %v7170 = vadd.f32 %v6861, %v6862
          %7171 = vadd.xlane.f32.xlu0 %v7170
          %v7172 = vpop.xlane.xlu0 %7171
          %v7173 = vadd.f32 %v6863, %v6864
          %7174 = vadd.xlane.f32.xlu0 %v7173
          %v7175 = vpop.xlane.xlu0 %7174
          %v7176 = vadd.f32 %v6865, %v6866
          %7177 = vadd.xlane.f32.xlu0 %v7176
          %v7178 = vpop.xlane.xlu0 %7177
          %v7179 = vadd.f32 %v6867, %v6868
          %7180 = vadd.xlane.f32.xlu0 %v7179
          %v7181 = vpop.xlane.xlu0 %7180
          %v7182 = vadd.f32 %v6869, %v6870
          %7183 = vadd.xlane.f32.xlu0 %v7182
          %v7184 = vpop.xlane.xlu0 %7183
          %v7185 = vadd.f32 %v6871, %v6872
          %7186 = vadd.xlane.f32.xlu0 %v7185
          %v7187 = vpop.xlane.xlu0 %7186
          %v7188 = vadd.f32 %v6873, %v6874
          %7189 = vadd.xlane.f32.xlu0 %v7188
          %v7190 = vpop.xlane.xlu0 %7189
          %v7191 = vadd.f32 %v6875, %v6876
          %7192 = vadd.xlane.f32.xlu0 %v7191
          %v7193 = vpop.xlane.xlu0 %7192
          %v7194 = vadd.f32 %v6877, %v6878
          %7195 = vadd.xlane.f32.xlu0 %v7194
          %v7196 = vpop.xlane.xlu0 %7195
          %v7197 = vadd.f32 %v6879, %v6880
          %7198 = vadd.xlane.f32.xlu0 %v7197
          %v7199 = vpop.xlane.xlu0 %7198
          %v7200 = vadd.f32 %v6881, %v6882
          %7201 = vadd.xlane.f32.xlu0 %v7200
          %v7202 = vpop.xlane.xlu0 %7201
          %v7203 = vadd.f32 %v6947, %v7013
          %v7204 = vadd.f32 %v6948, %v7016
          %v7205 = vadd.f32 %v6949, %v7019
          %v7206 = vadd.f32 %v6950, %v7022
          %v7207 = vadd.f32 %v6951, %v7025
          %v7208 = vadd.f32 %v6952, %v7028
          %v7209 = vadd.f32 %v6953, %v7031
          %v7210 = vadd.f32 %v6954, %v7034
          %v7211 = vadd.f32 %v6955, %v7037
          %v7212 = vadd.f32 %v6956, %v7040
          %v7213 = vadd.f32 %v6957, %v7043
          %v7214 = vadd.f32 %v6958, %v7046
          %v7215 = vadd.f32 %v6959, %v7049
          %v7216 = vadd.f32 %v6960, %v7052
          %v7217 = vadd.f32 %v6961, %v7055
          %v7218 = vadd.f32 %v6962, %v7058
          %v7219 = vadd.f32 %v6963, %v7061
          %v7220 = vadd.f32 %v6964, %v7064
          %v7221 = vadd.f32 %v6965, %v7067
          %v7222 = vadd.f32 %v6966, %v7070
          %v7223 = vadd.f32 %v6967, %v7073
          %v7224 = vadd.f32 %v6968, %v7076
          %v7225 = vadd.f32 %v6969, %v7079
          %v7226 = vadd.f32 %v6970, %v7082
          %v7227 = vadd.f32 %v6971, %v7085
          %v7228 = vadd.f32 %v6972, %v7088
          %v7229 = vadd.f32 %v6973, %v7091
          %v7230 = vadd.f32 %v6974, %v7094
          %v7231 = vadd.f32 %v6975, %v7097
          %v7232 = vadd.f32 %v6976, %v7100
          %v7233 = vadd.f32 %v6977, %v7103
          %v7234 = vadd.f32 %v6978, %v7106
          %v7235 = vadd.f32 %v6979, %v7109
          %v7236 = vadd.f32 %v6980, %v7112
          %v7237 = vadd.f32 %v6981, %v7115
          %v7238 = vadd.f32 %v6982, %v7118
          %v7239 = vadd.f32 %v6983, %v7121
          %v7240 = vadd.f32 %v6984, %v7124
          %v7241 = vadd.f32 %v6985, %v7127
          %v7242 = vadd.f32 %v6986, %v7130
          %v7243 = vadd.f32 %v6987, %v7133
          %v7244 = vadd.f32 %v6988, %v7136
          %v7245 = vadd.f32 %v6989, %v7139
          %v7246 = vadd.f32 %v6990, %v7142
          %v7247 = vadd.f32 %v6991, %v7145
          %v7248 = vadd.f32 %v6992, %v7148
          %v7249 = vadd.f32 %v6993, %v7151
          %v7250 = vadd.f32 %v6994, %v7154
          %v7251 = vadd.f32 %v6995, %v7157
          %v7252 = vadd.f32 %v6996, %v7160
          %v7253 = vadd.f32 %v6997, %v7163
          %v7254 = vadd.f32 %v6998, %v7166
          %v7255 = vadd.f32 %v6999, %v7169
          %v7256 = vadd.f32 %v7000, %v7172
          %v7257 = vadd.f32 %v7001, %v7175
          %v7258 = vadd.f32 %v7002, %v7178
          %v7259 = vadd.f32 %v7003, %v7181
          %v7260 = vadd.f32 %v7004, %v7184
          %v7261 = vadd.f32 %v7005, %v7187
          %v7262 = vadd.f32 %v7006, %v7190
          %v7263 = vadd.f32 %v7007, %v7193
          %v7264 = vadd.f32 %v7008, %v7196
          %v7265 = vadd.f32 %v7009, %v7199
          %v7266 = vadd.f32 %v7010, %v7202
          %vm7267 = vcmask 7168
          %7268 = vst.msk [vmem:[#allocation3] sm:$0xff] %vm7267, %v7203
          %7269 = vst.msk [vmem:[#allocation3 + $0x8] sm:$0xff] %vm7267, %v7204
          %7270 = vst.msk [vmem:[#allocation3 + $0x10] sm:$0xff] %vm7267, %v7205
          %7271 = vst.msk [vmem:[#allocation3 + $0x18] sm:$0xff] %vm7267, %v7206
          %7272 = vst.msk [vmem:[#allocation3 + $0x20] sm:$0xff] %vm7267, %v7207
          %7273 = vst.msk [vmem:[#allocation3 + $0x28] sm:$0xff] %vm7267, %v7208
          %7274 = vst.msk [vmem:[#allocation3 + $0x30] sm:$0xff] %vm7267, %v7209
          %7275 = vst.msk [vmem:[#allocation3 + $0x38] sm:$0xff] %vm7267, %v7210
          %7276 = vst.msk [vmem:[#allocation3 + $0x40] sm:$0xff] %vm7267, %v7211
          %7277 = vst.msk [vmem:[#allocation3 + $0x48] sm:$0xff] %vm7267, %v7212
          %7278 = vst.msk [vmem:[#allocation3 + $0x50] sm:$0xff] %vm7267, %v7213
          %7279 = vst.msk [vmem:[#allocation3 + $0x58] sm:$0xff] %vm7267, %v7214
          %7280 = vst.msk [vmem:[#allocation3 + $0x60] sm:$0xff] %vm7267, %v7215
          %7281 = vst.msk [vmem:[#allocation3 + $0x68] sm:$0xff] %vm7267, %v7216
          %7282 = vst.msk [vmem:[#allocation3 + $0x70] sm:$0xff] %vm7267, %v7217
          %7283 = vst.msk [vmem:[#allocation3 + $0x78] sm:$0xff] %vm7267, %v7218
          %7284 = vst.msk [vmem:[#allocation3 + $0x80] sm:$0xff] %vm7267, %v7219
          %7285 = vst.msk [vmem:[#allocation3 + $0x88] sm:$0xff] %vm7267, %v7220
          %7286 = vst.msk [vmem:[#allocation3 + $0x90] sm:$0xff] %vm7267, %v7221
          %7287 = vst.msk [vmem:[#allocation3 + $0x98] sm:$0xff] %vm7267, %v7222
          %7288 = vst.msk [vmem:[#allocation3 + $0xa0] sm:$0xff] %vm7267, %v7223
          %7289 = vst.msk [vmem:[#allocation3 + $0xa8] sm:$0xff] %vm7267, %v7224
          %7290 = vst.msk [vmem:[#allocation3 + $0xb0] sm:$0xff] %vm7267, %v7225
          %7291 = vst.msk [vmem:[#allocation3 + $0xb8] sm:$0xff] %vm7267, %v7226
          %7292 = vst.msk [vmem:[#allocation3 + $0xc0] sm:$0xff] %vm7267, %v7227
          %7293 = vst.msk [vmem:[#allocation3 + $0xc8] sm:$0xff] %vm7267, %v7228
          %7294 = vst.msk [vmem:[#allocation3 + $0xd0] sm:$0xff] %vm7267, %v7229
          %7295 = vst.msk [vmem:[#allocation3 + $0xd8] sm:$0xff] %vm7267, %v7230
          %7296 = vst.msk [vmem:[#allocation3 + $0xe0] sm:$0xff] %vm7267, %v7231
          %7297 = vst.msk [vmem:[#allocation3 + $0xe8] sm:$0xff] %vm7267, %v7232
          %7298 = vst.msk [vmem:[#allocation3 + $0xf0] sm:$0xff] %vm7267, %v7233
          %7299 = vst.msk [vmem:[#allocation3 + $0xf8] sm:$0xff] %vm7267, %v7234
          %7300 = vst.msk [vmem:[#allocation3 + $0x100] sm:$0xff] %vm7267, %v7235
          %7301 = vst.msk [vmem:[#allocation3 + $0x108] sm:$0xff] %vm7267, %v7236
          %7302 = vst.msk [vmem:[#allocation3 + $0x110] sm:$0xff] %vm7267, %v7237
          %7303 = vst.msk [vmem:[#allocation3 + $0x118] sm:$0xff] %vm7267, %v7238
          %7304 = vst.msk [vmem:[#allocation3 + $0x120] sm:$0xff] %vm7267, %v7239
          %7305 = vst.msk [vmem:[#allocation3 + $0x128] sm:$0xff] %vm7267, %v7240
          %7306 = vst.msk [vmem:[#allocation3 + $0x130] sm:$0xff] %vm7267, %v7241
          %7307 = vst.msk [vmem:[#allocation3 + $0x138] sm:$0xff] %vm7267, %v7242
          %7308 = vst.msk [vmem:[#allocation3 + $0x140] sm:$0xff] %vm7267, %v7243
          %7309 = vst.msk [vmem:[#allocation3 + $0x148] sm:$0xff] %vm7267, %v7244
          %7310 = vst.msk [vmem:[#allocation3 + $0x150] sm:$0xff] %vm7267, %v7245
          %7311 = vst.msk [vmem:[#allocation3 + $0x158] sm:$0xff] %vm7267, %v7246
          %7312 = vst.msk [vmem:[#allocation3 + $0x160] sm:$0xff] %vm7267, %v7247
          %7313 = vst.msk [vmem:[#allocation3 + $0x168] sm:$0xff] %vm7267, %v7248
          %7314 = vst.msk [vmem:[#allocation3 + $0x170] sm:$0xff] %vm7267, %v7249
          %7315 = vst.msk [vmem:[#allocation3 + $0x178] sm:$0xff] %vm7267, %v7250
          %7316 = vst.msk [vmem:[#allocation3 + $0x180] sm:$0xff] %vm7267, %v7251
          %7317 = vst.msk [vmem:[#allocation3 + $0x188] sm:$0xff] %vm7267, %v7252
          %7318 = vst.msk [vmem:[#allocation3 + $0x190] sm:$0xff] %vm7267, %v7253
          %7319 = vst.msk [vmem:[#allocation3 + $0x198] sm:$0xff] %vm7267, %v7254
          %7320 = vst.msk [vmem:[#allocation3 + $0x1a0] sm:$0xff] %vm7267, %v7255
          %7321 = vst.msk [vmem:[#allocation3 + $0x1a8] sm:$0xff] %vm7267, %v7256
          %7322 = vst.msk [vmem:[#allocation3 + $0x1b0] sm:$0xff] %vm7267, %v7257
          %7323 = vst.msk [vmem:[#allocation3 + $0x1b8] sm:$0xff] %vm7267, %v7258
          %7324 = vst.msk [vmem:[#allocation3 + $0x1c0] sm:$0xff] %vm7267, %v7259
          %7325 = vst.msk [vmem:[#allocation3 + $0x1c8] sm:$0xff] %vm7267, %v7260
          %7326 = vst.msk [vmem:[#allocation3 + $0x1d0] sm:$0xff] %vm7267, %v7261
          %7327 = vst.msk [vmem:[#allocation3 + $0x1d8] sm:$0xff] %vm7267, %v7262
          %7328 = vst.msk [vmem:[#allocation3 + $0x1e0] sm:$0xff] %vm7267, %v7263
          %7329 = vst.msk [vmem:[#allocation3 + $0x1e8] sm:$0xff] %vm7267, %v7264
          %7330 = vst.msk [vmem:[#allocation3 + $0x1f0] sm:$0xff] %vm7267, %v7265
          %7331 = vst.msk [vmem:[#allocation3 + $0x1f8] sm:$0xff] %vm7267, %v7266
          %v7332 = vld [vmem:[#allocation4] sm:$0xff]
          %v7333 = vld [vmem:[#allocation4 + $0x8] sm:$0xff]
          %v7334 = vld [vmem:[#allocation4 + $0x10] sm:$0xff]
          %v7335 = vld [vmem:[#allocation4 + $0x18] sm:$0xff]
          %v7336 = vld [vmem:[#allocation4 + $0x20] sm:$0xff]
          %v7337 = vld [vmem:[#allocation4 + $0x28] sm:$0xff]
          %v7338 = vld [vmem:[#allocation4 + $0x30] sm:$0xff]
          %v7339 = vld [vmem:[#allocation4 + $0x38] sm:$0xff]
          %v7340 = vld [vmem:[#allocation4 + $0x40] sm:$0xff]
          %v7341 = vld [vmem:[#allocation4 + $0x48] sm:$0xff]
          %v7342 = vld [vmem:[#allocation4 + $0x50] sm:$0xff]
          %v7343 = vld [vmem:[#allocation4 + $0x58] sm:$0xff]
          %v7344 = vld [vmem:[#allocation4 + $0x60] sm:$0xff]
          %v7345 = vld [vmem:[#allocation4 + $0x68] sm:$0xff]
          %v7346 = vld [vmem:[#allocation4 + $0x70] sm:$0xff]
          %v7347 = vld [vmem:[#allocation4 + $0x78] sm:$0xff]
          %v7348 = vld [vmem:[#allocation4 + $0x80] sm:$0xff]
          %v7349 = vld [vmem:[#allocation4 + $0x88] sm:$0xff]
          %v7350 = vld [vmem:[#allocation4 + $0x90] sm:$0xff]
          %v7351 = vld [vmem:[#allocation4 + $0x98] sm:$0xff]
          %v7352 = vld [vmem:[#allocation4 + $0xa0] sm:$0xff]
          %v7353 = vld [vmem:[#allocation4 + $0xa8] sm:$0xff]
          %v7354 = vld [vmem:[#allocation4 + $0xb0] sm:$0xff]
          %v7355 = vld [vmem:[#allocation4 + $0xb8] sm:$0xff]
          %v7356 = vld [vmem:[#allocation4 + $0xc0] sm:$0xff]
          %v7357 = vld [vmem:[#allocation4 + $0xc8] sm:$0xff]
          %v7358 = vld [vmem:[#allocation4 + $0xd0] sm:$0xff]
          %v7359 = vld [vmem:[#allocation4 + $0xd8] sm:$0xff]
          %v7360 = vld [vmem:[#allocation4 + $0xe0] sm:$0xff]
          %v7361 = vld [vmem:[#allocation4 + $0xe8] sm:$0xff]
          %v7362 = vld [vmem:[#allocation4 + $0xf0] sm:$0xff]
          %v7363 = vld [vmem:[#allocation4 + $0xf8] sm:$0xff]
          %v7364 = vld [vmem:[#allocation4 + $0x100] sm:$0xff]
          %v7365 = vld [vmem:[#allocation4 + $0x108] sm:$0xff]
          %v7366 = vld [vmem:[#allocation4 + $0x110] sm:$0xff]
          %v7367 = vld [vmem:[#allocation4 + $0x118] sm:$0xff]
          %v7368 = vld [vmem:[#allocation4 + $0x120] sm:$0xff]
          %v7369 = vld [vmem:[#allocation4 + $0x128] sm:$0xff]
          %v7370 = vld [vmem:[#allocation4 + $0x130] sm:$0xff]
          %v7371 = vld [vmem:[#allocation4 + $0x138] sm:$0xff]
          %v7372 = vld [vmem:[#allocation4 + $0x140] sm:$0xff]
          %v7373 = vld [vmem:[#allocation4 + $0x148] sm:$0xff]
          %v7374 = vld [vmem:[#allocation4 + $0x150] sm:$0xff]
          %v7375 = vld [vmem:[#allocation4 + $0x158] sm:$0xff]
          %v7376 = vld [vmem:[#allocation4 + $0x160] sm:$0xff]
          %v7377 = vld [vmem:[#allocation4 + $0x168] sm:$0xff]
          %v7378 = vld [vmem:[#allocation4 + $0x170] sm:$0xff]
          %v7379 = vld [vmem:[#allocation4 + $0x178] sm:$0xff]
          %v7380 = vld [vmem:[#allocation4 + $0x180] sm:$0xff]
          %v7381 = vld [vmem:[#allocation4 + $0x188] sm:$0xff]
          %v7382 = vld [vmem:[#allocation4 + $0x190] sm:$0xff]
          %v7383 = vld [vmem:[#allocation4 + $0x198] sm:$0xff]
          %v7384 = vld [vmem:[#allocation4 + $0x1a0] sm:$0xff]
          %v7385 = vld [vmem:[#allocation4 + $0x1a8] sm:$0xff]
          %v7386 = vld [vmem:[#allocation4 + $0x1b0] sm:$0xff]
          %v7387 = vld [vmem:[#allocation4 + $0x1b8] sm:$0xff]
          %v7388 = vld [vmem:[#allocation4 + $0x1c0] sm:$0xff]
          %v7389 = vld [vmem:[#allocation4 + $0x1c8] sm:$0xff]
          %v7390 = vld [vmem:[#allocation4 + $0x1d0] sm:$0xff]
          %v7391 = vld [vmem:[#allocation4 + $0x1d8] sm:$0xff]
          %v7392 = vld [vmem:[#allocation4 + $0x1e0] sm:$0xff]
          %v7393 = vld [vmem:[#allocation4 + $0x1e8] sm:$0xff]
          %v7394 = vld [vmem:[#allocation4 + $0x1f0] sm:$0xff]
          %v7395 = vld [vmem:[#allocation4 + $0x1f8] sm:$0xff]
          %7397 = vset.pattern.permute.xlu0 0
          %7398 = vperm.xlu0 %7397, %v5924
          %v7399 = vpop.permute.xlu0 %7398
          %7402 = vset.pattern.permute.xlu0 0
          %7403 = vperm.xlu0 %7402, %v5926
          %v7404 = vpop.permute.xlu0 %7403
          %7407 = vset.pattern.permute.xlu0 0
          %7408 = vperm.xlu0 %7407, %v5928
          %v7409 = vpop.permute.xlu0 %7408
          %7412 = vset.pattern.permute.xlu0 0
          %7413 = vperm.xlu0 %7412, %v5930
          %v7414 = vpop.permute.xlu0 %7413
          %7417 = vset.pattern.permute.xlu0 0
          %7418 = vperm.xlu0 %7417, %v5932
          %v7419 = vpop.permute.xlu0 %7418
          %7422 = vset.pattern.permute.xlu0 0
          %7423 = vperm.xlu0 %7422, %v5934
          %v7424 = vpop.permute.xlu0 %7423
          %7427 = vset.pattern.permute.xlu0 0
          %7428 = vperm.xlu0 %7427, %v5936
          %v7429 = vpop.permute.xlu0 %7428
          %7432 = vset.pattern.permute.xlu0 0
          %7433 = vperm.xlu0 %7432, %v5938
          %v7434 = vpop.permute.xlu0 %7433
          %7437 = vset.pattern.permute.xlu0 0
          %7438 = vperm.xlu0 %7437, %v5940
          %v7439 = vpop.permute.xlu0 %7438
          %7442 = vset.pattern.permute.xlu0 0
          %7443 = vperm.xlu0 %7442, %v5942
          %v7444 = vpop.permute.xlu0 %7443
          %7447 = vset.pattern.permute.xlu0 0
          %7448 = vperm.xlu0 %7447, %v5944
          %v7449 = vpop.permute.xlu0 %7448
          %7452 = vset.pattern.permute.xlu0 0
          %7453 = vperm.xlu0 %7452, %v5946
          %v7454 = vpop.permute.xlu0 %7453
          %7457 = vset.pattern.permute.xlu0 0
          %7458 = vperm.xlu0 %7457, %v5948
          %v7459 = vpop.permute.xlu0 %7458
          %7462 = vset.pattern.permute.xlu0 0
          %7463 = vperm.xlu0 %7462, %v5950
          %v7464 = vpop.permute.xlu0 %7463
          %7467 = vset.pattern.permute.xlu0 0
          %7468 = vperm.xlu0 %7467, %v5952
          %v7469 = vpop.permute.xlu0 %7468
          %7472 = vset.pattern.permute.xlu0 0
          %7473 = vperm.xlu0 %7472, %v5954
          %v7474 = vpop.permute.xlu0 %7473
          %7477 = vset.pattern.permute.xlu0 0
          %7478 = vperm.xlu0 %7477, %v5956
          %v7479 = vpop.permute.xlu0 %7478
          %7482 = vset.pattern.permute.xlu0 0
          %7483 = vperm.xlu0 %7482, %v5958
          %v7484 = vpop.permute.xlu0 %7483
          %7487 = vset.pattern.permute.xlu0 0
          %7488 = vperm.xlu0 %7487, %v5960
          %v7489 = vpop.permute.xlu0 %7488
          %7492 = vset.pattern.permute.xlu0 0
          %7493 = vperm.xlu0 %7492, %v5962
          %v7494 = vpop.permute.xlu0 %7493
          %7497 = vset.pattern.permute.xlu0 0
          %7498 = vperm.xlu0 %7497, %v5964
          %v7499 = vpop.permute.xlu0 %7498
          %7502 = vset.pattern.permute.xlu0 0
          %7503 = vperm.xlu0 %7502, %v5966
          %v7504 = vpop.permute.xlu0 %7503
          %7507 = vset.pattern.permute.xlu0 0
          %7508 = vperm.xlu0 %7507, %v5968
          %v7509 = vpop.permute.xlu0 %7508
          %7512 = vset.pattern.permute.xlu0 0
          %7513 = vperm.xlu0 %7512, %v5970
          %v7514 = vpop.permute.xlu0 %7513
          %7517 = vset.pattern.permute.xlu0 0
          %7518 = vperm.xlu0 %7517, %v5972
          %v7519 = vpop.permute.xlu0 %7518
          %7522 = vset.pattern.permute.xlu0 0
          %7523 = vperm.xlu0 %7522, %v5974
          %v7524 = vpop.permute.xlu0 %7523
          %7527 = vset.pattern.permute.xlu0 0
          %7528 = vperm.xlu0 %7527, %v5976
          %v7529 = vpop.permute.xlu0 %7528
          %7532 = vset.pattern.permute.xlu0 0
          %7533 = vperm.xlu0 %7532, %v5978
          %v7534 = vpop.permute.xlu0 %7533
          %7537 = vset.pattern.permute.xlu0 0
          %7538 = vperm.xlu0 %7537, %v5980
          %v7539 = vpop.permute.xlu0 %7538
          %7542 = vset.pattern.permute.xlu0 0
          %7543 = vperm.xlu0 %7542, %v5982
          %v7544 = vpop.permute.xlu0 %7543
          %7547 = vset.pattern.permute.xlu0 0
          %7548 = vperm.xlu0 %7547, %v5984
          %v7549 = vpop.permute.xlu0 %7548
          %7552 = vset.pattern.permute.xlu0 0
          %7553 = vperm.xlu0 %7552, %v5986
          %v7554 = vpop.permute.xlu0 %7553
          %7557 = vset.pattern.permute.xlu0 0
          %7558 = vperm.xlu0 %7557, %v5988
          %v7559 = vpop.permute.xlu0 %7558
          %7562 = vset.pattern.permute.xlu0 0
          %7563 = vperm.xlu0 %7562, %v5990
          %v7564 = vpop.permute.xlu0 %7563
          %7567 = vset.pattern.permute.xlu0 0
          %7568 = vperm.xlu0 %7567, %v5992
          %v7569 = vpop.permute.xlu0 %7568
          %7572 = vset.pattern.permute.xlu0 0
          %7573 = vperm.xlu0 %7572, %v5994
          %v7574 = vpop.permute.xlu0 %7573
          %7577 = vset.pattern.permute.xlu0 0
          %7578 = vperm.xlu0 %7577, %v5996
          %v7579 = vpop.permute.xlu0 %7578
          %7582 = vset.pattern.permute.xlu0 0
          %7583 = vperm.xlu0 %7582, %v5998
          %v7584 = vpop.permute.xlu0 %7583
          %7587 = vset.pattern.permute.xlu0 0
          %7588 = vperm.xlu0 %7587, %v6000
          %v7589 = vpop.permute.xlu0 %7588
          %7592 = vset.pattern.permute.xlu0 0
          %7593 = vperm.xlu0 %7592, %v6002
          %v7594 = vpop.permute.xlu0 %7593
          %7597 = vset.pattern.permute.xlu0 0
          %7598 = vperm.xlu0 %7597, %v6004
          %v7599 = vpop.permute.xlu0 %7598
          %7602 = vset.pattern.permute.xlu0 0
          %7603 = vperm.xlu0 %7602, %v6006
          %v7604 = vpop.permute.xlu0 %7603
          %7607 = vset.pattern.permute.xlu0 0
          %7608 = vperm.xlu0 %7607, %v6008
          %v7609 = vpop.permute.xlu0 %7608
          %7612 = vset.pattern.permute.xlu0 0
          %7613 = vperm.xlu0 %7612, %v6010
          %v7614 = vpop.permute.xlu0 %7613
          %7617 = vset.pattern.permute.xlu0 0
          %7618 = vperm.xlu0 %7617, %v6012
          %v7619 = vpop.permute.xlu0 %7618
          %7622 = vset.pattern.permute.xlu0 0
          %7623 = vperm.xlu0 %7622, %v6014
          %v7624 = vpop.permute.xlu0 %7623
          %7627 = vset.pattern.permute.xlu0 0
          %7628 = vperm.xlu0 %7627, %v6016
          %v7629 = vpop.permute.xlu0 %7628
          %7632 = vset.pattern.permute.xlu0 0
          %7633 = vperm.xlu0 %7632, %v6018
          %v7634 = vpop.permute.xlu0 %7633
          %7637 = vset.pattern.permute.xlu0 0
          %7638 = vperm.xlu0 %7637, %v6020
          %v7639 = vpop.permute.xlu0 %7638
          %7642 = vset.pattern.permute.xlu0 0
          %7643 = vperm.xlu0 %7642, %v6022
          %v7644 = vpop.permute.xlu0 %7643
          %7647 = vset.pattern.permute.xlu0 0
          %7648 = vperm.xlu0 %7647, %v6024
          %v7649 = vpop.permute.xlu0 %7648
          %7652 = vset.pattern.permute.xlu0 0
          %7653 = vperm.xlu0 %7652, %v6026
          %v7654 = vpop.permute.xlu0 %7653
          %7657 = vset.pattern.permute.xlu0 0
          %7658 = vperm.xlu0 %7657, %v6028
          %v7659 = vpop.permute.xlu0 %7658
          %7662 = vset.pattern.permute.xlu0 0
          %7663 = vperm.xlu0 %7662, %v6030
          %v7664 = vpop.permute.xlu0 %7663
          %7667 = vset.pattern.permute.xlu0 0
          %7668 = vperm.xlu0 %7667, %v6032
          %v7669 = vpop.permute.xlu0 %7668
          %7672 = vset.pattern.permute.xlu0 0
          %7673 = vperm.xlu0 %7672, %v6034
          %v7674 = vpop.permute.xlu0 %7673
          %7677 = vset.pattern.permute.xlu0 0
          %7678 = vperm.xlu0 %7677, %v6036
          %v7679 = vpop.permute.xlu0 %7678
          %7682 = vset.pattern.permute.xlu0 0
          %7683 = vperm.xlu0 %7682, %v6038
          %v7684 = vpop.permute.xlu0 %7683
          %7687 = vset.pattern.permute.xlu0 0
          %7688 = vperm.xlu0 %7687, %v6040
          %v7689 = vpop.permute.xlu0 %7688
          %7692 = vset.pattern.permute.xlu0 0
          %7693 = vperm.xlu0 %7692, %v6042
          %v7694 = vpop.permute.xlu0 %7693
          %7697 = vset.pattern.permute.xlu0 0
          %7698 = vperm.xlu0 %7697, %v6044
          %v7699 = vpop.permute.xlu0 %7698
          %7702 = vset.pattern.permute.xlu0 0
          %7703 = vperm.xlu0 %7702, %v6046
          %v7704 = vpop.permute.xlu0 %7703
          %7707 = vset.pattern.permute.xlu0 0
          %7708 = vperm.xlu0 %7707, %v6048
          %v7709 = vpop.permute.xlu0 %7708
          %7712 = vset.pattern.permute.xlu0 0
          %7713 = vperm.xlu0 %7712, %v6050
          %v7714 = vpop.permute.xlu0 %7713
          %v7716 = vmul.f32 %v7399, %v7332
          %v7717 = vmul.f32 %v7404, %v7333
          %v7718 = vmul.f32 %v7409, %v7334
          %v7719 = vmul.f32 %v7414, %v7335
          %v7720 = vmul.f32 %v7419, %v7336
          %v7721 = vmul.f32 %v7424, %v7337
          %v7722 = vmul.f32 %v7429, %v7338
          %v7723 = vmul.f32 %v7434, %v7339
          %v7724 = vmul.f32 %v7439, %v7340
          %v7725 = vmul.f32 %v7444, %v7341
          %v7726 = vmul.f32 %v7449, %v7342
          %v7727 = vmul.f32 %v7454, %v7343
          %v7728 = vmul.f32 %v7459, %v7344
          %v7729 = vmul.f32 %v7464, %v7345
          %v7730 = vmul.f32 %v7469, %v7346
          %v7731 = vmul.f32 %v7474, %v7347
          %v7732 = vmul.f32 %v7479, %v7348
          %v7733 = vmul.f32 %v7484, %v7349
          %v7734 = vmul.f32 %v7489, %v7350
          %v7735 = vmul.f32 %v7494, %v7351
          %v7736 = vmul.f32 %v7499, %v7352
          %v7737 = vmul.f32 %v7504, %v7353
          %v7738 = vmul.f32 %v7509, %v7354
          %v7739 = vmul.f32 %v7514, %v7355
          %v7740 = vmul.f32 %v7519, %v7356
          %v7741 = vmul.f32 %v7524, %v7357
          %v7742 = vmul.f32 %v7529, %v7358
          %v7743 = vmul.f32 %v7534, %v7359
          %v7744 = vmul.f32 %v7539, %v7360
          %v7745 = vmul.f32 %v7544, %v7361
          %v7746 = vmul.f32 %v7549, %v7362
          %v7747 = vmul.f32 %v7554, %v7363
          %v7748 = vmul.f32 %v7559, %v7364
          %v7749 = vmul.f32 %v7564, %v7365
          %v7750 = vmul.f32 %v7569, %v7366
          %v7751 = vmul.f32 %v7574, %v7367
          %v7752 = vmul.f32 %v7579, %v7368
          %v7753 = vmul.f32 %v7584, %v7369
          %v7754 = vmul.f32 %v7589, %v7370
          %v7755 = vmul.f32 %v7594, %v7371
          %v7756 = vmul.f32 %v7599, %v7372
          %v7757 = vmul.f32 %v7604, %v7373
          %v7758 = vmul.f32 %v7609, %v7374
          %v7759 = vmul.f32 %v7614, %v7375
          %v7760 = vmul.f32 %v7619, %v7376
          %v7761 = vmul.f32 %v7624, %v7377
          %v7762 = vmul.f32 %v7629, %v7378
          %v7763 = vmul.f32 %v7634, %v7379
          %v7764 = vmul.f32 %v7639, %v7380
          %v7765 = vmul.f32 %v7644, %v7381
          %v7766 = vmul.f32 %v7649, %v7382
          %v7767 = vmul.f32 %v7654, %v7383
          %v7768 = vmul.f32 %v7659, %v7384
          %v7769 = vmul.f32 %v7664, %v7385
          %v7770 = vmul.f32 %v7669, %v7386
          %v7771 = vmul.f32 %v7674, %v7387
          %v7772 = vmul.f32 %v7679, %v7388
          %v7773 = vmul.f32 %v7684, %v7389
          %v7774 = vmul.f32 %v7689, %v7390
          %v7775 = vmul.f32 %v7694, %v7391
          %v7776 = vmul.f32 %v7699, %v7392
          %v7777 = vmul.f32 %v7704, %v7393
          %v7778 = vmul.f32 %v7709, %v7394
          %v7779 = vmul.f32 %v7714, %v7395
          %v7780 = vpack.c.bf16 %v6757, %v6755
          %v7781 = vpack.c.bf16 %v6758, %v6756
          %v7782 = vpack.c.bf16 %v6761, %v6759
          %v7783 = vpack.c.bf16 %v6762, %v6760
          %v7784 = vpack.c.bf16 %v6765, %v6763
          %v7785 = vpack.c.bf16 %v6766, %v6764
          %v7786 = vpack.c.bf16 %v6769, %v6767
          %v7787 = vpack.c.bf16 %v6770, %v6768
          %v7788 = vpack.c.bf16 %v6773, %v6771
          %v7789 = vpack.c.bf16 %v6774, %v6772
          %v7790 = vpack.c.bf16 %v6777, %v6775
          %v7791 = vpack.c.bf16 %v6778, %v6776
          %v7792 = vpack.c.bf16 %v6781, %v6779
          %v7793 = vpack.c.bf16 %v6782, %v6780
          %v7794 = vpack.c.bf16 %v6785, %v6783
          %v7795 = vpack.c.bf16 %v6786, %v6784
          %v7796 = vpack.c.bf16 %v6789, %v6787
          %v7797 = vpack.c.bf16 %v6790, %v6788
          %v7798 = vpack.c.bf16 %v6793, %v6791
          %v7799 = vpack.c.bf16 %v6794, %v6792
          %v7800 = vpack.c.bf16 %v6797, %v6795
          %v7801 = vpack.c.bf16 %v6798, %v6796
          %v7802 = vpack.c.bf16 %v6801, %v6799
          %v7803 = vpack.c.bf16 %v6802, %v6800
          %v7804 = vpack.c.bf16 %v6805, %v6803
          %v7805 = vpack.c.bf16 %v6806, %v6804
          %v7806 = vpack.c.bf16 %v6809, %v6807
          %v7807 = vpack.c.bf16 %v6810, %v6808
          %v7808 = vpack.c.bf16 %v6813, %v6811
          %v7809 = vpack.c.bf16 %v6814, %v6812
          %v7810 = vpack.c.bf16 %v6817, %v6815
          %v7811 = vpack.c.bf16 %v6818, %v6816
          %v7812 = vpack.c.bf16 %v6821, %v6819
          %v7813 = vpack.c.bf16 %v6822, %v6820
          %v7814 = vpack.c.bf16 %v6825, %v6823
          %v7815 = vpack.c.bf16 %v6826, %v6824
          %v7816 = vpack.c.bf16 %v6829, %v6827
          %v7817 = vpack.c.bf16 %v6830, %v6828
          %v7818 = vpack.c.bf16 %v6833, %v6831
          %v7819 = vpack.c.bf16 %v6834, %v6832
          %v7820 = vpack.c.bf16 %v6837, %v6835
          %v7821 = vpack.c.bf16 %v6838, %v6836
          %v7822 = vpack.c.bf16 %v6841, %v6839
          %v7823 = vpack.c.bf16 %v6842, %v6840
          %v7824 = vpack.c.bf16 %v6845, %v6843
          %v7825 = vpack.c.bf16 %v6846, %v6844
          %v7826 = vpack.c.bf16 %v6849, %v6847
          %v7827 = vpack.c.bf16 %v6850, %v6848
          %v7828 = vpack.c.bf16 %v6853, %v6851
          %v7829 = vpack.c.bf16 %v6854, %v6852
          %v7830 = vpack.c.bf16 %v6857, %v6855
          %v7831 = vpack.c.bf16 %v6858, %v6856
          %v7832 = vpack.c.bf16 %v6861, %v6859
          %v7833 = vpack.c.bf16 %v6862, %v6860
          %v7834 = vpack.c.bf16 %v6865, %v6863
          %v7835 = vpack.c.bf16 %v6866, %v6864
          %v7836 = vpack.c.bf16 %v6869, %v6867
          %v7837 = vpack.c.bf16 %v6870, %v6868
          %v7838 = vpack.c.bf16 %v6873, %v6871
          %v7839 = vpack.c.bf16 %v6874, %v6872
          %v7840 = vpack.c.bf16 %v6877, %v6875
          %v7841 = vpack.c.bf16 %v6878, %v6876
          %v7842 = vpack.c.bf16 %v6881, %v6879
          %v7843 = vpack.c.bf16 %v6882, %v6880
          %v7876 = vunpack.c.l.b16 %v4464
          %v7877 = vunpack.c.l.b16 %v4465
          %v7878 = vunpack.c.l.b16 %v4466
          %v7879 = vunpack.c.l.b16 %v4467
          %v7880 = vunpack.c.l.b16 %v4468
          %v7881 = vunpack.c.l.b16 %v4469
          %v7882 = vunpack.c.l.b16 %v4470
          %v7883 = vunpack.c.l.b16 %v4471
          %v7884 = vunpack.c.l.b16 %v4472
          %v7885 = vunpack.c.l.b16 %v4473
          %v7886 = vunpack.c.l.b16 %v4474
          %v7887 = vunpack.c.l.b16 %v4475
          %v7888 = vunpack.c.l.b16 %v4476
          %v7889 = vunpack.c.l.b16 %v4477
          %v7890 = vunpack.c.l.b16 %v4478
          %v7891 = vunpack.c.l.b16 %v4479
          %v7892 = vunpack.c.l.b16 %v4480
          %v7893 = vunpack.c.l.b16 %v4481
          %v7894 = vunpack.c.l.b16 %v4482
          %v7895 = vunpack.c.l.b16 %v4483
          %v7896 = vunpack.c.l.b16 %v4484
          %v7897 = vunpack.c.l.b16 %v4485
          %v7898 = vunpack.c.l.b16 %v4486
          %v7899 = vunpack.c.l.b16 %v4487
          %v7900 = vunpack.c.l.b16 %v4488
          %v7901 = vunpack.c.l.b16 %v4489
          %v7902 = vunpack.c.l.b16 %v4490
          %v7903 = vunpack.c.l.b16 %v4491
          %v7904 = vunpack.c.l.b16 %v4492
          %v7905 = vunpack.c.l.b16 %v4493
          %v7906 = vunpack.c.l.b16 %v4494
          %v7907 = vunpack.c.l.b16 %v4495
          %v7908 = vpack.c.b16 %v7877, %v7876
          %v7909 = vpack.c.b16 %v7879, %v7878
          %v7910 = vpack.c.b16 %v7881, %v7880
          %v7911 = vpack.c.b16 %v7883, %v7882
          %v7912 = vpack.c.b16 %v7885, %v7884
          %v7913 = vpack.c.b16 %v7887, %v7886
          %v7914 = vpack.c.b16 %v7889, %v7888
          %v7915 = vpack.c.b16 %v7891, %v7890
          %v7916 = vpack.c.b16 %v7893, %v7892
          %v7917 = vpack.c.b16 %v7895, %v7894
          %v7918 = vpack.c.b16 %v7897, %v7896
          %v7919 = vpack.c.b16 %v7899, %v7898
          %v7920 = vpack.c.b16 %v7901, %v7900
          %v7921 = vpack.c.b16 %v7903, %v7902
          %v7922 = vpack.c.b16 %v7905, %v7904
          %v7923 = vpack.c.b16 %v7907, %v7906
          %7940 = vmatpush.bf16.msra.mxu0 %v7915
          %7941 = vmatpush.bf16.msra.mxu0 %v7914
          %7942 = vmatpush.bf16.msra.mxu0 %v7913
          %7943 = vmatpush.bf16.msra.mxu0 %v7912
          %7944 = vmatpush.bf16.msra.mxu0 %v7911
          %7945 = vmatpush.bf16.msra.mxu0 %v7910
          %7946 = vmatpush.bf16.msra.mxu0 %v7909
          %7947 = vmatpush.bf16.msra.mxu0 %v7908
          %7948 = vmatmul.bf16.gmra.mxu0 %v7780
          %v7949 = vpop.f32.mrf.mxu0
          %v7950 = vadd.f32 0.0, %v7949
          %v7951 = vpop.f32.mrf.mxu0
          %v7952 = vadd.f32 0.0, %v7951
          %7953 = vmatmul.bf16.gmra.mxu0 %v7782
          %v7954 = vpop.f32.mrf.mxu0
          %v7955 = vadd.f32 0.0, %v7954
          %v7956 = vpop.f32.mrf.mxu0
          %v7957 = vadd.f32 0.0, %v7956
          %7958 = vmatmul.bf16.gmra.mxu0 %v7784
          %v7959 = vpop.f32.mrf.mxu0
          %v7960 = vadd.f32 0.0, %v7959
          %v7961 = vpop.f32.mrf.mxu0
          %v7962 = vadd.f32 0.0, %v7961
          %7963 = vmatmul.bf16.gmra.mxu0 %v7786
          %v7964 = vpop.f32.mrf.mxu0
          %v7965 = vadd.f32 0.0, %v7964
          %v7966 = vpop.f32.mrf.mxu0
          %v7967 = vadd.f32 0.0, %v7966
          %7968 = vmatmul.bf16.gmra.mxu0 %v7788
          %v7969 = vpop.f32.mrf.mxu0
          %v7970 = vadd.f32 0.0, %v7969
          %v7971 = vpop.f32.mrf.mxu0
          %v7972 = vadd.f32 0.0, %v7971
          %7973 = vmatmul.bf16.gmra.mxu0 %v7790
          %v7974 = vpop.f32.mrf.mxu0
          %v7975 = vadd.f32 0.0, %v7974
          %v7976 = vpop.f32.mrf.mxu0
          %v7977 = vadd.f32 0.0, %v7976
          %7978 = vmatmul.bf16.gmra.mxu0 %v7792
          %v7979 = vpop.f32.mrf.mxu0
          %v7980 = vadd.f32 0.0, %v7979
          %v7981 = vpop.f32.mrf.mxu0
          %v7982 = vadd.f32 0.0, %v7981
          %7983 = vmatmul.bf16.gmra.mxu0 %v7794
          %v7984 = vpop.f32.mrf.mxu0
          %v7985 = vadd.f32 0.0, %v7984
          %v7986 = vpop.f32.mrf.mxu0
          %v7987 = vadd.f32 0.0, %v7986
          %7988 = vmatmul.bf16.gmra.mxu0 %v7796
          %v7989 = vpop.f32.mrf.mxu0
          %v7990 = vadd.f32 0.0, %v7989
          %v7991 = vpop.f32.mrf.mxu0
          %v7992 = vadd.f32 0.0, %v7991
          %7993 = vmatmul.bf16.gmra.mxu0 %v7798
          %v7994 = vpop.f32.mrf.mxu0
          %v7995 = vadd.f32 0.0, %v7994
          %v7996 = vpop.f32.mrf.mxu0
          %v7997 = vadd.f32 0.0, %v7996
          %7998 = vmatmul.bf16.gmra.mxu0 %v7800
          %v7999 = vpop.f32.mrf.mxu0
          %v8000 = vadd.f32 0.0, %v7999
          %v8001 = vpop.f32.mrf.mxu0
          %v8002 = vadd.f32 0.0, %v8001
          %8003 = vmatmul.bf16.gmra.mxu0 %v7802
          %v8004 = vpop.f32.mrf.mxu0
          %v8005 = vadd.f32 0.0, %v8004
          %v8006 = vpop.f32.mrf.mxu0
          %v8007 = vadd.f32 0.0, %v8006
          %8008 = vmatmul.bf16.gmra.mxu0 %v7804
          %v8009 = vpop.f32.mrf.mxu0
          %v8010 = vadd.f32 0.0, %v8009
          %v8011 = vpop.f32.mrf.mxu0
          %v8012 = vadd.f32 0.0, %v8011
          %8013 = vmatmul.bf16.gmra.mxu0 %v7806
          %v8014 = vpop.f32.mrf.mxu0
          %v8015 = vadd.f32 0.0, %v8014
          %v8016 = vpop.f32.mrf.mxu0
          %v8017 = vadd.f32 0.0, %v8016
          %8018 = vmatmul.bf16.gmra.mxu0 %v7808
          %v8019 = vpop.f32.mrf.mxu0
          %v8020 = vadd.f32 0.0, %v8019
          %v8021 = vpop.f32.mrf.mxu0
          %v8022 = vadd.f32 0.0, %v8021
          %8023 = vmatmul.bf16.gmra.mxu0 %v7810
          %v8024 = vpop.f32.mrf.mxu0
          %v8025 = vadd.f32 0.0, %v8024
          %v8026 = vpop.f32.mrf.mxu0
          %v8027 = vadd.f32 0.0, %v8026
          %8028 = vmatmul.bf16.gmra.mxu0 %v7812
          %v8029 = vpop.f32.mrf.mxu0
          %v8030 = vadd.f32 0.0, %v8029
          %v8031 = vpop.f32.mrf.mxu0
          %v8032 = vadd.f32 0.0, %v8031
          %8033 = vmatmul.bf16.gmra.mxu0 %v7814
          %v8034 = vpop.f32.mrf.mxu0
          %v8035 = vadd.f32 0.0, %v8034
          %v8036 = vpop.f32.mrf.mxu0
          %v8037 = vadd.f32 0.0, %v8036
          %8038 = vmatmul.bf16.gmra.mxu0 %v7816
          %v8039 = vpop.f32.mrf.mxu0
          %v8040 = vadd.f32 0.0, %v8039
          %v8041 = vpop.f32.mrf.mxu0
          %v8042 = vadd.f32 0.0, %v8041
          %8043 = vmatmul.bf16.gmra.mxu0 %v7818
          %v8044 = vpop.f32.mrf.mxu0
          %v8045 = vadd.f32 0.0, %v8044
          %v8046 = vpop.f32.mrf.mxu0
          %v8047 = vadd.f32 0.0, %v8046
          %8048 = vmatmul.bf16.gmra.mxu0 %v7820
          %v8049 = vpop.f32.mrf.mxu0
          %v8050 = vadd.f32 0.0, %v8049
          %v8051 = vpop.f32.mrf.mxu0
          %v8052 = vadd.f32 0.0, %v8051
          %8053 = vmatmul.bf16.gmra.mxu0 %v7822
          %v8054 = vpop.f32.mrf.mxu0
          %v8055 = vadd.f32 0.0, %v8054
          %v8056 = vpop.f32.mrf.mxu0
          %v8057 = vadd.f32 0.0, %v8056
          %8058 = vmatmul.bf16.gmra.mxu0 %v7824
          %v8059 = vpop.f32.mrf.mxu0
          %v8060 = vadd.f32 0.0, %v8059
          %v8061 = vpop.f32.mrf.mxu0
          %v8062 = vadd.f32 0.0, %v8061
          %8063 = vmatmul.bf16.gmra.mxu0 %v7826
          %v8064 = vpop.f32.mrf.mxu0
          %v8065 = vadd.f32 0.0, %v8064
          %v8066 = vpop.f32.mrf.mxu0
          %v8067 = vadd.f32 0.0, %v8066
          %8068 = vmatmul.bf16.gmra.mxu0 %v7828
          %v8069 = vpop.f32.mrf.mxu0
          %v8070 = vadd.f32 0.0, %v8069
          %v8071 = vpop.f32.mrf.mxu0
          %v8072 = vadd.f32 0.0, %v8071
          %8073 = vmatmul.bf16.gmra.mxu0 %v7830
          %v8074 = vpop.f32.mrf.mxu0
          %v8075 = vadd.f32 0.0, %v8074
          %v8076 = vpop.f32.mrf.mxu0
          %v8077 = vadd.f32 0.0, %v8076
          %8078 = vmatmul.bf16.gmra.mxu0 %v7832
          %v8079 = vpop.f32.mrf.mxu0
          %v8080 = vadd.f32 0.0, %v8079
          %v8081 = vpop.f32.mrf.mxu0
          %v8082 = vadd.f32 0.0, %v8081
          %8083 = vmatmul.bf16.gmra.mxu0 %v7834
          %v8084 = vpop.f32.mrf.mxu0
          %v8085 = vadd.f32 0.0, %v8084
          %v8086 = vpop.f32.mrf.mxu0
          %v8087 = vadd.f32 0.0, %v8086
          %8088 = vmatmul.bf16.gmra.mxu0 %v7836
          %v8089 = vpop.f32.mrf.mxu0
          %v8090 = vadd.f32 0.0, %v8089
          %v8091 = vpop.f32.mrf.mxu0
          %v8092 = vadd.f32 0.0, %v8091
          %8093 = vmatmul.bf16.gmra.mxu0 %v7838
          %v8094 = vpop.f32.mrf.mxu0
          %v8095 = vadd.f32 0.0, %v8094
          %v8096 = vpop.f32.mrf.mxu0
          %v8097 = vadd.f32 0.0, %v8096
          %8098 = vmatmul.bf16.gmra.mxu0 %v7840
          %v8099 = vpop.f32.mrf.mxu0
          %v8100 = vadd.f32 0.0, %v8099
          %v8101 = vpop.f32.mrf.mxu0
          %v8102 = vadd.f32 0.0, %v8101
          %8103 = vmatmul.bf16.gmra.mxu0 %v7842
          %v8104 = vpop.f32.mrf.mxu0
          %v8105 = vadd.f32 0.0, %v8104
          %v8106 = vpop.f32.mrf.mxu0
          %v8107 = vadd.f32 0.0, %v8106
          %8108 = vdwg.mxu0
          %8109 = vmatpush.bf16.msra.mxu0 %v7923
          %8110 = vmatpush.bf16.msra.mxu0 %v7922
          %8111 = vmatpush.bf16.msra.mxu0 %v7921
          %8112 = vmatpush.bf16.msra.mxu0 %v7920
          %8113 = vmatpush.bf16.msra.mxu0 %v7919
          %8114 = vmatpush.bf16.msra.mxu0 %v7918
          %8115 = vmatpush.bf16.msra.mxu0 %v7917
          %8116 = vmatpush.bf16.msra.mxu0 %v7916
          %8117 = vmatmul.bf16.gmra.mxu0 %v7781
          %v8118 = vpop.f32.mrf.mxu0
          %v8119 = vadd.f32 %v7950, %v8118
          %v8120 = vpop.f32.mrf.mxu0
          %v8121 = vadd.f32 %v7952, %v8120
          %8122 = vmatmul.bf16.gmra.mxu0 %v7783
          %v8123 = vpop.f32.mrf.mxu0
          %v8124 = vadd.f32 %v7955, %v8123
          %v8125 = vpop.f32.mrf.mxu0
          %v8126 = vadd.f32 %v7957, %v8125
          %8127 = vmatmul.bf16.gmra.mxu0 %v7785
          %v8128 = vpop.f32.mrf.mxu0
          %v8129 = vadd.f32 %v7960, %v8128
          %v8130 = vpop.f32.mrf.mxu0
          %v8131 = vadd.f32 %v7962, %v8130
          %8132 = vmatmul.bf16.gmra.mxu0 %v7787
          %v8133 = vpop.f32.mrf.mxu0
          %v8134 = vadd.f32 %v7965, %v8133
          %v8135 = vpop.f32.mrf.mxu0
          %v8136 = vadd.f32 %v7967, %v8135
          %8137 = vmatmul.bf16.gmra.mxu0 %v7789
          %v8138 = vpop.f32.mrf.mxu0
          %v8139 = vadd.f32 %v7970, %v8138
          %v8140 = vpop.f32.mrf.mxu0
          %v8141 = vadd.f32 %v7972, %v8140
          %8142 = vmatmul.bf16.gmra.mxu0 %v7791
          %v8143 = vpop.f32.mrf.mxu0
          %v8144 = vadd.f32 %v7975, %v8143
          %v8145 = vpop.f32.mrf.mxu0
          %v8146 = vadd.f32 %v7977, %v8145
          %8147 = vmatmul.bf16.gmra.mxu0 %v7793
          %v8148 = vpop.f32.mrf.mxu0
          %v8149 = vadd.f32 %v7980, %v8148
          %v8150 = vpop.f32.mrf.mxu0
          %v8151 = vadd.f32 %v7982, %v8150
          %8152 = vmatmul.bf16.gmra.mxu0 %v7795
          %v8153 = vpop.f32.mrf.mxu0
          %v8154 = vadd.f32 %v7985, %v8153
          %v8155 = vpop.f32.mrf.mxu0
          %v8156 = vadd.f32 %v7987, %v8155
          %8157 = vmatmul.bf16.gmra.mxu0 %v7797
          %v8158 = vpop.f32.mrf.mxu0
          %v8159 = vadd.f32 %v7990, %v8158
          %v8160 = vpop.f32.mrf.mxu0
          %v8161 = vadd.f32 %v7992, %v8160
          %8162 = vmatmul.bf16.gmra.mxu0 %v7799
          %v8163 = vpop.f32.mrf.mxu0
          %v8164 = vadd.f32 %v7995, %v8163
          %v8165 = vpop.f32.mrf.mxu0
          %v8166 = vadd.f32 %v7997, %v8165
          %8167 = vmatmul.bf16.gmra.mxu0 %v7801
          %v8168 = vpop.f32.mrf.mxu0
          %v8169 = vadd.f32 %v8000, %v8168
          %v8170 = vpop.f32.mrf.mxu0
          %v8171 = vadd.f32 %v8002, %v8170
          %8172 = vmatmul.bf16.gmra.mxu0 %v7803
          %v8173 = vpop.f32.mrf.mxu0
          %v8174 = vadd.f32 %v8005, %v8173
          %v8175 = vpop.f32.mrf.mxu0
          %v8176 = vadd.f32 %v8007, %v8175
          %8177 = vmatmul.bf16.gmra.mxu0 %v7805
          %v8178 = vpop.f32.mrf.mxu0
          %v8179 = vadd.f32 %v8010, %v8178
          %v8180 = vpop.f32.mrf.mxu0
          %v8181 = vadd.f32 %v8012, %v8180
          %8182 = vmatmul.bf16.gmra.mxu0 %v7807
          %v8183 = vpop.f32.mrf.mxu0
          %v8184 = vadd.f32 %v8015, %v8183
          %v8185 = vpop.f32.mrf.mxu0
          %v8186 = vadd.f32 %v8017, %v8185
          %8187 = vmatmul.bf16.gmra.mxu0 %v7809
          %v8188 = vpop.f32.mrf.mxu0
          %v8189 = vadd.f32 %v8020, %v8188
          %v8190 = vpop.f32.mrf.mxu0
          %v8191 = vadd.f32 %v8022, %v8190
          %8192 = vmatmul.bf16.gmra.mxu0 %v7811
          %v8193 = vpop.f32.mrf.mxu0
          %v8194 = vadd.f32 %v8025, %v8193
          %v8195 = vpop.f32.mrf.mxu0
          %v8196 = vadd.f32 %v8027, %v8195
          %8197 = vmatmul.bf16.gmra.mxu0 %v7813
          %v8198 = vpop.f32.mrf.mxu0
          %v8199 = vadd.f32 %v8030, %v8198
          %v8200 = vpop.f32.mrf.mxu0
          %v8201 = vadd.f32 %v8032, %v8200
          %8202 = vmatmul.bf16.gmra.mxu0 %v7815
          %v8203 = vpop.f32.mrf.mxu0
          %v8204 = vadd.f32 %v8035, %v8203
          %v8205 = vpop.f32.mrf.mxu0
          %v8206 = vadd.f32 %v8037, %v8205
          %8207 = vmatmul.bf16.gmra.mxu0 %v7817
          %v8208 = vpop.f32.mrf.mxu0
          %v8209 = vadd.f32 %v8040, %v8208
          %v8210 = vpop.f32.mrf.mxu0
          %v8211 = vadd.f32 %v8042, %v8210
          %8212 = vmatmul.bf16.gmra.mxu0 %v7819
          %v8213 = vpop.f32.mrf.mxu0
          %v8214 = vadd.f32 %v8045, %v8213
          %v8215 = vpop.f32.mrf.mxu0
          %v8216 = vadd.f32 %v8047, %v8215
          %8217 = vmatmul.bf16.gmra.mxu0 %v7821
          %v8218 = vpop.f32.mrf.mxu0
          %v8219 = vadd.f32 %v8050, %v8218
          %v8220 = vpop.f32.mrf.mxu0
          %v8221 = vadd.f32 %v8052, %v8220
          %8222 = vmatmul.bf16.gmra.mxu0 %v7823
          %v8223 = vpop.f32.mrf.mxu0
          %v8224 = vadd.f32 %v8055, %v8223
          %v8225 = vpop.f32.mrf.mxu0
          %v8226 = vadd.f32 %v8057, %v8225
          %8227 = vmatmul.bf16.gmra.mxu0 %v7825
          %v8228 = vpop.f32.mrf.mxu0
          %v8229 = vadd.f32 %v8060, %v8228
          %v8230 = vpop.f32.mrf.mxu0
          %v8231 = vadd.f32 %v8062, %v8230
          %8232 = vmatmul.bf16.gmra.mxu0 %v7827
          %v8233 = vpop.f32.mrf.mxu0
          %v8234 = vadd.f32 %v8065, %v8233
          %v8235 = vpop.f32.mrf.mxu0
          %v8236 = vadd.f32 %v8067, %v8235
          %8237 = vmatmul.bf16.gmra.mxu0 %v7829
          %v8238 = vpop.f32.mrf.mxu0
          %v8239 = vadd.f32 %v8070, %v8238
          %v8240 = vpop.f32.mrf.mxu0
          %v8241 = vadd.f32 %v8072, %v8240
          %8242 = vmatmul.bf16.gmra.mxu0 %v7831
          %v8243 = vpop.f32.mrf.mxu0
          %v8244 = vadd.f32 %v8075, %v8243
          %v8245 = vpop.f32.mrf.mxu0
          %v8246 = vadd.f32 %v8077, %v8245
          %8247 = vmatmul.bf16.gmra.mxu0 %v7833
          %v8248 = vpop.f32.mrf.mxu0
          %v8249 = vadd.f32 %v8080, %v8248
          %v8250 = vpop.f32.mrf.mxu0
          %v8251 = vadd.f32 %v8082, %v8250
          %8252 = vmatmul.bf16.gmra.mxu0 %v7835
          %v8253 = vpop.f32.mrf.mxu0
          %v8254 = vadd.f32 %v8085, %v8253
          %v8255 = vpop.f32.mrf.mxu0
          %v8256 = vadd.f32 %v8087, %v8255
          %8257 = vmatmul.bf16.gmra.mxu0 %v7837
          %v8258 = vpop.f32.mrf.mxu0
          %v8259 = vadd.f32 %v8090, %v8258
          %v8260 = vpop.f32.mrf.mxu0
          %v8261 = vadd.f32 %v8092, %v8260
          %8262 = vmatmul.bf16.gmra.mxu0 %v7839
          %v8263 = vpop.f32.mrf.mxu0
          %v8264 = vadd.f32 %v8095, %v8263
          %v8265 = vpop.f32.mrf.mxu0
          %v8266 = vadd.f32 %v8097, %v8265
          %8267 = vmatmul.bf16.gmra.mxu0 %v7841
          %v8268 = vpop.f32.mrf.mxu0
          %v8269 = vadd.f32 %v8100, %v8268
          %v8270 = vpop.f32.mrf.mxu0
          %v8271 = vadd.f32 %v8102, %v8270
          %8272 = vmatmul.bf16.gmra.mxu0 %v7843
          %v8273 = vpop.f32.mrf.mxu0
          %v8274 = vadd.f32 %v8105, %v8273
          %v8275 = vpop.f32.mrf.mxu0
          %v8276 = vadd.f32 %v8107, %v8275
          %8277 = vdwg.mxu0
          %v8278 = vadd.f32 %v7716, %v8119
          %v8279 = vadd.f32 %v7717, %v8121
          %v8280 = vadd.f32 %v7718, %v8124
          %v8281 = vadd.f32 %v7719, %v8126
          %v8282 = vadd.f32 %v7720, %v8129
          %v8283 = vadd.f32 %v7721, %v8131
          %v8284 = vadd.f32 %v7722, %v8134
          %v8285 = vadd.f32 %v7723, %v8136
          %v8286 = vadd.f32 %v7724, %v8139
          %v8287 = vadd.f32 %v7725, %v8141
          %v8288 = vadd.f32 %v7726, %v8144
          %v8289 = vadd.f32 %v7727, %v8146
          %v8290 = vadd.f32 %v7728, %v8149
          %v8291 = vadd.f32 %v7729, %v8151
          %v8292 = vadd.f32 %v7730, %v8154
          %v8293 = vadd.f32 %v7731, %v8156
          %v8294 = vadd.f32 %v7732, %v8159
          %v8295 = vadd.f32 %v7733, %v8161
          %v8296 = vadd.f32 %v7734, %v8164
          %v8297 = vadd.f32 %v7735, %v8166
          %v8298 = vadd.f32 %v7736, %v8169
          %v8299 = vadd.f32 %v7737, %v8171
          %v8300 = vadd.f32 %v7738, %v8174
          %v8301 = vadd.f32 %v7739, %v8176
          %v8302 = vadd.f32 %v7740, %v8179
          %v8303 = vadd.f32 %v7741, %v8181
          %v8304 = vadd.f32 %v7742, %v8184
          %v8305 = vadd.f32 %v7743, %v8186
          %v8306 = vadd.f32 %v7744, %v8189
          %v8307 = vadd.f32 %v7745, %v8191
          %v8308 = vadd.f32 %v7746, %v8194
          %v8309 = vadd.f32 %v7747, %v8196
          %v8310 = vadd.f32 %v7748, %v8199
          %v8311 = vadd.f32 %v7749, %v8201
          %v8312 = vadd.f32 %v7750, %v8204
          %v8313 = vadd.f32 %v7751, %v8206
          %v8314 = vadd.f32 %v7752, %v8209
          %v8315 = vadd.f32 %v7753, %v8211
          %v8316 = vadd.f32 %v7754, %v8214
          %v8317 = vadd.f32 %v7755, %v8216
          %v8318 = vadd.f32 %v7756, %v8219
          %v8319 = vadd.f32 %v7757, %v8221
          %v8320 = vadd.f32 %v7758, %v8224
          %v8321 = vadd.f32 %v7759, %v8226
          %v8322 = vadd.f32 %v7760, %v8229
          %v8323 = vadd.f32 %v7761, %v8231
          %v8324 = vadd.f32 %v7762, %v8234
          %v8325 = vadd.f32 %v7763, %v8236
          %v8326 = vadd.f32 %v7764, %v8239
          %v8327 = vadd.f32 %v7765, %v8241
          %v8328 = vadd.f32 %v7766, %v8244
          %v8329 = vadd.f32 %v7767, %v8246
          %v8330 = vadd.f32 %v7768, %v8249
          %v8331 = vadd.f32 %v7769, %v8251
          %v8332 = vadd.f32 %v7770, %v8254
          %v8333 = vadd.f32 %v7771, %v8256
          %v8334 = vadd.f32 %v7772, %v8259
          %v8335 = vadd.f32 %v7773, %v8261
          %v8336 = vadd.f32 %v7774, %v8264
          %v8337 = vadd.f32 %v7775, %v8266
          %v8338 = vadd.f32 %v7776, %v8269
          %v8339 = vadd.f32 %v7777, %v8271
          %v8340 = vadd.f32 %v7778, %v8274
          %v8341 = vadd.f32 %v7779, %v8276
          %8342 = vst.msk [vmem:[#allocation4] sm:$0xff] %vm4800, %v8278
          %8343 = vst.msk [vmem:[#allocation4 + $0x8] sm:$0xff] %vm4800, %v8279
          %8344 = vst.msk [vmem:[#allocation4 + $0x10] sm:$0xff] %vm4800, %v8280
          %8345 = vst.msk [vmem:[#allocation4 + $0x18] sm:$0xff] %vm4800, %v8281
          %8346 = vst.msk [vmem:[#allocation4 + $0x20] sm:$0xff] %vm4800, %v8282
          %8347 = vst.msk [vmem:[#allocation4 + $0x28] sm:$0xff] %vm4800, %v8283
          %8348 = vst.msk [vmem:[#allocation4 + $0x30] sm:$0xff] %vm4800, %v8284
          %8349 = vst.msk [vmem:[#allocation4 + $0x38] sm:$0xff] %vm4800, %v8285
          %8350 = vst.msk [vmem:[#allocation4 + $0x40] sm:$0xff] %vm4800, %v8286
          %8351 = vst.msk [vmem:[#allocation4 + $0x48] sm:$0xff] %vm4800, %v8287
          %8352 = vst.msk [vmem:[#allocation4 + $0x50] sm:$0xff] %vm4800, %v8288
          %8353 = vst.msk [vmem:[#allocation4 + $0x58] sm:$0xff] %vm4800, %v8289
          %8354 = vst.msk [vmem:[#allocation4 + $0x60] sm:$0xff] %vm4800, %v8290
          %8355 = vst.msk [vmem:[#allocation4 + $0x68] sm:$0xff] %vm4800, %v8291
          %8356 = vst.msk [vmem:[#allocation4 + $0x70] sm:$0xff] %vm4800, %v8292
          %8357 = vst.msk [vmem:[#allocation4 + $0x78] sm:$0xff] %vm4800, %v8293
          %8358 = vst.msk [vmem:[#allocation4 + $0x80] sm:$0xff] %vm4800, %v8294
          %8359 = vst.msk [vmem:[#allocation4 + $0x88] sm:$0xff] %vm4800, %v8295
          %8360 = vst.msk [vmem:[#allocation4 + $0x90] sm:$0xff] %vm4800, %v8296
          %8361 = vst.msk [vmem:[#allocation4 + $0x98] sm:$0xff] %vm4800, %v8297
          %8362 = vst.msk [vmem:[#allocation4 + $0xa0] sm:$0xff] %vm4800, %v8298
          %8363 = vst.msk [vmem:[#allocation4 + $0xa8] sm:$0xff] %vm4800, %v8299
          %8364 = vst.msk [vmem:[#allocation4 + $0xb0] sm:$0xff] %vm4800, %v8300
          %8365 = vst.msk [vmem:[#allocation4 + $0xb8] sm:$0xff] %vm4800, %v8301
          %8366 = vst.msk [vmem:[#allocation4 + $0xc0] sm:$0xff] %vm4800, %v8302
          %8367 = vst.msk [vmem:[#allocation4 + $0xc8] sm:$0xff] %vm4800, %v8303
          %8368 = vst.msk [vmem:[#allocation4 + $0xd0] sm:$0xff] %vm4800, %v8304
          %8369 = vst.msk [vmem:[#allocation4 + $0xd8] sm:$0xff] %vm4800, %v8305
          %8370 = vst.msk [vmem:[#allocation4 + $0xe0] sm:$0xff] %vm4800, %v8306
          %8371 = vst.msk [vmem:[#allocation4 + $0xe8] sm:$0xff] %vm4800, %v8307
          %8372 = vst.msk [vmem:[#allocation4 + $0xf0] sm:$0xff] %vm4800, %v8308
          %8373 = vst.msk [vmem:[#allocation4 + $0xf8] sm:$0xff] %vm4800, %v8309
          %8374 = vst.msk [vmem:[#allocation4 + $0x100] sm:$0xff] %vm4800, %v8310
          %8375 = vst.msk [vmem:[#allocation4 + $0x108] sm:$0xff] %vm4800, %v8311
          %8376 = vst.msk [vmem:[#allocation4 + $0x110] sm:$0xff] %vm4800, %v8312
          %8377 = vst.msk [vmem:[#allocation4 + $0x118] sm:$0xff] %vm4800, %v8313
          %8378 = vst.msk [vmem:[#allocation4 + $0x120] sm:$0xff] %vm4800, %v8314
          %8379 = vst.msk [vmem:[#allocation4 + $0x128] sm:$0xff] %vm4800, %v8315
          %8380 = vst.msk [vmem:[#allocation4 + $0x130] sm:$0xff] %vm4800, %v8316
          %8381 = vst.msk [vmem:[#allocation4 + $0x138] sm:$0xff] %vm4800, %v8317
          %8382 = vst.msk [vmem:[#allocation4 + $0x140] sm:$0xff] %vm4800, %v8318
          %8383 = vst.msk [vmem:[#allocation4 + $0x148] sm:$0xff] %vm4800, %v8319
          %8384 = vst.msk [vmem:[#allocation4 + $0x150] sm:$0xff] %vm4800, %v8320
          %8385 = vst.msk [vmem:[#allocation4 + $0x158] sm:$0xff] %vm4800, %v8321
          %8386 = vst.msk [vmem:[#allocation4 + $0x160] sm:$0xff] %vm4800, %v8322
          %8387 = vst.msk [vmem:[#allocation4 + $0x168] sm:$0xff] %vm4800, %v8323
          %8388 = vst.msk [vmem:[#allocation4 + $0x170] sm:$0xff] %vm4800, %v8324
          %8389 = vst.msk [vmem:[#allocation4 + $0x178] sm:$0xff] %vm4800, %v8325
          %8390 = vst.msk [vmem:[#allocation4 + $0x180] sm:$0xff] %vm4800, %v8326
          %8391 = vst.msk [vmem:[#allocation4 + $0x188] sm:$0xff] %vm4800, %v8327
          %8392 = vst.msk [vmem:[#allocation4 + $0x190] sm:$0xff] %vm4800, %v8328
          %8393 = vst.msk [vmem:[#allocation4 + $0x198] sm:$0xff] %vm4800, %v8329
          %8394 = vst.msk [vmem:[#allocation4 + $0x1a0] sm:$0xff] %vm4800, %v8330
          %8395 = vst.msk [vmem:[#allocation4 + $0x1a8] sm:$0xff] %vm4800, %v8331
          %8396 = vst.msk [vmem:[#allocation4 + $0x1b0] sm:$0xff] %vm4800, %v8332
          %8397 = vst.msk [vmem:[#allocation4 + $0x1b8] sm:$0xff] %vm4800, %v8333
          %8398 = vst.msk [vmem:[#allocation4 + $0x1c0] sm:$0xff] %vm4800, %v8334
          %8399 = vst.msk [vmem:[#allocation4 + $0x1c8] sm:$0xff] %vm4800, %v8335
          %8400 = vst.msk [vmem:[#allocation4 + $0x1d0] sm:$0xff] %vm4800, %v8336
          %8401 = vst.msk [vmem:[#allocation4 + $0x1d8] sm:$0xff] %vm4800, %v8337
          %8402 = vst.msk [vmem:[#allocation4 + $0x1e0] sm:$0xff] %vm4800, %v8338
          %8403 = vst.msk [vmem:[#allocation4 + $0x1e8] sm:$0xff] %vm4800, %v8339
          %8404 = vst.msk [vmem:[#allocation4 + $0x1f0] sm:$0xff] %vm4800, %v8340
          %8405 = vst.msk [vmem:[#allocation4 + $0x1f8] sm:$0xff] %vm4800, %v8341
          %8406 = vst.msk [vmem:[#allocation2] sm:$0xff] %vm7267, %v5795
          %8407 = vst.msk [vmem:[#allocation2 + $0x8] sm:$0xff] %vm7267, %v5796
          %8408 = vst.msk [vmem:[#allocation2 + $0x10] sm:$0xff] %vm7267, %v5797
          %8409 = vst.msk [vmem:[#allocation2 + $0x18] sm:$0xff] %vm7267, %v5798
          %8410 = vst.msk [vmem:[#allocation2 + $0x20] sm:$0xff] %vm7267, %v5799
          %8411 = vst.msk [vmem:[#allocation2 + $0x28] sm:$0xff] %vm7267, %v5800
          %8412 = vst.msk [vmem:[#allocation2 + $0x30] sm:$0xff] %vm7267, %v5801
          %8413 = vst.msk [vmem:[#allocation2 + $0x38] sm:$0xff] %vm7267, %v5802
          %8414 = vst.msk [vmem:[#allocation2 + $0x40] sm:$0xff] %vm7267, %v5803
          %8415 = vst.msk [vmem:[#allocation2 + $0x48] sm:$0xff] %vm7267, %v5804
          %8416 = vst.msk [vmem:[#allocation2 + $0x50] sm:$0xff] %vm7267, %v5805
          %8417 = vst.msk [vmem:[#allocation2 + $0x58] sm:$0xff] %vm7267, %v5806
          %8418 = vst.msk [vmem:[#allocation2 + $0x60] sm:$0xff] %vm7267, %v5807
          %8419 = vst.msk [vmem:[#allocation2 + $0x68] sm:$0xff] %vm7267, %v5808
          %8420 = vst.msk [vmem:[#allocation2 + $0x70] sm:$0xff] %vm7267, %v5809
          %8421 = vst.msk [vmem:[#allocation2 + $0x78] sm:$0xff] %vm7267, %v5810
          %8422 = vst.msk [vmem:[#allocation2 + $0x80] sm:$0xff] %vm7267, %v5811
          %8423 = vst.msk [vmem:[#allocation2 + $0x88] sm:$0xff] %vm7267, %v5812
          %8424 = vst.msk [vmem:[#allocation2 + $0x90] sm:$0xff] %vm7267, %v5813
          %8425 = vst.msk [vmem:[#allocation2 + $0x98] sm:$0xff] %vm7267, %v5814
          %8426 = vst.msk [vmem:[#allocation2 + $0xa0] sm:$0xff] %vm7267, %v5815
          %8427 = vst.msk [vmem:[#allocation2 + $0xa8] sm:$0xff] %vm7267, %v5816
          %8428 = vst.msk [vmem:[#allocation2 + $0xb0] sm:$0xff] %vm7267, %v5817
          %8429 = vst.msk [vmem:[#allocation2 + $0xb8] sm:$0xff] %vm7267, %v5818
          %8430 = vst.msk [vmem:[#allocation2 + $0xc0] sm:$0xff] %vm7267, %v5819
          %8431 = vst.msk [vmem:[#allocation2 + $0xc8] sm:$0xff] %vm7267, %v5820
          %8432 = vst.msk [vmem:[#allocation2 + $0xd0] sm:$0xff] %vm7267, %v5821
          %8433 = vst.msk [vmem:[#allocation2 + $0xd8] sm:$0xff] %vm7267, %v5822
          %8434 = vst.msk [vmem:[#allocation2 + $0xe0] sm:$0xff] %vm7267, %v5823
          %8435 = vst.msk [vmem:[#allocation2 + $0xe8] sm:$0xff] %vm7267, %v5824
          %8436 = vst.msk [vmem:[#allocation2 + $0xf0] sm:$0xff] %vm7267, %v5825
          %8437 = vst.msk [vmem:[#allocation2 + $0xf8] sm:$0xff] %vm7267, %v5826
          %8438 = vst.msk [vmem:[#allocation2 + $0x100] sm:$0xff] %vm7267, %v5827
          %8439 = vst.msk [vmem:[#allocation2 + $0x108] sm:$0xff] %vm7267, %v5828
          %8440 = vst.msk [vmem:[#allocation2 + $0x110] sm:$0xff] %vm7267, %v5829
          %8441 = vst.msk [vmem:[#allocation2 + $0x118] sm:$0xff] %vm7267, %v5830
          %8442 = vst.msk [vmem:[#allocation2 + $0x120] sm:$0xff] %vm7267, %v5831
          %8443 = vst.msk [vmem:[#allocation2 + $0x128] sm:$0xff] %vm7267, %v5832
          %8444 = vst.msk [vmem:[#allocation2 + $0x130] sm:$0xff] %vm7267, %v5833
          %8445 = vst.msk [vmem:[#allocation2 + $0x138] sm:$0xff] %vm7267, %v5834
          %8446 = vst.msk [vmem:[#allocation2 + $0x140] sm:$0xff] %vm7267, %v5835
          %8447 = vst.msk [vmem:[#allocation2 + $0x148] sm:$0xff] %vm7267, %v5836
          %8448 = vst.msk [vmem:[#allocation2 + $0x150] sm:$0xff] %vm7267, %v5837
          %8449 = vst.msk [vmem:[#allocation2 + $0x158] sm:$0xff] %vm7267, %v5838
          %8450 = vst.msk [vmem:[#allocation2 + $0x160] sm:$0xff] %vm7267, %v5839
          %8451 = vst.msk [vmem:[#allocation2 + $0x168] sm:$0xff] %vm7267, %v5840
          %8452 = vst.msk [vmem:[#allocation2 + $0x170] sm:$0xff] %vm7267, %v5841
          %8453 = vst.msk [vmem:[#allocation2 + $0x178] sm:$0xff] %vm7267, %v5842
          %8454 = vst.msk [vmem:[#allocation2 + $0x180] sm:$0xff] %vm7267, %v5843
          %8455 = vst.msk [vmem:[#allocation2 + $0x188] sm:$0xff] %vm7267, %v5844
          %8456 = vst.msk [vmem:[#allocation2 + $0x190] sm:$0xff] %vm7267, %v5845
          %8457 = vst.msk [vmem:[#allocation2 + $0x198] sm:$0xff] %vm7267, %v5846
          %8458 = vst.msk [vmem:[#allocation2 + $0x1a0] sm:$0xff] %vm7267, %v5847
          %8459 = vst.msk [vmem:[#allocation2 + $0x1a8] sm:$0xff] %vm7267, %v5848
          %8460 = vst.msk [vmem:[#allocation2 + $0x1b0] sm:$0xff] %vm7267, %v5849
          %8461 = vst.msk [vmem:[#allocation2 + $0x1b8] sm:$0xff] %vm7267, %v5850
          %8462 = vst.msk [vmem:[#allocation2 + $0x1c0] sm:$0xff] %vm7267, %v5851
          %8463 = vst.msk [vmem:[#allocation2 + $0x1c8] sm:$0xff] %vm7267, %v5852
          %8464 = vst.msk [vmem:[#allocation2 + $0x1d0] sm:$0xff] %vm7267, %v5853
          %8465 = vst.msk [vmem:[#allocation2 + $0x1d8] sm:$0xff] %vm7267, %v5854
          %8466 = vst.msk [vmem:[#allocation2 + $0x1e0] sm:$0xff] %vm7267, %v5855
          %8467 = vst.msk [vmem:[#allocation2 + $0x1e8] sm:$0xff] %vm7267, %v5856
          %8468 = vst.msk [vmem:[#allocation2 + $0x1f0] sm:$0xff] %vm7267, %v5857
          %8469 = vst.msk [vmem:[#allocation2 + $0x1f8] sm:$0xff] %vm7267, %v5858
        $region85: #{tpu_custom_call.1} parent=68 // pred_fallthru
          _
        // Predicated region
        $region86: #{tpu_custom_call.1} parent=68 // pred_check
          %p8470 = pneg %p543
        $region87: #{tpu_custom_call.1} parent=68 // pred_check_branch
          %8472 = sbr.rel (%p8470) target = $region89
        $region88: #{tpu_custom_call.1} parent=68 // pred_region
          %v8473 = vld [vmem:[#allocation3] sm:$0xff]
          %v8474 = vld [vmem:[#allocation3 + $0x8] sm:$0xff]
          %v8475 = vld [vmem:[#allocation3 + $0x10] sm:$0xff]
          %v8476 = vld [vmem:[#allocation3 + $0x18] sm:$0xff]
          %v8477 = vld [vmem:[#allocation3 + $0x20] sm:$0xff]
          %v8478 = vld [vmem:[#allocation3 + $0x28] sm:$0xff]
          %v8479 = vld [vmem:[#allocation3 + $0x30] sm:$0xff]
          %v8480 = vld [vmem:[#allocation3 + $0x38] sm:$0xff]
          %v8481 = vld [vmem:[#allocation3 + $0x40] sm:$0xff]
          %v8482 = vld [vmem:[#allocation3 + $0x48] sm:$0xff]
          %v8483 = vld [vmem:[#allocation3 + $0x50] sm:$0xff]
          %v8484 = vld [vmem:[#allocation3 + $0x58] sm:$0xff]
          %v8485 = vld [vmem:[#allocation3 + $0x60] sm:$0xff]
          %v8486 = vld [vmem:[#allocation3 + $0x68] sm:$0xff]
          %v8487 = vld [vmem:[#allocation3 + $0x70] sm:$0xff]
          %v8488 = vld [vmem:[#allocation3 + $0x78] sm:$0xff]
          %v8489 = vld [vmem:[#allocation3 + $0x80] sm:$0xff]
          %v8490 = vld [vmem:[#allocation3 + $0x88] sm:$0xff]
          %v8491 = vld [vmem:[#allocation3 + $0x90] sm:$0xff]
          %v8492 = vld [vmem:[#allocation3 + $0x98] sm:$0xff]
          %v8493 = vld [vmem:[#allocation3 + $0xa0] sm:$0xff]
          %v8494 = vld [vmem:[#allocation3 + $0xa8] sm:$0xff]
          %v8495 = vld [vmem:[#allocation3 + $0xb0] sm:$0xff]
          %v8496 = vld [vmem:[#allocation3 + $0xb8] sm:$0xff]
          %v8497 = vld [vmem:[#allocation3 + $0xc0] sm:$0xff]
          %v8498 = vld [vmem:[#allocation3 + $0xc8] sm:$0xff]
          %v8499 = vld [vmem:[#allocation3 + $0xd0] sm:$0xff]
          %v8500 = vld [vmem:[#allocation3 + $0xd8] sm:$0xff]
          %v8501 = vld [vmem:[#allocation3 + $0xe0] sm:$0xff]
          %v8502 = vld [vmem:[#allocation3 + $0xe8] sm:$0xff]
          %v8503 = vld [vmem:[#allocation3 + $0xf0] sm:$0xff]
          %v8504 = vld [vmem:[#allocation3 + $0xf8] sm:$0xff]
          %v8505 = vld [vmem:[#allocation3 + $0x100] sm:$0xff]
          %v8506 = vld [vmem:[#allocation3 + $0x108] sm:$0xff]
          %v8507 = vld [vmem:[#allocation3 + $0x110] sm:$0xff]
          %v8508 = vld [vmem:[#allocation3 + $0x118] sm:$0xff]
          %v8509 = vld [vmem:[#allocation3 + $0x120] sm:$0xff]
          %v8510 = vld [vmem:[#allocation3 + $0x128] sm:$0xff]
          %v8511 = vld [vmem:[#allocation3 + $0x130] sm:$0xff]
          %v8512 = vld [vmem:[#allocation3 + $0x138] sm:$0xff]
          %v8513 = vld [vmem:[#allocation3 + $0x140] sm:$0xff]
          %v8514 = vld [vmem:[#allocation3 + $0x148] sm:$0xff]
          %v8515 = vld [vmem:[#allocation3 + $0x150] sm:$0xff]
          %v8516 = vld [vmem:[#allocation3 + $0x158] sm:$0xff]
          %v8517 = vld [vmem:[#allocation3 + $0x160] sm:$0xff]
          %v8518 = vld [vmem:[#allocation3 + $0x168] sm:$0xff]
          %v8519 = vld [vmem:[#allocation3 + $0x170] sm:$0xff]
          %v8520 = vld [vmem:[#allocation3 + $0x178] sm:$0xff]
          %v8521 = vld [vmem:[#allocation3 + $0x180] sm:$0xff]
          %v8522 = vld [vmem:[#allocation3 + $0x188] sm:$0xff]
          %v8523 = vld [vmem:[#allocation3 + $0x190] sm:$0xff]
          %v8524 = vld [vmem:[#allocation3 + $0x198] sm:$0xff]
          %v8525 = vld [vmem:[#allocation3 + $0x1a0] sm:$0xff]
          %v8526 = vld [vmem:[#allocation3 + $0x1a8] sm:$0xff]
          %v8527 = vld [vmem:[#allocation3 + $0x1b0] sm:$0xff]
          %v8528 = vld [vmem:[#allocation3 + $0x1b8] sm:$0xff]
          %v8529 = vld [vmem:[#allocation3 + $0x1c0] sm:$0xff]
          %v8530 = vld [vmem:[#allocation3 + $0x1c8] sm:$0xff]
          %v8531 = vld [vmem:[#allocation3 + $0x1d0] sm:$0xff]
          %v8532 = vld [vmem:[#allocation3 + $0x1d8] sm:$0xff]
          %v8533 = vld [vmem:[#allocation3 + $0x1e0] sm:$0xff]
          %v8534 = vld [vmem:[#allocation3 + $0x1e8] sm:$0xff]
          %v8535 = vld [vmem:[#allocation3 + $0x1f0] sm:$0xff]
          %v8536 = vld [vmem:[#allocation3 + $0x1f8] sm:$0xff]
          %vm8537 = vcmp.eq.f32.partialorder %v8473, 0.0
          %vm8538 = vcmp.eq.f32.partialorder %v8474, 0.0
          %vm8539 = vcmp.eq.f32.partialorder %v8475, 0.0
          %vm8540 = vcmp.eq.f32.partialorder %v8476, 0.0
          %vm8541 = vcmp.eq.f32.partialorder %v8477, 0.0
          %vm8542 = vcmp.eq.f32.partialorder %v8478, 0.0
          %vm8543 = vcmp.eq.f32.partialorder %v8479, 0.0
          %vm8544 = vcmp.eq.f32.partialorder %v8480, 0.0
          %vm8545 = vcmp.eq.f32.partialorder %v8481, 0.0
          %vm8546 = vcmp.eq.f32.partialorder %v8482, 0.0
          %vm8547 = vcmp.eq.f32.partialorder %v8483, 0.0
          %vm8548 = vcmp.eq.f32.partialorder %v8484, 0.0
          %vm8549 = vcmp.eq.f32.partialorder %v8485, 0.0
          %vm8550 = vcmp.eq.f32.partialorder %v8486, 0.0
          %vm8551 = vcmp.eq.f32.partialorder %v8487, 0.0
          %vm8552 = vcmp.eq.f32.partialorder %v8488, 0.0
          %vm8553 = vcmp.eq.f32.partialorder %v8489, 0.0
          %vm8554 = vcmp.eq.f32.partialorder %v8490, 0.0
          %vm8555 = vcmp.eq.f32.partialorder %v8491, 0.0
          %vm8556 = vcmp.eq.f32.partialorder %v8492, 0.0
          %vm8557 = vcmp.eq.f32.partialorder %v8493, 0.0
          %vm8558 = vcmp.eq.f32.partialorder %v8494, 0.0
          %vm8559 = vcmp.eq.f32.partialorder %v8495, 0.0
          %vm8560 = vcmp.eq.f32.partialorder %v8496, 0.0
          %vm8561 = vcmp.eq.f32.partialorder %v8497, 0.0
          %vm8562 = vcmp.eq.f32.partialorder %v8498, 0.0
          %vm8563 = vcmp.eq.f32.partialorder %v8499, 0.0
          %vm8564 = vcmp.eq.f32.partialorder %v8500, 0.0
          %vm8565 = vcmp.eq.f32.partialorder %v8501, 0.0
          %vm8566 = vcmp.eq.f32.partialorder %v8502, 0.0
          %vm8567 = vcmp.eq.f32.partialorder %v8503, 0.0
          %vm8568 = vcmp.eq.f32.partialorder %v8504, 0.0
          %vm8569 = vcmp.eq.f32.partialorder %v8505, 0.0
          %vm8570 = vcmp.eq.f32.partialorder %v8506, 0.0
          %vm8571 = vcmp.eq.f32.partialorder %v8507, 0.0
          %vm8572 = vcmp.eq.f32.partialorder %v8508, 0.0
          %vm8573 = vcmp.eq.f32.partialorder %v8509, 0.0
          %vm8574 = vcmp.eq.f32.partialorder %v8510, 0.0
          %vm8575 = vcmp.eq.f32.partialorder %v8511, 0.0
          %vm8576 = vcmp.eq.f32.partialorder %v8512, 0.0
          %vm8577 = vcmp.eq.f32.partialorder %v8513, 0.0
          %vm8578 = vcmp.eq.f32.partialorder %v8514, 0.0
          %vm8579 = vcmp.eq.f32.partialorder %v8515, 0.0
          %vm8580 = vcmp.eq.f32.partialorder %v8516, 0.0
          %vm8581 = vcmp.eq.f32.partialorder %v8517, 0.0
          %vm8582 = vcmp.eq.f32.partialorder %v8518, 0.0
          %vm8583 = vcmp.eq.f32.partialorder %v8519, 0.0
          %vm8584 = vcmp.eq.f32.partialorder %v8520, 0.0
          %vm8585 = vcmp.eq.f32.partialorder %v8521, 0.0
          %vm8586 = vcmp.eq.f32.partialorder %v8522, 0.0
          %vm8587 = vcmp.eq.f32.partialorder %v8523, 0.0
          %vm8588 = vcmp.eq.f32.partialorder %v8524, 0.0
          %vm8589 = vcmp.eq.f32.partialorder %v8525, 0.0
          %vm8590 = vcmp.eq.f32.partialorder %v8526, 0.0
          %vm8591 = vcmp.eq.f32.partialorder %v8527, 0.0
          %vm8592 = vcmp.eq.f32.partialorder %v8528, 0.0
          %vm8593 = vcmp.eq.f32.partialorder %v8529, 0.0
          %vm8594 = vcmp.eq.f32.partialorder %v8530, 0.0
          %vm8595 = vcmp.eq.f32.partialorder %v8531, 0.0
          %vm8596 = vcmp.eq.f32.partialorder %v8532, 0.0
          %vm8597 = vcmp.eq.f32.partialorder %v8533, 0.0
          %vm8598 = vcmp.eq.f32.partialorder %v8534, 0.0
          %vm8599 = vcmp.eq.f32.partialorder %v8535, 0.0
          %vm8600 = vcmp.eq.f32.partialorder %v8536, 0.0
          %v8601 = vsel %vm8537, 1.0, %v8473
          %v8602 = vsel %vm8538, 1.0, %v8474
          %v8603 = vsel %vm8539, 1.0, %v8475
          %v8604 = vsel %vm8540, 1.0, %v8476
          %v8605 = vsel %vm8541, 1.0, %v8477
          %v8606 = vsel %vm8542, 1.0, %v8478
          %v8607 = vsel %vm8543, 1.0, %v8479
          %v8608 = vsel %vm8544, 1.0, %v8480
          %v8609 = vsel %vm8545, 1.0, %v8481
          %v8610 = vsel %vm8546, 1.0, %v8482
          %v8611 = vsel %vm8547, 1.0, %v8483
          %v8612 = vsel %vm8548, 1.0, %v8484
          %v8613 = vsel %vm8549, 1.0, %v8485
          %v8614 = vsel %vm8550, 1.0, %v8486
          %v8615 = vsel %vm8551, 1.0, %v8487
          %v8616 = vsel %vm8552, 1.0, %v8488
          %v8617 = vsel %vm8553, 1.0, %v8489
          %v8618 = vsel %vm8554, 1.0, %v8490
          %v8619 = vsel %vm8555, 1.0, %v8491
          %v8620 = vsel %vm8556, 1.0, %v8492
          %v8621 = vsel %vm8557, 1.0, %v8493
          %v8622 = vsel %vm8558, 1.0, %v8494
          %v8623 = vsel %vm8559, 1.0, %v8495
          %v8624 = vsel %vm8560, 1.0, %v8496
          %v8625 = vsel %vm8561, 1.0, %v8497
          %v8626 = vsel %vm8562, 1.0, %v8498
          %v8627 = vsel %vm8563, 1.0, %v8499
          %v8628 = vsel %vm8564, 1.0, %v8500
          %v8629 = vsel %vm8565, 1.0, %v8501
          %v8630 = vsel %vm8566, 1.0, %v8502
          %v8631 = vsel %vm8567, 1.0, %v8503
          %v8632 = vsel %vm8568, 1.0, %v8504
          %v8633 = vsel %vm8569, 1.0, %v8505
          %v8634 = vsel %vm8570, 1.0, %v8506
          %v8635 = vsel %vm8571, 1.0, %v8507
          %v8636 = vsel %vm8572, 1.0, %v8508
          %v8637 = vsel %vm8573, 1.0, %v8509
          %v8638 = vsel %vm8574, 1.0, %v8510
          %v8639 = vsel %vm8575, 1.0, %v8511
          %v8640 = vsel %vm8576, 1.0, %v8512
          %v8641 = vsel %vm8577, 1.0, %v8513
          %v8642 = vsel %vm8578, 1.0, %v8514
          %v8643 = vsel %vm8579, 1.0, %v8515
          %v8644 = vsel %vm8580, 1.0, %v8516
          %v8645 = vsel %vm8581, 1.0, %v8517
          %v8646 = vsel %vm8582, 1.0, %v8518
          %v8647 = vsel %vm8583, 1.0, %v8519
          %v8648 = vsel %vm8584, 1.0, %v8520
          %v8649 = vsel %vm8585, 1.0, %v8521
          %v8650 = vsel %vm8586, 1.0, %v8522
          %v8651 = vsel %vm8587, 1.0, %v8523
          %v8652 = vsel %vm8588, 1.0, %v8524
          %v8653 = vsel %vm8589, 1.0, %v8525
          %v8654 = vsel %vm8590, 1.0, %v8526
          %v8655 = vsel %vm8591, 1.0, %v8527
          %v8656 = vsel %vm8592, 1.0, %v8528
          %v8657 = vsel %vm8593, 1.0, %v8529
          %v8658 = vsel %vm8594, 1.0, %v8530
          %v8659 = vsel %vm8595, 1.0, %v8531
          %v8660 = vsel %vm8596, 1.0, %v8532
          %v8661 = vsel %vm8597, 1.0, %v8533
          %v8662 = vsel %vm8598, 1.0, %v8534
          %v8663 = vsel %vm8599, 1.0, %v8535
          %v8664 = vsel %vm8600, 1.0, %v8536
          %v8665 = vrcp.pop %v8601
          %v8666 = vrcp.pop %v8602
          %v8667 = vrcp.pop %v8603
          %v8668 = vrcp.pop %v8604
          %v8669 = vrcp.pop %v8605
          %v8670 = vrcp.pop %v8606
          %v8671 = vrcp.pop %v8607
          %v8672 = vrcp.pop %v8608
          %v8673 = vrcp.pop %v8609
          %v8674 = vrcp.pop %v8610
          %v8675 = vrcp.pop %v8611
          %v8676 = vrcp.pop %v8612
          %v8677 = vrcp.pop %v8613
          %v8678 = vrcp.pop %v8614
          %v8679 = vrcp.pop %v8615
          %v8680 = vrcp.pop %v8616
          %v8681 = vrcp.pop %v8617
          %v8682 = vrcp.pop %v8618
          %v8683 = vrcp.pop %v8619
          %v8684 = vrcp.pop %v8620
          %v8685 = vrcp.pop %v8621
          %v8686 = vrcp.pop %v8622
          %v8687 = vrcp.pop %v8623
          %v8688 = vrcp.pop %v8624
          %v8689 = vrcp.pop %v8625
          %v8690 = vrcp.pop %v8626
          %v8691 = vrcp.pop %v8627
          %v8692 = vrcp.pop %v8628
          %v8693 = vrcp.pop %v8629
          %v8694 = vrcp.pop %v8630
          %v8695 = vrcp.pop %v8631
          %v8696 = vrcp.pop %v8632
          %v8697 = vrcp.pop %v8633
          %v8698 = vrcp.pop %v8634
          %v8699 = vrcp.pop %v8635
          %v8700 = vrcp.pop %v8636
          %v8701 = vrcp.pop %v8637
          %v8702 = vrcp.pop %v8638
          %v8703 = vrcp.pop %v8639
          %v8704 = vrcp.pop %v8640
          %v8705 = vrcp.pop %v8641
          %v8706 = vrcp.pop %v8642
          %v8707 = vrcp.pop %v8643
          %v8708 = vrcp.pop %v8644
          %v8709 = vrcp.pop %v8645
          %v8710 = vrcp.pop %v8646
          %v8711 = vrcp.pop %v8647
          %v8712 = vrcp.pop %v8648
          %v8713 = vrcp.pop %v8649
          %v8714 = vrcp.pop %v8650
          %v8715 = vrcp.pop %v8651
          %v8716 = vrcp.pop %v8652
          %v8717 = vrcp.pop %v8653
          %v8718 = vrcp.pop %v8654
          %v8719 = vrcp.pop %v8655
          %v8720 = vrcp.pop %v8656
          %v8721 = vrcp.pop %v8657
          %v8722 = vrcp.pop %v8658
          %v8723 = vrcp.pop %v8659
          %v8724 = vrcp.pop %v8660
          %v8725 = vrcp.pop %v8661
          %v8726 = vrcp.pop %v8662
          %v8727 = vrcp.pop %v8663
          %v8728 = vrcp.pop %v8664
          %v8729 = vld [vmem:[#allocation4] sm:$0xff]
          %v8730 = vld [vmem:[#allocation4 + $0x8] sm:$0xff]
          %v8731 = vld [vmem:[#allocation4 + $0x10] sm:$0xff]
          %v8732 = vld [vmem:[#allocation4 + $0x18] sm:$0xff]
          %v8733 = vld [vmem:[#allocation4 + $0x20] sm:$0xff]
          %v8734 = vld [vmem:[#allocation4 + $0x28] sm:$0xff]
          %v8735 = vld [vmem:[#allocation4 + $0x30] sm:$0xff]
          %v8736 = vld [vmem:[#allocation4 + $0x38] sm:$0xff]
          %v8737 = vld [vmem:[#allocation4 + $0x40] sm:$0xff]
          %v8738 = vld [vmem:[#allocation4 + $0x48] sm:$0xff]
          %v8739 = vld [vmem:[#allocation4 + $0x50] sm:$0xff]
          %v8740 = vld [vmem:[#allocation4 + $0x58] sm:$0xff]
          %v8741 = vld [vmem:[#allocation4 + $0x60] sm:$0xff]
          %v8742 = vld [vmem:[#allocation4 + $0x68] sm:$0xff]
          %v8743 = vld [vmem:[#allocation4 + $0x70] sm:$0xff]
          %v8744 = vld [vmem:[#allocation4 + $0x78] sm:$0xff]
          %v8745 = vld [vmem:[#allocation4 + $0x80] sm:$0xff]
          %v8746 = vld [vmem:[#allocation4 + $0x88] sm:$0xff]
          %v8747 = vld [vmem:[#allocation4 + $0x90] sm:$0xff]
          %v8748 = vld [vmem:[#allocation4 + $0x98] sm:$0xff]
          %v8749 = vld [vmem:[#allocation4 + $0xa0] sm:$0xff]
          %v8750 = vld [vmem:[#allocation4 + $0xa8] sm:$0xff]
          %v8751 = vld [vmem:[#allocation4 + $0xb0] sm:$0xff]
          %v8752 = vld [vmem:[#allocation4 + $0xb8] sm:$0xff]
          %v8753 = vld [vmem:[#allocation4 + $0xc0] sm:$0xff]
          %v8754 = vld [vmem:[#allocation4 + $0xc8] sm:$0xff]
          %v8755 = vld [vmem:[#allocation4 + $0xd0] sm:$0xff]
          %v8756 = vld [vmem:[#allocation4 + $0xd8] sm:$0xff]
          %v8757 = vld [vmem:[#allocation4 + $0xe0] sm:$0xff]
          %v8758 = vld [vmem:[#allocation4 + $0xe8] sm:$0xff]
          %v8759 = vld [vmem:[#allocation4 + $0xf0] sm:$0xff]
          %v8760 = vld [vmem:[#allocation4 + $0xf8] sm:$0xff]
          %v8761 = vld [vmem:[#allocation4 + $0x100] sm:$0xff]
          %v8762 = vld [vmem:[#allocation4 + $0x108] sm:$0xff]
          %v8763 = vld [vmem:[#allocation4 + $0x110] sm:$0xff]
          %v8764 = vld [vmem:[#allocation4 + $0x118] sm:$0xff]
          %v8765 = vld [vmem:[#allocation4 + $0x120] sm:$0xff]
          %v8766 = vld [vmem:[#allocation4 + $0x128] sm:$0xff]
          %v8767 = vld [vmem:[#allocation4 + $0x130] sm:$0xff]
          %v8768 = vld [vmem:[#allocation4 + $0x138] sm:$0xff]
          %v8769 = vld [vmem:[#allocation4 + $0x140] sm:$0xff]
          %v8770 = vld [vmem:[#allocation4 + $0x148] sm:$0xff]
          %v8771 = vld [vmem:[#allocation4 + $0x150] sm:$0xff]
          %v8772 = vld [vmem:[#allocation4 + $0x158] sm:$0xff]
          %v8773 = vld [vmem:[#allocation4 + $0x160] sm:$0xff]
          %v8774 = vld [vmem:[#allocation4 + $0x168] sm:$0xff]
          %v8775 = vld [vmem:[#allocation4 + $0x170] sm:$0xff]
          %v8776 = vld [vmem:[#allocation4 + $0x178] sm:$0xff]
          %v8777 = vld [vmem:[#allocation4 + $0x180] sm:$0xff]
          %v8778 = vld [vmem:[#allocation4 + $0x188] sm:$0xff]
          %v8779 = vld [vmem:[#allocation4 + $0x190] sm:$0xff]
          %v8780 = vld [vmem:[#allocation4 + $0x198] sm:$0xff]
          %v8781 = vld [vmem:[#allocation4 + $0x1a0] sm:$0xff]
          %v8782 = vld [vmem:[#allocation4 + $0x1a8] sm:$0xff]
          %v8783 = vld [vmem:[#allocation4 + $0x1b0] sm:$0xff]
          %v8784 = vld [vmem:[#allocation4 + $0x1b8] sm:$0xff]
          %v8785 = vld [vmem:[#allocation4 + $0x1c0] sm:$0xff]
          %v8786 = vld [vmem:[#allocation4 + $0x1c8] sm:$0xff]
          %v8787 = vld [vmem:[#allocation4 + $0x1d0] sm:$0xff]
          %v8788 = vld [vmem:[#allocation4 + $0x1d8] sm:$0xff]
          %v8789 = vld [vmem:[#allocation4 + $0x1e0] sm:$0xff]
          %v8790 = vld [vmem:[#allocation4 + $0x1e8] sm:$0xff]
          %v8791 = vld [vmem:[#allocation4 + $0x1f0] sm:$0xff]
          %v8792 = vld [vmem:[#allocation4 + $0x1f8] sm:$0xff]
          %8794 = vset.pattern.permute.xlu0 0
          %8795 = vperm.xlu0 %8794, %v8665
          %v8796 = vpop.permute.xlu0 %8795
          %8799 = vset.pattern.permute.xlu0 0
          %8800 = vperm.xlu0 %8799, %v8666
          %v8801 = vpop.permute.xlu0 %8800
          %8804 = vset.pattern.permute.xlu0 0
          %8805 = vperm.xlu0 %8804, %v8667
          %v8806 = vpop.permute.xlu0 %8805
          %8809 = vset.pattern.permute.xlu0 0
          %8810 = vperm.xlu0 %8809, %v8668
          %v8811 = vpop.permute.xlu0 %8810
          %8814 = vset.pattern.permute.xlu0 0
          %8815 = vperm.xlu0 %8814, %v8669
          %v8816 = vpop.permute.xlu0 %8815
          %8819 = vset.pattern.permute.xlu0 0
          %8820 = vperm.xlu0 %8819, %v8670
          %v8821 = vpop.permute.xlu0 %8820
          %8824 = vset.pattern.permute.xlu0 0
          %8825 = vperm.xlu0 %8824, %v8671
          %v8826 = vpop.permute.xlu0 %8825
          %8829 = vset.pattern.permute.xlu0 0
          %8830 = vperm.xlu0 %8829, %v8672
          %v8831 = vpop.permute.xlu0 %8830
          %8834 = vset.pattern.permute.xlu0 0
          %8835 = vperm.xlu0 %8834, %v8673
          %v8836 = vpop.permute.xlu0 %8835
          %8839 = vset.pattern.permute.xlu0 0
          %8840 = vperm.xlu0 %8839, %v8674
          %v8841 = vpop.permute.xlu0 %8840
          %8844 = vset.pattern.permute.xlu0 0
          %8845 = vperm.xlu0 %8844, %v8675
          %v8846 = vpop.permute.xlu0 %8845
          %8849 = vset.pattern.permute.xlu0 0
          %8850 = vperm.xlu0 %8849, %v8676
          %v8851 = vpop.permute.xlu0 %8850
          %8854 = vset.pattern.permute.xlu0 0
          %8855 = vperm.xlu0 %8854, %v8677
          %v8856 = vpop.permute.xlu0 %8855
          %8859 = vset.pattern.permute.xlu0 0
          %8860 = vperm.xlu0 %8859, %v8678
          %v8861 = vpop.permute.xlu0 %8860
          %8864 = vset.pattern.permute.xlu0 0
          %8865 = vperm.xlu0 %8864, %v8679
          %v8866 = vpop.permute.xlu0 %8865
          %8869 = vset.pattern.permute.xlu0 0
          %8870 = vperm.xlu0 %8869, %v8680
          %v8871 = vpop.permute.xlu0 %8870
          %8874 = vset.pattern.permute.xlu0 0
          %8875 = vperm.xlu0 %8874, %v8681
          %v8876 = vpop.permute.xlu0 %8875
          %8879 = vset.pattern.permute.xlu0 0
          %8880 = vperm.xlu0 %8879, %v8682
          %v8881 = vpop.permute.xlu0 %8880
          %8884 = vset.pattern.permute.xlu0 0
          %8885 = vperm.xlu0 %8884, %v8683
          %v8886 = vpop.permute.xlu0 %8885
          %8889 = vset.pattern.permute.xlu0 0
          %8890 = vperm.xlu0 %8889, %v8684
          %v8891 = vpop.permute.xlu0 %8890
          %8894 = vset.pattern.permute.xlu0 0
          %8895 = vperm.xlu0 %8894, %v8685
          %v8896 = vpop.permute.xlu0 %8895
          %8899 = vset.pattern.permute.xlu0 0
          %8900 = vperm.xlu0 %8899, %v8686
          %v8901 = vpop.permute.xlu0 %8900
          %8904 = vset.pattern.permute.xlu0 0
          %8905 = vperm.xlu0 %8904, %v8687
          %v8906 = vpop.permute.xlu0 %8905
          %8909 = vset.pattern.permute.xlu0 0
          %8910 = vperm.xlu0 %8909, %v8688
          %v8911 = vpop.permute.xlu0 %8910
          %8914 = vset.pattern.permute.xlu0 0
          %8915 = vperm.xlu0 %8914, %v8689
          %v8916 = vpop.permute.xlu0 %8915
          %8919 = vset.pattern.permute.xlu0 0
          %8920 = vperm.xlu0 %8919, %v8690
          %v8921 = vpop.permute.xlu0 %8920
          %8924 = vset.pattern.permute.xlu0 0
          %8925 = vperm.xlu0 %8924, %v8691
          %v8926 = vpop.permute.xlu0 %8925
          %8929 = vset.pattern.permute.xlu0 0
          %8930 = vperm.xlu0 %8929, %v8692
          %v8931 = vpop.permute.xlu0 %8930
          %8934 = vset.pattern.permute.xlu0 0
          %8935 = vperm.xlu0 %8934, %v8693
          %v8936 = vpop.permute.xlu0 %8935
          %8939 = vset.pattern.permute.xlu0 0
          %8940 = vperm.xlu0 %8939, %v8694
          %v8941 = vpop.permute.xlu0 %8940
          %8944 = vset.pattern.permute.xlu0 0
          %8945 = vperm.xlu0 %8944, %v8695
          %v8946 = vpop.permute.xlu0 %8945
          %8949 = vset.pattern.permute.xlu0 0
          %8950 = vperm.xlu0 %8949, %v8696
          %v8951 = vpop.permute.xlu0 %8950
          %8954 = vset.pattern.permute.xlu0 0
          %8955 = vperm.xlu0 %8954, %v8697
          %v8956 = vpop.permute.xlu0 %8955
          %8959 = vset.pattern.permute.xlu0 0
          %8960 = vperm.xlu0 %8959, %v8698
          %v8961 = vpop.permute.xlu0 %8960
          %8964 = vset.pattern.permute.xlu0 0
          %8965 = vperm.xlu0 %8964, %v8699
          %v8966 = vpop.permute.xlu0 %8965
          %8969 = vset.pattern.permute.xlu0 0
          %8970 = vperm.xlu0 %8969, %v8700
          %v8971 = vpop.permute.xlu0 %8970
          %8974 = vset.pattern.permute.xlu0 0
          %8975 = vperm.xlu0 %8974, %v8701
          %v8976 = vpop.permute.xlu0 %8975
          %8979 = vset.pattern.permute.xlu0 0
          %8980 = vperm.xlu0 %8979, %v8702
          %v8981 = vpop.permute.xlu0 %8980
          %8984 = vset.pattern.permute.xlu0 0
          %8985 = vperm.xlu0 %8984, %v8703
          %v8986 = vpop.permute.xlu0 %8985
          %8989 = vset.pattern.permute.xlu0 0
          %8990 = vperm.xlu0 %8989, %v8704
          %v8991 = vpop.permute.xlu0 %8990
          %8994 = vset.pattern.permute.xlu0 0
          %8995 = vperm.xlu0 %8994, %v8705
          %v8996 = vpop.permute.xlu0 %8995
          %8999 = vset.pattern.permute.xlu0 0
          %9000 = vperm.xlu0 %8999, %v8706
          %v9001 = vpop.permute.xlu0 %9000
          %9004 = vset.pattern.permute.xlu0 0
          %9005 = vperm.xlu0 %9004, %v8707
          %v9006 = vpop.permute.xlu0 %9005
          %9009 = vset.pattern.permute.xlu0 0
          %9010 = vperm.xlu0 %9009, %v8708
          %v9011 = vpop.permute.xlu0 %9010
          %9014 = vset.pattern.permute.xlu0 0
          %9015 = vperm.xlu0 %9014, %v8709
          %v9016 = vpop.permute.xlu0 %9015
          %9019 = vset.pattern.permute.xlu0 0
          %9020 = vperm.xlu0 %9019, %v8710
          %v9021 = vpop.permute.xlu0 %9020
          %9024 = vset.pattern.permute.xlu0 0
          %9025 = vperm.xlu0 %9024, %v8711
          %v9026 = vpop.permute.xlu0 %9025
          %9029 = vset.pattern.permute.xlu0 0
          %9030 = vperm.xlu0 %9029, %v8712
          %v9031 = vpop.permute.xlu0 %9030
          %9034 = vset.pattern.permute.xlu0 0
          %9035 = vperm.xlu0 %9034, %v8713
          %v9036 = vpop.permute.xlu0 %9035
          %9039 = vset.pattern.permute.xlu0 0
          %9040 = vperm.xlu0 %9039, %v8714
          %v9041 = vpop.permute.xlu0 %9040
          %9044 = vset.pattern.permute.xlu0 0
          %9045 = vperm.xlu0 %9044, %v8715
          %v9046 = vpop.permute.xlu0 %9045
          %9049 = vset.pattern.permute.xlu0 0
          %9050 = vperm.xlu0 %9049, %v8716
          %v9051 = vpop.permute.xlu0 %9050
          %9054 = vset.pattern.permute.xlu0 0
          %9055 = vperm.xlu0 %9054, %v8717
          %v9056 = vpop.permute.xlu0 %9055
          %9059 = vset.pattern.permute.xlu0 0
          %9060 = vperm.xlu0 %9059, %v8718
          %v9061 = vpop.permute.xlu0 %9060
          %9064 = vset.pattern.permute.xlu0 0
          %9065 = vperm.xlu0 %9064, %v8719
          %v9066 = vpop.permute.xlu0 %9065
          %9069 = vset.pattern.permute.xlu0 0
          %9070 = vperm.xlu0 %9069, %v8720
          %v9071 = vpop.permute.xlu0 %9070
          %9074 = vset.pattern.permute.xlu0 0
          %9075 = vperm.xlu0 %9074, %v8721
          %v9076 = vpop.permute.xlu0 %9075
          %9079 = vset.pattern.permute.xlu0 0
          %9080 = vperm.xlu0 %9079, %v8722
          %v9081 = vpop.permute.xlu0 %9080
          %9084 = vset.pattern.permute.xlu0 0
          %9085 = vperm.xlu0 %9084, %v8723
          %v9086 = vpop.permute.xlu0 %9085
          %9089 = vset.pattern.permute.xlu0 0
          %9090 = vperm.xlu0 %9089, %v8724
          %v9091 = vpop.permute.xlu0 %9090
          %9094 = vset.pattern.permute.xlu0 0
          %9095 = vperm.xlu0 %9094, %v8725
          %v9096 = vpop.permute.xlu0 %9095
          %9099 = vset.pattern.permute.xlu0 0
          %9100 = vperm.xlu0 %9099, %v8726
          %v9101 = vpop.permute.xlu0 %9100
          %9104 = vset.pattern.permute.xlu0 0
          %9105 = vperm.xlu0 %9104, %v8727
          %v9106 = vpop.permute.xlu0 %9105
          %9109 = vset.pattern.permute.xlu0 0
          %9110 = vperm.xlu0 %9109, %v8728
          %v9111 = vpop.permute.xlu0 %9110
          %v9113 = vmul.f32 %v8729, %v8796
          %v9114 = vmul.f32 %v8730, %v8801
          %v9115 = vmul.f32 %v8731, %v8806
          %v9116 = vmul.f32 %v8732, %v8811
          %v9117 = vmul.f32 %v8733, %v8816
          %v9118 = vmul.f32 %v8734, %v8821
          %v9119 = vmul.f32 %v8735, %v8826
          %v9120 = vmul.f32 %v8736, %v8831
          %v9121 = vmul.f32 %v8737, %v8836
          %v9122 = vmul.f32 %v8738, %v8841
          %v9123 = vmul.f32 %v8739, %v8846
          %v9124 = vmul.f32 %v8740, %v8851
          %v9125 = vmul.f32 %v8741, %v8856
          %v9126 = vmul.f32 %v8742, %v8861
          %v9127 = vmul.f32 %v8743, %v8866
          %v9128 = vmul.f32 %v8744, %v8871
          %v9129 = vmul.f32 %v8745, %v8876
          %v9130 = vmul.f32 %v8746, %v8881
          %v9131 = vmul.f32 %v8747, %v8886
          %v9132 = vmul.f32 %v8748, %v8891
          %v9133 = vmul.f32 %v8749, %v8896
          %v9134 = vmul.f32 %v8750, %v8901
          %v9135 = vmul.f32 %v8751, %v8906
          %v9136 = vmul.f32 %v8752, %v8911
          %v9137 = vmul.f32 %v8753, %v8916
          %v9138 = vmul.f32 %v8754, %v8921
          %v9139 = vmul.f32 %v8755, %v8926
          %v9140 = vmul.f32 %v8756, %v8931
          %v9141 = vmul.f32 %v8757, %v8936
          %v9142 = vmul.f32 %v8758, %v8941
          %v9143 = vmul.f32 %v8759, %v8946
          %v9144 = vmul.f32 %v8760, %v8951
          %v9145 = vmul.f32 %v8761, %v8956
          %v9146 = vmul.f32 %v8762, %v8961
          %v9147 = vmul.f32 %v8763, %v8966
          %v9148 = vmul.f32 %v8764, %v8971
          %v9149 = vmul.f32 %v8765, %v8976
          %v9150 = vmul.f32 %v8766, %v8981
          %v9151 = vmul.f32 %v8767, %v8986
          %v9152 = vmul.f32 %v8768, %v8991
          %v9153 = vmul.f32 %v8769, %v8996
          %v9154 = vmul.f32 %v8770, %v9001
          %v9155 = vmul.f32 %v8771, %v9006
          %v9156 = vmul.f32 %v8772, %v9011
          %v9157 = vmul.f32 %v8773, %v9016
          %v9158 = vmul.f32 %v8774, %v9021
          %v9159 = vmul.f32 %v8775, %v9026
          %v9160 = vmul.f32 %v8776, %v9031
          %v9161 = vmul.f32 %v8777, %v9036
          %v9162 = vmul.f32 %v8778, %v9041
          %v9163 = vmul.f32 %v8779, %v9046
          %v9164 = vmul.f32 %v8780, %v9051
          %v9165 = vmul.f32 %v8781, %v9056
          %v9166 = vmul.f32 %v8782, %v9061
          %v9167 = vmul.f32 %v8783, %v9066
          %v9168 = vmul.f32 %v8784, %v9071
          %v9169 = vmul.f32 %v8785, %v9076
          %v9170 = vmul.f32 %v8786, %v9081
          %v9171 = vmul.f32 %v8787, %v9086
          %v9172 = vmul.f32 %v8788, %v9091
          %v9173 = vmul.f32 %v8789, %v9096
          %v9174 = vmul.f32 %v8790, %v9101
          %v9175 = vmul.f32 %v8791, %v9106
          %v9176 = vmul.f32 %v8792, %v9111
          %v9177 = vpack.c.bf16 %v9113, %v9113
          %v9178 = vpack.c.bf16 %v9114, %v9114
          %v9179 = vpack.c.bf16 %v9115, %v9115
          %v9180 = vpack.c.bf16 %v9116, %v9116
          %v9181 = vpack.c.bf16 %v9117, %v9117
          %v9182 = vpack.c.bf16 %v9118, %v9118
          %v9183 = vpack.c.bf16 %v9119, %v9119
          %v9184 = vpack.c.bf16 %v9120, %v9120
          %v9185 = vpack.c.bf16 %v9121, %v9121
          %v9186 = vpack.c.bf16 %v9122, %v9122
          %v9187 = vpack.c.bf16 %v9123, %v9123
          %v9188 = vpack.c.bf16 %v9124, %v9124
          %v9189 = vpack.c.bf16 %v9125, %v9125
          %v9190 = vpack.c.bf16 %v9126, %v9126
          %v9191 = vpack.c.bf16 %v9127, %v9127
          %v9192 = vpack.c.bf16 %v9128, %v9128
          %v9193 = vpack.c.bf16 %v9129, %v9129
          %v9194 = vpack.c.bf16 %v9130, %v9130
          %v9195 = vpack.c.bf16 %v9131, %v9131
          %v9196 = vpack.c.bf16 %v9132, %v9132
          %v9197 = vpack.c.bf16 %v9133, %v9133
          %v9198 = vpack.c.bf16 %v9134, %v9134
          %v9199 = vpack.c.bf16 %v9135, %v9135
          %v9200 = vpack.c.bf16 %v9136, %v9136
          %v9201 = vpack.c.bf16 %v9137, %v9137
          %v9202 = vpack.c.bf16 %v9138, %v9138
          %v9203 = vpack.c.bf16 %v9139, %v9139
          %v9204 = vpack.c.bf16 %v9140, %v9140
          %v9205 = vpack.c.bf16 %v9141, %v9141
          %v9206 = vpack.c.bf16 %v9142, %v9142
          %v9207 = vpack.c.bf16 %v9143, %v9143
          %v9208 = vpack.c.bf16 %v9144, %v9144
          %v9209 = vpack.c.bf16 %v9145, %v9145
          %v9210 = vpack.c.bf16 %v9146, %v9146
          %v9211 = vpack.c.bf16 %v9147, %v9147
          %v9212 = vpack.c.bf16 %v9148, %v9148
          %v9213 = vpack.c.bf16 %v9149, %v9149
          %v9214 = vpack.c.bf16 %v9150, %v9150
          %v9215 = vpack.c.bf16 %v9151, %v9151
          %v9216 = vpack.c.bf16 %v9152, %v9152
          %v9217 = vpack.c.bf16 %v9153, %v9153
          %v9218 = vpack.c.bf16 %v9154, %v9154
          %v9219 = vpack.c.bf16 %v9155, %v9155
          %v9220 = vpack.c.bf16 %v9156, %v9156
          %v9221 = vpack.c.bf16 %v9157, %v9157
          %v9222 = vpack.c.bf16 %v9158, %v9158
          %v9223 = vpack.c.bf16 %v9159, %v9159
          %v9224 = vpack.c.bf16 %v9160, %v9160
          %v9225 = vpack.c.bf16 %v9161, %v9161
          %v9226 = vpack.c.bf16 %v9162, %v9162
          %v9227 = vpack.c.bf16 %v9163, %v9163
          %v9228 = vpack.c.bf16 %v9164, %v9164
          %v9229 = vpack.c.bf16 %v9165, %v9165
          %v9230 = vpack.c.bf16 %v9166, %v9166
          %v9231 = vpack.c.bf16 %v9167, %v9167
          %v9232 = vpack.c.bf16 %v9168, %v9168
          %v9233 = vpack.c.bf16 %v9169, %v9169
          %v9234 = vpack.c.bf16 %v9170, %v9170
          %v9235 = vpack.c.bf16 %v9171, %v9171
          %v9236 = vpack.c.bf16 %v9172, %v9172
          %v9237 = vpack.c.bf16 %v9173, %v9173
          %v9238 = vpack.c.bf16 %v9174, %v9174
          %v9239 = vpack.c.bf16 %v9175, %v9175
          %v9240 = vpack.c.bf16 %v9176, %v9176
          %vm9241 = vcmask 519168
          %9242 = vst.msk [vmem:[%s530] sm:$0xf] %vm9241, %v9177
          %9243 = vst.msk [vmem:[%s530 + $0x4] sm:$0xf] %vm9241, %v9178
          %9244 = vst.msk [vmem:[%s530 + $0x8] sm:$0xf] %vm9241, %v9179
          %9245 = vst.msk [vmem:[%s530 + $0xc] sm:$0xf] %vm9241, %v9180
          %9246 = vst.msk [vmem:[%s530 + $0x10] sm:$0xf] %vm9241, %v9181
          %9247 = vst.msk [vmem:[%s530 + $0x14] sm:$0xf] %vm9241, %v9182
          %9248 = vst.msk [vmem:[%s530 + $0x18] sm:$0xf] %vm9241, %v9183
          %9249 = vst.msk [vmem:[%s530 + $0x1c] sm:$0xf] %vm9241, %v9184
          %9250 = vst.msk [vmem:[%s530 + $0x20] sm:$0xf] %vm9241, %v9185
          %9251 = vst.msk [vmem:[%s530 + $0x24] sm:$0xf] %vm9241, %v9186
          %9252 = vst.msk [vmem:[%s530 + $0x28] sm:$0xf] %vm9241, %v9187
          %9253 = vst.msk [vmem:[%s530 + $0x2c] sm:$0xf] %vm9241, %v9188
          %9254 = vst.msk [vmem:[%s530 + $0x30] sm:$0xf] %vm9241, %v9189
          %9255 = vst.msk [vmem:[%s530 + $0x34] sm:$0xf] %vm9241, %v9190
          %9256 = vst.msk [vmem:[%s530 + $0x38] sm:$0xf] %vm9241, %v9191
          %9257 = vst.msk [vmem:[%s530 + $0x3c] sm:$0xf] %vm9241, %v9192
          %9258 = vst.msk [vmem:[%s530 + $0x40] sm:$0xf] %vm9241, %v9193
          %9259 = vst.msk [vmem:[%s530 + $0x44] sm:$0xf] %vm9241, %v9194
          %9260 = vst.msk [vmem:[%s530 + $0x48] sm:$0xf] %vm9241, %v9195
          %9261 = vst.msk [vmem:[%s530 + $0x4c] sm:$0xf] %vm9241, %v9196
          %9262 = vst.msk [vmem:[%s530 + $0x50] sm:$0xf] %vm9241, %v9197
          %9263 = vst.msk [vmem:[%s530 + $0x54] sm:$0xf] %vm9241, %v9198
          %9264 = vst.msk [vmem:[%s530 + $0x58] sm:$0xf] %vm9241, %v9199
          %9265 = vst.msk [vmem:[%s530 + $0x5c] sm:$0xf] %vm9241, %v9200
          %9266 = vst.msk [vmem:[%s530 + $0x60] sm:$0xf] %vm9241, %v9201
          %9267 = vst.msk [vmem:[%s530 + $0x64] sm:$0xf] %vm9241, %v9202
          %9268 = vst.msk [vmem:[%s530 + $0x68] sm:$0xf] %vm9241, %v9203
          %9269 = vst.msk [vmem:[%s530 + $0x6c] sm:$0xf] %vm9241, %v9204
          %9270 = vst.msk [vmem:[%s530 + $0x70] sm:$0xf] %vm9241, %v9205
          %9271 = vst.msk [vmem:[%s530 + $0x74] sm:$0xf] %vm9241, %v9206
          %9272 = vst.msk [vmem:[%s530 + $0x78] sm:$0xf] %vm9241, %v9207
          %9273 = vst.msk [vmem:[%s530 + $0x7c] sm:$0xf] %vm9241, %v9208
          %9274 = vst.msk [vmem:[%s530 + $0x80] sm:$0xf] %vm9241, %v9209
          %9275 = vst.msk [vmem:[%s530 + $0x84] sm:$0xf] %vm9241, %v9210
          %9276 = vst.msk [vmem:[%s530 + $0x88] sm:$0xf] %vm9241, %v9211
          %9277 = vst.msk [vmem:[%s530 + $0x8c] sm:$0xf] %vm9241, %v9212
          %9278 = vst.msk [vmem:[%s530 + $0x90] sm:$0xf] %vm9241, %v9213
          %9279 = vst.msk [vmem:[%s530 + $0x94] sm:$0xf] %vm9241, %v9214
          %9280 = vst.msk [vmem:[%s530 + $0x98] sm:$0xf] %vm9241, %v9215
          %9281 = vst.msk [vmem:[%s530 + $0x9c] sm:$0xf] %vm9241, %v9216
          %9282 = vst.msk [vmem:[%s530 + $0xa0] sm:$0xf] %vm9241, %v9217
          %9283 = vst.msk [vmem:[%s530 + $0xa4] sm:$0xf] %vm9241, %v9218
          %9284 = vst.msk [vmem:[%s530 + $0xa8] sm:$0xf] %vm9241, %v9219
          %9285 = vst.msk [vmem:[%s530 + $0xac] sm:$0xf] %vm9241, %v9220
          %9286 = vst.msk [vmem:[%s530 + $0xb0] sm:$0xf] %vm9241, %v9221
          %9287 = vst.msk [vmem:[%s530 + $0xb4] sm:$0xf] %vm9241, %v9222
          %9288 = vst.msk [vmem:[%s530 + $0xb8] sm:$0xf] %vm9241, %v9223
          %9289 = vst.msk [vmem:[%s530 + $0xbc] sm:$0xf] %vm9241, %v9224
          %9290 = vst.msk [vmem:[%s530 + $0xc0] sm:$0xf] %vm9241, %v9225
          %9291 = vst.msk [vmem:[%s530 + $0xc4] sm:$0xf] %vm9241, %v9226
          %9292 = vst.msk [vmem:[%s530 + $0xc8] sm:$0xf] %vm9241, %v9227
          %9293 = vst.msk [vmem:[%s530 + $0xcc] sm:$0xf] %vm9241, %v9228
          %9294 = vst.msk [vmem:[%s530 + $0xd0] sm:$0xf] %vm9241, %v9229
          %9295 = vst.msk [vmem:[%s530 + $0xd4] sm:$0xf] %vm9241, %v9230
          %9296 = vst.msk [vmem:[%s530 + $0xd8] sm:$0xf] %vm9241, %v9231
          %9297 = vst.msk [vmem:[%s530 + $0xdc] sm:$0xf] %vm9241, %v9232
          %9298 = vst.msk [vmem:[%s530 + $0xe0] sm:$0xf] %vm9241, %v9233
          %9299 = vst.msk [vmem:[%s530 + $0xe4] sm:$0xf] %vm9241, %v9234
          %9300 = vst.msk [vmem:[%s530 + $0xe8] sm:$0xf] %vm9241, %v9235
          %9301 = vst.msk [vmem:[%s530 + $0xec] sm:$0xf] %vm9241, %v9236
          %9302 = vst.msk [vmem:[%s530 + $0xf0] sm:$0xf] %vm9241, %v9237
          %9303 = vst.msk [vmem:[%s530 + $0xf4] sm:$0xf] %vm9241, %v9238
          %9304 = vst.msk [vmem:[%s530 + $0xf8] sm:$0xf] %vm9241, %v9239
          %9305 = vst.msk [vmem:[%s530 + $0xfc] sm:$0xf] %vm9241, %v9240
        $region89: #{tpu_custom_call.1} parent=68 // pred_fallthru
          _
        %s9306 = sand.u32 %s138, 1
        %s9307 = sand.u32 %s138, 1
        %s9308 = smul.addr %s9307, 256
        %s9309 = scalar_lea.vmem [#allocation9], %s9308
        // Predicated region
        $region90: #{tpu_custom_call.1} parent=68 // pred_check
          %p9310 = pneg %p148
        $region91: #{tpu_custom_call.1} parent=68 // pred_check_branch
          %9312 = sbr.rel (%p9310) target = $region93
        $region92: #{tpu_custom_call.1} parent=68 // pred_region
          %s9313 = smul.u32 16, %s35
          %s9314 = smul.addr %s34, 128
          %s9315 = sadd.s32 %s9313, %s9314
          %s9316 = smul.addr %s9315, 4
          %s9317 = scalar_lea.vmem %s5, %s9316
          // Predicated region
          $region94: #{tpu_custom_call.1} parent=92 // pred_check
            _
          $region95: #{tpu_custom_call.1} parent=92 // pred_check_branch
            %9319 = sbr.rel (0) target = $region97
          $region96: #{tpu_custom_call.1} parent=92 // pred_region
            // Predicated region
            $region98: #{tpu_custom_call.1} parent=96 // pred_check
              _
            $region99: #{tpu_custom_call.1} parent=96 // pred_check_branch
              %9321 = sbr.rel target = $region101
            $region100: #{tpu_custom_call.1} parent=96 // pred_region
              // Predicated region
              $region113: #{tpu_custom_call.1} parent=100 // pred_check
                _
              $region114: #{tpu_custom_call.1} parent=100 // pred_check_branch
                %9463 = sbr.rel (0) target = $region116
              $region115: #{tpu_custom_call.1} parent=100 // pred_region
                loop: start=0, step=1, limit=1
                $region117: #{tpu_custom_call.1} parent=115 // loop_pre_header
                  _
                $region118: #{tpu_custom_call.1} parent=115 // loop_header
                  %s9465 = sphi 0, %s9469
                  %p9466 = scmp.ge.s32.totalorder %s9465, 1
                  %s9470 = sphi %s9309, %s9309
                  %s9471 = sphi %s9317, %s9317
                $region119: #{tpu_custom_call.1} parent=115 // loop_header_branch
                  %9468 = sbr.rel (%p9466) target = $region123
                $region120: #{tpu_custom_call.1} parent=115 // loop_body
                  _
                $region121: #{tpu_custom_call.1} parent=115 // loop_footer
                  %s9469 = sadd.s32 1, %s9465
                $region122: #{tpu_custom_call.1} parent=115 // loop_footer_branch
                  %9464 = sbr.rel target = $region118
                $region123: #{tpu_custom_call.1} parent=115 // loop_exit
                  _
                %s9473 = ssub.s32 16, 1
                loop: start=0, step=1, limit=1
                $region124: #{tpu_custom_call.1} parent=115 // loop_pre_header
                  _
                $region125: #{tpu_custom_call.1} parent=115 // loop_header
                  %s9475 = sphi 0, %s9479
                  %p9476 = scmp.ge.s32.totalorder %s9475, 1
                  %s9480 = sphi %s9309, %s9309
                  %s9481 = sphi %s9317, %s9317
                $region126: #{tpu_custom_call.1} parent=115 // loop_header_branch
                  %9478 = sbr.rel (%p9476) target = $region130
                $region127: #{tpu_custom_call.1} parent=115 // loop_body
                  %v9482 = vld [vmem:[%s9480] sm:%s9473]
                  %9483 = vst [vmem:[%s9481] sm:%s9473] %v9482
                  %v9484 = vld [vmem:[%s9480 + $0x4] sm:%s9473]
                  %9485 = vst [vmem:[%s9481 + $0x4] sm:%s9473] %v9484
                  %v9486 = vld [vmem:[%s9480 + $0x8] sm:%s9473]
                  %9487 = vst [vmem:[%s9481 + $0x8] sm:%s9473] %v9486
                  %v9488 = vld [vmem:[%s9480 + $0xc] sm:%s9473]
                  %9489 = vst [vmem:[%s9481 + $0xc] sm:%s9473] %v9488
                  %v9490 = vld [vmem:[%s9480 + $0x10] sm:%s9473]
                  %9491 = vst [vmem:[%s9481 + $0x10] sm:%s9473] %v9490
                  %v9492 = vld [vmem:[%s9480 + $0x14] sm:%s9473]
                  %9493 = vst [vmem:[%s9481 + $0x14] sm:%s9473] %v9492
                  %v9494 = vld [vmem:[%s9480 + $0x18] sm:%s9473]
                  %9495 = vst [vmem:[%s9481 + $0x18] sm:%s9473] %v9494
                  %v9496 = vld [vmem:[%s9480 + $0x1c] sm:%s9473]
                  %9497 = vst [vmem:[%s9481 + $0x1c] sm:%s9473] %v9496
                  %v9498 = vld [vmem:[%s9480 + $0x20] sm:%s9473]
                  %9499 = vst [vmem:[%s9481 + $0x20] sm:%s9473] %v9498
                  %v9500 = vld [vmem:[%s9480 + $0x24] sm:%s9473]
                  %9501 = vst [vmem:[%s9481 + $0x24] sm:%s9473] %v9500
                  %v9502 = vld [vmem:[%s9480 + $0x28] sm:%s9473]
                  %9503 = vst [vmem:[%s9481 + $0x28] sm:%s9473] %v9502
                  %v9504 = vld [vmem:[%s9480 + $0x2c] sm:%s9473]
                  %9505 = vst [vmem:[%s9481 + $0x2c] sm:%s9473] %v9504
                  %v9506 = vld [vmem:[%s9480 + $0x30] sm:%s9473]
                  %9507 = vst [vmem:[%s9481 + $0x30] sm:%s9473] %v9506
                  %v9508 = vld [vmem:[%s9480 + $0x34] sm:%s9473]
                  %9509 = vst [vmem:[%s9481 + $0x34] sm:%s9473] %v9508
                  %v9510 = vld [vmem:[%s9480 + $0x38] sm:%s9473]
                  %9511 = vst [vmem:[%s9481 + $0x38] sm:%s9473] %v9510
                  %v9512 = vld [vmem:[%s9480 + $0x3c] sm:%s9473]
                  %9513 = vst [vmem:[%s9481 + $0x3c] sm:%s9473] %v9512
                  %v9514 = vld [vmem:[%s9480 + $0x40] sm:%s9473]
                  %9515 = vst [vmem:[%s9481 + $0x80] sm:%s9473] %v9514
                  %v9516 = vld [vmem:[%s9480 + $0x44] sm:%s9473]
                  %9517 = vst [vmem:[%s9481 + $0x84] sm:%s9473] %v9516
                  %v9518 = vld [vmem:[%s9480 + $0x48] sm:%s9473]
                  %9519 = vst [vmem:[%s9481 + $0x88] sm:%s9473] %v9518
                  %v9520 = vld [vmem:[%s9480 + $0x4c] sm:%s9473]
                  %9521 = vst [vmem:[%s9481 + $0x8c] sm:%s9473] %v9520
                  %v9522 = vld [vmem:[%s9480 + $0x50] sm:%s9473]
                  %9523 = vst [vmem:[%s9481 + $0x90] sm:%s9473] %v9522
                  %v9524 = vld [vmem:[%s9480 + $0x54] sm:%s9473]
                  %9525 = vst [vmem:[%s9481 + $0x94] sm:%s9473] %v9524
                  %v9526 = vld [vmem:[%s9480 + $0x58] sm:%s9473]
                  %9527 = vst [vmem:[%s9481 + $0x98] sm:%s9473] %v9526
                  %v9528 = vld [vmem:[%s9480 + $0x5c] sm:%s9473]
                  %9529 = vst [vmem:[%s9481 + $0x9c] sm:%s9473] %v9528
                  %v9530 = vld [vmem:[%s9480 + $0x60] sm:%s9473]
                  %9531 = vst [vmem:[%s9481 + $0xa0] sm:%s9473] %v9530
                  %v9532 = vld [vmem:[%s9480 + $0x64] sm:%s9473]
                  %9533 = vst [vmem:[%s9481 + $0xa4] sm:%s9473] %v9532
                  %v9534 = vld [vmem:[%s9480 + $0x68] sm:%s9473]
                  %9535 = vst [vmem:[%s9481 + $0xa8] sm:%s9473] %v9534
                  %v9536 = vld [vmem:[%s9480 + $0x6c] sm:%s9473]
                  %9537 = vst [vmem:[%s9481 + $0xac] sm:%s9473] %v9536
                  %v9538 = vld [vmem:[%s9480 + $0x70] sm:%s9473]
                  %9539 = vst [vmem:[%s9481 + $0xb0] sm:%s9473] %v9538
                  %v9540 = vld [vmem:[%s9480 + $0x74] sm:%s9473]
                  %9541 = vst [vmem:[%s9481 + $0xb4] sm:%s9473] %v9540
                  %v9542 = vld [vmem:[%s9480 + $0x78] sm:%s9473]
                  %9543 = vst [vmem:[%s9481 + $0xb8] sm:%s9473] %v9542
                  %v9544 = vld [vmem:[%s9480 + $0x7c] sm:%s9473]
                  %9545 = vst [vmem:[%s9481 + $0xbc] sm:%s9473] %v9544
                  %v9546 = vld [vmem:[%s9480 + $0x80] sm:%s9473]
                  %9547 = vst [vmem:[%s9481 + $0x100] sm:%s9473] %v9546
                  %v9548 = vld [vmem:[%s9480 + $0x84] sm:%s9473]
                  %9549 = vst [vmem:[%s9481 + $0x104] sm:%s9473] %v9548
                  %v9550 = vld [vmem:[%s9480 + $0x88] sm:%s9473]
                  %9551 = vst [vmem:[%s9481 + $0x108] sm:%s9473] %v9550
                  %v9552 = vld [vmem:[%s9480 + $0x8c] sm:%s9473]
                  %9553 = vst [vmem:[%s9481 + $0x10c] sm:%s9473] %v9552
                  %v9554 = vld [vmem:[%s9480 + $0x90] sm:%s9473]
                  %9555 = vst [vmem:[%s9481 + $0x110] sm:%s9473] %v9554
                  %v9556 = vld [vmem:[%s9480 + $0x94] sm:%s9473]
                  %9557 = vst [vmem:[%s9481 + $0x114] sm:%s9473] %v9556
                  %v9558 = vld [vmem:[%s9480 + $0x98] sm:%s9473]
                  %9559 = vst [vmem:[%s9481 + $0x118] sm:%s9473] %v9558
                  %v9560 = vld [vmem:[%s9480 + $0x9c] sm:%s9473]
                  %9561 = vst [vmem:[%s9481 + $0x11c] sm:%s9473] %v9560
                  %v9562 = vld [vmem:[%s9480 + $0xa0] sm:%s9473]
                  %9563 = vst [vmem:[%s9481 + $0x120] sm:%s9473] %v9562
                  %v9564 = vld [vmem:[%s9480 + $0xa4] sm:%s9473]
                  %9565 = vst [vmem:[%s9481 + $0x124] sm:%s9473] %v9564
                  %v9566 = vld [vmem:[%s9480 + $0xa8] sm:%s9473]
                  %9567 = vst [vmem:[%s9481 + $0x128] sm:%s9473] %v9566
                  %v9568 = vld [vmem:[%s9480 + $0xac] sm:%s9473]
                  %9569 = vst [vmem:[%s9481 + $0x12c] sm:%s9473] %v9568
                  %v9570 = vld [vmem:[%s9480 + $0xb0] sm:%s9473]
                  %9571 = vst [vmem:[%s9481 + $0x130] sm:%s9473] %v9570
                  %v9572 = vld [vmem:[%s9480 + $0xb4] sm:%s9473]
                  %9573 = vst [vmem:[%s9481 + $0x134] sm:%s9473] %v9572
                  %v9574 = vld [vmem:[%s9480 + $0xb8] sm:%s9473]
                  %9575 = vst [vmem:[%s9481 + $0x138] sm:%s9473] %v9574
                  %v9576 = vld [vmem:[%s9480 + $0xbc] sm:%s9473]
                  %9577 = vst [vmem:[%s9481 + $0x13c] sm:%s9473] %v9576
                  %v9578 = vld [vmem:[%s9480 + $0xc0] sm:%s9473]
                  %9579 = vst [vmem:[%s9481 + $0x180] sm:%s9473] %v9578
                  %v9580 = vld [vmem:[%s9480 + $0xc4] sm:%s9473]
                  %9581 = vst [vmem:[%s9481 + $0x184] sm:%s9473] %v9580
                  %v9582 = vld [vmem:[%s9480 + $0xc8] sm:%s9473]
                  %9583 = vst [vmem:[%s9481 + $0x188] sm:%s9473] %v9582
                  %v9584 = vld [vmem:[%s9480 + $0xcc] sm:%s9473]
                  %9585 = vst [vmem:[%s9481 + $0x18c] sm:%s9473] %v9584
                  %v9586 = vld [vmem:[%s9480 + $0xd0] sm:%s9473]
                  %9587 = vst [vmem:[%s9481 + $0x190] sm:%s9473] %v9586
                  %v9588 = vld [vmem:[%s9480 + $0xd4] sm:%s9473]
                  %9589 = vst [vmem:[%s9481 + $0x194] sm:%s9473] %v9588
                  %v9590 = vld [vmem:[%s9480 + $0xd8] sm:%s9473]
                  %9591 = vst [vmem:[%s9481 + $0x198] sm:%s9473] %v9590
                  %v9592 = vld [vmem:[%s9480 + $0xdc] sm:%s9473]
                  %9593 = vst [vmem:[%s9481 + $0x19c] sm:%s9473] %v9592
                  %v9594 = vld [vmem:[%s9480 + $0xe0] sm:%s9473]
                  %9595 = vst [vmem:[%s9481 + $0x1a0] sm:%s9473] %v9594
                  %v9596 = vld [vmem:[%s9480 + $0xe4] sm:%s9473]
                  %9597 = vst [vmem:[%s9481 + $0x1a4] sm:%s9473] %v9596
                  %v9598 = vld [vmem:[%s9480 + $0xe8] sm:%s9473]
                  %9599 = vst [vmem:[%s9481 + $0x1a8] sm:%s9473] %v9598
                  %v9600 = vld [vmem:[%s9480 + $0xec] sm:%s9473]
                  %9601 = vst [vmem:[%s9481 + $0x1ac] sm:%s9473] %v9600
                  %v9602 = vld [vmem:[%s9480 + $0xf0] sm:%s9473]
                  %9603 = vst [vmem:[%s9481 + $0x1b0] sm:%s9473] %v9602
                  %v9604 = vld [vmem:[%s9480 + $0xf4] sm:%s9473]
                  %9605 = vst [vmem:[%s9481 + $0x1b4] sm:%s9473] %v9604
                  %v9606 = vld [vmem:[%s9480 + $0xf8] sm:%s9473]
                  %9607 = vst [vmem:[%s9481 + $0x1b8] sm:%s9473] %v9606
                  %v9608 = vld [vmem:[%s9480 + $0xfc] sm:%s9473]
                  %9609 = vst [vmem:[%s9481 + $0x1bc] sm:%s9473] %v9608
                $region128: #{tpu_custom_call.1} parent=115 // loop_footer
                  %s9479 = sadd.s32 1, %s9475
                $region129: #{tpu_custom_call.1} parent=115 // loop_footer_branch
                  %9474 = sbr.rel target = $region125
                $region130: #{tpu_custom_call.1} parent=115 // loop_exit
                  _
              $region116: #{tpu_custom_call.1} parent=100 // pred_fallthru
                _
            $region101: #{tpu_custom_call.1} parent=96 // pred_fallthru
              _
            // Predicated region
            $region102: #{tpu_custom_call.1} parent=96 // pred_check
              _
            $region103: #{tpu_custom_call.1} parent=96 // pred_check_branch
              %9323 = sbr.rel (0) target = $region105
            $region104: #{tpu_custom_call.1} parent=96 // pred_region
              %s9325 = ssub.s32 16, 1
              loop: start=0, step=1, limit=1
              $region106: #{tpu_custom_call.1} parent=104 // loop_pre_header
                _
              $region107: #{tpu_custom_call.1} parent=104 // loop_header
                %s9327 = sphi 0, %s9331
                %p9328 = scmp.ge.s32.totalorder %s9327, 1
                %s9332 = sphi %s9309, %s9309
                %s9333 = sphi %s9317, %s9317
              $region108: #{tpu_custom_call.1} parent=104 // loop_header_branch
                %9330 = sbr.rel (%p9328) target = $region112
              $region109: #{tpu_custom_call.1} parent=104 // loop_body
                %v9334 = vld [vmem:[%s9332] sm:%s9325]
                %9335 = vst [vmem:[%s9333] sm:%s9325] %v9334
                %v9336 = vld [vmem:[%s9332 + $0x4] sm:%s9325]
                %9337 = vst [vmem:[%s9333 + $0x4] sm:%s9325] %v9336
                %v9338 = vld [vmem:[%s9332 + $0x8] sm:%s9325]
                %9339 = vst [vmem:[%s9333 + $0x8] sm:%s9325] %v9338
                %v9340 = vld [vmem:[%s9332 + $0xc] sm:%s9325]
                %9341 = vst [vmem:[%s9333 + $0xc] sm:%s9325] %v9340
                %v9342 = vld [vmem:[%s9332 + $0x10] sm:%s9325]
                %9343 = vst [vmem:[%s9333 + $0x10] sm:%s9325] %v9342
                %v9344 = vld [vmem:[%s9332 + $0x14] sm:%s9325]
                %9345 = vst [vmem:[%s9333 + $0x14] sm:%s9325] %v9344
                %v9346 = vld [vmem:[%s9332 + $0x18] sm:%s9325]
                %9347 = vst [vmem:[%s9333 + $0x18] sm:%s9325] %v9346
                %v9348 = vld [vmem:[%s9332 + $0x1c] sm:%s9325]
                %9349 = vst [vmem:[%s9333 + $0x1c] sm:%s9325] %v9348
                %v9350 = vld [vmem:[%s9332 + $0x20] sm:%s9325]
                %9351 = vst [vmem:[%s9333 + $0x20] sm:%s9325] %v9350
                %v9352 = vld [vmem:[%s9332 + $0x24] sm:%s9325]
                %9353 = vst [vmem:[%s9333 + $0x24] sm:%s9325] %v9352
                %v9354 = vld [vmem:[%s9332 + $0x28] sm:%s9325]
                %9355 = vst [vmem:[%s9333 + $0x28] sm:%s9325] %v9354
                %v9356 = vld [vmem:[%s9332 + $0x2c] sm:%s9325]
                %9357 = vst [vmem:[%s9333 + $0x2c] sm:%s9325] %v9356
                %v9358 = vld [vmem:[%s9332 + $0x30] sm:%s9325]
                %9359 = vst [vmem:[%s9333 + $0x30] sm:%s9325] %v9358
                %v9360 = vld [vmem:[%s9332 + $0x34] sm:%s9325]
                %9361 = vst [vmem:[%s9333 + $0x34] sm:%s9325] %v9360
                %v9362 = vld [vmem:[%s9332 + $0x38] sm:%s9325]
                %9363 = vst [vmem:[%s9333 + $0x38] sm:%s9325] %v9362
                %v9364 = vld [vmem:[%s9332 + $0x3c] sm:%s9325]
                %9365 = vst [vmem:[%s9333 + $0x3c] sm:%s9325] %v9364
                %v9366 = vld [vmem:[%s9332 + $0x40] sm:%s9325]
                %9367 = vst [vmem:[%s9333 + $0x80] sm:%s9325] %v9366
                %v9368 = vld [vmem:[%s9332 + $0x44] sm:%s9325]
                %9369 = vst [vmem:[%s9333 + $0x84] sm:%s9325] %v9368
                %v9370 = vld [vmem:[%s9332 + $0x48] sm:%s9325]
                %9371 = vst [vmem:[%s9333 + $0x88] sm:%s9325] %v9370
                %v9372 = vld [vmem:[%s9332 + $0x4c] sm:%s9325]
                %9373 = vst [vmem:[%s9333 + $0x8c] sm:%s9325] %v9372
                %v9374 = vld [vmem:[%s9332 + $0x50] sm:%s9325]
                %9375 = vst [vmem:[%s9333 + $0x90] sm:%s9325] %v9374
                %v9376 = vld [vmem:[%s9332 + $0x54] sm:%s9325]
                %9377 = vst [vmem:[%s9333 + $0x94] sm:%s9325] %v9376
                %v9378 = vld [vmem:[%s9332 + $0x58] sm:%s9325]
                %9379 = vst [vmem:[%s9333 + $0x98] sm:%s9325] %v9378
                %v9380 = vld [vmem:[%s9332 + $0x5c] sm:%s9325]
                %9381 = vst [vmem:[%s9333 + $0x9c] sm:%s9325] %v9380
                %v9382 = vld [vmem:[%s9332 + $0x60] sm:%s9325]
                %9383 = vst [vmem:[%s9333 + $0xa0] sm:%s9325] %v9382
                %v9384 = vld [vmem:[%s9332 + $0x64] sm:%s9325]
                %9385 = vst [vmem:[%s9333 + $0xa4] sm:%s9325] %v9384
                %v9386 = vld [vmem:[%s9332 + $0x68] sm:%s9325]
                %9387 = vst [vmem:[%s9333 + $0xa8] sm:%s9325] %v9386
                %v9388 = vld [vmem:[%s9332 + $0x6c] sm:%s9325]
                %9389 = vst [vmem:[%s9333 + $0xac] sm:%s9325] %v9388
                %v9390 = vld [vmem:[%s9332 + $0x70] sm:%s9325]
                %9391 = vst [vmem:[%s9333 + $0xb0] sm:%s9325] %v9390
                %v9392 = vld [vmem:[%s9332 + $0x74] sm:%s9325]
                %9393 = vst [vmem:[%s9333 + $0xb4] sm:%s9325] %v9392
                %v9394 = vld [vmem:[%s9332 + $0x78] sm:%s9325]
                %9395 = vst [vmem:[%s9333 + $0xb8] sm:%s9325] %v9394
                %v9396 = vld [vmem:[%s9332 + $0x7c] sm:%s9325]
                %9397 = vst [vmem:[%s9333 + $0xbc] sm:%s9325] %v9396
                %v9398 = vld [vmem:[%s9332 + $0x80] sm:%s9325]
                %9399 = vst [vmem:[%s9333 + $0x100] sm:%s9325] %v9398
                %v9400 = vld [vmem:[%s9332 + $0x84] sm:%s9325]
                %9401 = vst [vmem:[%s9333 + $0x104] sm:%s9325] %v9400
                %v9402 = vld [vmem:[%s9332 + $0x88] sm:%s9325]
                %9403 = vst [vmem:[%s9333 + $0x108] sm:%s9325] %v9402
                %v9404 = vld [vmem:[%s9332 + $0x8c] sm:%s9325]
                %9405 = vst [vmem:[%s9333 + $0x10c] sm:%s9325] %v9404
                %v9406 = vld [vmem:[%s9332 + $0x90] sm:%s9325]
                %9407 = vst [vmem:[%s9333 + $0x110] sm:%s9325] %v9406
                %v9408 = vld [vmem:[%s9332 + $0x94] sm:%s9325]
                %9409 = vst [vmem:[%s9333 + $0x114] sm:%s9325] %v9408
                %v9410 = vld [vmem:[%s9332 + $0x98] sm:%s9325]
                %9411 = vst [vmem:[%s9333 + $0x118] sm:%s9325] %v9410
                %v9412 = vld [vmem:[%s9332 + $0x9c] sm:%s9325]
                %9413 = vst [vmem:[%s9333 + $0x11c] sm:%s9325] %v9412
                %v9414 = vld [vmem:[%s9332 + $0xa0] sm:%s9325]
                %9415 = vst [vmem:[%s9333 + $0x120] sm:%s9325] %v9414
                %v9416 = vld [vmem:[%s9332 + $0xa4] sm:%s9325]
                %9417 = vst [vmem:[%s9333 + $0x124] sm:%s9325] %v9416
                %v9418 = vld [vmem:[%s9332 + $0xa8] sm:%s9325]
                %9419 = vst [vmem:[%s9333 + $0x128] sm:%s9325] %v9418
                %v9420 = vld [vmem:[%s9332 + $0xac] sm:%s9325]
                %9421 = vst [vmem:[%s9333 + $0x12c] sm:%s9325] %v9420
                %v9422 = vld [vmem:[%s9332 + $0xb0] sm:%s9325]
                %9423 = vst [vmem:[%s9333 + $0x130] sm:%s9325] %v9422
                %v9424 = vld [vmem:[%s9332 + $0xb4] sm:%s9325]
                %9425 = vst [vmem:[%s9333 + $0x134] sm:%s9325] %v9424
                %v9426 = vld [vmem:[%s9332 + $0xb8] sm:%s9325]
                %9427 = vst [vmem:[%s9333 + $0x138] sm:%s9325] %v9426
                %v9428 = vld [vmem:[%s9332 + $0xbc] sm:%s9325]
                %9429 = vst [vmem:[%s9333 + $0x13c] sm:%s9325] %v9428
                %v9430 = vld [vmem:[%s9332 + $0xc0] sm:%s9325]
                %9431 = vst [vmem:[%s9333 + $0x180] sm:%s9325] %v9430
                %v9432 = vld [vmem:[%s9332 + $0xc4] sm:%s9325]
                %9433 = vst [vmem:[%s9333 + $0x184] sm:%s9325] %v9432
                %v9434 = vld [vmem:[%s9332 + $0xc8] sm:%s9325]
                %9435 = vst [vmem:[%s9333 + $0x188] sm:%s9325] %v9434
                %v9436 = vld [vmem:[%s9332 + $0xcc] sm:%s9325]
                %9437 = vst [vmem:[%s9333 + $0x18c] sm:%s9325] %v9436
                %v9438 = vld [vmem:[%s9332 + $0xd0] sm:%s9325]
                %9439 = vst [vmem:[%s9333 + $0x190] sm:%s9325] %v9438
                %v9440 = vld [vmem:[%s9332 + $0xd4] sm:%s9325]
                %9441 = vst [vmem:[%s9333 + $0x194] sm:%s9325] %v9440
                %v9442 = vld [vmem:[%s9332 + $0xd8] sm:%s9325]
                %9443 = vst [vmem:[%s9333 + $0x198] sm:%s9325] %v9442
                %v9444 = vld [vmem:[%s9332 + $0xdc] sm:%s9325]
                %9445 = vst [vmem:[%s9333 + $0x19c] sm:%s9325] %v9444
                %v9446 = vld [vmem:[%s9332 + $0xe0] sm:%s9325]
                %9447 = vst [vmem:[%s9333 + $0x1a0] sm:%s9325] %v9446
                %v9448 = vld [vmem:[%s9332 + $0xe4] sm:%s9325]
                %9449 = vst [vmem:[%s9333 + $0x1a4] sm:%s9325] %v9448
                %v9450 = vld [vmem:[%s9332 + $0xe8] sm:%s9325]
                %9451 = vst [vmem:[%s9333 + $0x1a8] sm:%s9325] %v9450
                %v9452 = vld [vmem:[%s9332 + $0xec] sm:%s9325]
                %9453 = vst [vmem:[%s9333 + $0x1ac] sm:%s9325] %v9452
                %v9454 = vld [vmem:[%s9332 + $0xf0] sm:%s9325]
                %9455 = vst [vmem:[%s9333 + $0x1b0] sm:%s9325] %v9454
                %v9456 = vld [vmem:[%s9332 + $0xf4] sm:%s9325]
                %9457 = vst [vmem:[%s9333 + $0x1b4] sm:%s9325] %v9456
                %v9458 = vld [vmem:[%s9332 + $0xf8] sm:%s9325]
                %9459 = vst [vmem:[%s9333 + $0x1b8] sm:%s9325] %v9458
                %v9460 = vld [vmem:[%s9332 + $0xfc] sm:%s9325]
                %9461 = vst [vmem:[%s9333 + $0x1bc] sm:%s9325] %v9460
              $region110: #{tpu_custom_call.1} parent=104 // loop_footer
                %s9331 = sadd.s32 1, %s9327
              $region111: #{tpu_custom_call.1} parent=104 // loop_footer_branch
                %9326 = sbr.rel target = $region107
              $region112: #{tpu_custom_call.1} parent=104 // loop_exit
                _
            $region105: #{tpu_custom_call.1} parent=96 // pred_fallthru
              _
          $region97: #{tpu_custom_call.1} parent=92 // pred_fallthru
            _
          %9610 = vnop
        $region93: #{tpu_custom_call.1} parent=68 // pred_fallthru
          _
      $region69: #{tpu_custom_call.1} parent=5 // pred_fallthru
        _
      %p9611 = scmp.le.s32.totalorder 2, %s24
      // Predicated region
      $region131: #{tpu_custom_call.1} parent=5 // pred_check
        %p9612 = pneg %p9611
      $region132: #{tpu_custom_call.1} parent=5 // pred_check_branch
        %9614 = sbr.rel (%p9612) target = $region134
      $region133: #{tpu_custom_call.1} parent=5 // pred_region
        %s9615 = ssub.s32 %s24, 2
        // Predicated region
        $region135: #{tpu_custom_call.1} parent=133 // pred_check
          %p9616 = pneg %p154
        $region136: #{tpu_custom_call.1} parent=133 // pred_check_branch
          %9618 = sbr.rel (%p9616) target = $region138
        $region137: #{tpu_custom_call.1} parent=133 // pred_region
          %s9619 = sand.u32 %s139, 1
          %s9620 = sand.u32 %s139, 1
          %s9621 = smul.addr %s9620, 256
          %s9622 = scalar_lea.vmem [#allocation9], %s9621
        $region138: #{tpu_custom_call.1} parent=133 // pred_fallthru
          _
      $region134: #{tpu_custom_call.1} parent=5 // pred_fallthru
        _
    $region6: #{tpu_custom_call.1} parent=1 // loop_footer
      %s28 = sadd.s32 1, %s24
    $region7: #{tpu_custom_call.1} parent=1 // loop_footer_branch
      %23 = sbr.rel target = $region3
    $region8: #{tpu_custom_call.1} parent=1 // loop_exit
      _

</llo_original>
